<compile_context>
chip_gen: v6e
topology: v6e:2x2x1
jax: 0.10.0
libtpu: 0.0.40
codegen_flags: <defaults>
</compile_context>

<pallas_src>
import jax
import jax.numpy as jnp
from jax.experimental import pallas as pl
from jax.experimental.pallas import tpu as pltpu

# ----------------------------- small synthetic CLIP-ViT config --------------------
B = 2            # batch
C = 3            # image channels
IMG = 16         # image height/width
PATCH = 8        # patch size (stride == kernel)
GRID = IMG // PATCH
N_PATCH = GRID * GRID          # 4 patches
T = N_PATCH + 1                # +1 CLS token -> 5 tokens
H = 32                         # hidden size
N_HEADS = 4
HEAD_DIM = H // N_HEADS        # 8
MLP = 64                       # intermediate size
LAYERS = 2                     # encoder layers
PROJ = 16                      # visual projection dim
PATCH_DIM = C * PATCH * PATCH  # 192
LN_EPS = 1e-5
ATTN_SCALE = HEAD_DIM ** -0.5


# ----------------------------------- kernel ---------------------------------------
def _layernorm(x, w, b, eps=LN_EPS):
    mu = jnp.mean(x, axis=-1, keepdims=True)
    var = jnp.mean((x - mu) ** 2, axis=-1, keepdims=True)
    return (x - mu) * jax.lax.rsqrt(var + eps) * w + b


def clip_fused_kernel(
    patches_ref,                     # (B, T, PATCH_DIM) f32, row 0 per image is zeros (CLS slot)
    patch_w_ref,                     # (PATCH_DIM, H)    bf16
    pos_cls_ref,                     # (T, H)            f32  (class_embedding folded into row 0)
    pre_ln_w_ref, pre_ln_b_ref,      # (1, H)            f32
    ln1_w_ref, ln1_b_ref,            # (L, 1, H)         f32
    wqkv_ref, bqkv_ref,              # (L, H, 3H) bf16 / (L, 1, 3H) f32   (q pre-scaled)
    wo_ref, bo_ref,                  # (L, H, H)  bf16 / (L, 1, H)  f32
    ln2_w_ref, ln2_b_ref,            # (L, 1, H)         f32
    w1_ref, b1_ref,                  # (L, H, MLP) bf16 / (L, 1, MLP) f32
    w2_ref, b2_ref,                  # (L, MLP, H) bf16 / (L, 1, H)   f32
    post_ln_w_ref, post_ln_b_ref,    # (1, H)            f32
    proj_w_ref,                      # (H, PROJ)         bf16
    out_ref,                         # (B, 1, PROJ)      f32
):
    # ---- embeddings: patch conv as one matmul; CLS + positional added in one shot ----
    # (the zero CLS-slot row turns into 0 from the matmul, then pos_cls row 0 supplies
    #  class_embedding + position_embedding[0])
    emb = jnp.einsum('bpc,ch->bph', patches_ref[...].astype(jnp.bfloat16),
                     patch_w_ref[...], preferred_element_type=jnp.float32)
    x = emb + pos_cls_ref[...][None, :, :]                      # (B, T, H)

    # ---- pre layernorm ----
    x = _layernorm(x, pre_ln_w_ref[...], pre_ln_b_ref[...])

    # ---- transformer encoder: all layers unrolled inside the single kernel ----
    for l in range(LAYERS):
        h = _layernorm(x, ln1_w_ref[l], ln1_b_ref[l])
        qkv = jnp.einsum('bth,hd->btd', h.astype(jnp.bfloat16), wqkv_ref[l],
                         preferred_element_type=jnp.float32) + bqkv_ref[l]   # (B, T, 3H)
        q = qkv[:, :, 0:H]            # already scaled by HEAD_DIM**-0.5 (folded into wq/bq)
        k = qkv[:, :, H:2 * H]
        v = qkv[:, :, 2 * H:3 * H]

        # Move heads into the einsum batch dim: stack per-head lane slices along a new
        # leading axis (layout no-op) -> (N_HEADS*B, T, HEAD_DIM).
        def to_heads(t):
            parts = [t[:, :, hh * HEAD_DIM:(hh + 1) * HEAD_DIM] for hh in range(N_HEADS)]
            return jnp.stack(parts, axis=0).reshape(N_HEADS * B, T, HEAD_DIM)

        qs = to_heads(q).astype(jnp.bfloat16)
        ks = to_heads(k).astype(jnp.bfloat16)
        vs = to_heads(v).astype(jnp.bfloat16)

        # One batched score einsum + one softmax + one batched context einsum.
        s = jnp.einsum('bqd,bkd->bqk', qs, ks, preferred_element_type=jnp.float32)
        s = s - jnp.max(s, axis=-1, keepdims=True)
        p = jnp.exp(s)
        p = p * pl.reciprocal(jnp.sum(p, axis=-1, keepdims=True), approx=True)
        ctx = jnp.einsum('bqk,bkd->bqd', p.astype(jnp.bfloat16), vs,
                         preferred_element_type=jnp.float32)                 # (NH*B, T, D)

        # Re-concatenate heads on the lane axis and do the output projection as ONE matmul.
        ctx = ctx.reshape(N_HEADS, B, T, HEAD_DIM)
        ctx = jnp.concatenate([ctx[hh] for hh in range(N_HEADS)], axis=-1)   # (B, T, H)
        attn = jnp.einsum('bth,hd->btd', ctx.astype(jnp.bfloat16), wo_ref[l],
                          preferred_element_type=jnp.float32) + bo_ref[l]
        x = x + attn

        # ---- MLP with CLIP quick_gelu ----
        h2 = _layernorm(x, ln2_w_ref[l], ln2_b_ref[l])
        f = jnp.einsum('bth,hm->btm', h2.astype(jnp.bfloat16), w1_ref[l],
                       preferred_element_type=jnp.float32) + b1_ref[l]
        f = f * jax.nn.sigmoid(1.702 * f)                       # quick_gelu, fp32 on the VPU
        f = jnp.einsum('btm,mh->bth', f.astype(jnp.bfloat16), w2_ref[l],
                       preferred_element_type=jnp.float32) + b2_ref[l]
        x = x + f

    # ---- pooled CLS -> post LN -> visual projection -> L2 normalize ----
    pooled = x[:, 0:1, :]                                       # (B, 1, H), keep rank
    pooled = _layernorm(pooled, post_ln_w_ref[...], post_ln_b_ref[...])
    e = jnp.einsum('bth,hp->btp', pooled.astype(jnp.bfloat16), proj_w_ref[...],
                   preferred_element_type=jnp.float32)          # (B, 1, PROJ)
    # F.normalize(p=2, dim=1, eps=1e-12): x / max(||x||, eps) == x * rsqrt(max(||x||^2, eps^2))
    ss = jnp.sum(e * e, axis=-1, keepdims=True)
    out_ref[...] = e * jax.lax.rsqrt(jnp.maximum(ss, 1e-24))


# --------------------------------- wrapper -----------------------------------------
_VMEM = pltpu.MemorySpace.VMEM


def patchify_with_cls_slot(pixel_values):
    # NCHW -> (B, N_PATCH, C*PATCH*PATCH), row-major over the patch grid
    # (matches conv(x).flatten(2).transpose(1, 2) of the PyTorch patch embedding),
    # with a leading all-zero row per image so the CLS slot falls out of the same matmul.
    # TODO(synk): at real image sizes (224x224) fold this transpose into the patch-embed
    # input BlockSpec / DMA instead of a host-side reshape.
    x = pixel_values.reshape(B, C, GRID, PATCH, GRID, PATCH)
    x = x.transpose(0, 2, 4, 1, 3, 5).reshape(B, N_PATCH, PATCH_DIM)
    cls_slot = jnp.zeros((B, 1, PATCH_DIM), x.dtype)
    return jnp.concatenate([cls_slot, x], axis=1)               # (B, T, PATCH_DIM)


@jax.jit
def clip_image_encoder_forward(pixel_values, packed):
    patches = patchify_with_cls_slot(pixel_values)
    args = (patches, packed['patch_w'], packed['pos_cls'],
            packed['pre_ln_w'], packed['pre_ln_b'],
            packed['ln1_w'], packed['ln1_b'], packed['wqkv'], packed['bqkv'],
            packed['wo'], packed['bo'], packed['ln2_w'], packed['ln2_b'],
            packed['w1'], packed['b1'], packed['w2'], packed['b2'],
            packed['post_ln_w'], packed['post_ln_b'], packed['proj_w'])
    out = pl.pallas_call(
        clip_fused_kernel,
        out_shape=jax.ShapeDtypeStruct((B, 1, PROJ), jnp.float32),
        in_specs=[pl.BlockSpec(memory_space=_VMEM)] * len(args),
        out_specs=pl.BlockSpec(memory_space=_VMEM),
    )(*args)
    return {'image_embedding': out.reshape(B, PROJ)}


# ----------------------------- deterministic parameters ----------------------------
def init_params(key):
    """Parameters in the original (per-layer, unpacked) layout, mirroring the PyTorch module."""
    def nrm(k, shape, scale=0.02):
        return (scale * jax.random.normal(k, shape)).astype(jnp.float32)

    keys = iter(jax.random.split(key, 64))
    params = {
        'patch_w': nrm(next(keys), (PATCH_DIM, H)),   # Conv2d(C,H,PATCH,stride=PATCH,bias=False) as matmul
        'class_emb': nrm(next(keys), (1, H)),
        'pos_emb': nrm(next(keys), (T, H)),
        'pre_ln_w': jnp.ones((1, H), jnp.float32),
        'pre_ln_b': jnp.zeros((1, H), jnp.float32),
        'post_ln_w': jnp.ones((1, H), jnp.float32),
        'post_ln_b': jnp.zeros((1, H), jnp.float32),
        'proj_w': nrm(next(keys), (H, PROJ)),         # visual_projection (no bias)
        'layers': [],
    }
    for _ in range(LAYERS):
        params['layers'].append({
            'ln1_w': jnp.ones((1, H), jnp.float32), 'ln1_b': jnp.zeros((1, H), jnp.float32),
            'wq': nrm(next(keys), (H, H)), 'bq': jnp.zeros((1, H), jnp.float32),
            'wk': nrm(next(keys), (H, H)), 'bk': jnp.zeros((1, H), jnp.float32),
            'wv': nrm(next(keys), (H, H)), 'bv': jnp.zeros((1, H), jnp.float32),
            'wo': nrm(next(keys), (H, H)), 'bo': jnp.zeros((1, H), jnp.float32),
            'ln2_w': jnp.ones((1, H), jnp.float32), 'ln2_b': jnp.zeros((1, H), jnp.float32),
            'w1': nrm(next(keys), (H, MLP)), 'b1': jnp.zeros((1, MLP), jnp.float32),
            'w2': nrm(next(keys), (MLP, H)), 'b2': jnp.zeros((1, H), jnp.float32),
        })
    return params


def pack_params(p):
    """Host-side one-time repack into the fused-kernel layout (mathematically identical)."""
    bf16 = jnp.bfloat16
    layers = p['layers']

    def stack(key, dtype=jnp.float32):
        return jnp.stack([lp[key] for lp in layers], axis=0).astype(dtype)

    # QKV packed into one (H, 3H) matmul; attention q-scale folded into wq / bq.
    wqkv = jnp.stack([jnp.concatenate([lp['wq'] * ATTN_SCALE, lp['wk'], lp['wv']], axis=1)
                      for lp in layers], axis=0)
    bqkv = jnp.stack([jnp.concatenate([lp['bq'] * ATTN_SCALE, lp['bk'], lp['bv']], axis=1)
                      for lp in layers], axis=0)
    # class_embedding folded into row 0 of the positional embedding (CLS-slot patch row is 0).
    pos_cls = p['pos_emb'].at[0, :].add(p['class_emb'][0, :])

    return {
        'patch_w': p['patch_w'].astype(bf16),
        'pos_cls': pos_cls,
        'pre_ln_w': p['pre_ln_w'], 'pre_ln_b': p['pre_ln_b'],
        'ln1_w': stack('ln1_w'), 'ln1_b': stack('ln1_b'),
        'wqkv': wqkv.astype(bf16), 'bqkv': bqkv,
        'wo': stack('wo', bf16), 'bo': stack('bo'),
        'ln2_w': stack('ln2_w'), 'ln2_b': stack('ln2_b'),
        'w1': stack('w1', bf16), 'b1': stack('b1'),
        'w2': stack('w2', bf16), 'b2': stack('b2'),
        'post_ln_w': p['post_ln_w'], 'post_ln_b': p['post_ln_b'],
        'proj_w': p['proj_w'].astype(bf16),
    }


if __name__ == "__main__":
    key = jax.random.PRNGKey(0)
    pkey, xkey = jax.random.split(key)
    params = init_params(pkey)
    packed = pack_params(params)
    # pixel_values in NCHW, like the PyTorch CLIPFeatureExtractor output.
    pixel_values = jax.random.normal(xkey, (B, C, IMG, IMG), dtype=jnp.float32)

    out = clip_image_encoder_forward(pixel_values, packed)
    emb = jax.block_until_ready(out['image_embedding'])

    assert emb.shape == (B, PROJ)
    assert bool(jnp.all(jnp.isfinite(emb)))
    # L2 norm per row should be ~1 (tolerance covers the EUP rsqrt path)
    norms = jnp.linalg.norm(emb, axis=1)
    assert bool(jnp.all(jnp.abs(norms - 1.0) < 1e-3))
    # TODO(synk): CLIPFeatureExtractor image preprocessing (PIL resize/normalize) has no
    # kernel equivalent; the kernel consumes already-preprocessed pixel_values.
    print("KERNEL_OK")
</pallas_src>

<mosaic_0001>
module attributes {stable_mosaic.version = 11 : i64} {
  func.func @clip_fused_kernel(%arg0: memref<2x5x192xf32, #tpu.memory_space<vmem>>, %arg1: memref<192x32xbf16, #tpu.memory_space<vmem>>, %arg2: memref<5x32xf32, #tpu.memory_space<vmem>>, %arg3: memref<1x32xf32, #tpu.memory_space<vmem>>, %arg4: memref<1x32xf32, #tpu.memory_space<vmem>>, %arg5: memref<2x1x32xf32, #tpu.memory_space<vmem>>, %arg6: memref<2x1x32xf32, #tpu.memory_space<vmem>>, %arg7: memref<2x32x96xbf16, #tpu.memory_space<vmem>>, %arg8: memref<2x1x96xf32, #tpu.memory_space<vmem>>, %arg9: memref<2x32x32xbf16, #tpu.memory_space<vmem>>, %arg10: memref<2x1x32xf32, #tpu.memory_space<vmem>>, %arg11: memref<2x1x32xf32, #tpu.memory_space<vmem>>, %arg12: memref<2x1x32xf32, #tpu.memory_space<vmem>>, %arg13: memref<2x32x64xbf16, #tpu.memory_space<vmem>>, %arg14: memref<2x1x64xf32, #tpu.memory_space<vmem>>, %arg15: memref<2x64x32xbf16, #tpu.memory_space<vmem>>, %arg16: memref<2x1x32xf32, #tpu.memory_space<vmem>>, %arg17: memref<1x32xf32, #tpu.memory_space<vmem>>, %arg18: memref<1x32xf32, #tpu.memory_space<vmem>>, %arg19: memref<32x16xbf16, #tpu.memory_space<vmem>>, %arg20: memref<2x1x16xf32, #tpu.memory_space<vmem>>) attributes {dimension_semantics = [], scalar_prefetch = 0 : i64, scratch_operands = 0 : i64, tpu.core_type = #tpu.core_type<tc>} {
    %c0 = arith.constant 0 : index
    %c0_0 = arith.constant 0 : index
    %c0_1 = arith.constant 0 : index
    %0 = vector.load %arg0[%c0, %c0_0, %c0_1] : memref<2x5x192xf32, #tpu.memory_space<vmem>>, vector<2x5x192xf32>
    %1 = arith.truncf %0 : vector<2x5x192xf32> to vector<2x5x192xbf16>
    %c0_2 = arith.constant 0 : index
    %c0_3 = arith.constant 0 : index
    %2 = vector.load %arg1[%c0_2, %c0_3] : memref<192x32xbf16, #tpu.memory_space<vmem>>, vector<192x32xbf16>
    "tpu.trace_start"() <{level = 10 : i32, message = "bpc,ch->bph"}> : () -> ()
    %cst = arith.constant dense<0.000000e+00> : vector<2x5x32xf32>
    %3 = tpu.matmul %1, %2, %cst {dimension_numbers = #tpu.dot_dimension_numbers<[2], [0], [0, 1], [1], [0, 0, 0, 1, 1, 1], [], []>} : vector<2x5x192xbf16>, vector<192x32xbf16>, vector<2x5x32xf32> -> vector<2x5x32xf32>
    "tpu.trace_stop"() : () -> ()
    %c0_4 = arith.constant 0 : index
    %c0_5 = arith.constant 0 : index
    %4 = vector.load %arg2[%c0_4, %c0_5] : memref<5x32xf32, #tpu.memory_space<vmem>>, vector<5x32xf32>
    %5 = vector.shape_cast %4 : vector<5x32xf32> to vector<1x5x32xf32>
    %6 = vector.broadcast %5 : vector<1x5x32xf32> to vector<2x5x32xf32>
    %7 = arith.addf %3, %6 : vector<2x5x32xf32>
    %c0_6 = arith.constant 0 : index
    %c0_7 = arith.constant 0 : index
    %8 = vector.load %arg3[%c0_6, %c0_7] : memref<1x32xf32, #tpu.memory_space<vmem>>, vector<1x32xf32>
    %c0_8 = arith.constant 0 : index
    %c0_9 = arith.constant 0 : index
    %9 = vector.load %arg4[%c0_8, %c0_9] : memref<1x32xf32, #tpu.memory_space<vmem>>, vector<1x32xf32>
    %cst_10 = arith.constant dense<0.000000e+00> : vector<2x5xf32>
    %10 = vector.multi_reduction <add>, %7, %cst_10 [2] : vector<2x5x32xf32> to vector<2x5xf32>
    %11 = vector.shape_cast %10 : vector<2x5xf32> to vector<2x5x1xf32>
    %cst_11 = arith.constant 3.200000e+01 : f32
    %12 = vector.broadcast %cst_11 : f32 to vector<2x5x1xf32>
    %13 = arith.divf %11, %12 : vector<2x5x1xf32>
    %14 = vector.broadcast %13 : vector<2x5x1xf32> to vector<2x5x32xf32>
    %15 = arith.subf %7, %14 : vector<2x5x32xf32>
    %16 = arith.mulf %15, %15 : vector<2x5x32xf32>
    %cst_12 = arith.constant dense<0.000000e+00> : vector<2x5xf32>
    %17 = vector.multi_reduction <add>, %16, %cst_12 [2] : vector<2x5x32xf32> to vector<2x5xf32>
    %18 = vector.shape_cast %17 : vector<2x5xf32> to vector<2x5x1xf32>
    %cst_13 = arith.constant 3.200000e+01 : f32
    %19 = vector.broadcast %cst_13 : f32 to vector<2x5x1xf32>
    %20 = arith.divf %18, %19 : vector<2x5x1xf32>
    %21 = vector.broadcast %13 : vector<2x5x1xf32> to vector<2x5x32xf32>
    %22 = arith.subf %7, %21 : vector<2x5x32xf32>
    %cst_14 = arith.constant 9.99999974E-6 : f32
    %23 = vector.broadcast %cst_14 : f32 to vector<2x5x1xf32>
    %24 = arith.addf %20, %23 : vector<2x5x1xf32>
    %25 = math.rsqrt %24 : vector<2x5x1xf32>
    %26 = vector.broadcast %25 : vector<2x5x1xf32> to vector<2x5x32xf32>
    %27 = arith.mulf %22, %26 : vector<2x5x32xf32>
    %28 = vector.shape_cast %8 : vector<1x32xf32> to vector<1x1x32xf32>
    %29 = vector.broadcast %28 : vector<1x1x32xf32> to vector<2x5x32xf32>
    %30 = arith.mulf %27, %29 : vector<2x5x32xf32>
    %31 = vector.shape_cast %9 : vector<1x32xf32> to vector<1x1x32xf32>
    %32 = vector.broadcast %31 : vector<1x1x32xf32> to vector<2x5x32xf32>
    %33 = arith.addf %30, %32 : vector<2x5x32xf32>
    %c0_15 = arith.constant 0 : index
    %c0_16 = arith.constant 0 : index
    %c0_17 = arith.constant 0 : index
    %34 = vector.load %arg5[%c0_15, %c0_16, %c0_17] : memref<2x1x32xf32, #tpu.memory_space<vmem>>, vector<1x1x32xf32>
    %35 = vector.shape_cast %34 : vector<1x1x32xf32> to vector<1x32xf32>
    %c0_18 = arith.constant 0 : index
    %c0_19 = arith.constant 0 : index
    %c0_20 = arith.constant 0 : index
    %36 = vector.load %arg6[%c0_18, %c0_19, %c0_20] : memref<2x1x32xf32, #tpu.memory_space<vmem>>, vector<1x1x32xf32>
    %37 = vector.shape_cast %36 : vector<1x1x32xf32> to vector<1x32xf32>
    %cst_21 = arith.constant dense<0.000000e+00> : vector<2x5xf32>
    %38 = vector.multi_reduction <add>, %33, %cst_21 [2] : vector<2x5x32xf32> to vector<2x5xf32>
    %39 = vector.shape_cast %38 : vector<2x5xf32> to vector<2x5x1xf32>
    %cst_22 = arith.constant 3.200000e+01 : f32
    %40 = vector.broadcast %cst_22 : f32 to vector<2x5x1xf32>
    %41 = arith.divf %39, %40 : vector<2x5x1xf32>
    %42 = vector.broadcast %41 : vector<2x5x1xf32> to vector<2x5x32xf32>
    %43 = arith.subf %33, %42 : vector<2x5x32xf32>
    %44 = arith.mulf %43, %43 : vector<2x5x32xf32>
    %cst_23 = arith.constant dense<0.000000e+00> : vector<2x5xf32>
    %45 = vector.multi_reduction <add>, %44, %cst_23 [2] : vector<2x5x32xf32> to vector<2x5xf32>
    %46 = vector.shape_cast %45 : vector<2x5xf32> to vector<2x5x1xf32>
    %cst_24 = arith.constant 3.200000e+01 : f32
    %47 = vector.broadcast %cst_24 : f32 to vector<2x5x1xf32>
    %48 = arith.divf %46, %47 : vector<2x5x1xf32>
    %49 = vector.broadcast %41 : vector<2x5x1xf32> to vector<2x5x32xf32>
    %50 = arith.subf %33, %49 : vector<2x5x32xf32>
    %cst_25 = arith.constant 9.99999974E-6 : f32
    %51 = vector.broadcast %cst_25 : f32 to vector<2x5x1xf32>
    %52 = arith.addf %48, %51 : vector<2x5x1xf32>
    %53 = math.rsqrt %52 : vector<2x5x1xf32>
    %54 = vector.broadcast %53 : vector<2x5x1xf32> to vector<2x5x32xf32>
    %55 = arith.mulf %50, %54 : vector<2x5x32xf32>
    %56 = vector.shape_cast %35 : vector<1x32xf32> to vector<1x1x32xf32>
    %57 = vector.broadcast %56 : vector<1x1x32xf32> to vector<2x5x32xf32>
    %58 = arith.mulf %55, %57 : vector<2x5x32xf32>
    %59 = vector.shape_cast %37 : vector<1x32xf32> to vector<1x1x32xf32>
    %60 = vector.broadcast %59 : vector<1x1x32xf32> to vector<2x5x32xf32>
    %61 = arith.addf %58, %60 : vector<2x5x32xf32>
    %62 = arith.truncf %61 : vector<2x5x32xf32> to vector<2x5x32xbf16>
    %c0_26 = arith.constant 0 : index
    %c0_27 = arith.constant 0 : index
    %c0_28 = arith.constant 0 : index
    %63 = vector.load %arg7[%c0_26, %c0_27, %c0_28] : memref<2x32x96xbf16, #tpu.memory_space<vmem>>, vector<1x32x96xbf16>
    %64 = vector.shape_cast %63 : vector<1x32x96xbf16> to vector<32x96xbf16>
    "tpu.trace_start"() <{level = 10 : i32, message = "bth,hd->btd"}> : () -> ()
    %cst_29 = arith.constant dense<0.000000e+00> : vector<2x5x96xf32>
    %65 = tpu.matmul %62, %64, %cst_29 {dimension_numbers = #tpu.dot_dimension_numbers<[2], [0], [0, 1], [1], [0, 0, 0, 1, 1, 1], [], []>} : vector<2x5x32xbf16>, vector<32x96xbf16>, vector<2x5x96xf32> -> vector<2x5x96xf32>
    "tpu.trace_stop"() : () -> ()
    %c0_30 = arith.constant 0 : index
    %c0_31 = arith.constant 0 : index
    %c0_32 = arith.constant 0 : index
    %66 = vector.load %arg8[%c0_30, %c0_31, %c0_32] : memref<2x1x96xf32, #tpu.memory_space<vmem>>, vector<1x1x96xf32>
    %67 = vector.shape_cast %66 : vector<1x1x96xf32> to vector<1x96xf32>
    %68 = vector.shape_cast %67 : vector<1x96xf32> to vector<1x1x96xf32>
    %69 = vector.broadcast %68 : vector<1x1x96xf32> to vector<2x5x96xf32>
    %70 = arith.addf %65, %69 : vector<2x5x96xf32>
    %71 = vector.extract_strided_slice %70 {offsets = [0, 0, 0], sizes = [2, 5, 32], strides = [1, 1, 1]} : vector<2x5x96xf32> to vector<2x5x32xf32>
    %72 = vector.extract_strided_slice %70 {offsets = [0, 0, 32], sizes = [2, 5, 32], strides = [1, 1, 1]} : vector<2x5x96xf32> to vector<2x5x32xf32>
    %73 = vector.extract_strided_slice %70 {offsets = [0, 0, 64], sizes = [2, 5, 32], strides = [1, 1, 1]} : vector<2x5x96xf32> to vector<2x5x32xf32>
    %74 = vector.extract_strided_slice %71 {offsets = [0, 0, 0], sizes = [2, 5, 8], strides = [1, 1, 1]} : vector<2x5x32xf32> to vector<2x5x8xf32>
    %75 = vector.extract_strided_slice %71 {offsets = [0, 0, 8], sizes = [2, 5, 8], strides = [1, 1, 1]} : vector<2x5x32xf32> to vector<2x5x8xf32>
    %76 = vector.extract_strided_slice %71 {offsets = [0, 0, 16], sizes = [2, 5, 8], strides = [1, 1, 1]} : vector<2x5x32xf32> to vector<2x5x8xf32>
    %77 = vector.extract_strided_slice %71 {offsets = [0, 0, 24], sizes = [2, 5, 8], strides = [1, 1, 1]} : vector<2x5x32xf32> to vector<2x5x8xf32>
    %78 = vector.shape_cast %74 : vector<2x5x8xf32> to vector<1x2x5x8xf32>
    %79 = vector.shape_cast %75 : vector<2x5x8xf32> to vector<1x2x5x8xf32>
    %80 = vector.shape_cast %76 : vector<2x5x8xf32> to vector<1x2x5x8xf32>
    %81 = vector.shape_cast %77 : vector<2x5x8xf32> to vector<1x2x5x8xf32>
    %82 = tpu.concatenate %78, %79, %80, %81 in 0 : vector<1x2x5x8xf32>, vector<1x2x5x8xf32>, vector<1x2x5x8xf32>, vector<1x2x5x8xf32> -> vector<4x2x5x8xf32>
    %83 = vector.shape_cast %82 : vector<4x2x5x8xf32> to vector<8x5x8xf32>
    %84 = arith.truncf %83 : vector<8x5x8xf32> to vector<8x5x8xbf16>
    %85 = vector.extract_strided_slice %72 {offsets = [0, 0, 0], sizes = [2, 5, 8], strides = [1, 1, 1]} : vector<2x5x32xf32> to vector<2x5x8xf32>
    %86 = vector.extract_strided_slice %72 {offsets = [0, 0, 8], sizes = [2, 5, 8], strides = [1, 1, 1]} : vector<2x5x32xf32> to vector<2x5x8xf32>
    %87 = vector.extract_strided_slice %72 {offsets = [0, 0, 16], sizes = [2, 5, 8], strides = [1, 1, 1]} : vector<2x5x32xf32> to vector<2x5x8xf32>
    %88 = vector.extract_strided_slice %72 {offsets = [0, 0, 24], sizes = [2, 5, 8], strides = [1, 1, 1]} : vector<2x5x32xf32> to vector<2x5x8xf32>
    %89 = vector.shape_cast %85 : vector<2x5x8xf32> to vector<1x2x5x8xf32>
    %90 = vector.shape_cast %86 : vector<2x5x8xf32> to vector<1x2x5x8xf32>
    %91 = vector.shape_cast %87 : vector<2x5x8xf32> to vector<1x2x5x8xf32>
    %92 = vector.shape_cast %88 : vector<2x5x8xf32> to vector<1x2x5x8xf32>
    %93 = tpu.concatenate %89, %90, %91, %92 in 0 : vector<1x2x5x8xf32>, vector<1x2x5x8xf32>, vector<1x2x5x8xf32>, vector<1x2x5x8xf32> -> vector<4x2x5x8xf32>
    %94 = vector.shape_cast %93 : vector<4x2x5x8xf32> to vector<8x5x8xf32>
    %95 = arith.truncf %94 : vector<8x5x8xf32> to vector<8x5x8xbf16>
    %96 = vector.extract_strided_slice %73 {offsets = [0, 0, 0], sizes = [2, 5, 8], strides = [1, 1, 1]} : vector<2x5x32xf32> to vector<2x5x8xf32>
    %97 = vector.extract_strided_slice %73 {offsets = [0, 0, 8], sizes = [2, 5, 8], strides = [1, 1, 1]} : vector<2x5x32xf32> to vector<2x5x8xf32>
    %98 = vector.extract_strided_slice %73 {offsets = [0, 0, 16], sizes = [2, 5, 8], strides = [1, 1, 1]} : vector<2x5x32xf32> to vector<2x5x8xf32>
    %99 = vector.extract_strided_slice %73 {offsets = [0, 0, 24], sizes = [2, 5, 8], strides = [1, 1, 1]} : vector<2x5x32xf32> to vector<2x5x8xf32>
    %100 = vector.shape_cast %96 : vector<2x5x8xf32> to vector<1x2x5x8xf32>
    %101 = vector.shape_cast %97 : vector<2x5x8xf32> to vector<1x2x5x8xf32>
    %102 = vector.shape_cast %98 : vector<2x5x8xf32> to vector<1x2x5x8xf32>
    %103 = vector.shape_cast %99 : vector<2x5x8xf32> to vector<1x2x5x8xf32>
    %104 = tpu.concatenate %100, %101, %102, %103 in 0 : vector<1x2x5x8xf32>, vector<1x2x5x8xf32>, vector<1x2x5x8xf32>, vector<1x2x5x8xf32> -> vector<4x2x5x8xf32>
    %105 = vector.shape_cast %104 : vector<4x2x5x8xf32> to vector<8x5x8xf32>
    %106 = arith.truncf %105 : vector<8x5x8xf32> to vector<8x5x8xbf16>
    "tpu.trace_start"() <{level = 10 : i32, message = "bqd,bkd->bqk"}> : () -> ()
    %cst_33 = arith.constant dense<0.000000e+00> : vector<8x5x5xf32>
    %107 = tpu.matmul %84, %95, %cst_33 {dimension_numbers = #tpu.dot_dimension_numbers<[2], [2], [1], [1], [0, 0, 0, 1, 1, 1], [0], [0]>} : vector<8x5x8xbf16>, vector<8x5x8xbf16>, vector<8x5x5xf32> -> vector<8x5x5xf32>
    "tpu.trace_stop"() : () -> ()
    %cst_34 = arith.constant dense<0xFF800000> : vector<8x5xf32>
    %108 = vector.multi_reduction <maximumf>, %107, %cst_34 [2] : vector<8x5x5xf32> to vector<8x5xf32>
    %109 = vector.shape_cast %108 : vector<8x5xf32> to vector<8x5x1xf32>
    %110 = vector.broadcast %109 : vector<8x5x1xf32> to vector<8x5x5xf32>
    %111 = arith.subf %107, %110 : vector<8x5x5xf32>
    %112 = math.exp %111 : vector<8x5x5xf32>
    %cst_35 = arith.constant dense<0.000000e+00> : vector<8x5xf32>
    %113 = vector.multi_reduction <add>, %112, %cst_35 [2] : vector<8x5x5xf32> to vector<8x5xf32>
    %114 = vector.shape_cast %113 : vector<8x5xf32> to vector<8x5x1xf32>
    %115 = tpu.reciprocal %114 {approx = true} : vector<8x5x1xf32> -> vector<8x5x1xf32>
    %116 = vector.broadcast %115 : vector<8x5x1xf32> to vector<8x5x5xf32>
    %117 = arith.mulf %112, %116 : vector<8x5x5xf32>
    %118 = arith.truncf %117 : vector<8x5x5xf32> to vector<8x5x5xbf16>
    "tpu.trace_start"() <{level = 10 : i32, message = "bqk,bkd->bqd"}> : () -> ()
    %cst_36 = arith.constant dense<0.000000e+00> : vector<8x5x8xf32>
    %119 = tpu.matmul %118, %106, %cst_36 {dimension_numbers = #tpu.dot_dimension_numbers<[2], [1], [1], [2], [0, 0, 0, 1, 1, 2], [0], [0]>} : vector<8x5x5xbf16>, vector<8x5x8xbf16>, vector<8x5x8xf32> -> vector<8x5x8xf32>
    "tpu.trace_stop"() : () -> ()
    %120 = vector.shape_cast %119 : vector<8x5x8xf32> to vector<4x2x5x8xf32>
    %121 = vector.extract_strided_slice %120 {offsets = [0, 0, 0, 0], sizes = [1, 2, 5, 8], strides = [1, 1, 1, 1]} : vector<4x2x5x8xf32> to vector<1x2x5x8xf32>
    %122 = vector.shape_cast %121 : vector<1x2x5x8xf32> to vector<2x5x8xf32>
    %123 = vector.extract_strided_slice %120 {offsets = [1, 0, 0, 0], sizes = [1, 2, 5, 8], strides = [1, 1, 1, 1]} : vector<4x2x5x8xf32> to vector<1x2x5x8xf32>
    %124 = vector.shape_cast %123 : vector<1x2x5x8xf32> to vector<2x5x8xf32>
    %125 = vector.extract_strided_slice %120 {offsets = [2, 0, 0, 0], sizes = [1, 2, 5, 8], strides = [1, 1, 1, 1]} : vector<4x2x5x8xf32> to vector<1x2x5x8xf32>
    %126 = vector.shape_cast %125 : vector<1x2x5x8xf32> to vector<2x5x8xf32>
    %127 = vector.extract_strided_slice %120 {offsets = [3, 0, 0, 0], sizes = [1, 2, 5, 8], strides = [1, 1, 1, 1]} : vector<4x2x5x8xf32> to vector<1x2x5x8xf32>
    %128 = vector.shape_cast %127 : vector<1x2x5x8xf32> to vector<2x5x8xf32>
    %129 = tpu.concatenate %122, %124, %126, %128 in 2 : vector<2x5x8xf32>, vector<2x5x8xf32>, vector<2x5x8xf32>, vector<2x5x8xf32> -> vector<2x5x32xf32>
    %130 = arith.truncf %129 : vector<2x5x32xf32> to vector<2x5x32xbf16>
    %c0_37 = arith.constant 0 : index
    %c0_38 = arith.constant 0 : index
    %c0_39 = arith.constant 0 : index
    %131 = vector.load %arg9[%c0_37, %c0_38, %c0_39] : memref<2x32x32xbf16, #tpu.memory_space<vmem>>, vector<1x32x32xbf16>
    %132 = vector.shape_cast %131 : vector<1x32x32xbf16> to vector<32x32xbf16>
    "tpu.trace_start"() <{level = 10 : i32, message = "bth,hd->btd"}> : () -> ()
    %cst_40 = arith.constant dense<0.000000e+00> : vector<2x5x32xf32>
    %133 = tpu.matmul %130, %132, %cst_40 {dimension_numbers = #tpu.dot_dimension_numbers<[2], [0], [0, 1], [1], [0, 0, 0, 1, 1, 1], [], []>} : vector<2x5x32xbf16>, vector<32x32xbf16>, vector<2x5x32xf32> -> vector<2x5x32xf32>
    "tpu.trace_stop"() : () -> ()
    %c0_41 = arith.constant 0 : index
    %c0_42 = arith.constant 0 : index
    %c0_43 = arith.constant 0 : index
    %134 = vector.load %arg10[%c0_41, %c0_42, %c0_43] : memref<2x1x32xf32, #tpu.memory_space<vmem>>, vector<1x1x32xf32>
    %135 = vector.shape_cast %134 : vector<1x1x32xf32> to vector<1x32xf32>
    %136 = vector.shape_cast %135 : vector<1x32xf32> to vector<1x1x32xf32>
    %137 = vector.broadcast %136 : vector<1x1x32xf32> to vector<2x5x32xf32>
    %138 = arith.addf %133, %137 : vector<2x5x32xf32>
    %139 = arith.addf %33, %138 : vector<2x5x32xf32>
    %c0_44 = arith.constant 0 : index
    %c0_45 = arith.constant 0 : index
    %c0_46 = arith.constant 0 : index
    %140 = vector.load %arg11[%c0_44, %c0_45, %c0_46] : memref<2x1x32xf32, #tpu.memory_space<vmem>>, vector<1x1x32xf32>
    %141 = vector.shape_cast %140 : vector<1x1x32xf32> to vector<1x32xf32>
    %c0_47 = arith.constant 0 : index
    %c0_48 = arith.constant 0 : index
    %c0_49 = arith.constant 0 : index
    %142 = vector.load %arg12[%c0_47, %c0_48, %c0_49] : memref<2x1x32xf32, #tpu.memory_space<vmem>>, vector<1x1x32xf32>
    %143 = vector.shape_cast %142 : vector<1x1x32xf32> to vector<1x32xf32>
    %cst_50 = arith.constant dense<0.000000e+00> : vector<2x5xf32>
    %144 = vector.multi_reduction <add>, %139, %cst_50 [2] : vector<2x5x32xf32> to vector<2x5xf32>
    %145 = vector.shape_cast %144 : vector<2x5xf32> to vector<2x5x1xf32>
    %cst_51 = arith.constant 3.200000e+01 : f32
    %146 = vector.broadcast %cst_51 : f32 to vector<2x5x1xf32>
    %147 = arith.divf %145, %146 : vector<2x5x1xf32>
    %148 = vector.broadcast %147 : vector<2x5x1xf32> to vector<2x5x32xf32>
    %149 = arith.subf %139, %148 : vector<2x5x32xf32>
    %150 = arith.mulf %149, %149 : vector<2x5x32xf32>
    %cst_52 = arith.constant dense<0.000000e+00> : vector<2x5xf32>
    %151 = vector.multi_reduction <add>, %150, %cst_52 [2] : vector<2x5x32xf32> to vector<2x5xf32>
    %152 = vector.shape_cast %151 : vector<2x5xf32> to vector<2x5x1xf32>
    %cst_53 = arith.constant 3.200000e+01 : f32
    %153 = vector.broadcast %cst_53 : f32 to vector<2x5x1xf32>
    %154 = arith.divf %152, %153 : vector<2x5x1xf32>
    %155 = vector.broadcast %147 : vector<2x5x1xf32> to vector<2x5x32xf32>
    %156 = arith.subf %139, %155 : vector<2x5x32xf32>
    %cst_54 = arith.constant 9.99999974E-6 : f32
    %157 = vector.broadcast %cst_54 : f32 to vector<2x5x1xf32>
    %158 = arith.addf %154, %157 : vector<2x5x1xf32>
    %159 = math.rsqrt %158 : vector<2x5x1xf32>
    %160 = vector.broadcast %159 : vector<2x5x1xf32> to vector<2x5x32xf32>
    %161 = arith.mulf %156, %160 : vector<2x5x32xf32>
    %162 = vector.shape_cast %141 : vector<1x32xf32> to vector<1x1x32xf32>
    %163 = vector.broadcast %162 : vector<1x1x32xf32> to vector<2x5x32xf32>
    %164 = arith.mulf %161, %163 : vector<2x5x32xf32>
    %165 = vector.shape_cast %143 : vector<1x32xf32> to vector<1x1x32xf32>
    %166 = vector.broadcast %165 : vector<1x1x32xf32> to vector<2x5x32xf32>
    %167 = arith.addf %164, %166 : vector<2x5x32xf32>
    %168 = arith.truncf %167 : vector<2x5x32xf32> to vector<2x5x32xbf16>
    %c0_55 = arith.constant 0 : index
    %c0_56 = arith.constant 0 : index
    %c0_57 = arith.constant 0 : index
    %169 = vector.load %arg13[%c0_55, %c0_56, %c0_57] : memref<2x32x64xbf16, #tpu.memory_space<vmem>>, vector<1x32x64xbf16>
    %170 = vector.shape_cast %169 : vector<1x32x64xbf16> to vector<32x64xbf16>
    "tpu.trace_start"() <{level = 10 : i32, message = "bth,hm->btm"}> : () -> ()
    %cst_58 = arith.constant dense<0.000000e+00> : vector<2x5x64xf32>
    %171 = tpu.matmul %168, %170, %cst_58 {dimension_numbers = #tpu.dot_dimension_numbers<[2], [0], [0, 1], [1], [0, 0, 0, 1, 1, 1], [], []>} : vector<2x5x32xbf16>, vector<32x64xbf16>, vector<2x5x64xf32> -> vector<2x5x64xf32>
    "tpu.trace_stop"() : () -> ()
    %c0_59 = arith.constant 0 : index
    %c0_60 = arith.constant 0 : index
    %c0_61 = arith.constant 0 : index
    %172 = vector.load %arg14[%c0_59, %c0_60, %c0_61] : memref<2x1x64xf32, #tpu.memory_space<vmem>>, vector<1x1x64xf32>
    %173 = vector.shape_cast %172 : vector<1x1x64xf32> to vector<1x64xf32>
    %174 = vector.shape_cast %173 : vector<1x64xf32> to vector<1x1x64xf32>
    %175 = vector.broadcast %174 : vector<1x1x64xf32> to vector<2x5x64xf32>
    %176 = arith.addf %171, %175 : vector<2x5x64xf32>
    %cst_62 = arith.constant 1.702000e+00 : f32
    %177 = vector.broadcast %cst_62 : f32 to vector<2x5x64xf32>
    %178 = arith.mulf %177, %176 : vector<2x5x64xf32>
    %179 = arith.negf %178 : vector<2x5x64xf32>
    %180 = math.exp %179 : vector<2x5x64xf32>
    %cst_63 = arith.constant 1.000000e+00 : f32
    %181 = vector.broadcast %cst_63 : f32 to vector<2x5x64xf32>
    %182 = arith.addf %181, %180 : vector<2x5x64xf32>
    %183 = arith.divf %181, %182 : vector<2x5x64xf32>
    %184 = arith.mulf %176, %183 : vector<2x5x64xf32>
    %185 = arith.truncf %184 : vector<2x5x64xf32> to vector<2x5x64xbf16>
    %c0_64 = arith.constant 0 : index
    %c0_65 = arith.constant 0 : index
    %c0_66 = arith.constant 0 : index
    %186 = vector.load %arg15[%c0_64, %c0_65, %c0_66] : memref<2x64x32xbf16, #tpu.memory_space<vmem>>, vector<1x64x32xbf16>
    %187 = vector.shape_cast %186 : vector<1x64x32xbf16> to vector<64x32xbf16>
    "tpu.trace_start"() <{level = 10 : i32, message = "btm,mh->bth"}> : () -> ()
    %cst_67 = arith.constant dense<0.000000e+00> : vector<2x5x32xf32>
    %188 = tpu.matmul %185, %187, %cst_67 {dimension_numbers = #tpu.dot_dimension_numbers<[2], [0], [0, 1], [1], [0, 0, 0, 1, 1, 1], [], []>} : vector<2x5x64xbf16>, vector<64x32xbf16>, vector<2x5x32xf32> -> vector<2x5x32xf32>
    "tpu.trace_stop"() : () -> ()
    %c0_68 = arith.constant 0 : index
    %c0_69 = arith.constant 0 : index
    %c0_70 = arith.constant 0 : index
    %189 = vector.load %arg16[%c0_68, %c0_69, %c0_70] : memref<2x1x32xf32, #tpu.memory_space<vmem>>, vector<1x1x32xf32>
    %190 = vector.shape_cast %189 : vector<1x1x32xf32> to vector<1x32xf32>
    %191 = vector.shape_cast %190 : vector<1x32xf32> to vector<1x1x32xf32>
    %192 = vector.broadcast %191 : vector<1x1x32xf32> to vector<2x5x32xf32>
    %193 = arith.addf %188, %192 : vector<2x5x32xf32>
    %194 = arith.addf %139, %193 : vector<2x5x32xf32>
    %c1 = arith.constant 1 : index
    %c0_71 = arith.constant 0 : index
    %c0_72 = arith.constant 0 : index
    %195 = vector.load %arg5[%c1, %c0_71, %c0_72] : memref<2x1x32xf32, #tpu.memory_space<vmem>>, vector<1x1x32xf32>
    %196 = vector.shape_cast %195 : vector<1x1x32xf32> to vector<1x32xf32>
    %c1_73 = arith.constant 1 : index
    %c0_74 = arith.constant 0 : index
    %c0_75 = arith.constant 0 : index
    %197 = vector.load %arg6[%c1_73, %c0_74, %c0_75] : memref<2x1x32xf32, #tpu.memory_space<vmem>>, vector<1x1x32xf32>
    %198 = vector.shape_cast %197 : vector<1x1x32xf32> to vector<1x32xf32>
    %cst_76 = arith.constant dense<0.000000e+00> : vector<2x5xf32>
    %199 = vector.multi_reduction <add>, %194, %cst_76 [2] : vector<2x5x32xf32> to vector<2x5xf32>
    %200 = vector.shape_cast %199 : vector<2x5xf32> to vector<2x5x1xf32>
    %cst_77 = arith.constant 3.200000e+01 : f32
    %201 = vector.broadcast %cst_77 : f32 to vector<2x5x1xf32>
    %202 = arith.divf %200, %201 : vector<2x5x1xf32>
    %203 = vector.broadcast %202 : vector<2x5x1xf32> to vector<2x5x32xf32>
    %204 = arith.subf %194, %203 : vector<2x5x32xf32>
    %205 = arith.mulf %204, %204 : vector<2x5x32xf32>
    %cst_78 = arith.constant dense<0.000000e+00> : vector<2x5xf32>
    %206 = vector.multi_reduction <add>, %205, %cst_78 [2] : vector<2x5x32xf32> to vector<2x5xf32>
    %207 = vector.shape_cast %206 : vector<2x5xf32> to vector<2x5x1xf32>
    %cst_79 = arith.constant 3.200000e+01 : f32
    %208 = vector.broadcast %cst_79 : f32 to vector<2x5x1xf32>
    %209 = arith.divf %207, %208 : vector<2x5x1xf32>
    %210 = vector.broadcast %202 : vector<2x5x1xf32> to vector<2x5x32xf32>
    %211 = arith.subf %194, %210 : vector<2x5x32xf32>
    %cst_80 = arith.constant 9.99999974E-6 : f32
    %212 = vector.broadcast %cst_80 : f32 to vector<2x5x1xf32>
    %213 = arith.addf %209, %212 : vector<2x5x1xf32>
    %214 = math.rsqrt %213 : vector<2x5x1xf32>
    %215 = vector.broadcast %214 : vector<2x5x1xf32> to vector<2x5x32xf32>
    %216 = arith.mulf %211, %215 : vector<2x5x32xf32>
    %217 = vector.shape_cast %196 : vector<1x32xf32> to vector<1x1x32xf32>
    %218 = vector.broadcast %217 : vector<1x1x32xf32> to vector<2x5x32xf32>
    %219 = arith.mulf %216, %218 : vector<2x5x32xf32>
    %220 = vector.shape_cast %198 : vector<1x32xf32> to vector<1x1x32xf32>
    %221 = vector.broadcast %220 : vector<1x1x32xf32> to vector<2x5x32xf32>
    %222 = arith.addf %219, %221 : vector<2x5x32xf32>
    %223 = arith.truncf %222 : vector<2x5x32xf32> to vector<2x5x32xbf16>
    %c1_81 = arith.constant 1 : index
    %c0_82 = arith.constant 0 : index
    %c0_83 = arith.constant 0 : index
    %224 = vector.load %arg7[%c1_81, %c0_82, %c0_83] : memref<2x32x96xbf16, #tpu.memory_space<vmem>>, vector<1x32x96xbf16>
    %225 = vector.shape_cast %224 : vector<1x32x96xbf16> to vector<32x96xbf16>
    "tpu.trace_start"() <{level = 10 : i32, message = "bth,hd->btd"}> : () -> ()
    %cst_84 = arith.constant dense<0.000000e+00> : vector<2x5x96xf32>
    %226 = tpu.matmul %223, %225, %cst_84 {dimension_numbers = #tpu.dot_dimension_numbers<[2], [0], [0, 1], [1], [0, 0, 0, 1, 1, 1], [], []>} : vector<2x5x32xbf16>, vector<32x96xbf16>, vector<2x5x96xf32> -> vector<2x5x96xf32>
    "tpu.trace_stop"() : () -> ()
    %c1_85 = arith.constant 1 : index
    %c0_86 = arith.constant 0 : index
    %c0_87 = arith.constant 0 : index
    %227 = vector.load %arg8[%c1_85, %c0_86, %c0_87] : memref<2x1x96xf32, #tpu.memory_space<vmem>>, vector<1x1x96xf32>
    %228 = vector.shape_cast %227 : vector<1x1x96xf32> to vector<1x96xf32>
    %229 = vector.shape_cast %228 : vector<1x96xf32> to vector<1x1x96xf32>
    %230 = vector.broadcast %229 : vector<1x1x96xf32> to vector<2x5x96xf32>
    %231 = arith.addf %226, %230 : vector<2x5x96xf32>
    %232 = vector.extract_strided_slice %231 {offsets = [0, 0, 0], sizes = [2, 5, 32], strides = [1, 1, 1]} : vector<2x5x96xf32> to vector<2x5x32xf32>
    %233 = vector.extract_strided_slice %231 {offsets = [0, 0, 32], sizes = [2, 5, 32], strides = [1, 1, 1]} : vector<2x5x96xf32> to vector<2x5x32xf32>
    %234 = vector.extract_strided_slice %231 {offsets = [0, 0, 64], sizes = [2, 5, 32], strides = [1, 1, 1]} : vector<2x5x96xf32> to vector<2x5x32xf32>
    %235 = vector.extract_strided_slice %232 {offsets = [0, 0, 0], sizes = [2, 5, 8], strides = [1, 1, 1]} : vector<2x5x32xf32> to vector<2x5x8xf32>
    %236 = vector.extract_strided_slice %232 {offsets = [0, 0, 8], sizes = [2, 5, 8], strides = [1, 1, 1]} : vector<2x5x32xf32> to vector<2x5x8xf32>
    %237 = vector.extract_strided_slice %232 {offsets = [0, 0, 16], sizes = [2, 5, 8], strides = [1, 1, 1]} : vector<2x5x32xf32> to vector<2x5x8xf32>
    %238 = vector.extract_strided_slice %232 {offsets = [0, 0, 24], sizes = [2, 5, 8], strides = [1, 1, 1]} : vector<2x5x32xf32> to vector<2x5x8xf32>
    %239 = vector.shape_cast %235 : vector<2x5x8xf32> to vector<1x2x5x8xf32>
    %240 = vector.shape_cast %236 : vector<2x5x8xf32> to vector<1x2x5x8xf32>
    %241 = vector.shape_cast %237 : vector<2x5x8xf32> to vector<1x2x5x8xf32>
    %242 = vector.shape_cast %238 : vector<2x5x8xf32> to vector<1x2x5x8xf32>
    %243 = tpu.concatenate %239, %240, %241, %242 in 0 : vector<1x2x5x8xf32>, vector<1x2x5x8xf32>, vector<1x2x5x8xf32>, vector<1x2x5x8xf32> -> vector<4x2x5x8xf32>
    %244 = vector.shape_cast %243 : vector<4x2x5x8xf32> to vector<8x5x8xf32>
    %245 = arith.truncf %244 : vector<8x5x8xf32> to vector<8x5x8xbf16>
    %246 = vector.extract_strided_slice %233 {offsets = [0, 0, 0], sizes = [2, 5, 8], strides = [1, 1, 1]} : vector<2x5x32xf32> to vector<2x5x8xf32>
    %247 = vector.extract_strided_slice %233 {offsets = [0, 0, 8], sizes = [2, 5, 8], strides = [1, 1, 1]} : vector<2x5x32xf32> to vector<2x5x8xf32>
    %248 = vector.extract_strided_slice %233 {offsets = [0, 0, 16], sizes = [2, 5, 8], strides = [1, 1, 1]} : vector<2x5x32xf32> to vector<2x5x8xf32>
    %249 = vector.extract_strided_slice %233 {offsets = [0, 0, 24], sizes = [2, 5, 8], strides = [1, 1, 1]} : vector<2x5x32xf32> to vector<2x5x8xf32>
    %250 = vector.shape_cast %246 : vector<2x5x8xf32> to vector<1x2x5x8xf32>
    %251 = vector.shape_cast %247 : vector<2x5x8xf32> to vector<1x2x5x8xf32>
    %252 = vector.shape_cast %248 : vector<2x5x8xf32> to vector<1x2x5x8xf32>
    %253 = vector.shape_cast %249 : vector<2x5x8xf32> to vector<1x2x5x8xf32>
    %254 = tpu.concatenate %250, %251, %252, %253 in 0 : vector<1x2x5x8xf32>, vector<1x2x5x8xf32>, vector<1x2x5x8xf32>, vector<1x2x5x8xf32> -> vector<4x2x5x8xf32>
    %255 = vector.shape_cast %254 : vector<4x2x5x8xf32> to vector<8x5x8xf32>
    %256 = arith.truncf %255 : vector<8x5x8xf32> to vector<8x5x8xbf16>
    %257 = vector.extract_strided_slice %234 {offsets = [0, 0, 0], sizes = [2, 5, 8], strides = [1, 1, 1]} : vector<2x5x32xf32> to vector<2x5x8xf32>
    %258 = vector.extract_strided_slice %234 {offsets = [0, 0, 8], sizes = [2, 5, 8], strides = [1, 1, 1]} : vector<2x5x32xf32> to vector<2x5x8xf32>
    %259 = vector.extract_strided_slice %234 {offsets = [0, 0, 16], sizes = [2, 5, 8], strides = [1, 1, 1]} : vector<2x5x32xf32> to vector<2x5x8xf32>
    %260 = vector.extract_strided_slice %234 {offsets = [0, 0, 24], sizes = [2, 5, 8], strides = [1, 1, 1]} : vector<2x5x32xf32> to vector<2x5x8xf32>
    %261 = vector.shape_cast %257 : vector<2x5x8xf32> to vector<1x2x5x8xf32>
    %262 = vector.shape_cast %258 : vector<2x5x8xf32> to vector<1x2x5x8xf32>
    %263 = vector.shape_cast %259 : vector<2x5x8xf32> to vector<1x2x5x8xf32>
    %264 = vector.shape_cast %260 : vector<2x5x8xf32> to vector<1x2x5x8xf32>
    %265 = tpu.concatenate %261, %262, %263, %264 in 0 : vector<1x2x5x8xf32>, vector<1x2x5x8xf32>, vector<1x2x5x8xf32>, vector<1x2x5x8xf32> -> vector<4x2x5x8xf32>
    %266 = vector.shape_cast %265 : vector<4x2x5x8xf32> to vector<8x5x8xf32>
    %267 = arith.truncf %266 : vector<8x5x8xf32> to vector<8x5x8xbf16>
    "tpu.trace_start"() <{level = 10 : i32, message = "bqd,bkd->bqk"}> : () -> ()
    %cst_88 = arith.constant dense<0.000000e+00> : vector<8x5x5xf32>
    %268 = tpu.matmul %245, %256, %cst_88 {dimension_numbers = #tpu.dot_dimension_numbers<[2], [2], [1], [1], [0, 0, 0, 1, 1, 1], [0], [0]>} : vector<8x5x8xbf16>, vector<8x5x8xbf16>, vector<8x5x5xf32> -> vector<8x5x5xf32>
    "tpu.trace_stop"() : () -> ()
    %cst_89 = arith.constant dense<0xFF800000> : vector<8x5xf32>
    %269 = vector.multi_reduction <maximumf>, %268, %cst_89 [2] : vector<8x5x5xf32> to vector<8x5xf32>
    %270 = vector.shape_cast %269 : vector<8x5xf32> to vector<8x5x1xf32>
    %271 = vector.broadcast %270 : vector<8x5x1xf32> to vector<8x5x5xf32>
    %272 = arith.subf %268, %271 : vector<8x5x5xf32>
    %273 = math.exp %272 : vector<8x5x5xf32>
    %cst_90 = arith.constant dense<0.000000e+00> : vector<8x5xf32>
    %274 = vector.multi_reduction <add>, %273, %cst_90 [2] : vector<8x5x5xf32> to vector<8x5xf32>
    %275 = vector.shape_cast %274 : vector<8x5xf32> to vector<8x5x1xf32>
    %276 = tpu.reciprocal %275 {approx = true} : vector<8x5x1xf32> -> vector<8x5x1xf32>
    %277 = vector.broadcast %276 : vector<8x5x1xf32> to vector<8x5x5xf32>
    %278 = arith.mulf %273, %277 : vector<8x5x5xf32>
    %279 = arith.truncf %278 : vector<8x5x5xf32> to vector<8x5x5xbf16>
    "tpu.trace_start"() <{level = 10 : i32, message = "bqk,bkd->bqd"}> : () -> ()
    %cst_91 = arith.constant dense<0.000000e+00> : vector<8x5x8xf32>
    %280 = tpu.matmul %279, %267, %cst_91 {dimension_numbers = #tpu.dot_dimension_numbers<[2], [1], [1], [2], [0, 0, 0, 1, 1, 2], [0], [0]>} : vector<8x5x5xbf16>, vector<8x5x8xbf16>, vector<8x5x8xf32> -> vector<8x5x8xf32>
    "tpu.trace_stop"() : () -> ()
    %281 = vector.shape_cast %280 : vector<8x5x8xf32> to vector<4x2x5x8xf32>
    %282 = vector.extract_strided_slice %281 {offsets = [0, 0, 0, 0], sizes = [1, 2, 5, 8], strides = [1, 1, 1, 1]} : vector<4x2x5x8xf32> to vector<1x2x5x8xf32>
    %283 = vector.shape_cast %282 : vector<1x2x5x8xf32> to vector<2x5x8xf32>
    %284 = vector.extract_strided_slice %281 {offsets = [1, 0, 0, 0], sizes = [1, 2, 5, 8], strides = [1, 1, 1, 1]} : vector<4x2x5x8xf32> to vector<1x2x5x8xf32>
    %285 = vector.shape_cast %284 : vector<1x2x5x8xf32> to vector<2x5x8xf32>
    %286 = vector.extract_strided_slice %281 {offsets = [2, 0, 0, 0], sizes = [1, 2, 5, 8], strides = [1, 1, 1, 1]} : vector<4x2x5x8xf32> to vector<1x2x5x8xf32>
    %287 = vector.shape_cast %286 : vector<1x2x5x8xf32> to vector<2x5x8xf32>
    %288 = vector.extract_strided_slice %281 {offsets = [3, 0, 0, 0], sizes = [1, 2, 5, 8], strides = [1, 1, 1, 1]} : vector<4x2x5x8xf32> to vector<1x2x5x8xf32>
    %289 = vector.shape_cast %288 : vector<1x2x5x8xf32> to vector<2x5x8xf32>
    %290 = tpu.concatenate %283, %285, %287, %289 in 2 : vector<2x5x8xf32>, vector<2x5x8xf32>, vector<2x5x8xf32>, vector<2x5x8xf32> -> vector<2x5x32xf32>
    %291 = arith.truncf %290 : vector<2x5x32xf32> to vector<2x5x32xbf16>
    %c1_92 = arith.constant 1 : index
    %c0_93 = arith.constant 0 : index
    %c0_94 = arith.constant 0 : index
    %292 = vector.load %arg9[%c1_92, %c0_93, %c0_94] : memref<2x32x32xbf16, #tpu.memory_space<vmem>>, vector<1x32x32xbf16>
    %293 = vector.shape_cast %292 : vector<1x32x32xbf16> to vector<32x32xbf16>
    "tpu.trace_start"() <{level = 10 : i32, message = "bth,hd->btd"}> : () -> ()
    %cst_95 = arith.constant dense<0.000000e+00> : vector<2x5x32xf32>
    %294 = tpu.matmul %291, %293, %cst_95 {dimension_numbers = #tpu.dot_dimension_numbers<[2], [0], [0, 1], [1], [0, 0, 0, 1, 1, 1], [], []>} : vector<2x5x32xbf16>, vector<32x32xbf16>, vector<2x5x32xf32> -> vector<2x5x32xf32>
    "tpu.trace_stop"() : () -> ()
    %c1_96 = arith.constant 1 : index
    %c0_97 = arith.constant 0 : index
    %c0_98 = arith.constant 0 : index
    %295 = vector.load %arg10[%c1_96, %c0_97, %c0_98] : memref<2x1x32xf32, #tpu.memory_space<vmem>>, vector<1x1x32xf32>
    %296 = vector.shape_cast %295 : vector<1x1x32xf32> to vector<1x32xf32>
    %297 = vector.shape_cast %296 : vector<1x32xf32> to vector<1x1x32xf32>
    %298 = vector.broadcast %297 : vector<1x1x32xf32> to vector<2x5x32xf32>
    %299 = arith.addf %294, %298 : vector<2x5x32xf32>
    %300 = arith.addf %194, %299 : vector<2x5x32xf32>
    %c1_99 = arith.constant 1 : index
    %c0_100 = arith.constant 0 : index
    %c0_101 = arith.constant 0 : index
    %301 = vector.load %arg11[%c1_99, %c0_100, %c0_101] : memref<2x1x32xf32, #tpu.memory_space<vmem>>, vector<1x1x32xf32>
    %302 = vector.shape_cast %301 : vector<1x1x32xf32> to vector<1x32xf32>
    %c1_102 = arith.constant 1 : index
    %c0_103 = arith.constant 0 : index
    %c0_104 = arith.constant 0 : index
    %303 = vector.load %arg12[%c1_102, %c0_103, %c0_104] : memref<2x1x32xf32, #tpu.memory_space<vmem>>, vector<1x1x32xf32>
    %304 = vector.shape_cast %303 : vector<1x1x32xf32> to vector<1x32xf32>
    %cst_105 = arith.constant dense<0.000000e+00> : vector<2x5xf32>
    %305 = vector.multi_reduction <add>, %300, %cst_105 [2] : vector<2x5x32xf32> to vector<2x5xf32>
    %306 = vector.shape_cast %305 : vector<2x5xf32> to vector<2x5x1xf32>
    %cst_106 = arith.constant 3.200000e+01 : f32
    %307 = vector.broadcast %cst_106 : f32 to vector<2x5x1xf32>
    %308 = arith.divf %306, %307 : vector<2x5x1xf32>
    %309 = vector.broadcast %308 : vector<2x5x1xf32> to vector<2x5x32xf32>
    %310 = arith.subf %300, %309 : vector<2x5x32xf32>
    %311 = arith.mulf %310, %310 : vector<2x5x32xf32>
    %cst_107 = arith.constant dense<0.000000e+00> : vector<2x5xf32>
    %312 = vector.multi_reduction <add>, %311, %cst_107 [2] : vector<2x5x32xf32> to vector<2x5xf32>
    %313 = vector.shape_cast %312 : vector<2x5xf32> to vector<2x5x1xf32>
    %cst_108 = arith.constant 3.200000e+01 : f32
    %314 = vector.broadcast %cst_108 : f32 to vector<2x5x1xf32>
    %315 = arith.divf %313, %314 : vector<2x5x1xf32>
    %316 = vector.broadcast %308 : vector<2x5x1xf32> to vector<2x5x32xf32>
    %317 = arith.subf %300, %316 : vector<2x5x32xf32>
    %cst_109 = arith.constant 9.99999974E-6 : f32
    %318 = vector.broadcast %cst_109 : f32 to vector<2x5x1xf32>
    %319 = arith.addf %315, %318 : vector<2x5x1xf32>
    %320 = math.rsqrt %319 : vector<2x5x1xf32>
    %321 = vector.broadcast %320 : vector<2x5x1xf32> to vector<2x5x32xf32>
    %322 = arith.mulf %317, %321 : vector<2x5x32xf32>
    %323 = vector.shape_cast %302 : vector<1x32xf32> to vector<1x1x32xf32>
    %324 = vector.broadcast %323 : vector<1x1x32xf32> to vector<2x5x32xf32>
    %325 = arith.mulf %322, %324 : vector<2x5x32xf32>
    %326 = vector.shape_cast %304 : vector<1x32xf32> to vector<1x1x32xf32>
    %327 = vector.broadcast %326 : vector<1x1x32xf32> to vector<2x5x32xf32>
    %328 = arith.addf %325, %327 : vector<2x5x32xf32>
    %329 = arith.truncf %328 : vector<2x5x32xf32> to vector<2x5x32xbf16>
    %c1_110 = arith.constant 1 : index
    %c0_111 = arith.constant 0 : index
    %c0_112 = arith.constant 0 : index
    %330 = vector.load %arg13[%c1_110, %c0_111, %c0_112] : memref<2x32x64xbf16, #tpu.memory_space<vmem>>, vector<1x32x64xbf16>
    %331 = vector.shape_cast %330 : vector<1x32x64xbf16> to vector<32x64xbf16>
    "tpu.trace_start"() <{level = 10 : i32, message = "bth,hm->btm"}> : () -> ()
    %cst_113 = arith.constant dense<0.000000e+00> : vector<2x5x64xf32>
    %332 = tpu.matmul %329, %331, %cst_113 {dimension_numbers = #tpu.dot_dimension_numbers<[2], [0], [0, 1], [1], [0, 0, 0, 1, 1, 1], [], []>} : vector<2x5x32xbf16>, vector<32x64xbf16>, vector<2x5x64xf32> -> vector<2x5x64xf32>
    "tpu.trace_stop"() : () -> ()
    %c1_114 = arith.constant 1 : index
    %c0_115 = arith.constant 0 : index
    %c0_116 = arith.constant 0 : index
    %333 = vector.load %arg14[%c1_114, %c0_115, %c0_116] : memref<2x1x64xf32, #tpu.memory_space<vmem>>, vector<1x1x64xf32>
    %334 = vector.shape_cast %333 : vector<1x1x64xf32> to vector<1x64xf32>
    %335 = vector.shape_cast %334 : vector<1x64xf32> to vector<1x1x64xf32>
    %336 = vector.broadcast %335 : vector<1x1x64xf32> to vector<2x5x64xf32>
    %337 = arith.addf %332, %336 : vector<2x5x64xf32>
    %cst_117 = arith.constant 1.702000e+00 : f32
    %338 = vector.broadcast %cst_117 : f32 to vector<2x5x64xf32>
    %339 = arith.mulf %338, %337 : vector<2x5x64xf32>
    %340 = arith.negf %339 : vector<2x5x64xf32>
    %341 = math.exp %340 : vector<2x5x64xf32>
    %cst_118 = arith.constant 1.000000e+00 : f32
    %342 = vector.broadcast %cst_118 : f32 to vector<2x5x64xf32>
    %343 = arith.addf %342, %341 : vector<2x5x64xf32>
    %344 = arith.divf %342, %343 : vector<2x5x64xf32>
    %345 = arith.mulf %337, %344 : vector<2x5x64xf32>
    %346 = arith.truncf %345 : vector<2x5x64xf32> to vector<2x5x64xbf16>
    %c1_119 = arith.constant 1 : index
    %c0_120 = arith.constant 0 : index
    %c0_121 = arith.constant 0 : index
    %347 = vector.load %arg15[%c1_119, %c0_120, %c0_121] : memref<2x64x32xbf16, #tpu.memory_space<vmem>>, vector<1x64x32xbf16>
    %348 = vector.shape_cast %347 : vector<1x64x32xbf16> to vector<64x32xbf16>
    "tpu.trace_start"() <{level = 10 : i32, message = "btm,mh->bth"}> : () -> ()
    %cst_122 = arith.constant dense<0.000000e+00> : vector<2x5x32xf32>
    %349 = tpu.matmul %346, %348, %cst_122 {dimension_numbers = #tpu.dot_dimension_numbers<[2], [0], [0, 1], [1], [0, 0, 0, 1, 1, 1], [], []>} : vector<2x5x64xbf16>, vector<64x32xbf16>, vector<2x5x32xf32> -> vector<2x5x32xf32>
    "tpu.trace_stop"() : () -> ()
    %c1_123 = arith.constant 1 : index
    %c0_124 = arith.constant 0 : index
    %c0_125 = arith.constant 0 : index
    %350 = vector.load %arg16[%c1_123, %c0_124, %c0_125] : memref<2x1x32xf32, #tpu.memory_space<vmem>>, vector<1x1x32xf32>
    %351 = vector.shape_cast %350 : vector<1x1x32xf32> to vector<1x32xf32>
    %352 = vector.shape_cast %351 : vector<1x32xf32> to vector<1x1x32xf32>
    %353 = vector.broadcast %352 : vector<1x1x32xf32> to vector<2x5x32xf32>
    %354 = arith.addf %349, %353 : vector<2x5x32xf32>
    %355 = arith.addf %300, %354 : vector<2x5x32xf32>
    %356 = vector.extract_strided_slice %355 {offsets = [0, 0, 0], sizes = [2, 1, 32], strides = [1, 1, 1]} : vector<2x5x32xf32> to vector<2x1x32xf32>
    %c0_126 = arith.constant 0 : index
    %c0_127 = arith.constant 0 : index
    %357 = vector.load %arg17[%c0_126, %c0_127] : memref<1x32xf32, #tpu.memory_space<vmem>>, vector<1x32xf32>
    %c0_128 = arith.constant 0 : index
    %c0_129 = arith.constant 0 : index
    %358 = vector.load %arg18[%c0_128, %c0_129] : memref<1x32xf32, #tpu.memory_space<vmem>>, vector<1x32xf32>
    %cst_130 = arith.constant dense<0.000000e+00> : vector<2x1xf32>
    %359 = vector.multi_reduction <add>, %356, %cst_130 [2] : vector<2x1x32xf32> to vector<2x1xf32>
    %360 = vector.shape_cast %359 : vector<2x1xf32> to vector<2x1x1xf32>
    %cst_131 = arith.constant 3.200000e+01 : f32
    %361 = vector.broadcast %cst_131 : f32 to vector<2x1x1xf32>
    %362 = arith.divf %360, %361 : vector<2x1x1xf32>
    %363 = vector.broadcast %362 : vector<2x1x1xf32> to vector<2x1x32xf32>
    %364 = arith.subf %356, %363 : vector<2x1x32xf32>
    %365 = arith.mulf %364, %364 : vector<2x1x32xf32>
    %cst_132 = arith.constant dense<0.000000e+00> : vector<2x1xf32>
    %366 = vector.multi_reduction <add>, %365, %cst_132 [2] : vector<2x1x32xf32> to vector<2x1xf32>
    %367 = vector.shape_cast %366 : vector<2x1xf32> to vector<2x1x1xf32>
    %cst_133 = arith.constant 3.200000e+01 : f32
    %368 = vector.broadcast %cst_133 : f32 to vector<2x1x1xf32>
    %369 = arith.divf %367, %368 : vector<2x1x1xf32>
    %370 = vector.broadcast %362 : vector<2x1x1xf32> to vector<2x1x32xf32>
    %371 = arith.subf %356, %370 : vector<2x1x32xf32>
    %cst_134 = arith.constant 9.99999974E-6 : f32
    %372 = vector.broadcast %cst_134 : f32 to vector<2x1x1xf32>
    %373 = arith.addf %369, %372 : vector<2x1x1xf32>
    %374 = math.rsqrt %373 : vector<2x1x1xf32>
    %375 = vector.broadcast %374 : vector<2x1x1xf32> to vector<2x1x32xf32>
    %376 = arith.mulf %371, %375 : vector<2x1x32xf32>
    %377 = vector.shape_cast %357 : vector<1x32xf32> to vector<1x1x32xf32>
    %378 = vector.broadcast %377 : vector<1x1x32xf32> to vector<2x1x32xf32>
    %379 = arith.mulf %376, %378 : vector<2x1x32xf32>
    %380 = vector.shape_cast %358 : vector<1x32xf32> to vector<1x1x32xf32>
    %381 = vector.broadcast %380 : vector<1x1x32xf32> to vector<2x1x32xf32>
    %382 = arith.addf %379, %381 : vector<2x1x32xf32>
    %383 = arith.truncf %382 : vector<2x1x32xf32> to vector<2x1x32xbf16>
    %c0_135 = arith.constant 0 : index
    %c0_136 = arith.constant 0 : index
    %384 = vector.load %arg19[%c0_135, %c0_136] : memref<32x16xbf16, #tpu.memory_space<vmem>>, vector<32x16xbf16>
    "tpu.trace_start"() <{level = 10 : i32, message = "bth,hp->btp"}> : () -> ()
    %cst_137 = arith.constant dense<0.000000e+00> : vector<2x1x16xf32>
    %385 = tpu.matmul %383, %384, %cst_137 {dimension_numbers = #tpu.dot_dimension_numbers<[2], [0], [0, 1], [1], [0, 0, 0, 1, 1, 1], [], []>} : vector<2x1x32xbf16>, vector<32x16xbf16>, vector<2x1x16xf32> -> vector<2x1x16xf32>
    "tpu.trace_stop"() : () -> ()
    %386 = arith.mulf %385, %385 : vector<2x1x16xf32>
    %cst_138 = arith.constant dense<0.000000e+00> : vector<2x1xf32>
    %387 = vector.multi_reduction <add>, %386, %cst_138 [2] : vector<2x1x16xf32> to vector<2x1xf32>
    %388 = vector.shape_cast %387 : vector<2x1xf32> to vector<2x1x1xf32>
    %cst_139 = arith.constant 1.000000e-24 : f32
    %389 = vector.broadcast %cst_139 : f32 to vector<2x1x1xf32>
    %390 = arith.maximumf %388, %389 : vector<2x1x1xf32>
    %391 = math.rsqrt %390 : vector<2x1x1xf32>
    %392 = vector.broadcast %391 : vector<2x1x1xf32> to vector<2x1x16xf32>
    %393 = arith.mulf %385, %392 : vector<2x1x16xf32>
    %c0_140 = arith.constant 0 : index
    %c0_141 = arith.constant 0 : index
    %c0_142 = arith.constant 0 : index
    %394 = vector.load %arg20[%c0_140, %c0_141, %c0_142] : memref<2x1x16xf32, #tpu.memory_space<vmem>>, vector<2x1x16xf32>
    tpu.vector_store %arg20[%c0_140, %c0_141, %c0_142], %393 {strides = array<i32>} : memref<2x1x16xf32, #tpu.memory_space<vmem>>, vector<2x1x16xf32>,
    return
  }
}

</mosaic_0001>

<llo_original>
// kernel: clip_image_encoder_forward.1
$region0: #{clip_image_encoder_forward.1}
  #allocation0 [shape = 'u32[]', space=smem, size = 0x4, offset = 0x4, fixed_abs, tag = 'smem constant byte address 0x4 - core index']
  #allocation1 [shape = 'u32[144,128]{1,0:T(1,128)}', space=vmem, size = 0x12000, scoped, tag = 'internal scratch']
  %s0 = inlined_call_operand.vmem [shape: f32[2,5,192], index: 0, kind: input, shape index: {}]
  %s1 = inlined_call_operand.vmem [shape: bf16[192,32], index: 1, kind: input, shape index: {}]
  %s2 = inlined_call_operand.vmem [shape: f32[5,32], index: 2, kind: input, shape index: {}]
  %s3 = inlined_call_operand.vmem [shape: f32[1,32], index: 3, kind: input, shape index: {}]
  %s4 = inlined_call_operand.vmem [shape: f32[1,32], index: 4, kind: input, shape index: {}]
  %s5 = inlined_call_operand.vmem [shape: f32[2,1,32], index: 5, kind: input, shape index: {}]
  %s6 = inlined_call_operand.vmem [shape: f32[2,1,32], index: 6, kind: input, shape index: {}]
  %s7 = inlined_call_operand.vmem [shape: bf16[2,32,96], index: 7, kind: input, shape index: {}]
  %s8 = inlined_call_operand.vmem [shape: f32[2,1,96], index: 8, kind: input, shape index: {}]
  %s9 = inlined_call_operand.vmem [shape: bf16[2,32,32], index: 9, kind: input, shape index: {}]
  %s10 = inlined_call_operand.vmem [shape: f32[2,1,32], index: 10, kind: input, shape index: {}]
  %s11 = inlined_call_operand.vmem [shape: f32[2,1,32], index: 11, kind: input, shape index: {}]
  %s12 = inlined_call_operand.vmem [shape: f32[2,1,32], index: 12, kind: input, shape index: {}]
  %s13 = inlined_call_operand.vmem [shape: bf16[2,32,64], index: 13, kind: input, shape index: {}]
  %s14 = inlined_call_operand.vmem [shape: f32[2,1,64], index: 14, kind: input, shape index: {}]
  %s15 = inlined_call_operand.vmem [shape: bf16[2,64,32], index: 15, kind: input, shape index: {}]
  %s16 = inlined_call_operand.vmem [shape: f32[2,1,32], index: 16, kind: input, shape index: {}]
  %s17 = inlined_call_operand.vmem [shape: f32[1,32], index: 17, kind: input, shape index: {}]
  %s18 = inlined_call_operand.vmem [shape: f32[1,32], index: 18, kind: input, shape index: {}]
  %s19 = inlined_call_operand.vmem [shape: bf16[32,16], index: 19, kind: input, shape index: {}]
  %s20 = inlined_call_operand.hbm [shape: f32[2,1,16], index: 20, kind: output, shape index: {}]
  %s21 = sld [smem:[#allocation0]]
  $region90: #{clip_image_encoder_forward.1} parent=0
    _
  %s23 = ssub.s32 1, %s21
  %s24 = scalar_select 0, %s23, %s21
  $region1: #{clip_image_encoder_forward.1} parent=0
    #allocation2 [shape = 'u8[1024]{0}', space=vmem, size = 0x400, scoped, tag = 'output window, operand 0, single buffered']
    #allocation3 [shape = 's32[1]{0}', space=sflag, size = 0x4, scoped, tag = 'scoped memory for clip_image_encoder_forward.1']
    %25 = vsyncpa [#allocation3], 0
    // Predicated region
    $region2: #{clip_image_encoder_forward.1} parent=1 // pred_check
      _
    $region3: #{clip_image_encoder_forward.1} parent=1 // pred_check_branch
      %27 = sbr.rel (0) target = $region5
    $region4: #{clip_image_encoder_forward.1} parent=1 // pred_region
      _
    $region5: #{clip_image_encoder_forward.1} parent=1 // pred_fallthru
      _
    // Predicated region
    $region6: #{clip_image_encoder_forward.1} parent=1 // pred_check
      _
    $region7: #{clip_image_encoder_forward.1} parent=1 // pred_check_branch
      %29 = sbr.rel (0) target = $region9
    $region8: #{clip_image_encoder_forward.1} parent=1 // pred_region
      _
    $region9: #{clip_image_encoder_forward.1} parent=1 // pred_fallthru
      _
    // Predicated region
    $region10: #{clip_image_encoder_forward.1} parent=1 // pred_check
      _
    $region11: #{clip_image_encoder_forward.1} parent=1 // pred_check_branch
      %31 = sbr.rel (0) target = $region13
    $region12: #{clip_image_encoder_forward.1} parent=1 // pred_region
      _
    $region13: #{clip_image_encoder_forward.1} parent=1 // pred_fallthru
      _
    // Predicated region
    $region14: #{clip_image_encoder_forward.1} parent=1 // pred_check
      _
    $region15: #{clip_image_encoder_forward.1} parent=1 // pred_check_branch
      %33 = sbr.rel (0) target = $region17
    $region16: #{clip_image_encoder_forward.1} parent=1 // pred_region
      _
    $region17: #{clip_image_encoder_forward.1} parent=1 // pred_fallthru
      _
    // Predicated region
    $region18: #{clip_image_encoder_forward.1} parent=1 // pred_check
      _
    $region19: #{clip_image_encoder_forward.1} parent=1 // pred_check_branch
      %35 = sbr.rel (0) target = $region21
    $region20: #{clip_image_encoder_forward.1} parent=1 // pred_region
      _
    $region21: #{clip_image_encoder_forward.1} parent=1 // pred_fallthru
      _
    // Predicated region
    $region22: #{clip_image_encoder_forward.1} parent=1 // pred_check
      _
    $region23: #{clip_image_encoder_forward.1} parent=1 // pred_check_branch
      %37 = sbr.rel (0) target = $region25
    $region24: #{clip_image_encoder_forward.1} parent=1 // pred_region
      _
    $region25: #{clip_image_encoder_forward.1} parent=1 // pred_fallthru
      _
    // Predicated region
    $region26: #{clip_image_encoder_forward.1} parent=1 // pred_check
      _
    $region27: #{clip_image_encoder_forward.1} parent=1 // pred_check_branch
      %39 = sbr.rel (0) target = $region29
    $region28: #{clip_image_encoder_forward.1} parent=1 // pred_region
      _
    $region29: #{clip_image_encoder_forward.1} parent=1 // pred_fallthru
      _
    // Predicated region
    $region30: #{clip_image_encoder_forward.1} parent=1 // pred_check
      _
    $region31: #{clip_image_encoder_forward.1} parent=1 // pred_check_branch
      %41 = sbr.rel (0) target = $region33
    $region32: #{clip_image_encoder_forward.1} parent=1 // pred_region
      _
    $region33: #{clip_image_encoder_forward.1} parent=1 // pred_fallthru
      _
    // Predicated region
    $region34: #{clip_image_encoder_forward.1} parent=1 // pred_check
      _
    $region35: #{clip_image_encoder_forward.1} parent=1 // pred_check_branch
      %43 = sbr.rel (0) target = $region37
    $region36: #{clip_image_encoder_forward.1} parent=1 // pred_region
      _
    $region37: #{clip_image_encoder_forward.1} parent=1 // pred_fallthru
      _
    // Predicated region
    $region38: #{clip_image_encoder_forward.1} parent=1 // pred_check
      _
    $region39: #{clip_image_encoder_forward.1} parent=1 // pred_check_branch
      %45 = sbr.rel (0) target = $region41
    $region40: #{clip_image_encoder_forward.1} parent=1 // pred_region
      _
    $region41: #{clip_image_encoder_forward.1} parent=1 // pred_fallthru
      _
    // Predicated region
    $region42: #{clip_image_encoder_forward.1} parent=1 // pred_check
      _
    $region43: #{clip_image_encoder_forward.1} parent=1 // pred_check_branch
      %47 = sbr.rel (0) target = $region45
    $region44: #{clip_image_encoder_forward.1} parent=1 // pred_region
      _
    $region45: #{clip_image_encoder_forward.1} parent=1 // pred_fallthru
      _
    // Predicated region
    $region46: #{clip_image_encoder_forward.1} parent=1 // pred_check
      _
    $region47: #{clip_image_encoder_forward.1} parent=1 // pred_check_branch
      %49 = sbr.rel (0) target = $region49
    $region48: #{clip_image_encoder_forward.1} parent=1 // pred_region
      _
    $region49: #{clip_image_encoder_forward.1} parent=1 // pred_fallthru
      _
    // Predicated region
    $region50: #{clip_image_encoder_forward.1} parent=1 // pred_check
      _
    $region51: #{clip_image_encoder_forward.1} parent=1 // pred_check_branch
      %51 = sbr.rel (0) target = $region53
    $region52: #{clip_image_encoder_forward.1} parent=1 // pred_region
      _
    $region53: #{clip_image_encoder_forward.1} parent=1 // pred_fallthru
      _
    // Predicated region
    $region54: #{clip_image_encoder_forward.1} parent=1 // pred_check
      _
    $region55: #{clip_image_encoder_forward.1} parent=1 // pred_check_branch
      %53 = sbr.rel (0) target = $region57
    $region56: #{clip_image_encoder_forward.1} parent=1 // pred_region
      _
    $region57: #{clip_image_encoder_forward.1} parent=1 // pred_fallthru
      _
    // Predicated region
    $region58: #{clip_image_encoder_forward.1} parent=1 // pred_check
      _
    $region59: #{clip_image_encoder_forward.1} parent=1 // pred_check_branch
      %55 = sbr.rel (0) target = $region61
    $region60: #{clip_image_encoder_forward.1} parent=1 // pred_region
      _
    $region61: #{clip_image_encoder_forward.1} parent=1 // pred_fallthru
      _
    // Predicated region
    $region62: #{clip_image_encoder_forward.1} parent=1 // pred_check
      _
    $region63: #{clip_image_encoder_forward.1} parent=1 // pred_check_branch
      %57 = sbr.rel (0) target = $region65
    $region64: #{clip_image_encoder_forward.1} parent=1 // pred_region
      _
    $region65: #{clip_image_encoder_forward.1} parent=1 // pred_fallthru
      _
    // Predicated region
    $region66: #{clip_image_encoder_forward.1} parent=1 // pred_check
      _
    $region67: #{clip_image_encoder_forward.1} parent=1 // pred_check_branch
      %59 = sbr.rel (0) target = $region69
    $region68: #{clip_image_encoder_forward.1} parent=1 // pred_region
      _
    $region69: #{clip_image_encoder_forward.1} parent=1 // pred_fallthru
      _
    // Predicated region
    $region70: #{clip_image_encoder_forward.1} parent=1 // pred_check
      _
    $region71: #{clip_image_encoder_forward.1} parent=1 // pred_check_branch
      %61 = sbr.rel (0) target = $region73
    $region72: #{clip_image_encoder_forward.1} parent=1 // pred_region
      _
    $region73: #{clip_image_encoder_forward.1} parent=1 // pred_fallthru
      _
    // Predicated region
    $region74: #{clip_image_encoder_forward.1} parent=1 // pred_check
      _
    $region75: #{clip_image_encoder_forward.1} parent=1 // pred_check_branch
      %63 = sbr.rel (0) target = $region77
    $region76: #{clip_image_encoder_forward.1} parent=1 // pred_region
      _
    $region77: #{clip_image_encoder_forward.1} parent=1 // pred_fallthru
      _
    // Predicated region
    $region78: #{clip_image_encoder_forward.1} parent=1 // pred_check
      _
    $region79: #{clip_image_encoder_forward.1} parent=1 // pred_check_branch
      %65 = sbr.rel (0) target = $region81
    $region80: #{clip_image_encoder_forward.1} parent=1 // pred_region
      _
    $region81: #{clip_image_encoder_forward.1} parent=1 // pred_fallthru
      _
    %v67 = vld [vmem:[%s0] sm:$0x1f]
    %v68 = vld [vmem:[%s0 + $0x8] sm:$0x1f]
    %v69 = vld [vmem:[%s0 + $0x10] sm:$0x1f]
    %v70 = vld [vmem:[%s0 + $0x18] sm:$0x1f]
    %v71 = vpack.c.bf16 %v67, %v67
    %v72 = vpack.c.bf16 %v68, %v68
    %v73 = vpack.c.bf16 %v69, %v69
    %v74 = vpack.c.bf16 %v70, %v70
    %v75 = vld [vmem:[%s1] sm:$0xf]
    %v76 = vld [vmem:[%s1 + $0x4] sm:$0xf]
    %v77 = vld [vmem:[%s1 + $0x8] sm:$0xf]
    %v78 = vld [vmem:[%s1 + $0xc] sm:$0xf]
    %v79 = vld [vmem:[%s1 + $0x10] sm:$0xf]
    %v80 = vld [vmem:[%s1 + $0x14] sm:$0xf]
    %v81 = vld [vmem:[%s1 + $0x18] sm:$0xf]
    %v82 = vld [vmem:[%s1 + $0x1c] sm:$0xf]
    %v83 = vld [vmem:[%s1 + $0x20] sm:$0xf]
    %v84 = vld [vmem:[%s1 + $0x24] sm:$0xf]
    %v85 = vld [vmem:[%s1 + $0x28] sm:$0xf]
    %v86 = vld [vmem:[%s1 + $0x2c] sm:$0xf]
    %v87 = vld [vmem:[%s1 + $0x30] sm:$0xf]
    %v88 = vld [vmem:[%s1 + $0x34] sm:$0xf]
    %v89 = vld [vmem:[%s1 + $0x38] sm:$0xf]
    %v90 = vld [vmem:[%s1 + $0x3c] sm:$0xf]
    %v91 = vld [vmem:[%s1 + $0x40] sm:$0xf]
    %v92 = vld [vmem:[%s1 + $0x44] sm:$0xf]
    %v93 = vld [vmem:[%s1 + $0x48] sm:$0xf]
    %v94 = vld [vmem:[%s1 + $0x4c] sm:$0xf]
    %v95 = vld [vmem:[%s1 + $0x50] sm:$0xf]
    %v96 = vld [vmem:[%s1 + $0x54] sm:$0xf]
    %v97 = vld [vmem:[%s1 + $0x58] sm:$0xf]
    %v98 = vld [vmem:[%s1 + $0x5c] sm:$0xf]
    %v99 = vld [vmem:[%s2] sm:$0x1f]
    %v104 = vcombine.low %v71, %v72
    %v106 = vunpack.c.l.s4 1966171168
    %v107 = vunpack.c.0.s8 %v106
    %v108 = vlaneseq
    %v109 = vshrl.u32 %v108, 7
    %v110 = vsub.s32 %v107, %v109
    %v111 = vrot.slane %v104, %v110
    %v112 = vcombine.high %v111, %v111
    %v114 = vunpack.c.l.s4 1966171168
    %v115 = vunpack.c.0.s8 %v114
    %v116 = vlaneseq
    %v117 = vshrl.u32 %v116, 7
    %v118 = vsub.s32 %v115, %v117
    %v119 = vrot.slane %v111, %v118
    %v121 = vunpack.c.l.s4 1966171168
    %v122 = vunpack.c.0.s8 %v121
    %v123 = vlaneseq
    %v124 = vshrl.u32 %v123, 7
    %v125 = vsub.s32 %v122, %v124
    %v126 = vrot.slane %v112, %v125
    %v127 = vcombine.high %v119, %v119
    %v128 = vcombine.low %v73, %v74
    %v130 = vunpack.c.l.s4 1966171168
    %v131 = vunpack.c.0.s8 %v130
    %v132 = vlaneseq
    %v133 = vshrl.u32 %v132, 7
    %v134 = vsub.s32 %v131, %v133
    %v135 = vrot.slane %v128, %v134
    %v136 = vcombine.high %v135, %v135
    %v138 = vunpack.c.l.s4 1966171168
    %v139 = vunpack.c.0.s8 %v138
    %v140 = vlaneseq
    %v141 = vshrl.u32 %v140, 7
    %v142 = vsub.s32 %v139, %v141
    %v143 = vrot.slane %v135, %v142
    %v145 = vunpack.c.l.s4 1966171168
    %v146 = vunpack.c.0.s8 %v145
    %v147 = vlaneseq
    %v148 = vshrl.u32 %v147, 7
    %v149 = vsub.s32 %v146, %v148
    %v150 = vrot.slane %v136, %v149
    %v151 = vcombine.high %v143, %v143
    %v152 = vunpack.i.l.s16 %v119
    %v153 = vunpack.i.h.s16 %v119
    %v154 = vunpack.i.l.s16 %v126
    %v155 = vunpack.i.h.s16 %v126
    %v156 = vunpack.i.l.s16 %v127
    %v157 = vunpack.i.l.s16 %v143
    %v158 = vunpack.i.h.s16 %v143
    %v159 = vunpack.i.l.s16 %v150
    %v160 = vunpack.i.h.s16 %v150
    %v161 = vunpack.i.l.s16 %v151
    %v163 = vcombine.high %v99, %v99
    %v165 = vunpack.c.l.s4 1966171168
    %v166 = vunpack.c.0.s8 %v165
    %v167 = vlaneseq
    %v168 = vshrl.u32 %v167, 7
    %v169 = vsub.s32 %v166, %v168
    %v170 = vrot.slane %v99, %v169
    %v172 = vunpack.c.l.s4 1966171168
    %v173 = vunpack.c.0.s8 %v172
    %v174 = vlaneseq
    %v175 = vshrl.u32 %v174, 7
    %v176 = vsub.s32 %v173, %v175
    %v177 = vrot.slane %v163, %v176
    %v178 = vcombine.high %v170, %v170
    %v180 = vunpack.c.l.s4 1966171168
    %v181 = vunpack.c.0.s8 %v180
    %v182 = vlaneseq
    %v183 = vshrl.u32 %v182, 7
    %v184 = vsub.s32 %v181, %v183
    %v185 = vrot.slane %v170, %v184
    %v187 = vunpack.c.l.s4 1966171168
    %v188 = vunpack.c.0.s8 %v187
    %v189 = vlaneseq
    %v190 = vshrl.u32 %v189, 7
    %v191 = vsub.s32 %v188, %v190
    %v192 = vrot.slane %v177, %v191
    %v194 = vunpack.c.l.s4 1966171168
    %v195 = vunpack.c.0.s8 %v194
    %v196 = vlaneseq
    %v197 = vshrl.u32 %v196, 7
    %v198 = vsub.s32 %v195, %v197
    %v199 = vrot.slane %v178, %v198
    %v200 = vcombine.high %v185, %v185
    %v201 = vcombine.high %v199, %v199
    %v202 = vpack.i.b16 %v153, %v152
    %v203 = vpack.i.b16 %v155, %v154
    %v204 = vpack.i.b16 %v157, %v156
    %v205 = vpack.i.b16 %v159, %v158
    %v206 = vpack.i.b16 %v161, %v160
    %v207 = vcombine.low %v202, %v203
    %v208 = vcombine.low %v204, %v205
    %v210 = vunpack.c.l.s4 1966171168
    %v211 = vunpack.c.0.s8 %v210
    %v212 = vlaneseq
    %v213 = vshrl.u32 %v212, 7
    %v214 = vsub.s32 %v211, %v213
    %v215 = vrot.slane %v207, %v214
    %v217 = vunpack.c.l.s4 1966171168
    %v218 = vunpack.c.0.s8 %v217
    %v219 = vlaneseq
    %v220 = vshrl.u32 %v219, 7
    %v221 = vsub.s32 %v218, %v220
    %v222 = vrot.slane %v208, %v221
    %v224 = vunpack.c.l.s4 1966171168
    %v225 = vunpack.c.0.s8 %v224
    %v226 = vlaneseq
    %v227 = vshrl.u32 %v226, 7
    %v228 = vsub.s32 %v225, %v227
    %v229 = vrot.slane %v206, %v228
    %v230 = vcombine.low %v215, %v222
    %v231 = vcombine.high %v215, %v222
    %v232 = vcombine.high %v229, %v229
    %v234 = vunpack.c.l.s4 1966171168
    %v235 = vunpack.c.0.s8 %v234
    %v236 = vlaneseq
    %v237 = vshrl.u32 %v236, 7
    %v238 = vsub.s32 %v235, %v237
    %v239 = vrot.slane %v230, %v238
    %v241 = vunpack.c.l.s4 1966171168
    %v242 = vunpack.c.0.s8 %v241
    %v243 = vlaneseq
    %v244 = vshrl.u32 %v243, 7
    %v245 = vsub.s32 %v242, %v244
    %v246 = vrot.slane %v231, %v245
    %v248 = vunpack.c.l.s4 1966171168
    %v249 = vunpack.c.0.s8 %v248
    %v250 = vlaneseq
    %v251 = vshrl.u32 %v250, 7
    %v252 = vsub.s32 %v249, %v251
    %v253 = vrot.slane %v229, %v252
    %v255 = vunpack.c.l.s4 1966171168
    %v256 = vunpack.c.0.s8 %v255
    %v257 = vlaneseq
    %v258 = vshrl.u32 %v257, 7
    %v259 = vsub.s32 %v256, %v258
    %v260 = vrot.slane %v232, %v259
    %v261 = vcombine.low %v239, %v253
    %v262 = vcombine.low %v246, %v260
    %v288 = vunpack.c.l.b16 %v75
    %v289 = vunpack.c.l.b16 %v76
    %v290 = vunpack.c.l.b16 %v77
    %v291 = vunpack.c.l.b16 %v78
    %v292 = vunpack.c.l.b16 %v79
    %v293 = vunpack.c.l.b16 %v80
    %v294 = vunpack.c.l.b16 %v81
    %v295 = vunpack.c.l.b16 %v82
    %v296 = vunpack.c.l.b16 %v83
    %v297 = vunpack.c.l.b16 %v84
    %v298 = vunpack.c.l.b16 %v85
    %v299 = vunpack.c.l.b16 %v86
    %v300 = vunpack.c.l.b16 %v87
    %v301 = vunpack.c.l.b16 %v88
    %v302 = vunpack.c.l.b16 %v89
    %v303 = vunpack.c.l.b16 %v90
    %v304 = vunpack.c.l.b16 %v91
    %v305 = vunpack.c.l.b16 %v92
    %v306 = vunpack.c.l.b16 %v93
    %v307 = vunpack.c.l.b16 %v94
    %v308 = vunpack.c.l.b16 %v95
    %v309 = vunpack.c.l.b16 %v96
    %v310 = vunpack.c.l.b16 %v97
    %v311 = vunpack.c.l.b16 %v98
    %v312 = vpack.c.b16 %v289, %v288
    %v313 = vpack.c.b16 %v291, %v290
    %v314 = vpack.c.b16 %v293, %v292
    %v315 = vpack.c.b16 %v295, %v294
    %v316 = vpack.c.b16 %v297, %v296
    %v317 = vpack.c.b16 %v299, %v298
    %v318 = vpack.c.b16 %v301, %v300
    %v319 = vpack.c.b16 %v303, %v302
    %v320 = vpack.c.b16 %v305, %v304
    %v321 = vpack.c.b16 %v307, %v306
    %v322 = vpack.c.b16 %v309, %v308
    %v323 = vpack.c.b16 %v311, %v310
    %v336 = vcombine.low %v185, %v199
    %v337 = vcombine.low %v200, %v201
    %v338 = vcombine.low %v192, %v185
    %v339 = vcombine.low %v199, %v200
    %v341 = vunpack.c.l.s4 1966171168
    %v342 = vunpack.c.0.s8 %v341
    %v343 = vlaneseq
    %v344 = vshrl.u32 %v343, 7
    %v345 = vsub.s32 %v342, %v344
    %v346 = vrot.slane %v336, %v345
    %v348 = vunpack.c.l.s4 1966171168
    %v349 = vunpack.c.0.s8 %v348
    %v350 = vlaneseq
    %v351 = vshrl.u32 %v350, 7
    %v352 = vsub.s32 %v349, %v351
    %v353 = vrot.slane %v337, %v352
    %v355 = vunpack.c.l.s4 1966171168
    %v356 = vunpack.c.0.s8 %v355
    %v357 = vlaneseq
    %v358 = vshrl.u32 %v357, 7
    %v359 = vsub.s32 %v356, %v358
    %v360 = vrot.slane %v338, %v359
    %v362 = vunpack.c.l.s4 1966171168
    %v363 = vunpack.c.0.s8 %v362
    %v364 = vlaneseq
    %v365 = vshrl.u32 %v364, 7
    %v366 = vsub.s32 %v363, %v365
    %v367 = vrot.slane %v339, %v366
    %v368 = vcombine.low %v346, %v353
    %v369 = vcombine.low %v360, %v367
    %v371 = vunpack.c.l.s4 1966171168
    %v372 = vunpack.c.0.s8 %v371
    %v373 = vlaneseq
    %v374 = vshrl.u32 %v373, 7
    %v375 = vsub.s32 %v372, %v374
    %v376 = vrot.slane %v368, %v375
    %v378 = vunpack.c.l.s4 1966171168
    %v379 = vunpack.c.0.s8 %v378
    %v380 = vlaneseq
    %v381 = vshrl.u32 %v380, 7
    %v382 = vsub.s32 %v379, %v381
    %v383 = vrot.slane %v369, %v382
    %v384 = vcombine.low %v376, %v383
    %v385 = vcombine.low %v201, %v192
    %v387 = vunpack.c.l.s4 1966171168
    %v388 = vunpack.c.0.s8 %v387
    %v389 = vlaneseq
    %v390 = vshrl.u32 %v389, 7
    %v391 = vsub.s32 %v388, %v390
    %v392 = vrot.slane %v385, %v391
    %v394 = vunpack.c.l.s4 1966171168
    %v395 = vunpack.c.0.s8 %v394
    %v396 = vlaneseq
    %v397 = vshrl.u32 %v396, 7
    %v398 = vsub.s32 %v395, %v397
    %v399 = vrot.slane %v392, %v398
    %vm402 = vcmask 523264
    %v404 = vsel %vm402, %v262, 0
    %406 = vmatprep.subr.bf16.mxu0 0
    %407 = vmatpush1.bf16.msra.mxu0 %v319
    %408 = vmatprep.subr.bf16.mxu0 0
    %409 = vmatpush1.bf16.msra.mxu0 %v318
    %410 = vmatprep.subr.bf16.mxu0 0
    %411 = vmatpush1.bf16.msra.mxu0 %v317
    %412 = vmatprep.subr.bf16.mxu0 0
    %413 = vmatpush1.bf16.msra.mxu0 %v316
    %414 = vmatprep.subr.bf16.mxu0 0
    %415 = vmatpush1.bf16.msra.mxu0 %v315
    %416 = vmatprep.subr.bf16.mxu0 0
    %417 = vmatpush1.bf16.msra.mxu0 %v314
    %418 = vmatprep.subr.bf16.mxu0 0
    %419 = vmatpush1.bf16.msra.mxu0 %v313
    %420 = vmatprep.subr.bf16.mxu0 0
    %421 = vmatpush1.bf16.msra.mxu0 %v312
    %422 = vmatprep.subr.bf16.mxu0 0
    %423 = vmatpush2.bf16.msra.mxu0 0
    %424 = vmatprep.subr.bf16.mxu0 0
    %425 = vmatpush2.bf16.msra.mxu0 0
    %426 = vmatprep.subr.bf16.mxu0 0
    %427 = vmatpush2.bf16.msra.mxu0 0
    %428 = vmatprep.subr.bf16.mxu0 0
    %429 = vmatpush2.bf16.msra.mxu0 0
    %430 = vmatprep.subr.bf16.mxu0 0
    %431 = vmatpush2.bf16.msra.mxu0 %v323
    %432 = vmatprep.subr.bf16.mxu0 0
    %433 = vmatpush2.bf16.msra.mxu0 %v322
    %434 = vmatprep.subr.bf16.mxu0 0
    %435 = vmatpush2.bf16.msra.mxu0 %v321
    %436 = vmatprep.subr.bf16.mxu0 0
    %437 = vmatpush2.bf16.msra.mxu0 %v320
    %438 = vmatprep.mubr.bf16.mxu0 %v404
    %439 = vmatmul.mubr.bf16.gmra.mxu0 %v261
    %v440 = vpop.f32.mrf.mxu0
    %v441 = vadd.f32 %v384, %v440
    %v442 = vpop.f32.mrf.mxu0
    %v443 = vpop.f32.mrf.mxu0
    %v444 = vadd.f32 %v399, %v443
    %v445 = vpop.f32.mrf.mxu0
    %446 = vdwg.mxu0
    %v449 = vcombine.high %v441, %v441
    %v451 = vunpack.c.l.s4 1966171168
    %v452 = vunpack.c.0.s8 %v451
    %v453 = vlaneseq
    %v454 = vshrl.u32 %v453, 7
    %v455 = vsub.s32 %v452, %v454
    %v456 = vrot.slane %v441, %v455
    %v458 = vunpack.c.l.s4 1966171168
    %v459 = vunpack.c.0.s8 %v458
    %v460 = vlaneseq
    %v461 = vshrl.u32 %v460, 7
    %v462 = vsub.s32 %v459, %v461
    %v463 = vrot.slane %v449, %v462
    %v464 = vcombine.high %v456, %v456
    %v465 = vcombine.high %v463, %v463
    %v467 = vunpack.c.l.s4 1966171168
    %v468 = vunpack.c.0.s8 %v467
    %v469 = vlaneseq
    %v470 = vshrl.u32 %v469, 7
    %v471 = vsub.s32 %v468, %v470
    %v472 = vrot.slane %v456, %v471
    %v474 = vunpack.c.l.s4 1966171168
    %v475 = vunpack.c.0.s8 %v474
    %v476 = vlaneseq
    %v477 = vshrl.u32 %v476, 7
    %v478 = vsub.s32 %v475, %v477
    %v479 = vrot.slane %v463, %v478
    %v481 = vunpack.c.l.s4 1966171168
    %v482 = vunpack.c.0.s8 %v481
    %v483 = vlaneseq
    %v484 = vshrl.u32 %v483, 7
    %v485 = vsub.s32 %v482, %v484
    %v486 = vrot.slane %v464, %v485
    %v488 = vunpack.c.l.s4 1966171168
    %v489 = vunpack.c.0.s8 %v488
    %v490 = vlaneseq
    %v491 = vshrl.u32 %v490, 7
    %v492 = vsub.s32 %v489, %v491
    %v493 = vrot.slane %v465, %v492
    %v494 = vcombine.high %v472, %v472
    %v495 = vcombine.high %v479, %v479
    %v496 = vcombine.high %v486, %v486
    %v497 = vcombine.high %v493, %v493
    %v499 = vunpack.c.l.s4 1966171168
    %v500 = vunpack.c.0.s8 %v499
    %v501 = vlaneseq
    %v502 = vshrl.u32 %v501, 7
    %v503 = vsub.s32 %v500, %v502
    %v504 = vrot.slane %v444, %v503
    %v505 = vcombine.high %v504, %v504
    %v507 = vunpack.c.l.s4 1966171168
    %v508 = vunpack.c.0.s8 %v507
    %v509 = vlaneseq
    %v510 = vshrl.u32 %v509, 7
    %v511 = vsub.s32 %v508, %v510
    %v512 = vrot.slane %v504, %v511
    %v514 = vunpack.c.l.s4 1966171168
    %v515 = vunpack.c.0.s8 %v514
    %v516 = vlaneseq
    %v517 = vshrl.u32 %v516, 7
    %v518 = vsub.s32 %v515, %v517
    %v519 = vrot.slane %v505, %v518
    %v530 = vld [vmem:[%s3] sm:$0x1]
    %v531 = vld [vmem:[%s4] sm:$0x1]
    %v532 = vcombine.low %v472, %v486
    %v533 = vcombine.low %v494, %v496
    %v535 = vunpack.c.l.s4 1966171168
    %v536 = vunpack.c.0.s8 %v535
    %v537 = vlaneseq
    %v538 = vshrl.u32 %v537, 7
    %v539 = vsub.s32 %v536, %v538
    %v540 = vrot.slane %v532, %v539
    %v542 = vunpack.c.l.s4 1966171168
    %v543 = vunpack.c.0.s8 %v542
    %v544 = vlaneseq
    %v545 = vshrl.u32 %v544, 7
    %v546 = vsub.s32 %v543, %v545
    %v547 = vrot.slane %v533, %v546
    %v549 = vunpack.c.l.s4 1966171168
    %v550 = vunpack.c.0.s8 %v549
    %v551 = vlaneseq
    %v552 = vshrl.u32 %v551, 7
    %v553 = vsub.s32 %v550, %v552
    %v554 = vrot.slane %v479, %v553
    %v555 = vcombine.low %v540, %v547
    %v557 = vunpack.c.l.s4 1966171168
    %v558 = vunpack.c.0.s8 %v557
    %v559 = vlaneseq
    %v560 = vshrl.u32 %v559, 7
    %v561 = vsub.s32 %v558, %v560
    %v562 = vrot.slane %v555, %v561
    %v564 = vunpack.c.l.s4 1966171168
    %v565 = vunpack.c.0.s8 %v564
    %v566 = vlaneseq
    %v567 = vshrl.u32 %v566, 7
    %v568 = vsub.s32 %v565, %v567
    %v569 = vrot.slane %v554, %v568
    %v570 = vcombine.low %v562, %v569
    %v571 = vcombine.low %v493, %v495
    %v572 = vcombine.low %v497, %v512
    %v574 = vunpack.c.l.s4 1966171168
    %v575 = vunpack.c.0.s8 %v574
    %v576 = vlaneseq
    %v577 = vshrl.u32 %v576, 7
    %v578 = vsub.s32 %v575, %v577
    %v579 = vrot.slane %v571, %v578
    %v581 = vunpack.c.l.s4 1966171168
    %v582 = vunpack.c.0.s8 %v581
    %v583 = vlaneseq
    %v584 = vshrl.u32 %v583, 7
    %v585 = vsub.s32 %v582, %v584
    %v586 = vrot.slane %v572, %v585
    %v588 = vunpack.c.l.s4 1966171168
    %v589 = vunpack.c.0.s8 %v588
    %v590 = vlaneseq
    %v591 = vshrl.u32 %v590, 7
    %v592 = vsub.s32 %v589, %v591
    %v593 = vrot.slane %v519, %v592
    %v594 = vcombine.low %v579, %v586
    %v596 = vunpack.c.l.s4 1966171168
    %v597 = vunpack.c.0.s8 %v596
    %v598 = vlaneseq
    %v599 = vshrl.u32 %v598, 7
    %v600 = vsub.s32 %v597, %v599
    %v601 = vrot.slane %v594, %v600
    %v603 = vunpack.c.l.s4 1966171168
    %v604 = vunpack.c.0.s8 %v603
    %v605 = vlaneseq
    %v606 = vshrl.u32 %v605, 7
    %v607 = vsub.s32 %v604, %v606
    %v608 = vrot.slane %v593, %v607
    %v609 = vcombine.low %v601, %v608
    %vm612 = vcmask 258048
    %v613 = vsel %vm612, %v570, 0.0
    %614 = vadd.xlane.f32.xlu0 %v613
    %v615 = vpop.xlane.xlu0 %614
    %v616 = vsel %vm612, %v609, 0.0
    %617 = vadd.xlane.f32.xlu0 %v616
    %v618 = vpop.xlane.xlu0 %617
    %v619 = vrcp.pop 32.0
    %v620 = vmul.f32 %v615, %v619
    %v621 = vmul.f32 %v618, %v619
    %v624 = vlaneseq
    %v625 = vshrl.u32 %v624, 7
    %v626 = vsub.s32 0, %v625
    %v627 = vrot.slane %v620, %v626
    %v628 = vlaneseq
    %v629 = vshrl.u32 %v628, 7
    %v630 = vsub.s32 1, %v629
    %v631 = vrot.slane %v620, %v630
    %v632 = vlaneseq
    %v633 = vshrl.u32 %v632, 7
    %v634 = vsub.s32 2, %v633
    %v635 = vrot.slane %v620, %v634
    %v636 = vlaneseq
    %v637 = vshrl.u32 %v636, 7
    %v638 = vsub.s32 3, %v637
    %v639 = vrot.slane %v620, %v638
    %v640 = vlaneseq
    %v641 = vshrl.u32 %v640, 7
    %v642 = vsub.s32 4, %v641
    %v643 = vrot.slane %v620, %v642
    %v644 = vlaneseq
    %v645 = vshrl.u32 %v644, 7
    %v646 = vsub.s32 0, %v645
    %v647 = vrot.slane %v621, %v646
    %v648 = vlaneseq
    %v649 = vshrl.u32 %v648, 7
    %v650 = vsub.s32 1, %v649
    %v651 = vrot.slane %v621, %v650
    %v652 = vlaneseq
    %v653 = vshrl.u32 %v652, 7
    %v654 = vsub.s32 2, %v653
    %v655 = vrot.slane %v621, %v654
    %v656 = vlaneseq
    %v657 = vshrl.u32 %v656, 7
    %v658 = vsub.s32 3, %v657
    %v659 = vrot.slane %v621, %v658
    %v660 = vlaneseq
    %v661 = vshrl.u32 %v660, 7
    %v662 = vsub.s32 4, %v661
    %v663 = vrot.slane %v621, %v662
    %v674 = vsub.f32 %v472, %v627
    %v675 = vsub.f32 %v486, %v631
    %v676 = vsub.f32 %v494, %v635
    %v677 = vsub.f32 %v496, %v639
    %v678 = vsub.f32 %v479, %v643
    %v679 = vsub.f32 %v493, %v647
    %v680 = vsub.f32 %v495, %v651
    %v681 = vsub.f32 %v497, %v655
    %v682 = vsub.f32 %v512, %v659
    %v683 = vsub.f32 %v519, %v663
    %v684 = vmul.f32 %v674, %v674
    %v685 = vmul.f32 %v675, %v675
    %v686 = vmul.f32 %v676, %v676
    %v687 = vmul.f32 %v677, %v677
    %v688 = vmul.f32 %v678, %v678
    %v689 = vmul.f32 %v679, %v679
    %v690 = vmul.f32 %v680, %v680
    %v691 = vmul.f32 %v681, %v681
    %v692 = vmul.f32 %v682, %v682
    %v693 = vmul.f32 %v683, %v683
    %v704 = vcombine.low %v684, %v685
    %v705 = vcombine.low %v686, %v687
    %v707 = vunpack.c.l.s4 1966171168
    %v708 = vunpack.c.0.s8 %v707
    %v709 = vlaneseq
    %v710 = vshrl.u32 %v709, 7
    %v711 = vsub.s32 %v708, %v710
    %v712 = vrot.slane %v704, %v711
    %v714 = vunpack.c.l.s4 1966171168
    %v715 = vunpack.c.0.s8 %v714
    %v716 = vlaneseq
    %v717 = vshrl.u32 %v716, 7
    %v718 = vsub.s32 %v715, %v717
    %v719 = vrot.slane %v705, %v718
    %v721 = vunpack.c.l.s4 1966171168
    %v722 = vunpack.c.0.s8 %v721
    %v723 = vlaneseq
    %v724 = vshrl.u32 %v723, 7
    %v725 = vsub.s32 %v722, %v724
    %v726 = vrot.slane %v688, %v725
    %v727 = vcombine.low %v712, %v719
    %v729 = vunpack.c.l.s4 1966171168
    %v730 = vunpack.c.0.s8 %v729
    %v731 = vlaneseq
    %v732 = vshrl.u32 %v731, 7
    %v733 = vsub.s32 %v730, %v732
    %v734 = vrot.slane %v727, %v733
    %v736 = vunpack.c.l.s4 1966171168
    %v737 = vunpack.c.0.s8 %v736
    %v738 = vlaneseq
    %v739 = vshrl.u32 %v738, 7
    %v740 = vsub.s32 %v737, %v739
    %v741 = vrot.slane %v726, %v740
    %v742 = vcombine.low %v734, %v741
    %v743 = vcombine.low %v689, %v690
    %v744 = vcombine.low %v691, %v692
    %v746 = vunpack.c.l.s4 1966171168
    %v747 = vunpack.c.0.s8 %v746
    %v748 = vlaneseq
    %v749 = vshrl.u32 %v748, 7
    %v750 = vsub.s32 %v747, %v749
    %v751 = vrot.slane %v743, %v750
    %v753 = vunpack.c.l.s4 1966171168
    %v754 = vunpack.c.0.s8 %v753
    %v755 = vlaneseq
    %v756 = vshrl.u32 %v755, 7
    %v757 = vsub.s32 %v754, %v756
    %v758 = vrot.slane %v744, %v757
    %v760 = vunpack.c.l.s4 1966171168
    %v761 = vunpack.c.0.s8 %v760
    %v762 = vlaneseq
    %v763 = vshrl.u32 %v762, 7
    %v764 = vsub.s32 %v761, %v763
    %v765 = vrot.slane %v693, %v764
    %v766 = vcombine.low %v751, %v758
    %v768 = vunpack.c.l.s4 1966171168
    %v769 = vunpack.c.0.s8 %v768
    %v770 = vlaneseq
    %v771 = vshrl.u32 %v770, 7
    %v772 = vsub.s32 %v769, %v771
    %v773 = vrot.slane %v766, %v772
    %v775 = vunpack.c.l.s4 1966171168
    %v776 = vunpack.c.0.s8 %v775
    %v777 = vlaneseq
    %v778 = vshrl.u32 %v777, 7
    %v779 = vsub.s32 %v776, %v778
    %v780 = vrot.slane %v765, %v779
    %v781 = vcombine.low %v773, %v780
    %v784 = vsel %vm612, %v742, 0.0
    %785 = vadd.xlane.f32.xlu0 %v784
    %v786 = vpop.xlane.xlu0 %785
    %v787 = vsel %vm612, %v781, 0.0
    %788 = vadd.xlane.f32.xlu0 %v787
    %v789 = vpop.xlane.xlu0 %788
    %v790 = vmul.f32 %v786, %v619
    %v791 = vmul.f32 %v789, %v619
    %v792 = vadd.f32 %v790, 1e-05
    %v793 = vadd.f32 %v791, 1e-05
    %v794 = vrsqrt.pop %v792
    %v795 = vrsqrt.pop %v793
    %v798 = vlaneseq
    %v799 = vshrl.u32 %v798, 7
    %v800 = vsub.s32 0, %v799
    %v801 = vrot.slane %v794, %v800
    %v802 = vlaneseq
    %v803 = vshrl.u32 %v802, 7
    %v804 = vsub.s32 1, %v803
    %v805 = vrot.slane %v794, %v804
    %v806 = vlaneseq
    %v807 = vshrl.u32 %v806, 7
    %v808 = vsub.s32 2, %v807
    %v809 = vrot.slane %v794, %v808
    %v810 = vlaneseq
    %v811 = vshrl.u32 %v810, 7
    %v812 = vsub.s32 3, %v811
    %v813 = vrot.slane %v794, %v812
    %v814 = vlaneseq
    %v815 = vshrl.u32 %v814, 7
    %v816 = vsub.s32 4, %v815
    %v817 = vrot.slane %v794, %v816
    %v818 = vlaneseq
    %v819 = vshrl.u32 %v818, 7
    %v820 = vsub.s32 0, %v819
    %v821 = vrot.slane %v795, %v820
    %v822 = vlaneseq
    %v823 = vshrl.u32 %v822, 7
    %v824 = vsub.s32 1, %v823
    %v825 = vrot.slane %v795, %v824
    %v826 = vlaneseq
    %v827 = vshrl.u32 %v826, 7
    %v828 = vsub.s32 2, %v827
    %v829 = vrot.slane %v795, %v828
    %v830 = vlaneseq
    %v831 = vshrl.u32 %v830, 7
    %v832 = vsub.s32 3, %v831
    %v833 = vrot.slane %v795, %v832
    %v834 = vlaneseq
    %v835 = vshrl.u32 %v834, 7
    %v836 = vsub.s32 4, %v835
    %v837 = vrot.slane %v795, %v836
    %v848 = vmul.f32 %v674, %v801
    %v849 = vmul.f32 %v675, %v805
    %v850 = vmul.f32 %v676, %v809
    %v851 = vmul.f32 %v677, %v813
    %v852 = vmul.f32 %v678, %v817
    %v853 = vmul.f32 %v679, %v821
    %v854 = vmul.f32 %v680, %v825
    %v855 = vmul.f32 %v681, %v829
    %v856 = vmul.f32 %v682, %v833
    %v857 = vmul.f32 %v683, %v837
    %v859 = vlaneseq
    %v860 = vshrl.u32 %v859, 7
    %v861 = vsub.s32 0, %v860
    %v862 = vrot.slane %v530, %v861
    %v863 = vcombine.high %v862, %v862
    %v865 = vunpack.c.l.s4 1966171168
    %v866 = vunpack.c.0.s8 %v865
    %v867 = vlaneseq
    %v868 = vshrl.u32 %v867, 7
    %v869 = vsub.s32 %v866, %v868
    %v870 = vrot.slane %v862, %v869
    %v872 = vunpack.c.l.s4 1966171168
    %v873 = vunpack.c.0.s8 %v872
    %v874 = vlaneseq
    %v875 = vshrl.u32 %v874, 7
    %v876 = vsub.s32 %v873, %v875
    %v877 = vrot.slane %v863, %v876
    %v878 = vcombine.high %v870, %v870
    %v880 = vunpack.c.l.s4 1966171168
    %v881 = vunpack.c.0.s8 %v880
    %v882 = vlaneseq
    %v883 = vshrl.u32 %v882, 7
    %v884 = vsub.s32 %v881, %v883
    %v885 = vrot.slane %v870, %v884
    %v887 = vunpack.c.l.s4 1966171168
    %v888 = vunpack.c.0.s8 %v887
    %v889 = vlaneseq
    %v890 = vshrl.u32 %v889, 7
    %v891 = vsub.s32 %v888, %v890
    %v892 = vrot.slane %v877, %v891
    %v894 = vunpack.c.l.s4 1966171168
    %v895 = vunpack.c.0.s8 %v894
    %v896 = vlaneseq
    %v897 = vshrl.u32 %v896, 7
    %v898 = vsub.s32 %v895, %v897
    %v899 = vrot.slane %v878, %v898
    %v900 = vcombine.high %v885, %v885
    %v901 = vcombine.high %v899, %v899
    %v907 = vmul.f32 %v848, %v885
    %v908 = vmul.f32 %v849, %v899
    %v909 = vmul.f32 %v850, %v900
    %v910 = vmul.f32 %v851, %v901
    %v911 = vmul.f32 %v852, %v892
    %v912 = vmul.f32 %v853, %v885
    %v913 = vmul.f32 %v854, %v899
    %v914 = vmul.f32 %v855, %v900
    %v915 = vmul.f32 %v856, %v901
    %v916 = vmul.f32 %v857, %v892
    %v918 = vlaneseq
    %v919 = vshrl.u32 %v918, 7
    %v920 = vsub.s32 0, %v919
    %v921 = vrot.slane %v531, %v920
    %v922 = vcombine.high %v921, %v921
    %v924 = vunpack.c.l.s4 1966171168
    %v925 = vunpack.c.0.s8 %v924
    %v926 = vlaneseq
    %v927 = vshrl.u32 %v926, 7
    %v928 = vsub.s32 %v925, %v927
    %v929 = vrot.slane %v921, %v928
    %v931 = vunpack.c.l.s4 1966171168
    %v932 = vunpack.c.0.s8 %v931
    %v933 = vlaneseq
    %v934 = vshrl.u32 %v933, 7
    %v935 = vsub.s32 %v932, %v934
    %v936 = vrot.slane %v922, %v935
    %v937 = vcombine.high %v929, %v929
    %v939 = vunpack.c.l.s4 1966171168
    %v940 = vunpack.c.0.s8 %v939
    %v941 = vlaneseq
    %v942 = vshrl.u32 %v941, 7
    %v943 = vsub.s32 %v940, %v942
    %v944 = vrot.slane %v929, %v943
    %v946 = vunpack.c.l.s4 1966171168
    %v947 = vunpack.c.0.s8 %v946
    %v948 = vlaneseq
    %v949 = vshrl.u32 %v948, 7
    %v950 = vsub.s32 %v947, %v949
    %v951 = vrot.slane %v936, %v950
    %v953 = vunpack.c.l.s4 1966171168
    %v954 = vunpack.c.0.s8 %v953
    %v955 = vlaneseq
    %v956 = vshrl.u32 %v955, 7
    %v957 = vsub.s32 %v954, %v956
    %v958 = vrot.slane %v937, %v957
    %v959 = vcombine.high %v944, %v944
    %v960 = vcombine.high %v958, %v958
    %v966 = vadd.f32 %v907, %v944
    %v967 = vadd.f32 %v908, %v958
    %v968 = vadd.f32 %v909, %v959
    %v969 = vadd.f32 %v910, %v960
    %v970 = vadd.f32 %v911, %v951
    %v971 = vadd.f32 %v912, %v944
    %v972 = vadd.f32 %v913, %v958
    %v973 = vadd.f32 %v914, %v959
    %v974 = vadd.f32 %v915, %v960
    %v975 = vadd.f32 %v916, %v951
    %v976 = vld [vmem:[%s5] sm:$0x1]
    %v977 = vld [vmem:[%s6] sm:$0x1]
    %v988 = vcombine.low %v966, %v967
    %v989 = vcombine.low %v968, %v969
    %v991 = vunpack.c.l.s4 1966171168
    %v992 = vunpack.c.0.s8 %v991
    %v993 = vlaneseq
    %v994 = vshrl.u32 %v993, 7
    %v995 = vsub.s32 %v992, %v994
    %v996 = vrot.slane %v988, %v995
    %v998 = vunpack.c.l.s4 1966171168
    %v999 = vunpack.c.0.s8 %v998
    %v1000 = vlaneseq
    %v1001 = vshrl.u32 %v1000, 7
    %v1002 = vsub.s32 %v999, %v1001
    %v1003 = vrot.slane %v989, %v1002
    %v1005 = vunpack.c.l.s4 1966171168
    %v1006 = vunpack.c.0.s8 %v1005
    %v1007 = vlaneseq
    %v1008 = vshrl.u32 %v1007, 7
    %v1009 = vsub.s32 %v1006, %v1008
    %v1010 = vrot.slane %v970, %v1009
    %v1011 = vcombine.low %v996, %v1003
    %v1013 = vunpack.c.l.s4 1966171168
    %v1014 = vunpack.c.0.s8 %v1013
    %v1015 = vlaneseq
    %v1016 = vshrl.u32 %v1015, 7
    %v1017 = vsub.s32 %v1014, %v1016
    %v1018 = vrot.slane %v1011, %v1017
    %v1020 = vunpack.c.l.s4 1966171168
    %v1021 = vunpack.c.0.s8 %v1020
    %v1022 = vlaneseq
    %v1023 = vshrl.u32 %v1022, 7
    %v1024 = vsub.s32 %v1021, %v1023
    %v1025 = vrot.slane %v1010, %v1024
    %v1026 = vcombine.low %v1018, %v1025
    %v1027 = vcombine.low %v971, %v972
    %v1028 = vcombine.low %v973, %v974
    %v1030 = vunpack.c.l.s4 1966171168
    %v1031 = vunpack.c.0.s8 %v1030
    %v1032 = vlaneseq
    %v1033 = vshrl.u32 %v1032, 7
    %v1034 = vsub.s32 %v1031, %v1033
    %v1035 = vrot.slane %v1027, %v1034
    %v1037 = vunpack.c.l.s4 1966171168
    %v1038 = vunpack.c.0.s8 %v1037
    %v1039 = vlaneseq
    %v1040 = vshrl.u32 %v1039, 7
    %v1041 = vsub.s32 %v1038, %v1040
    %v1042 = vrot.slane %v1028, %v1041
    %v1044 = vunpack.c.l.s4 1966171168
    %v1045 = vunpack.c.0.s8 %v1044
    %v1046 = vlaneseq
    %v1047 = vshrl.u32 %v1046, 7
    %v1048 = vsub.s32 %v1045, %v1047
    %v1049 = vrot.slane %v975, %v1048
    %v1050 = vcombine.low %v1035, %v1042
    %v1052 = vunpack.c.l.s4 1966171168
    %v1053 = vunpack.c.0.s8 %v1052
    %v1054 = vlaneseq
    %v1055 = vshrl.u32 %v1054, 7
    %v1056 = vsub.s32 %v1053, %v1055
    %v1057 = vrot.slane %v1050, %v1056
    %v1059 = vunpack.c.l.s4 1966171168
    %v1060 = vunpack.c.0.s8 %v1059
    %v1061 = vlaneseq
    %v1062 = vshrl.u32 %v1061, 7
    %v1063 = vsub.s32 %v1060, %v1062
    %v1064 = vrot.slane %v1049, %v1063
    %v1065 = vcombine.low %v1057, %v1064
    %v1068 = vsel %vm612, %v1026, 0.0
    %1069 = vadd.xlane.f32.xlu0 %v1068
    %v1070 = vpop.xlane.xlu0 %1069
    %v1071 = vsel %vm612, %v1065, 0.0
    %1072 = vadd.xlane.f32.xlu0 %v1071
    %v1073 = vpop.xlane.xlu0 %1072
    %v1074 = vmul.f32 %v1070, %v619
    %v1075 = vmul.f32 %v1073, %v619
    %v1078 = vlaneseq
    %v1079 = vshrl.u32 %v1078, 7
    %v1080 = vsub.s32 0, %v1079
    %v1081 = vrot.slane %v1074, %v1080
    %v1082 = vlaneseq
    %v1083 = vshrl.u32 %v1082, 7
    %v1084 = vsub.s32 1, %v1083
    %v1085 = vrot.slane %v1074, %v1084
    %v1086 = vlaneseq
    %v1087 = vshrl.u32 %v1086, 7
    %v1088 = vsub.s32 2, %v1087
    %v1089 = vrot.slane %v1074, %v1088
    %v1090 = vlaneseq
    %v1091 = vshrl.u32 %v1090, 7
    %v1092 = vsub.s32 3, %v1091
    %v1093 = vrot.slane %v1074, %v1092
    %v1094 = vlaneseq
    %v1095 = vshrl.u32 %v1094, 7
    %v1096 = vsub.s32 4, %v1095
    %v1097 = vrot.slane %v1074, %v1096
    %v1098 = vlaneseq
    %v1099 = vshrl.u32 %v1098, 7
    %v1100 = vsub.s32 0, %v1099
    %v1101 = vrot.slane %v1075, %v1100
    %v1102 = vlaneseq
    %v1103 = vshrl.u32 %v1102, 7
    %v1104 = vsub.s32 1, %v1103
    %v1105 = vrot.slane %v1075, %v1104
    %v1106 = vlaneseq
    %v1107 = vshrl.u32 %v1106, 7
    %v1108 = vsub.s32 2, %v1107
    %v1109 = vrot.slane %v1075, %v1108
    %v1110 = vlaneseq
    %v1111 = vshrl.u32 %v1110, 7
    %v1112 = vsub.s32 3, %v1111
    %v1113 = vrot.slane %v1075, %v1112
    %v1114 = vlaneseq
    %v1115 = vshrl.u32 %v1114, 7
    %v1116 = vsub.s32 4, %v1115
    %v1117 = vrot.slane %v1075, %v1116
    %v1128 = vsub.f32 %v966, %v1081
    %v1129 = vsub.f32 %v967, %v1085
    %v1130 = vsub.f32 %v968, %v1089
    %v1131 = vsub.f32 %v969, %v1093
    %v1132 = vsub.f32 %v970, %v1097
    %v1133 = vsub.f32 %v971, %v1101
    %v1134 = vsub.f32 %v972, %v1105
    %v1135 = vsub.f32 %v973, %v1109
    %v1136 = vsub.f32 %v974, %v1113
    %v1137 = vsub.f32 %v975, %v1117
    %v1138 = vmul.f32 %v1128, %v1128
    %v1139 = vmul.f32 %v1129, %v1129
    %v1140 = vmul.f32 %v1130, %v1130
    %v1141 = vmul.f32 %v1131, %v1131
    %v1142 = vmul.f32 %v1132, %v1132
    %v1143 = vmul.f32 %v1133, %v1133
    %v1144 = vmul.f32 %v1134, %v1134
    %v1145 = vmul.f32 %v1135, %v1135
    %v1146 = vmul.f32 %v1136, %v1136
    %v1147 = vmul.f32 %v1137, %v1137
    %v1158 = vcombine.low %v1138, %v1139
    %v1159 = vcombine.low %v1140, %v1141
    %v1161 = vunpack.c.l.s4 1966171168
    %v1162 = vunpack.c.0.s8 %v1161
    %v1163 = vlaneseq
    %v1164 = vshrl.u32 %v1163, 7
    %v1165 = vsub.s32 %v1162, %v1164
    %v1166 = vrot.slane %v1158, %v1165
    %v1168 = vunpack.c.l.s4 1966171168
    %v1169 = vunpack.c.0.s8 %v1168
    %v1170 = vlaneseq
    %v1171 = vshrl.u32 %v1170, 7
    %v1172 = vsub.s32 %v1169, %v1171
    %v1173 = vrot.slane %v1159, %v1172
    %v1175 = vunpack.c.l.s4 1966171168
    %v1176 = vunpack.c.0.s8 %v1175
    %v1177 = vlaneseq
    %v1178 = vshrl.u32 %v1177, 7
    %v1179 = vsub.s32 %v1176, %v1178
    %v1180 = vrot.slane %v1142, %v1179
    %v1181 = vcombine.low %v1166, %v1173
    %v1183 = vunpack.c.l.s4 1966171168
    %v1184 = vunpack.c.0.s8 %v1183
    %v1185 = vlaneseq
    %v1186 = vshrl.u32 %v1185, 7
    %v1187 = vsub.s32 %v1184, %v1186
    %v1188 = vrot.slane %v1181, %v1187
    %v1190 = vunpack.c.l.s4 1966171168
    %v1191 = vunpack.c.0.s8 %v1190
    %v1192 = vlaneseq
    %v1193 = vshrl.u32 %v1192, 7
    %v1194 = vsub.s32 %v1191, %v1193
    %v1195 = vrot.slane %v1180, %v1194
    %v1196 = vcombine.low %v1188, %v1195
    %v1197 = vcombine.low %v1143, %v1144
    %v1198 = vcombine.low %v1145, %v1146
    %v1200 = vunpack.c.l.s4 1966171168
    %v1201 = vunpack.c.0.s8 %v1200
    %v1202 = vlaneseq
    %v1203 = vshrl.u32 %v1202, 7
    %v1204 = vsub.s32 %v1201, %v1203
    %v1205 = vrot.slane %v1197, %v1204
    %v1207 = vunpack.c.l.s4 1966171168
    %v1208 = vunpack.c.0.s8 %v1207
    %v1209 = vlaneseq
    %v1210 = vshrl.u32 %v1209, 7
    %v1211 = vsub.s32 %v1208, %v1210
    %v1212 = vrot.slane %v1198, %v1211
    %v1214 = vunpack.c.l.s4 1966171168
    %v1215 = vunpack.c.0.s8 %v1214
    %v1216 = vlaneseq
    %v1217 = vshrl.u32 %v1216, 7
    %v1218 = vsub.s32 %v1215, %v1217
    %v1219 = vrot.slane %v1147, %v1218
    %v1220 = vcombine.low %v1205, %v1212
    %v1222 = vunpack.c.l.s4 1966171168
    %v1223 = vunpack.c.0.s8 %v1222
    %v1224 = vlaneseq
    %v1225 = vshrl.u32 %v1224, 7
    %v1226 = vsub.s32 %v1223, %v1225
    %v1227 = vrot.slane %v1220, %v1226
    %v1229 = vunpack.c.l.s4 1966171168
    %v1230 = vunpack.c.0.s8 %v1229
    %v1231 = vlaneseq
    %v1232 = vshrl.u32 %v1231, 7
    %v1233 = vsub.s32 %v1230, %v1232
    %v1234 = vrot.slane %v1219, %v1233
    %v1235 = vcombine.low %v1227, %v1234
    %v1238 = vsel %vm612, %v1196, 0.0
    %1239 = vadd.xlane.f32.xlu0 %v1238
    %v1240 = vpop.xlane.xlu0 %1239
    %v1241 = vsel %vm612, %v1235, 0.0
    %1242 = vadd.xlane.f32.xlu0 %v1241
    %v1243 = vpop.xlane.xlu0 %1242
    %v1244 = vmul.f32 %v1240, %v619
    %v1245 = vmul.f32 %v1243, %v619
    %v1246 = vadd.f32 %v1244, 1e-05
    %v1247 = vadd.f32 %v1245, 1e-05
    %v1248 = vrsqrt.pop %v1246
    %v1249 = vrsqrt.pop %v1247
    %v1252 = vlaneseq
    %v1253 = vshrl.u32 %v1252, 7
    %v1254 = vsub.s32 0, %v1253
    %v1255 = vrot.slane %v1248, %v1254
    %v1256 = vlaneseq
    %v1257 = vshrl.u32 %v1256, 7
    %v1258 = vsub.s32 1, %v1257
    %v1259 = vrot.slane %v1248, %v1258
    %v1260 = vlaneseq
    %v1261 = vshrl.u32 %v1260, 7
    %v1262 = vsub.s32 2, %v1261
    %v1263 = vrot.slane %v1248, %v1262
    %v1264 = vlaneseq
    %v1265 = vshrl.u32 %v1264, 7
    %v1266 = vsub.s32 3, %v1265
    %v1267 = vrot.slane %v1248, %v1266
    %v1268 = vlaneseq
    %v1269 = vshrl.u32 %v1268, 7
    %v1270 = vsub.s32 4, %v1269
    %v1271 = vrot.slane %v1248, %v1270
    %v1272 = vlaneseq
    %v1273 = vshrl.u32 %v1272, 7
    %v1274 = vsub.s32 0, %v1273
    %v1275 = vrot.slane %v1249, %v1274
    %v1276 = vlaneseq
    %v1277 = vshrl.u32 %v1276, 7
    %v1278 = vsub.s32 1, %v1277
    %v1279 = vrot.slane %v1249, %v1278
    %v1280 = vlaneseq
    %v1281 = vshrl.u32 %v1280, 7
    %v1282 = vsub.s32 2, %v1281
    %v1283 = vrot.slane %v1249, %v1282
    %v1284 = vlaneseq
    %v1285 = vshrl.u32 %v1284, 7
    %v1286 = vsub.s32 3, %v1285
    %v1287 = vrot.slane %v1249, %v1286
    %v1288 = vlaneseq
    %v1289 = vshrl.u32 %v1288, 7
    %v1290 = vsub.s32 4, %v1289
    %v1291 = vrot.slane %v1249, %v1290
    %v1302 = vmul.f32 %v1128, %v1255
    %v1303 = vmul.f32 %v1129, %v1259
    %v1304 = vmul.f32 %v1130, %v1263
    %v1305 = vmul.f32 %v1131, %v1267
    %v1306 = vmul.f32 %v1132, %v1271
    %v1307 = vmul.f32 %v1133, %v1275
    %v1308 = vmul.f32 %v1134, %v1279
    %v1309 = vmul.f32 %v1135, %v1283
    %v1310 = vmul.f32 %v1136, %v1287
    %v1311 = vmul.f32 %v1137, %v1291
    %v1313 = vlaneseq
    %v1314 = vshrl.u32 %v1313, 7
    %v1315 = vsub.s32 0, %v1314
    %v1316 = vrot.slane %v976, %v1315
    %v1317 = vcombine.high %v1316, %v1316
    %v1319 = vunpack.c.l.s4 1966171168
    %v1320 = vunpack.c.0.s8 %v1319
    %v1321 = vlaneseq
    %v1322 = vshrl.u32 %v1321, 7
    %v1323 = vsub.s32 %v1320, %v1322
    %v1324 = vrot.slane %v1316, %v1323
    %v1326 = vunpack.c.l.s4 1966171168
    %v1327 = vunpack.c.0.s8 %v1326
    %v1328 = vlaneseq
    %v1329 = vshrl.u32 %v1328, 7
    %v1330 = vsub.s32 %v1327, %v1329
    %v1331 = vrot.slane %v1317, %v1330
    %v1332 = vcombine.high %v1324, %v1324
    %v1334 = vunpack.c.l.s4 1966171168
    %v1335 = vunpack.c.0.s8 %v1334
    %v1336 = vlaneseq
    %v1337 = vshrl.u32 %v1336, 7
    %v1338 = vsub.s32 %v1335, %v1337
    %v1339 = vrot.slane %v1324, %v1338
    %v1341 = vunpack.c.l.s4 1966171168
    %v1342 = vunpack.c.0.s8 %v1341
    %v1343 = vlaneseq
    %v1344 = vshrl.u32 %v1343, 7
    %v1345 = vsub.s32 %v1342, %v1344
    %v1346 = vrot.slane %v1331, %v1345
    %v1348 = vunpack.c.l.s4 1966171168
    %v1349 = vunpack.c.0.s8 %v1348
    %v1350 = vlaneseq
    %v1351 = vshrl.u32 %v1350, 7
    %v1352 = vsub.s32 %v1349, %v1351
    %v1353 = vrot.slane %v1332, %v1352
    %v1354 = vcombine.high %v1339, %v1339
    %v1355 = vcombine.high %v1353, %v1353
    %v1361 = vmul.f32 %v1302, %v1339
    %v1362 = vmul.f32 %v1303, %v1353
    %v1363 = vmul.f32 %v1304, %v1354
    %v1364 = vmul.f32 %v1305, %v1355
    %v1365 = vmul.f32 %v1306, %v1346
    %v1366 = vmul.f32 %v1307, %v1339
    %v1367 = vmul.f32 %v1308, %v1353
    %v1368 = vmul.f32 %v1309, %v1354
    %v1369 = vmul.f32 %v1310, %v1355
    %v1370 = vmul.f32 %v1311, %v1346
    %v1372 = vlaneseq
    %v1373 = vshrl.u32 %v1372, 7
    %v1374 = vsub.s32 0, %v1373
    %v1375 = vrot.slane %v977, %v1374
    %v1376 = vcombine.high %v1375, %v1375
    %v1378 = vunpack.c.l.s4 1966171168
    %v1379 = vunpack.c.0.s8 %v1378
    %v1380 = vlaneseq
    %v1381 = vshrl.u32 %v1380, 7
    %v1382 = vsub.s32 %v1379, %v1381
    %v1383 = vrot.slane %v1375, %v1382
    %v1385 = vunpack.c.l.s4 1966171168
    %v1386 = vunpack.c.0.s8 %v1385
    %v1387 = vlaneseq
    %v1388 = vshrl.u32 %v1387, 7
    %v1389 = vsub.s32 %v1386, %v1388
    %v1390 = vrot.slane %v1376, %v1389
    %v1391 = vcombine.high %v1383, %v1383
    %v1393 = vunpack.c.l.s4 1966171168
    %v1394 = vunpack.c.0.s8 %v1393
    %v1395 = vlaneseq
    %v1396 = vshrl.u32 %v1395, 7
    %v1397 = vsub.s32 %v1394, %v1396
    %v1398 = vrot.slane %v1383, %v1397
    %v1400 = vunpack.c.l.s4 1966171168
    %v1401 = vunpack.c.0.s8 %v1400
    %v1402 = vlaneseq
    %v1403 = vshrl.u32 %v1402, 7
    %v1404 = vsub.s32 %v1401, %v1403
    %v1405 = vrot.slane %v1390, %v1404
    %v1407 = vunpack.c.l.s4 1966171168
    %v1408 = vunpack.c.0.s8 %v1407
    %v1409 = vlaneseq
    %v1410 = vshrl.u32 %v1409, 7
    %v1411 = vsub.s32 %v1408, %v1410
    %v1412 = vrot.slane %v1391, %v1411
    %v1413 = vcombine.high %v1398, %v1398
    %v1414 = vcombine.high %v1412, %v1412
    %v1420 = vadd.f32 %v1361, %v1398
    %v1421 = vadd.f32 %v1362, %v1412
    %v1422 = vadd.f32 %v1363, %v1413
    %v1423 = vadd.f32 %v1364, %v1414
    %v1424 = vadd.f32 %v1365, %v1405
    %v1425 = vadd.f32 %v1366, %v1398
    %v1426 = vadd.f32 %v1367, %v1412
    %v1427 = vadd.f32 %v1368, %v1413
    %v1428 = vadd.f32 %v1369, %v1414
    %v1429 = vadd.f32 %v1370, %v1405
    %v1440 = vcombine.low %v1420, %v1421
    %v1441 = vcombine.low %v1422, %v1423
    %v1443 = vunpack.c.l.s4 1966171168
    %v1444 = vunpack.c.0.s8 %v1443
    %v1445 = vlaneseq
    %v1446 = vshrl.u32 %v1445, 7
    %v1447 = vsub.s32 %v1444, %v1446
    %v1448 = vrot.slane %v1440, %v1447
    %v1450 = vunpack.c.l.s4 1966171168
    %v1451 = vunpack.c.0.s8 %v1450
    %v1452 = vlaneseq
    %v1453 = vshrl.u32 %v1452, 7
    %v1454 = vsub.s32 %v1451, %v1453
    %v1455 = vrot.slane %v1441, %v1454
    %v1457 = vunpack.c.l.s4 1966171168
    %v1458 = vunpack.c.0.s8 %v1457
    %v1459 = vlaneseq
    %v1460 = vshrl.u32 %v1459, 7
    %v1461 = vsub.s32 %v1458, %v1460
    %v1462 = vrot.slane %v1424, %v1461
    %v1463 = vcombine.low %v1448, %v1455
    %v1465 = vunpack.c.l.s4 1966171168
    %v1466 = vunpack.c.0.s8 %v1465
    %v1467 = vlaneseq
    %v1468 = vshrl.u32 %v1467, 7
    %v1469 = vsub.s32 %v1466, %v1468
    %v1470 = vrot.slane %v1463, %v1469
    %v1472 = vunpack.c.l.s4 1966171168
    %v1473 = vunpack.c.0.s8 %v1472
    %v1474 = vlaneseq
    %v1475 = vshrl.u32 %v1474, 7
    %v1476 = vsub.s32 %v1473, %v1475
    %v1477 = vrot.slane %v1462, %v1476
    %v1478 = vcombine.low %v1470, %v1477
    %v1479 = vcombine.low %v1425, %v1426
    %v1480 = vcombine.low %v1427, %v1428
    %v1482 = vunpack.c.l.s4 1966171168
    %v1483 = vunpack.c.0.s8 %v1482
    %v1484 = vlaneseq
    %v1485 = vshrl.u32 %v1484, 7
    %v1486 = vsub.s32 %v1483, %v1485
    %v1487 = vrot.slane %v1479, %v1486
    %v1489 = vunpack.c.l.s4 1966171168
    %v1490 = vunpack.c.0.s8 %v1489
    %v1491 = vlaneseq
    %v1492 = vshrl.u32 %v1491, 7
    %v1493 = vsub.s32 %v1490, %v1492
    %v1494 = vrot.slane %v1480, %v1493
    %v1496 = vunpack.c.l.s4 1966171168
    %v1497 = vunpack.c.0.s8 %v1496
    %v1498 = vlaneseq
    %v1499 = vshrl.u32 %v1498, 7
    %v1500 = vsub.s32 %v1497, %v1499
    %v1501 = vrot.slane %v1429, %v1500
    %v1502 = vcombine.low %v1487, %v1494
    %v1504 = vunpack.c.l.s4 1966171168
    %v1505 = vunpack.c.0.s8 %v1504
    %v1506 = vlaneseq
    %v1507 = vshrl.u32 %v1506, 7
    %v1508 = vsub.s32 %v1505, %v1507
    %v1509 = vrot.slane %v1502, %v1508
    %v1511 = vunpack.c.l.s4 1966171168
    %v1512 = vunpack.c.0.s8 %v1511
    %v1513 = vlaneseq
    %v1514 = vshrl.u32 %v1513, 7
    %v1515 = vsub.s32 %v1512, %v1514
    %v1516 = vrot.slane %v1501, %v1515
    %v1517 = vcombine.low %v1509, %v1516
    %v1520 = vpack.c.bf16 %v1478, %v1478
    %v1521 = vpack.c.bf16 %v1517, %v1517
    %v1522 = vld [vmem:[%s7] sm:$0xf]
    %v1523 = vld [vmem:[%s7 + $0x4] sm:$0xf]
    %v1524 = vld [vmem:[%s7 + $0x8] sm:$0xf]
    %v1525 = vld [vmem:[%s7 + $0xc] sm:$0xf]
    %v1526 = vld [vmem:[%s8] sm:$0x1]
    %v1528 = vlaneseq
    %v1529 = vshrl.u32 %v1528, 7
    %v1530 = vsub.s32 0, %v1529
    %v1531 = vrot.slane %v1526, %v1530
    %v1535 = vunpack.c.l.s4 1966171168
    %v1536 = vunpack.c.0.s8 %v1535
    %v1537 = vlaneseq
    %v1538 = vshrl.u32 %v1537, 7
    %v1539 = vsub.s32 %v1536, %v1538
    %v1540 = vrot.slane %v1520, %v1539
    %v1541 = vcombine.high %v1540, %v1540
    %v1543 = vunpack.c.l.s4 1966171168
    %v1544 = vunpack.c.0.s8 %v1543
    %v1545 = vlaneseq
    %v1546 = vshrl.u32 %v1545, 7
    %v1547 = vsub.s32 %v1544, %v1546
    %v1548 = vrot.slane %v1540, %v1547
    %v1550 = vunpack.c.l.s4 1966171168
    %v1551 = vunpack.c.0.s8 %v1550
    %v1552 = vlaneseq
    %v1553 = vshrl.u32 %v1552, 7
    %v1554 = vsub.s32 %v1551, %v1553
    %v1555 = vrot.slane %v1541, %v1554
    %v1556 = vcombine.high %v1548, %v1548
    %v1558 = vunpack.c.l.s4 1966171168
    %v1559 = vunpack.c.0.s8 %v1558
    %v1560 = vlaneseq
    %v1561 = vshrl.u32 %v1560, 7
    %v1562 = vsub.s32 %v1559, %v1561
    %v1563 = vrot.slane %v1521, %v1562
    %v1564 = vcombine.high %v1563, %v1563
    %v1566 = vunpack.c.l.s4 1966171168
    %v1567 = vunpack.c.0.s8 %v1566
    %v1568 = vlaneseq
    %v1569 = vshrl.u32 %v1568, 7
    %v1570 = vsub.s32 %v1567, %v1569
    %v1571 = vrot.slane %v1563, %v1570
    %v1573 = vunpack.c.l.s4 1966171168
    %v1574 = vunpack.c.0.s8 %v1573
    %v1575 = vlaneseq
    %v1576 = vshrl.u32 %v1575, 7
    %v1577 = vsub.s32 %v1574, %v1576
    %v1578 = vrot.slane %v1564, %v1577
    %v1579 = vcombine.high %v1571, %v1571
    %v1580 = vunpack.i.l.s16 %v1548
    %v1581 = vunpack.i.h.s16 %v1548
    %v1582 = vunpack.i.l.s16 %v1555
    %v1583 = vunpack.i.h.s16 %v1555
    %v1584 = vunpack.i.l.s16 %v1556
    %v1585 = vunpack.i.l.s16 %v1571
    %v1586 = vunpack.i.h.s16 %v1571
    %v1587 = vunpack.i.l.s16 %v1578
    %v1588 = vunpack.i.h.s16 %v1578
    %v1589 = vunpack.i.l.s16 %v1579
    %v1590 = vcombine.high %v1531, %v1531
    %v1592 = vunpack.c.l.s4 1966171168
    %v1593 = vunpack.c.0.s8 %v1592
    %v1594 = vlaneseq
    %v1595 = vshrl.u32 %v1594, 7
    %v1596 = vsub.s32 %v1593, %v1595
    %v1597 = vrot.slane %v1531, %v1596
    %v1599 = vunpack.c.l.s4 1966171168
    %v1600 = vunpack.c.0.s8 %v1599
    %v1601 = vlaneseq
    %v1602 = vshrl.u32 %v1601, 7
    %v1603 = vsub.s32 %v1600, %v1602
    %v1604 = vrot.slane %v1590, %v1603
    %v1605 = vcombine.high %v1597, %v1597
    %v1607 = vunpack.c.l.s4 1966171168
    %v1608 = vunpack.c.0.s8 %v1607
    %v1609 = vlaneseq
    %v1610 = vshrl.u32 %v1609, 7
    %v1611 = vsub.s32 %v1608, %v1610
    %v1612 = vrot.slane %v1597, %v1611
    %v1614 = vunpack.c.l.s4 1966171168
    %v1615 = vunpack.c.0.s8 %v1614
    %v1616 = vlaneseq
    %v1617 = vshrl.u32 %v1616, 7
    %v1618 = vsub.s32 %v1615, %v1617
    %v1619 = vrot.slane %v1604, %v1618
    %v1621 = vunpack.c.l.s4 1966171168
    %v1622 = vunpack.c.0.s8 %v1621
    %v1623 = vlaneseq
    %v1624 = vshrl.u32 %v1623, 7
    %v1625 = vsub.s32 %v1622, %v1624
    %v1626 = vrot.slane %v1605, %v1625
    %v1627 = vcombine.high %v1612, %v1612
    %v1628 = vcombine.high %v1626, %v1626
    %v1629 = vpack.i.b16 %v1581, %v1580
    %v1630 = vpack.i.b16 %v1583, %v1582
    %v1631 = vpack.i.b16 %v1585, %v1584
    %v1632 = vpack.i.b16 %v1587, %v1586
    %v1633 = vpack.i.b16 %v1589, %v1588
    %v1634 = vcombine.low %v1629, %v1630
    %v1635 = vcombine.low %v1631, %v1632
    %v1637 = vunpack.c.l.s4 1966171168
    %v1638 = vunpack.c.0.s8 %v1637
    %v1639 = vlaneseq
    %v1640 = vshrl.u32 %v1639, 7
    %v1641 = vsub.s32 %v1638, %v1640
    %v1642 = vrot.slane %v1634, %v1641
    %v1644 = vunpack.c.l.s4 1966171168
    %v1645 = vunpack.c.0.s8 %v1644
    %v1646 = vlaneseq
    %v1647 = vshrl.u32 %v1646, 7
    %v1648 = vsub.s32 %v1645, %v1647
    %v1649 = vrot.slane %v1635, %v1648
    %v1651 = vunpack.c.l.s4 1966171168
    %v1652 = vunpack.c.0.s8 %v1651
    %v1653 = vlaneseq
    %v1654 = vshrl.u32 %v1653, 7
    %v1655 = vsub.s32 %v1652, %v1654
    %v1656 = vrot.slane %v1633, %v1655
    %v1657 = vcombine.low %v1642, %v1649
    %v1659 = vunpack.c.l.s4 1966171168
    %v1660 = vunpack.c.0.s8 %v1659
    %v1661 = vlaneseq
    %v1662 = vshrl.u32 %v1661, 7
    %v1663 = vsub.s32 %v1660, %v1662
    %v1664 = vrot.slane %v1657, %v1663
    %v1666 = vunpack.c.l.s4 1966171168
    %v1667 = vunpack.c.0.s8 %v1666
    %v1668 = vlaneseq
    %v1669 = vshrl.u32 %v1668, 7
    %v1670 = vsub.s32 %v1667, %v1669
    %v1671 = vrot.slane %v1656, %v1670
    %v1672 = vcombine.low %v1664, %v1671
    %v1677 = vunpack.c.l.b16 %v1522
    %v1678 = vunpack.c.l.b16 %v1523
    %v1679 = vunpack.c.l.b16 %v1524
    %v1680 = vunpack.c.l.b16 %v1525
    %v1681 = vpack.c.b16 %v1678, %v1677
    %v1682 = vpack.c.b16 %v1680, %v1679
    %v1685 = vcombine.low %v1612, %v1626
    %v1686 = vcombine.low %v1627, %v1628
    %v1687 = vcombine.low %v1619, %v1612
    %v1688 = vcombine.low %v1626, %v1627
    %v1690 = vunpack.c.l.s4 1966171168
    %v1691 = vunpack.c.0.s8 %v1690
    %v1692 = vlaneseq
    %v1693 = vshrl.u32 %v1692, 7
    %v1694 = vsub.s32 %v1691, %v1693
    %v1695 = vrot.slane %v1685, %v1694
    %v1697 = vunpack.c.l.s4 1966171168
    %v1698 = vunpack.c.0.s8 %v1697
    %v1699 = vlaneseq
    %v1700 = vshrl.u32 %v1699, 7
    %v1701 = vsub.s32 %v1698, %v1700
    %v1702 = vrot.slane %v1686, %v1701
    %v1704 = vunpack.c.l.s4 1966171168
    %v1705 = vunpack.c.0.s8 %v1704
    %v1706 = vlaneseq
    %v1707 = vshrl.u32 %v1706, 7
    %v1708 = vsub.s32 %v1705, %v1707
    %v1709 = vrot.slane %v1687, %v1708
    %v1711 = vunpack.c.l.s4 1966171168
    %v1712 = vunpack.c.0.s8 %v1711
    %v1713 = vlaneseq
    %v1714 = vshrl.u32 %v1713, 7
    %v1715 = vsub.s32 %v1712, %v1714
    %v1716 = vrot.slane %v1688, %v1715
    %v1717 = vcombine.low %v1695, %v1702
    %v1718 = vcombine.low %v1709, %v1716
    %v1720 = vunpack.c.l.s4 1966171168
    %v1721 = vunpack.c.0.s8 %v1720
    %v1722 = vlaneseq
    %v1723 = vshrl.u32 %v1722, 7
    %v1724 = vsub.s32 %v1721, %v1723
    %v1725 = vrot.slane %v1717, %v1724
    %v1727 = vunpack.c.l.s4 1966171168
    %v1728 = vunpack.c.0.s8 %v1727
    %v1729 = vlaneseq
    %v1730 = vshrl.u32 %v1729, 7
    %v1731 = vsub.s32 %v1728, %v1730
    %v1732 = vrot.slane %v1718, %v1731
    %v1733 = vcombine.low %v1725, %v1732
    %v1734 = vcombine.low %v1628, %v1619
    %v1736 = vunpack.c.l.s4 1966171168
    %v1737 = vunpack.c.0.s8 %v1736
    %v1738 = vlaneseq
    %v1739 = vshrl.u32 %v1738, 7
    %v1740 = vsub.s32 %v1737, %v1739
    %v1741 = vrot.slane %v1734, %v1740
    %v1743 = vunpack.c.l.s4 1966171168
    %v1744 = vunpack.c.0.s8 %v1743
    %v1745 = vlaneseq
    %v1746 = vshrl.u32 %v1745, 7
    %v1747 = vsub.s32 %v1744, %v1746
    %v1748 = vrot.slane %v1741, %v1747
    %vm1751 = vcmask 261120
    %v1753 = vsel %vm1751, %v1672, 0
    %1755 = vmatprep.subr.bf16.mxu0 0
    %1756 = vmatpush1.bf16.msra.mxu0 0
    %1757 = vmatprep.subr.bf16.mxu0 0
    %1758 = vmatpush1.bf16.msra.mxu0 0
    %1759 = vmatprep.subr.bf16.mxu0 0
    %1760 = vmatpush1.bf16.msra.mxu0 0
    %1761 = vmatprep.subr.bf16.mxu0 0
    %1762 = vmatpush1.bf16.msra.mxu0 0
    %1763 = vmatprep.subr.bf16.mxu0 0
    %1764 = vmatpush1.bf16.msra.mxu0 0
    %1765 = vmatprep.subr.bf16.mxu0 0
    %1766 = vmatpush1.bf16.msra.mxu0 0
    %1767 = vmatprep.subr.bf16.mxu0 0
    %1768 = vmatpush1.bf16.msra.mxu0 %v1682
    %1769 = vmatprep.subr.bf16.mxu0 0
    %1770 = vmatpush1.bf16.msra.mxu0 %v1681
    %1771 = vmatprep.subr.bf16.mxu0 0
    %1772 = vmatpush2.bf16.msra.mxu0 0
    %1773 = vmatprep.subr.bf16.mxu0 0
    %1774 = vmatpush2.bf16.msra.mxu0 0
    %1775 = vmatprep.subr.bf16.mxu0 0
    %1776 = vmatpush2.bf16.msra.mxu0 0
    %1777 = vmatprep.subr.bf16.mxu0 0
    %1778 = vmatpush2.bf16.msra.mxu0 0
    %1779 = vmatprep.subr.bf16.mxu0 0
    %1780 = vmatpush2.bf16.msra.mxu0 0
    %1781 = vmatprep.subr.bf16.mxu0 0
    %1782 = vmatpush2.bf16.msra.mxu0 0
    %1783 = vmatprep.subr.bf16.mxu0 0
    %1784 = vmatpush2.bf16.msra.mxu0 0
    %1785 = vmatprep.subr.bf16.mxu0 0
    %1786 = vmatpush2.bf16.msra.mxu0 0
    %1787 = vmatprep.mubr.bf16.mxu0 0
    %1788 = vmatmul.mubr.bf16.gmra.mxu0 %v1753
    %v1789 = vpop.f32.mrf.mxu0
    %v1790 = vadd.f32 %v1733, %v1789
    %v1791 = vpop.f32.mrf.mxu0
    %v1792 = vpop.f32.mrf.mxu0
    %v1793 = vadd.f32 %v1748, %v1792
    %v1794 = vpop.f32.mrf.mxu0
    %1795 = vdwg.mxu0
    %v1798 = vcombine.high %v1790, %v1790
    %v1800 = vunpack.c.l.s4 1966171168
    %v1801 = vunpack.c.0.s8 %v1800
    %v1802 = vlaneseq
    %v1803 = vshrl.u32 %v1802, 7
    %v1804 = vsub.s32 %v1801, %v1803
    %v1805 = vrot.slane %v1790, %v1804
    %v1807 = vunpack.c.l.s4 1966171168
    %v1808 = vunpack.c.0.s8 %v1807
    %v1809 = vlaneseq
    %v1810 = vshrl.u32 %v1809, 7
    %v1811 = vsub.s32 %v1808, %v1810
    %v1812 = vrot.slane %v1798, %v1811
    %v1813 = vcombine.high %v1805, %v1805
    %v1814 = vcombine.high %v1812, %v1812
    %v1816 = vunpack.c.l.s4 1966171168
    %v1817 = vunpack.c.0.s8 %v1816
    %v1818 = vlaneseq
    %v1819 = vshrl.u32 %v1818, 7
    %v1820 = vsub.s32 %v1817, %v1819
    %v1821 = vrot.slane %v1805, %v1820
    %v1823 = vunpack.c.l.s4 1966171168
    %v1824 = vunpack.c.0.s8 %v1823
    %v1825 = vlaneseq
    %v1826 = vshrl.u32 %v1825, 7
    %v1827 = vsub.s32 %v1824, %v1826
    %v1828 = vrot.slane %v1812, %v1827
    %v1830 = vunpack.c.l.s4 1966171168
    %v1831 = vunpack.c.0.s8 %v1830
    %v1832 = vlaneseq
    %v1833 = vshrl.u32 %v1832, 7
    %v1834 = vsub.s32 %v1831, %v1833
    %v1835 = vrot.slane %v1813, %v1834
    %v1837 = vunpack.c.l.s4 1966171168
    %v1838 = vunpack.c.0.s8 %v1837
    %v1839 = vlaneseq
    %v1840 = vshrl.u32 %v1839, 7
    %v1841 = vsub.s32 %v1838, %v1840
    %v1842 = vrot.slane %v1814, %v1841
    %v1843 = vcombine.high %v1821, %v1821
    %v1844 = vcombine.high %v1828, %v1828
    %v1845 = vcombine.high %v1835, %v1835
    %v1846 = vcombine.high %v1842, %v1842
    %v1848 = vunpack.c.l.s4 1966171168
    %v1849 = vunpack.c.0.s8 %v1848
    %v1850 = vlaneseq
    %v1851 = vshrl.u32 %v1850, 7
    %v1852 = vsub.s32 %v1849, %v1851
    %v1853 = vrot.slane %v1793, %v1852
    %v1854 = vcombine.high %v1853, %v1853
    %v1856 = vunpack.c.l.s4 1966171168
    %v1857 = vunpack.c.0.s8 %v1856
    %v1858 = vlaneseq
    %v1859 = vshrl.u32 %v1858, 7
    %v1860 = vsub.s32 %v1857, %v1859
    %v1861 = vrot.slane %v1853, %v1860
    %v1863 = vunpack.c.l.s4 1966171168
    %v1864 = vunpack.c.0.s8 %v1863
    %v1865 = vlaneseq
    %v1866 = vshrl.u32 %v1865, 7
    %v1867 = vsub.s32 %v1864, %v1866
    %v1868 = vrot.slane %v1854, %v1867
    %1869 = vrot.lane.b32.xlu0 %v1821, 120
    %v1870 = vpop.permute.xlu0 %1869
    %1871 = vrot.lane.b32.xlu0 %v1835, 120
    %v1872 = vpop.permute.xlu0 %1871
    %1873 = vrot.lane.b32.xlu0 %v1843, 120
    %v1874 = vpop.permute.xlu0 %1873
    %1875 = vrot.lane.b32.xlu0 %v1845, 120
    %v1876 = vpop.permute.xlu0 %1875
    %1877 = vrot.lane.b32.xlu0 %v1828, 120
    %v1878 = vpop.permute.xlu0 %1877
    %1879 = vrot.lane.b32.xlu0 %v1842, 120
    %v1880 = vpop.permute.xlu0 %1879
    %1881 = vrot.lane.b32.xlu0 %v1844, 120
    %v1882 = vpop.permute.xlu0 %1881
    %1883 = vrot.lane.b32.xlu0 %v1846, 120
    %v1884 = vpop.permute.xlu0 %1883
    %1885 = vrot.lane.b32.xlu0 %v1861, 120
    %v1886 = vpop.permute.xlu0 %1885
    %1887 = vrot.lane.b32.xlu0 %v1868, 120
    %v1888 = vpop.permute.xlu0 %1887
    %1889 = vrot.lane.b32.xlu0 %v1821, 112
    %v1890 = vpop.permute.xlu0 %1889
    %1891 = vrot.lane.b32.xlu0 %v1835, 112
    %v1892 = vpop.permute.xlu0 %1891
    %1893 = vrot.lane.b32.xlu0 %v1843, 112
    %v1894 = vpop.permute.xlu0 %1893
    %1895 = vrot.lane.b32.xlu0 %v1845, 112
    %v1896 = vpop.permute.xlu0 %1895
    %1897 = vrot.lane.b32.xlu0 %v1828, 112
    %v1898 = vpop.permute.xlu0 %1897
    %1899 = vrot.lane.b32.xlu0 %v1842, 112
    %v1900 = vpop.permute.xlu0 %1899
    %1901 = vrot.lane.b32.xlu0 %v1844, 112
    %v1902 = vpop.permute.xlu0 %1901
    %1903 = vrot.lane.b32.xlu0 %v1846, 112
    %v1904 = vpop.permute.xlu0 %1903
    %1905 = vrot.lane.b32.xlu0 %v1861, 112
    %v1906 = vpop.permute.xlu0 %1905
    %1907 = vrot.lane.b32.xlu0 %v1868, 112
    %v1908 = vpop.permute.xlu0 %1907
    %1909 = vrot.lane.b32.xlu0 %v1821, 104
    %v1910 = vpop.permute.xlu0 %1909
    %1911 = vrot.lane.b32.xlu0 %v1835, 104
    %v1912 = vpop.permute.xlu0 %1911
    %1913 = vrot.lane.b32.xlu0 %v1843, 104
    %v1914 = vpop.permute.xlu0 %1913
    %1915 = vrot.lane.b32.xlu0 %v1845, 104
    %v1916 = vpop.permute.xlu0 %1915
    %1917 = vrot.lane.b32.xlu0 %v1828, 104
    %v1918 = vpop.permute.xlu0 %1917
    %1919 = vrot.lane.b32.xlu0 %v1842, 104
    %v1920 = vpop.permute.xlu0 %1919
    %1921 = vrot.lane.b32.xlu0 %v1844, 104
    %v1922 = vpop.permute.xlu0 %1921
    %1923 = vrot.lane.b32.xlu0 %v1846, 104
    %v1924 = vpop.permute.xlu0 %1923
    %1925 = vrot.lane.b32.xlu0 %v1861, 104
    %v1926 = vpop.permute.xlu0 %1925
    %1927 = vrot.lane.b32.xlu0 %v1868, 104
    %v1928 = vpop.permute.xlu0 %1927
    %v1929 = vcombine.low %v1821, %v1835
    %v1930 = vcombine.low %v1843, %v1845
    %v1932 = vunpack.c.l.s4 1966171168
    %v1933 = vunpack.c.0.s8 %v1932
    %v1934 = vlaneseq
    %v1935 = vshrl.u32 %v1934, 7
    %v1936 = vsub.s32 %v1933, %v1935
    %v1937 = vrot.slane %v1929, %v1936
    %v1939 = vunpack.c.l.s4 1966171168
    %v1940 = vunpack.c.0.s8 %v1939
    %v1941 = vlaneseq
    %v1942 = vshrl.u32 %v1941, 7
    %v1943 = vsub.s32 %v1940, %v1942
    %v1944 = vrot.slane %v1930, %v1943
    %v1946 = vunpack.c.l.s4 1966171168
    %v1947 = vunpack.c.0.s8 %v1946
    %v1948 = vlaneseq
    %v1949 = vshrl.u32 %v1948, 7
    %v1950 = vsub.s32 %v1947, %v1949
    %v1951 = vrot.slane %v1828, %v1950
    %v1952 = vcombine.low %v1937, %v1944
    %v1954 = vunpack.c.l.s4 1966171168
    %v1955 = vunpack.c.0.s8 %v1954
    %v1956 = vlaneseq
    %v1957 = vshrl.u32 %v1956, 7
    %v1958 = vsub.s32 %v1955, %v1957
    %v1959 = vrot.slane %v1952, %v1958
    %v1961 = vunpack.c.l.s4 1966171168
    %v1962 = vunpack.c.0.s8 %v1961
    %v1963 = vlaneseq
    %v1964 = vshrl.u32 %v1963, 7
    %v1965 = vsub.s32 %v1962, %v1964
    %v1966 = vrot.slane %v1951, %v1965
    %v1967 = vcombine.low %v1959, %v1966
    %v1968 = vcombine.low %v1842, %v1844
    %v1969 = vcombine.low %v1846, %v1861
    %v1971 = vunpack.c.l.s4 1966171168
    %v1972 = vunpack.c.0.s8 %v1971
    %v1973 = vlaneseq
    %v1974 = vshrl.u32 %v1973, 7
    %v1975 = vsub.s32 %v1972, %v1974
    %v1976 = vrot.slane %v1968, %v1975
    %v1978 = vunpack.c.l.s4 1966171168
    %v1979 = vunpack.c.0.s8 %v1978
    %v1980 = vlaneseq
    %v1981 = vshrl.u32 %v1980, 7
    %v1982 = vsub.s32 %v1979, %v1981
    %v1983 = vrot.slane %v1969, %v1982
    %v1985 = vunpack.c.l.s4 1966171168
    %v1986 = vunpack.c.0.s8 %v1985
    %v1987 = vlaneseq
    %v1988 = vshrl.u32 %v1987, 7
    %v1989 = vsub.s32 %v1986, %v1988
    %v1990 = vrot.slane %v1868, %v1989
    %v1991 = vcombine.low %v1976, %v1983
    %v1993 = vunpack.c.l.s4 1966171168
    %v1994 = vunpack.c.0.s8 %v1993
    %v1995 = vlaneseq
    %v1996 = vshrl.u32 %v1995, 7
    %v1997 = vsub.s32 %v1994, %v1996
    %v1998 = vrot.slane %v1991, %v1997
    %v2000 = vunpack.c.l.s4 1966171168
    %v2001 = vunpack.c.0.s8 %v2000
    %v2002 = vlaneseq
    %v2003 = vshrl.u32 %v2002, 7
    %v2004 = vsub.s32 %v2001, %v2003
    %v2005 = vrot.slane %v1990, %v2004
    %v2006 = vcombine.low %v1998, %v2005
    %v2007 = vcombine.low %v1870, %v1872
    %v2008 = vcombine.low %v1874, %v1876
    %v2010 = vunpack.c.l.s4 1966171168
    %v2011 = vunpack.c.0.s8 %v2010
    %v2012 = vlaneseq
    %v2013 = vshrl.u32 %v2012, 7
    %v2014 = vsub.s32 %v2011, %v2013
    %v2015 = vrot.slane %v2007, %v2014
    %v2017 = vunpack.c.l.s4 1966171168
    %v2018 = vunpack.c.0.s8 %v2017
    %v2019 = vlaneseq
    %v2020 = vshrl.u32 %v2019, 7
    %v2021 = vsub.s32 %v2018, %v2020
    %v2022 = vrot.slane %v2008, %v2021
    %v2024 = vunpack.c.l.s4 1966171168
    %v2025 = vunpack.c.0.s8 %v2024
    %v2026 = vlaneseq
    %v2027 = vshrl.u32 %v2026, 7
    %v2028 = vsub.s32 %v2025, %v2027
    %v2029 = vrot.slane %v1878, %v2028
    %v2030 = vcombine.low %v2015, %v2022
    %v2032 = vunpack.c.l.s4 1966171168
    %v2033 = vunpack.c.0.s8 %v2032
    %v2034 = vlaneseq
    %v2035 = vshrl.u32 %v2034, 7
    %v2036 = vsub.s32 %v2033, %v2035
    %v2037 = vrot.slane %v2030, %v2036
    %v2039 = vunpack.c.l.s4 1966171168
    %v2040 = vunpack.c.0.s8 %v2039
    %v2041 = vlaneseq
    %v2042 = vshrl.u32 %v2041, 7
    %v2043 = vsub.s32 %v2040, %v2042
    %v2044 = vrot.slane %v2029, %v2043
    %v2045 = vcombine.low %v2037, %v2044
    %v2046 = vcombine.low %v1880, %v1882
    %v2047 = vcombine.low %v1884, %v1886
    %v2049 = vunpack.c.l.s4 1966171168
    %v2050 = vunpack.c.0.s8 %v2049
    %v2051 = vlaneseq
    %v2052 = vshrl.u32 %v2051, 7
    %v2053 = vsub.s32 %v2050, %v2052
    %v2054 = vrot.slane %v2046, %v2053
    %v2056 = vunpack.c.l.s4 1966171168
    %v2057 = vunpack.c.0.s8 %v2056
    %v2058 = vlaneseq
    %v2059 = vshrl.u32 %v2058, 7
    %v2060 = vsub.s32 %v2057, %v2059
    %v2061 = vrot.slane %v2047, %v2060
    %v2063 = vunpack.c.l.s4 1966171168
    %v2064 = vunpack.c.0.s8 %v2063
    %v2065 = vlaneseq
    %v2066 = vshrl.u32 %v2065, 7
    %v2067 = vsub.s32 %v2064, %v2066
    %v2068 = vrot.slane %v1888, %v2067
    %v2069 = vcombine.low %v2054, %v2061
    %v2071 = vunpack.c.l.s4 1966171168
    %v2072 = vunpack.c.0.s8 %v2071
    %v2073 = vlaneseq
    %v2074 = vshrl.u32 %v2073, 7
    %v2075 = vsub.s32 %v2072, %v2074
    %v2076 = vrot.slane %v2069, %v2075
    %v2078 = vunpack.c.l.s4 1966171168
    %v2079 = vunpack.c.0.s8 %v2078
    %v2080 = vlaneseq
    %v2081 = vshrl.u32 %v2080, 7
    %v2082 = vsub.s32 %v2079, %v2081
    %v2083 = vrot.slane %v2068, %v2082
    %v2084 = vcombine.low %v2076, %v2083
    %v2085 = vcombine.low %v1890, %v1892
    %v2086 = vcombine.low %v1894, %v1896
    %v2088 = vunpack.c.l.s4 1966171168
    %v2089 = vunpack.c.0.s8 %v2088
    %v2090 = vlaneseq
    %v2091 = vshrl.u32 %v2090, 7
    %v2092 = vsub.s32 %v2089, %v2091
    %v2093 = vrot.slane %v2085, %v2092
    %v2095 = vunpack.c.l.s4 1966171168
    %v2096 = vunpack.c.0.s8 %v2095
    %v2097 = vlaneseq
    %v2098 = vshrl.u32 %v2097, 7
    %v2099 = vsub.s32 %v2096, %v2098
    %v2100 = vrot.slane %v2086, %v2099
    %v2102 = vunpack.c.l.s4 1966171168
    %v2103 = vunpack.c.0.s8 %v2102
    %v2104 = vlaneseq
    %v2105 = vshrl.u32 %v2104, 7
    %v2106 = vsub.s32 %v2103, %v2105
    %v2107 = vrot.slane %v1898, %v2106
    %v2108 = vcombine.low %v2093, %v2100
    %v2110 = vunpack.c.l.s4 1966171168
    %v2111 = vunpack.c.0.s8 %v2110
    %v2112 = vlaneseq
    %v2113 = vshrl.u32 %v2112, 7
    %v2114 = vsub.s32 %v2111, %v2113
    %v2115 = vrot.slane %v2108, %v2114
    %v2117 = vunpack.c.l.s4 1966171168
    %v2118 = vunpack.c.0.s8 %v2117
    %v2119 = vlaneseq
    %v2120 = vshrl.u32 %v2119, 7
    %v2121 = vsub.s32 %v2118, %v2120
    %v2122 = vrot.slane %v2107, %v2121
    %v2123 = vcombine.low %v2115, %v2122
    %v2124 = vcombine.low %v1900, %v1902
    %v2125 = vcombine.low %v1904, %v1906
    %v2127 = vunpack.c.l.s4 1966171168
    %v2128 = vunpack.c.0.s8 %v2127
    %v2129 = vlaneseq
    %v2130 = vshrl.u32 %v2129, 7
    %v2131 = vsub.s32 %v2128, %v2130
    %v2132 = vrot.slane %v2124, %v2131
    %v2134 = vunpack.c.l.s4 1966171168
    %v2135 = vunpack.c.0.s8 %v2134
    %v2136 = vlaneseq
    %v2137 = vshrl.u32 %v2136, 7
    %v2138 = vsub.s32 %v2135, %v2137
    %v2139 = vrot.slane %v2125, %v2138
    %v2141 = vunpack.c.l.s4 1966171168
    %v2142 = vunpack.c.0.s8 %v2141
    %v2143 = vlaneseq
    %v2144 = vshrl.u32 %v2143, 7
    %v2145 = vsub.s32 %v2142, %v2144
    %v2146 = vrot.slane %v1908, %v2145
    %v2147 = vcombine.low %v2132, %v2139
    %v2149 = vunpack.c.l.s4 1966171168
    %v2150 = vunpack.c.0.s8 %v2149
    %v2151 = vlaneseq
    %v2152 = vshrl.u32 %v2151, 7
    %v2153 = vsub.s32 %v2150, %v2152
    %v2154 = vrot.slane %v2147, %v2153
    %v2156 = vunpack.c.l.s4 1966171168
    %v2157 = vunpack.c.0.s8 %v2156
    %v2158 = vlaneseq
    %v2159 = vshrl.u32 %v2158, 7
    %v2160 = vsub.s32 %v2157, %v2159
    %v2161 = vrot.slane %v2146, %v2160
    %v2162 = vcombine.low %v2154, %v2161
    %v2163 = vcombine.low %v1910, %v1912
    %v2164 = vcombine.low %v1914, %v1916
    %v2166 = vunpack.c.l.s4 1966171168
    %v2167 = vunpack.c.0.s8 %v2166
    %v2168 = vlaneseq
    %v2169 = vshrl.u32 %v2168, 7
    %v2170 = vsub.s32 %v2167, %v2169
    %v2171 = vrot.slane %v2163, %v2170
    %v2173 = vunpack.c.l.s4 1966171168
    %v2174 = vunpack.c.0.s8 %v2173
    %v2175 = vlaneseq
    %v2176 = vshrl.u32 %v2175, 7
    %v2177 = vsub.s32 %v2174, %v2176
    %v2178 = vrot.slane %v2164, %v2177
    %v2180 = vunpack.c.l.s4 1966171168
    %v2181 = vunpack.c.0.s8 %v2180
    %v2182 = vlaneseq
    %v2183 = vshrl.u32 %v2182, 7
    %v2184 = vsub.s32 %v2181, %v2183
    %v2185 = vrot.slane %v1918, %v2184
    %v2186 = vcombine.low %v2171, %v2178
    %v2188 = vunpack.c.l.s4 1966171168
    %v2189 = vunpack.c.0.s8 %v2188
    %v2190 = vlaneseq
    %v2191 = vshrl.u32 %v2190, 7
    %v2192 = vsub.s32 %v2189, %v2191
    %v2193 = vrot.slane %v2186, %v2192
    %v2195 = vunpack.c.l.s4 1966171168
    %v2196 = vunpack.c.0.s8 %v2195
    %v2197 = vlaneseq
    %v2198 = vshrl.u32 %v2197, 7
    %v2199 = vsub.s32 %v2196, %v2198
    %v2200 = vrot.slane %v2185, %v2199
    %v2201 = vcombine.low %v2193, %v2200
    %v2202 = vcombine.low %v1920, %v1922
    %v2203 = vcombine.low %v1924, %v1926
    %v2205 = vunpack.c.l.s4 1966171168
    %v2206 = vunpack.c.0.s8 %v2205
    %v2207 = vlaneseq
    %v2208 = vshrl.u32 %v2207, 7
    %v2209 = vsub.s32 %v2206, %v2208
    %v2210 = vrot.slane %v2202, %v2209
    %v2212 = vunpack.c.l.s4 1966171168
    %v2213 = vunpack.c.0.s8 %v2212
    %v2214 = vlaneseq
    %v2215 = vshrl.u32 %v2214, 7
    %v2216 = vsub.s32 %v2213, %v2215
    %v2217 = vrot.slane %v2203, %v2216
    %v2219 = vunpack.c.l.s4 1966171168
    %v2220 = vunpack.c.0.s8 %v2219
    %v2221 = vlaneseq
    %v2222 = vshrl.u32 %v2221, 7
    %v2223 = vsub.s32 %v2220, %v2222
    %v2224 = vrot.slane %v1928, %v2223
    %v2225 = vcombine.low %v2210, %v2217
    %v2227 = vunpack.c.l.s4 1966171168
    %v2228 = vunpack.c.0.s8 %v2227
    %v2229 = vlaneseq
    %v2230 = vshrl.u32 %v2229, 7
    %v2231 = vsub.s32 %v2228, %v2230
    %v2232 = vrot.slane %v2225, %v2231
    %v2234 = vunpack.c.l.s4 1966171168
    %v2235 = vunpack.c.0.s8 %v2234
    %v2236 = vlaneseq
    %v2237 = vshrl.u32 %v2236, 7
    %v2238 = vsub.s32 %v2235, %v2237
    %v2239 = vrot.slane %v2224, %v2238
    %v2240 = vcombine.low %v2232, %v2239
    %v2249 = vpack.c.bf16 %v1967, %v1967
    %v2250 = vpack.c.bf16 %v2006, %v2006
    %v2251 = vpack.c.bf16 %v2045, %v2045
    %v2252 = vpack.c.bf16 %v2084, %v2084
    %v2253 = vpack.c.bf16 %v2123, %v2123
    %v2254 = vpack.c.bf16 %v2162, %v2162
    %v2255 = vpack.c.bf16 %v2201, %v2201
    %v2256 = vpack.c.bf16 %v2240, %v2240
    %2258 = vrot.lane.b32.xlu0 %v2249, 96
    %v2259 = vpop.permute.xlu0 %2258
    %vm2260 = vcmask 64512
    %v2262 = vsel %vm2260, %v2249, 0
    %v2265 = vsel %vm2260, %v2259, 0
    %2267 = vmatprep.subr.bf16.mxu0 0
    %2268 = vmatpush1.bf16.xpose.msra.mxu0 0
    %2269 = vmatprep.subr.bf16.mxu0 0
    %2270 = vmatpush1.bf16.xpose.msra.mxu0 0
    %2271 = vmatprep.subr.bf16.mxu0 0
    %2272 = vmatpush1.bf16.xpose.msra.mxu0 0
    %2273 = vmatprep.subr.bf16.mxu0 0
    %2274 = vmatpush1.bf16.xpose.msra.mxu0 0
    %2275 = vmatprep.subr.bf16.mxu0 0
    %2276 = vmatpush1.bf16.xpose.msra.mxu0 0
    %2277 = vmatprep.subr.bf16.mxu0 0
    %2278 = vmatpush1.bf16.xpose.msra.mxu0 0
    %2279 = vmatprep.subr.bf16.mxu0 0
    %2280 = vmatpush1.bf16.xpose.msra.mxu0 0
    %2281 = vmatprep.subr.bf16.mxu0 0
    %2282 = vmatpush1.bf16.xpose.msra.mxu0 %v2265
    %2283 = vmatprep.subr.bf16.mxu0 0
    %2284 = vmatpush2.bf16.xpose.msra.mxu0 0
    %2285 = vmatprep.subr.bf16.mxu0 0
    %2286 = vmatpush2.bf16.xpose.msra.mxu0 0
    %2287 = vmatprep.subr.bf16.mxu0 0
    %2288 = vmatpush2.bf16.xpose.msra.mxu0 0
    %2289 = vmatprep.subr.bf16.mxu0 0
    %2290 = vmatpush2.bf16.xpose.msra.mxu0 0
    %2291 = vmatprep.subr.bf16.mxu0 0
    %2292 = vmatpush2.bf16.xpose.msra.mxu0 0
    %2293 = vmatprep.subr.bf16.mxu0 0
    %2294 = vmatpush2.bf16.xpose.msra.mxu0 0
    %2295 = vmatprep.subr.bf16.mxu0 0
    %2296 = vmatpush2.bf16.xpose.msra.mxu0 0
    %2297 = vmatprep.subr.bf16.mxu0 0
    %2298 = vmatpush2.bf16.xpose.msra.mxu0 0
    %2299 = vmatprep.mubr.bf16.mxu0 0
    %2300 = vmatmul.mubr.bf16.gmra.mxu0 %v2262
    %v2301 = vpop.f32.mrf.mxu0
    %v2302 = vadd.f32 0.0, %v2301
    %v2303 = vpop.f32.mrf.mxu0
    %v2304 = vpop.f32.mrf.mxu0
    %v2305 = vpop.f32.mrf.mxu0
    %2306 = vdwg.mxu0
    %2308 = vrot.lane.b32.xlu0 %v2250, 96
    %v2309 = vpop.permute.xlu0 %2308
    %v2311 = vsel %vm2260, %v2250, 0
    %v2314 = vsel %vm2260, %v2309, 0
    %2316 = vmatprep.subr.bf16.mxu0 0
    %2317 = vmatpush1.bf16.xpose.msra.mxu0 0
    %2318 = vmatprep.subr.bf16.mxu0 0
    %2319 = vmatpush1.bf16.xpose.msra.mxu0 0
    %2320 = vmatprep.subr.bf16.mxu0 0
    %2321 = vmatpush1.bf16.xpose.msra.mxu0 0
    %2322 = vmatprep.subr.bf16.mxu0 0
    %2323 = vmatpush1.bf16.xpose.msra.mxu0 0
    %2324 = vmatprep.subr.bf16.mxu0 0
    %2325 = vmatpush1.bf16.xpose.msra.mxu0 0
    %2326 = vmatprep.subr.bf16.mxu0 0
    %2327 = vmatpush1.bf16.xpose.msra.mxu0 0
    %2328 = vmatprep.subr.bf16.mxu0 0
    %2329 = vmatpush1.bf16.xpose.msra.mxu0 0
    %2330 = vmatprep.subr.bf16.mxu0 0
    %2331 = vmatpush1.bf16.xpose.msra.mxu0 %v2314
    %2332 = vmatprep.subr.bf16.mxu0 0
    %2333 = vmatpush2.bf16.xpose.msra.mxu0 0
    %2334 = vmatprep.subr.bf16.mxu0 0
    %2335 = vmatpush2.bf16.xpose.msra.mxu0 0
    %2336 = vmatprep.subr.bf16.mxu0 0
    %2337 = vmatpush2.bf16.xpose.msra.mxu0 0
    %2338 = vmatprep.subr.bf16.mxu0 0
    %2339 = vmatpush2.bf16.xpose.msra.mxu0 0
    %2340 = vmatprep.subr.bf16.mxu0 0
    %2341 = vmatpush2.bf16.xpose.msra.mxu0 0
    %2342 = vmatprep.subr.bf16.mxu0 0
    %2343 = vmatpush2.bf16.xpose.msra.mxu0 0
    %2344 = vmatprep.subr.bf16.mxu0 0
    %2345 = vmatpush2.bf16.xpose.msra.mxu0 0
    %2346 = vmatprep.subr.bf16.mxu0 0
    %2347 = vmatpush2.bf16.xpose.msra.mxu0 0
    %2348 = vmatprep.mubr.bf16.mxu0 0
    %2349 = vmatmul.mubr.bf16.gmra.mxu0 %v2311
    %v2350 = vpop.f32.mrf.mxu0
    %v2351 = vadd.f32 0.0, %v2350
    %v2352 = vpop.f32.mrf.mxu0
    %v2353 = vpop.f32.mrf.mxu0
    %v2354 = vpop.f32.mrf.mxu0
    %2355 = vdwg.mxu0
    %2357 = vrot.lane.b32.xlu0 %v2251, 96
    %v2358 = vpop.permute.xlu0 %2357
    %v2360 = vsel %vm2260, %v2251, 0
    %v2363 = vsel %vm2260, %v2358, 0
    %2365 = vmatprep.subr.bf16.mxu0 0
    %2366 = vmatpush1.bf16.xpose.msra.mxu0 0
    %2367 = vmatprep.subr.bf16.mxu0 0
    %2368 = vmatpush1.bf16.xpose.msra.mxu0 0
    %2369 = vmatprep.subr.bf16.mxu0 0
    %2370 = vmatpush1.bf16.xpose.msra.mxu0 0
    %2371 = vmatprep.subr.bf16.mxu0 0
    %2372 = vmatpush1.bf16.xpose.msra.mxu0 0
    %2373 = vmatprep.subr.bf16.mxu0 0
    %2374 = vmatpush1.bf16.xpose.msra.mxu0 0
    %2375 = vmatprep.subr.bf16.mxu0 0
    %2376 = vmatpush1.bf16.xpose.msra.mxu0 0
    %2377 = vmatprep.subr.bf16.mxu0 0
    %2378 = vmatpush1.bf16.xpose.msra.mxu0 0
    %2379 = vmatprep.subr.bf16.mxu0 0
    %2380 = vmatpush1.bf16.xpose.msra.mxu0 %v2363
    %2381 = vmatprep.subr.bf16.mxu0 0
    %2382 = vmatpush2.bf16.xpose.msra.mxu0 0
    %2383 = vmatprep.subr.bf16.mxu0 0
    %2384 = vmatpush2.bf16.xpose.msra.mxu0 0
    %2385 = vmatprep.subr.bf16.mxu0 0
    %2386 = vmatpush2.bf16.xpose.msra.mxu0 0
    %2387 = vmatprep.subr.bf16.mxu0 0
    %2388 = vmatpush2.bf16.xpose.msra.mxu0 0
    %2389 = vmatprep.subr.bf16.mxu0 0
    %2390 = vmatpush2.bf16.xpose.msra.mxu0 0
    %2391 = vmatprep.subr.bf16.mxu0 0
    %2392 = vmatpush2.bf16.xpose.msra.mxu0 0
    %2393 = vmatprep.subr.bf16.mxu0 0
    %2394 = vmatpush2.bf16.xpose.msra.mxu0 0
    %2395 = vmatprep.subr.bf16.mxu0 0
    %2396 = vmatpush2.bf16.xpose.msra.mxu0 0
    %2397 = vmatprep.mubr.bf16.mxu0 0
    %2398 = vmatmul.mubr.bf16.gmra.mxu0 %v2360
    %v2399 = vpop.f32.mrf.mxu0
    %v2400 = vadd.f32 0.0, %v2399
    %v2401 = vpop.f32.mrf.mxu0
    %v2402 = vpop.f32.mrf.mxu0
    %v2403 = vpop.f32.mrf.mxu0
    %2404 = vdwg.mxu0
    %2406 = vrot.lane.b32.xlu0 %v2252, 96
    %v2407 = vpop.permute.xlu0 %2406
    %v2409 = vsel %vm2260, %v2252, 0
    %v2412 = vsel %vm2260, %v2407, 0
    %2414 = vmatprep.subr.bf16.mxu0 0
    %2415 = vmatpush1.bf16.xpose.msra.mxu0 0
    %2416 = vmatprep.subr.bf16.mxu0 0
    %2417 = vmatpush1.bf16.xpose.msra.mxu0 0
    %2418 = vmatprep.subr.bf16.mxu0 0
    %2419 = vmatpush1.bf16.xpose.msra.mxu0 0
    %2420 = vmatprep.subr.bf16.mxu0 0
    %2421 = vmatpush1.bf16.xpose.msra.mxu0 0
    %2422 = vmatprep.subr.bf16.mxu0 0
    %2423 = vmatpush1.bf16.xpose.msra.mxu0 0
    %2424 = vmatprep.subr.bf16.mxu0 0
    %2425 = vmatpush1.bf16.xpose.msra.mxu0 0
    %2426 = vmatprep.subr.bf16.mxu0 0
    %2427 = vmatpush1.bf16.xpose.msra.mxu0 0
    %2428 = vmatprep.subr.bf16.mxu0 0
    %2429 = vmatpush1.bf16.xpose.msra.mxu0 %v2412
    %2430 = vmatprep.subr.bf16.mxu0 0
    %2431 = vmatpush2.bf16.xpose.msra.mxu0 0
    %2432 = vmatprep.subr.bf16.mxu0 0
    %2433 = vmatpush2.bf16.xpose.msra.mxu0 0
    %2434 = vmatprep.subr.bf16.mxu0 0
    %2435 = vmatpush2.bf16.xpose.msra.mxu0 0
    %2436 = vmatprep.subr.bf16.mxu0 0
    %2437 = vmatpush2.bf16.xpose.msra.mxu0 0
    %2438 = vmatprep.subr.bf16.mxu0 0
    %2439 = vmatpush2.bf16.xpose.msra.mxu0 0
    %2440 = vmatprep.subr.bf16.mxu0 0
    %2441 = vmatpush2.bf16.xpose.msra.mxu0 0
    %2442 = vmatprep.subr.bf16.mxu0 0
    %2443 = vmatpush2.bf16.xpose.msra.mxu0 0
    %2444 = vmatprep.subr.bf16.mxu0 0
    %2445 = vmatpush2.bf16.xpose.msra.mxu0 0
    %2446 = vmatprep.mubr.bf16.mxu0 0
    %2447 = vmatmul.mubr.bf16.gmra.mxu0 %v2409
    %v2448 = vpop.f32.mrf.mxu0
    %v2449 = vadd.f32 0.0, %v2448
    %v2450 = vpop.f32.mrf.mxu0
    %v2451 = vpop.f32.mrf.mxu0
    %v2452 = vpop.f32.mrf.mxu0
    %2453 = vdwg.mxu0
    %2455 = vrot.lane.b32.xlu0 %v2253, 96
    %v2456 = vpop.permute.xlu0 %2455
    %v2458 = vsel %vm2260, %v2253, 0
    %v2461 = vsel %vm2260, %v2456, 0
    %2463 = vmatprep.subr.bf16.mxu0 0
    %2464 = vmatpush1.bf16.xpose.msra.mxu0 0
    %2465 = vmatprep.subr.bf16.mxu0 0
    %2466 = vmatpush1.bf16.xpose.msra.mxu0 0
    %2467 = vmatprep.subr.bf16.mxu0 0
    %2468 = vmatpush1.bf16.xpose.msra.mxu0 0
    %2469 = vmatprep.subr.bf16.mxu0 0
    %2470 = vmatpush1.bf16.xpose.msra.mxu0 0
    %2471 = vmatprep.subr.bf16.mxu0 0
    %2472 = vmatpush1.bf16.xpose.msra.mxu0 0
    %2473 = vmatprep.subr.bf16.mxu0 0
    %2474 = vmatpush1.bf16.xpose.msra.mxu0 0
    %2475 = vmatprep.subr.bf16.mxu0 0
    %2476 = vmatpush1.bf16.xpose.msra.mxu0 0
    %2477 = vmatprep.subr.bf16.mxu0 0
    %2478 = vmatpush1.bf16.xpose.msra.mxu0 %v2461
    %2479 = vmatprep.subr.bf16.mxu0 0
    %2480 = vmatpush2.bf16.xpose.msra.mxu0 0
    %2481 = vmatprep.subr.bf16.mxu0 0
    %2482 = vmatpush2.bf16.xpose.msra.mxu0 0
    %2483 = vmatprep.subr.bf16.mxu0 0
    %2484 = vmatpush2.bf16.xpose.msra.mxu0 0
    %2485 = vmatprep.subr.bf16.mxu0 0
    %2486 = vmatpush2.bf16.xpose.msra.mxu0 0
    %2487 = vmatprep.subr.bf16.mxu0 0
    %2488 = vmatpush2.bf16.xpose.msra.mxu0 0
    %2489 = vmatprep.subr.bf16.mxu0 0
    %2490 = vmatpush2.bf16.xpose.msra.mxu0 0
    %2491 = vmatprep.subr.bf16.mxu0 0
    %2492 = vmatpush2.bf16.xpose.msra.mxu0 0
    %2493 = vmatprep.subr.bf16.mxu0 0
    %2494 = vmatpush2.bf16.xpose.msra.mxu0 0
    %2495 = vmatprep.mubr.bf16.mxu0 0
    %2496 = vmatmul.mubr.bf16.gmra.mxu0 %v2458
    %v2497 = vpop.f32.mrf.mxu0
    %v2498 = vadd.f32 0.0, %v2497
    %v2499 = vpop.f32.mrf.mxu0
    %v2500 = vpop.f32.mrf.mxu0
    %v2501 = vpop.f32.mrf.mxu0
    %2502 = vdwg.mxu0
    %2504 = vrot.lane.b32.xlu0 %v2254, 96
    %v2505 = vpop.permute.xlu0 %2504
    %v2507 = vsel %vm2260, %v2254, 0
    %v2510 = vsel %vm2260, %v2505, 0
    %2512 = vmatprep.subr.bf16.mxu0 0
    %2513 = vmatpush1.bf16.xpose.msra.mxu0 0
    %2514 = vmatprep.subr.bf16.mxu0 0
    %2515 = vmatpush1.bf16.xpose.msra.mxu0 0
    %2516 = vmatprep.subr.bf16.mxu0 0
    %2517 = vmatpush1.bf16.xpose.msra.mxu0 0
    %2518 = vmatprep.subr.bf16.mxu0 0
    %2519 = vmatpush1.bf16.xpose.msra.mxu0 0
    %2520 = vmatprep.subr.bf16.mxu0 0
    %2521 = vmatpush1.bf16.xpose.msra.mxu0 0
    %2522 = vmatprep.subr.bf16.mxu0 0
    %2523 = vmatpush1.bf16.xpose.msra.mxu0 0
    %2524 = vmatprep.subr.bf16.mxu0 0
    %2525 = vmatpush1.bf16.xpose.msra.mxu0 0
    %2526 = vmatprep.subr.bf16.mxu0 0
    %2527 = vmatpush1.bf16.xpose.msra.mxu0 %v2510
    %2528 = vmatprep.subr.bf16.mxu0 0
    %2529 = vmatpush2.bf16.xpose.msra.mxu0 0
    %2530 = vmatprep.subr.bf16.mxu0 0
    %2531 = vmatpush2.bf16.xpose.msra.mxu0 0
    %2532 = vmatprep.subr.bf16.mxu0 0
    %2533 = vmatpush2.bf16.xpose.msra.mxu0 0
    %2534 = vmatprep.subr.bf16.mxu0 0
    %2535 = vmatpush2.bf16.xpose.msra.mxu0 0
    %2536 = vmatprep.subr.bf16.mxu0 0
    %2537 = vmatpush2.bf16.xpose.msra.mxu0 0
    %2538 = vmatprep.subr.bf16.mxu0 0
    %2539 = vmatpush2.bf16.xpose.msra.mxu0 0
    %2540 = vmatprep.subr.bf16.mxu0 0
    %2541 = vmatpush2.bf16.xpose.msra.mxu0 0
    %2542 = vmatprep.subr.bf16.mxu0 0
    %2543 = vmatpush2.bf16.xpose.msra.mxu0 0
    %2544 = vmatprep.mubr.bf16.mxu0 0
    %2545 = vmatmul.mubr.bf16.gmra.mxu0 %v2507
    %v2546 = vpop.f32.mrf.mxu0
    %v2547 = vadd.f32 0.0, %v2546
    %v2548 = vpop.f32.mrf.mxu0
    %v2549 = vpop.f32.mrf.mxu0
    %v2550 = vpop.f32.mrf.mxu0
    %2551 = vdwg.mxu0
    %2553 = vrot.lane.b32.xlu0 %v2255, 96
    %v2554 = vpop.permute.xlu0 %2553
    %v2556 = vsel %vm2260, %v2255, 0
    %v2559 = vsel %vm2260, %v2554, 0
    %2561 = vmatprep.subr.bf16.mxu0 0
    %2562 = vmatpush1.bf16.xpose.msra.mxu0 0
    %2563 = vmatprep.subr.bf16.mxu0 0
    %2564 = vmatpush1.bf16.xpose.msra.mxu0 0
    %2565 = vmatprep.subr.bf16.mxu0 0
    %2566 = vmatpush1.bf16.xpose.msra.mxu0 0
    %2567 = vmatprep.subr.bf16.mxu0 0
    %2568 = vmatpush1.bf16.xpose.msra.mxu0 0
    %2569 = vmatprep.subr.bf16.mxu0 0
    %2570 = vmatpush1.bf16.xpose.msra.mxu0 0
    %2571 = vmatprep.subr.bf16.mxu0 0
    %2572 = vmatpush1.bf16.xpose.msra.mxu0 0
    %2573 = vmatprep.subr.bf16.mxu0 0
    %2574 = vmatpush1.bf16.xpose.msra.mxu0 0
    %2575 = vmatprep.subr.bf16.mxu0 0
    %2576 = vmatpush1.bf16.xpose.msra.mxu0 %v2559
    %2577 = vmatprep.subr.bf16.mxu0 0
    %2578 = vmatpush2.bf16.xpose.msra.mxu0 0
    %2579 = vmatprep.subr.bf16.mxu0 0
    %2580 = vmatpush2.bf16.xpose.msra.mxu0 0
    %2581 = vmatprep.subr.bf16.mxu0 0
    %2582 = vmatpush2.bf16.xpose.msra.mxu0 0
    %2583 = vmatprep.subr.bf16.mxu0 0
    %2584 = vmatpush2.bf16.xpose.msra.mxu0 0
    %2585 = vmatprep.subr.bf16.mxu0 0
    %2586 = vmatpush2.bf16.xpose.msra.mxu0 0
    %2587 = vmatprep.subr.bf16.mxu0 0
    %2588 = vmatpush2.bf16.xpose.msra.mxu0 0
    %2589 = vmatprep.subr.bf16.mxu0 0
    %2590 = vmatpush2.bf16.xpose.msra.mxu0 0
    %2591 = vmatprep.subr.bf16.mxu0 0
    %2592 = vmatpush2.bf16.xpose.msra.mxu0 0
    %2593 = vmatprep.mubr.bf16.mxu0 0
    %2594 = vmatmul.mubr.bf16.gmra.mxu0 %v2556
    %v2595 = vpop.f32.mrf.mxu0
    %v2596 = vadd.f32 0.0, %v2595
    %v2597 = vpop.f32.mrf.mxu0
    %v2598 = vpop.f32.mrf.mxu0
    %v2599 = vpop.f32.mrf.mxu0
    %2600 = vdwg.mxu0
    %2602 = vrot.lane.b32.xlu0 %v2256, 96
    %v2603 = vpop.permute.xlu0 %2602
    %v2605 = vsel %vm2260, %v2256, 0
    %v2608 = vsel %vm2260, %v2603, 0
    %2610 = vmatprep.subr.bf16.mxu0 0
    %2611 = vmatpush1.bf16.xpose.msra.mxu0 0
    %2612 = vmatprep.subr.bf16.mxu0 0
    %2613 = vmatpush1.bf16.xpose.msra.mxu0 0
    %2614 = vmatprep.subr.bf16.mxu0 0
    %2615 = vmatpush1.bf16.xpose.msra.mxu0 0
    %2616 = vmatprep.subr.bf16.mxu0 0
    %2617 = vmatpush1.bf16.xpose.msra.mxu0 0
    %2618 = vmatprep.subr.bf16.mxu0 0
    %2619 = vmatpush1.bf16.xpose.msra.mxu0 0
    %2620 = vmatprep.subr.bf16.mxu0 0
    %2621 = vmatpush1.bf16.xpose.msra.mxu0 0
    %2622 = vmatprep.subr.bf16.mxu0 0
    %2623 = vmatpush1.bf16.xpose.msra.mxu0 0
    %2624 = vmatprep.subr.bf16.mxu0 0
    %2625 = vmatpush1.bf16.xpose.msra.mxu0 %v2608
    %2626 = vmatprep.subr.bf16.mxu0 0
    %2627 = vmatpush2.bf16.xpose.msra.mxu0 0
    %2628 = vmatprep.subr.bf16.mxu0 0
    %2629 = vmatpush2.bf16.xpose.msra.mxu0 0
    %2630 = vmatprep.subr.bf16.mxu0 0
    %2631 = vmatpush2.bf16.xpose.msra.mxu0 0
    %2632 = vmatprep.subr.bf16.mxu0 0
    %2633 = vmatpush2.bf16.xpose.msra.mxu0 0
    %2634 = vmatprep.subr.bf16.mxu0 0
    %2635 = vmatpush2.bf16.xpose.msra.mxu0 0
    %2636 = vmatprep.subr.bf16.mxu0 0
    %2637 = vmatpush2.bf16.xpose.msra.mxu0 0
    %2638 = vmatprep.subr.bf16.mxu0 0
    %2639 = vmatpush2.bf16.xpose.msra.mxu0 0
    %2640 = vmatprep.subr.bf16.mxu0 0
    %2641 = vmatpush2.bf16.xpose.msra.mxu0 0
    %2642 = vmatprep.mubr.bf16.mxu0 0
    %2643 = vmatmul.mubr.bf16.gmra.mxu0 %v2605
    %v2644 = vpop.f32.mrf.mxu0
    %v2645 = vadd.f32 0.0, %v2644
    %v2646 = vpop.f32.mrf.mxu0
    %v2647 = vpop.f32.mrf.mxu0
    %v2648 = vpop.f32.mrf.mxu0
    %2649 = vdwg.mxu0
    %vm2650 = vcmask 36864
    %v2651 = vsel %vm2650, %v2302, -inf
    %2652 = vmax.xlane.f32.xlu0 %v2651
    %v2653 = vpop.xlane.xlu0 %2652
    %v2654 = vsel %vm2650, %v2351, -inf
    %2655 = vmax.xlane.f32.xlu0 %v2654
    %v2656 = vpop.xlane.xlu0 %2655
    %v2657 = vsel %vm2650, %v2400, -inf
    %2658 = vmax.xlane.f32.xlu0 %v2657
    %v2659 = vpop.xlane.xlu0 %2658
    %v2660 = vsel %vm2650, %v2449, -inf
    %2661 = vmax.xlane.f32.xlu0 %v2660
    %v2662 = vpop.xlane.xlu0 %2661
    %v2663 = vsel %vm2650, %v2498, -inf
    %2664 = vmax.xlane.f32.xlu0 %v2663
    %v2665 = vpop.xlane.xlu0 %2664
    %v2666 = vsel %vm2650, %v2547, -inf
    %2667 = vmax.xlane.f32.xlu0 %v2666
    %v2668 = vpop.xlane.xlu0 %2667
    %v2669 = vsel %vm2650, %v2596, -inf
    %2670 = vmax.xlane.f32.xlu0 %v2669
    %v2671 = vpop.xlane.xlu0 %2670
    %v2672 = vsel %vm2650, %v2645, -inf
    %2673 = vmax.xlane.f32.xlu0 %v2672
    %v2674 = vpop.xlane.xlu0 %2673
    %v2675 = vsub.f32 %v2302, %v2653
    %v2676 = vsub.f32 %v2351, %v2656
    %v2677 = vsub.f32 %v2400, %v2659
    %v2678 = vsub.f32 %v2449, %v2662
    %v2679 = vsub.f32 %v2498, %v2665
    %v2680 = vsub.f32 %v2547, %v2668
    %v2681 = vsub.f32 %v2596, %v2671
    %v2682 = vsub.f32 %v2645, %v2674
    %v2683 = vmul.f32 %v2675, 1.442695
    %v2684 = vpow.pop %v2683
    %v2685 = vmul.f32 %v2676, 1.442695
    %v2686 = vpow.pop %v2685
    %v2687 = vmul.f32 %v2677, 1.442695
    %v2688 = vpow.pop %v2687
    %v2689 = vmul.f32 %v2678, 1.442695
    %v2690 = vpow.pop %v2689
    %v2691 = vmul.f32 %v2679, 1.442695
    %v2692 = vpow.pop %v2691
    %v2693 = vmul.f32 %v2680, 1.442695
    %v2694 = vpow.pop %v2693
    %v2695 = vmul.f32 %v2681, 1.442695
    %v2696 = vpow.pop %v2695
    %v2697 = vmul.f32 %v2682, 1.442695
    %v2698 = vpow.pop %v2697
    %v2699 = vsel %vm2650, %v2684, 0.0
    %2700 = vadd.xlane.f32.xlu0 %v2699
    %v2701 = vpop.xlane.xlu0 %2700
    %v2702 = vsel %vm2650, %v2686, 0.0
    %2703 = vadd.xlane.f32.xlu0 %v2702
    %v2704 = vpop.xlane.xlu0 %2703
    %v2705 = vsel %vm2650, %v2688, 0.0
    %2706 = vadd.xlane.f32.xlu0 %v2705
    %v2707 = vpop.xlane.xlu0 %2706
    %v2708 = vsel %vm2650, %v2690, 0.0
    %2709 = vadd.xlane.f32.xlu0 %v2708
    %v2710 = vpop.xlane.xlu0 %2709
    %v2711 = vsel %vm2650, %v2692, 0.0
    %2712 = vadd.xlane.f32.xlu0 %v2711
    %v2713 = vpop.xlane.xlu0 %2712
    %v2714 = vsel %vm2650, %v2694, 0.0
    %2715 = vadd.xlane.f32.xlu0 %v2714
    %v2716 = vpop.xlane.xlu0 %2715
    %v2717 = vsel %vm2650, %v2696, 0.0
    %2718 = vadd.xlane.f32.xlu0 %v2717
    %v2719 = vpop.xlane.xlu0 %2718
    %v2720 = vsel %vm2650, %v2698, 0.0
    %2721 = vadd.xlane.f32.xlu0 %v2720
    %v2722 = vpop.xlane.xlu0 %2721
    %v2723 = vrcp.pop %v2701
    %v2724 = vrcp.pop %v2704
    %v2725 = vrcp.pop %v2707
    %v2726 = vrcp.pop %v2710
    %v2727 = vrcp.pop %v2713
    %v2728 = vrcp.pop %v2716
    %v2729 = vrcp.pop %v2719
    %v2730 = vrcp.pop %v2722
    %v2731 = vmul.f32 %v2684, %v2723
    %v2732 = vmul.f32 %v2686, %v2724
    %v2733 = vmul.f32 %v2688, %v2725
    %v2734 = vmul.f32 %v2690, %v2726
    %v2735 = vmul.f32 %v2692, %v2727
    %v2736 = vmul.f32 %v2694, %v2728
    %v2737 = vmul.f32 %v2696, %v2729
    %v2738 = vmul.f32 %v2698, %v2730
    %v2739 = vpack.c.bf16 %v2731, %v2731
    %v2740 = vpack.c.bf16 %v2732, %v2732
    %v2741 = vpack.c.bf16 %v2733, %v2733
    %v2742 = vpack.c.bf16 %v2734, %v2734
    %v2743 = vpack.c.bf16 %v2735, %v2735
    %v2744 = vpack.c.bf16 %v2736, %v2736
    %v2745 = vpack.c.bf16 %v2737, %v2737
    %v2746 = vpack.c.bf16 %v2738, %v2738
    %2747 = vrot.lane.b32.xlu0 %v2249, 64
    %v2748 = vpop.permute.xlu0 %2747
    %vm2749 = vcmask 39936
    %v2751 = vsel %vm2749, %v2739, 0
    %vm2753 = vcmask 1041408
    %vm2754 = vcmask 1042432
    %v2755 = vsel %vm2753, 4294967295, 65535
    %v2756 = vsel %vm2754, %v2755, 0
    %v2758 = vand.u32 %v2748, %v2756
    %2760 = vmatprep.subr.bf16.mxu0 0
    %2761 = vmatpush1.bf16.msra.mxu0 0
    %2762 = vmatprep.subr.bf16.mxu0 0
    %2763 = vmatpush1.bf16.msra.mxu0 0
    %2764 = vmatprep.subr.bf16.mxu0 0
    %2765 = vmatpush1.bf16.msra.mxu0 0
    %2766 = vmatprep.subr.bf16.mxu0 0
    %2767 = vmatpush1.bf16.msra.mxu0 0
    %2768 = vmatprep.subr.bf16.mxu0 0
    %2769 = vmatpush1.bf16.msra.mxu0 0
    %2770 = vmatprep.subr.bf16.mxu0 0
    %2771 = vmatpush1.bf16.msra.mxu0 0
    %2772 = vmatprep.subr.bf16.mxu0 0
    %2773 = vmatpush1.bf16.msra.mxu0 0
    %2774 = vmatprep.subr.bf16.mxu0 0
    %2775 = vmatpush1.bf16.msra.mxu0 %v2758
    %2776 = vmatprep.subr.bf16.mxu0 0
    %2777 = vmatpush2.bf16.msra.mxu0 0
    %2778 = vmatprep.subr.bf16.mxu0 0
    %2779 = vmatpush2.bf16.msra.mxu0 0
    %2780 = vmatprep.subr.bf16.mxu0 0
    %2781 = vmatpush2.bf16.msra.mxu0 0
    %2782 = vmatprep.subr.bf16.mxu0 0
    %2783 = vmatpush2.bf16.msra.mxu0 0
    %2784 = vmatprep.subr.bf16.mxu0 0
    %2785 = vmatpush2.bf16.msra.mxu0 0
    %2786 = vmatprep.subr.bf16.mxu0 0
    %2787 = vmatpush2.bf16.msra.mxu0 0
    %2788 = vmatprep.subr.bf16.mxu0 0
    %2789 = vmatpush2.bf16.msra.mxu0 0
    %2790 = vmatprep.subr.bf16.mxu0 0
    %2791 = vmatpush2.bf16.msra.mxu0 0
    %2792 = vmatprep.mubr.bf16.mxu0 0
    %2793 = vmatmul.mubr.bf16.gmra.mxu0 %v2751
    %v2794 = vpop.f32.mrf.mxu0
    %v2795 = vadd.f32 0.0, %v2794
    %v2796 = vpop.f32.mrf.mxu0
    %v2797 = vpop.f32.mrf.mxu0
    %v2798 = vpop.f32.mrf.mxu0
    %2799 = vdwg.mxu0
    %2800 = vrot.lane.b32.xlu0 %v2250, 64
    %v2801 = vpop.permute.xlu0 %2800
    %v2803 = vsel %vm2749, %v2740, 0
    %v2806 = vand.u32 %v2801, %v2756
    %2808 = vmatprep.subr.bf16.mxu0 0
    %2809 = vmatpush1.bf16.msra.mxu0 0
    %2810 = vmatprep.subr.bf16.mxu0 0
    %2811 = vmatpush1.bf16.msra.mxu0 0
    %2812 = vmatprep.subr.bf16.mxu0 0
    %2813 = vmatpush1.bf16.msra.mxu0 0
    %2814 = vmatprep.subr.bf16.mxu0 0
    %2815 = vmatpush1.bf16.msra.mxu0 0
    %2816 = vmatprep.subr.bf16.mxu0 0
    %2817 = vmatpush1.bf16.msra.mxu0 0
    %2818 = vmatprep.subr.bf16.mxu0 0
    %2819 = vmatpush1.bf16.msra.mxu0 0
    %2820 = vmatprep.subr.bf16.mxu0 0
    %2821 = vmatpush1.bf16.msra.mxu0 0
    %2822 = vmatprep.subr.bf16.mxu0 0
    %2823 = vmatpush1.bf16.msra.mxu0 %v2806
    %2824 = vmatprep.subr.bf16.mxu0 0
    %2825 = vmatpush2.bf16.msra.mxu0 0
    %2826 = vmatprep.subr.bf16.mxu0 0
    %2827 = vmatpush2.bf16.msra.mxu0 0
    %2828 = vmatprep.subr.bf16.mxu0 0
    %2829 = vmatpush2.bf16.msra.mxu0 0
    %2830 = vmatprep.subr.bf16.mxu0 0
    %2831 = vmatpush2.bf16.msra.mxu0 0
    %2832 = vmatprep.subr.bf16.mxu0 0
    %2833 = vmatpush2.bf16.msra.mxu0 0
    %2834 = vmatprep.subr.bf16.mxu0 0
    %2835 = vmatpush2.bf16.msra.mxu0 0
    %2836 = vmatprep.subr.bf16.mxu0 0
    %2837 = vmatpush2.bf16.msra.mxu0 0
    %2838 = vmatprep.subr.bf16.mxu0 0
    %2839 = vmatpush2.bf16.msra.mxu0 0
    %2840 = vmatprep.mubr.bf16.mxu0 0
    %2841 = vmatmul.mubr.bf16.gmra.mxu0 %v2803
    %v2842 = vpop.f32.mrf.mxu0
    %v2843 = vadd.f32 0.0, %v2842
    %v2844 = vpop.f32.mrf.mxu0
    %v2845 = vpop.f32.mrf.mxu0
    %v2846 = vpop.f32.mrf.mxu0
    %2847 = vdwg.mxu0
    %2848 = vrot.lane.b32.xlu0 %v2251, 64
    %v2849 = vpop.permute.xlu0 %2848
    %v2851 = vsel %vm2749, %v2741, 0
    %v2854 = vand.u32 %v2849, %v2756
    %2856 = vmatprep.subr.bf16.mxu0 0
    %2857 = vmatpush1.bf16.msra.mxu0 0
    %2858 = vmatprep.subr.bf16.mxu0 0
    %2859 = vmatpush1.bf16.msra.mxu0 0
    %2860 = vmatprep.subr.bf16.mxu0 0
    %2861 = vmatpush1.bf16.msra.mxu0 0
    %2862 = vmatprep.subr.bf16.mxu0 0
    %2863 = vmatpush1.bf16.msra.mxu0 0
    %2864 = vmatprep.subr.bf16.mxu0 0
    %2865 = vmatpush1.bf16.msra.mxu0 0
    %2866 = vmatprep.subr.bf16.mxu0 0
    %2867 = vmatpush1.bf16.msra.mxu0 0
    %2868 = vmatprep.subr.bf16.mxu0 0
    %2869 = vmatpush1.bf16.msra.mxu0 0
    %2870 = vmatprep.subr.bf16.mxu0 0
    %2871 = vmatpush1.bf16.msra.mxu0 %v2854
    %2872 = vmatprep.subr.bf16.mxu0 0
    %2873 = vmatpush2.bf16.msra.mxu0 0
    %2874 = vmatprep.subr.bf16.mxu0 0
    %2875 = vmatpush2.bf16.msra.mxu0 0
    %2876 = vmatprep.subr.bf16.mxu0 0
    %2877 = vmatpush2.bf16.msra.mxu0 0
    %2878 = vmatprep.subr.bf16.mxu0 0
    %2879 = vmatpush2.bf16.msra.mxu0 0
    %2880 = vmatprep.subr.bf16.mxu0 0
    %2881 = vmatpush2.bf16.msra.mxu0 0
    %2882 = vmatprep.subr.bf16.mxu0 0
    %2883 = vmatpush2.bf16.msra.mxu0 0
    %2884 = vmatprep.subr.bf16.mxu0 0
    %2885 = vmatpush2.bf16.msra.mxu0 0
    %2886 = vmatprep.subr.bf16.mxu0 0
    %2887 = vmatpush2.bf16.msra.mxu0 0
    %2888 = vmatprep.mubr.bf16.mxu0 0
    %2889 = vmatmul.mubr.bf16.gmra.mxu0 %v2851
    %v2890 = vpop.f32.mrf.mxu0
    %v2891 = vadd.f32 0.0, %v2890
    %v2892 = vpop.f32.mrf.mxu0
    %v2893 = vpop.f32.mrf.mxu0
    %v2894 = vpop.f32.mrf.mxu0
    %2895 = vdwg.mxu0
    %2896 = vrot.lane.b32.xlu0 %v2252, 64
    %v2897 = vpop.permute.xlu0 %2896
    %v2899 = vsel %vm2749, %v2742, 0
    %v2902 = vand.u32 %v2897, %v2756
    %2904 = vmatprep.subr.bf16.mxu0 0
    %2905 = vmatpush1.bf16.msra.mxu0 0
    %2906 = vmatprep.subr.bf16.mxu0 0
    %2907 = vmatpush1.bf16.msra.mxu0 0
    %2908 = vmatprep.subr.bf16.mxu0 0
    %2909 = vmatpush1.bf16.msra.mxu0 0
    %2910 = vmatprep.subr.bf16.mxu0 0
    %2911 = vmatpush1.bf16.msra.mxu0 0
    %2912 = vmatprep.subr.bf16.mxu0 0
    %2913 = vmatpush1.bf16.msra.mxu0 0
    %2914 = vmatprep.subr.bf16.mxu0 0
    %2915 = vmatpush1.bf16.msra.mxu0 0
    %2916 = vmatprep.subr.bf16.mxu0 0
    %2917 = vmatpush1.bf16.msra.mxu0 0
    %2918 = vmatprep.subr.bf16.mxu0 0
    %2919 = vmatpush1.bf16.msra.mxu0 %v2902
    %2920 = vmatprep.subr.bf16.mxu0 0
    %2921 = vmatpush2.bf16.msra.mxu0 0
    %2922 = vmatprep.subr.bf16.mxu0 0
    %2923 = vmatpush2.bf16.msra.mxu0 0
    %2924 = vmatprep.subr.bf16.mxu0 0
    %2925 = vmatpush2.bf16.msra.mxu0 0
    %2926 = vmatprep.subr.bf16.mxu0 0
    %2927 = vmatpush2.bf16.msra.mxu0 0
    %2928 = vmatprep.subr.bf16.mxu0 0
    %2929 = vmatpush2.bf16.msra.mxu0 0
    %2930 = vmatprep.subr.bf16.mxu0 0
    %2931 = vmatpush2.bf16.msra.mxu0 0
    %2932 = vmatprep.subr.bf16.mxu0 0
    %2933 = vmatpush2.bf16.msra.mxu0 0
    %2934 = vmatprep.subr.bf16.mxu0 0
    %2935 = vmatpush2.bf16.msra.mxu0 0
    %2936 = vmatprep.mubr.bf16.mxu0 0
    %2937 = vmatmul.mubr.bf16.gmra.mxu0 %v2899
    %v2938 = vpop.f32.mrf.mxu0
    %v2939 = vadd.f32 0.0, %v2938
    %v2940 = vpop.f32.mrf.mxu0
    %v2941 = vpop.f32.mrf.mxu0
    %v2942 = vpop.f32.mrf.mxu0
    %2943 = vdwg.mxu0
    %2944 = vrot.lane.b32.xlu0 %v2253, 64
    %v2945 = vpop.permute.xlu0 %2944
    %v2947 = vsel %vm2749, %v2743, 0
    %v2950 = vand.u32 %v2945, %v2756
    %2952 = vmatprep.subr.bf16.mxu0 0
    %2953 = vmatpush1.bf16.msra.mxu0 0
    %2954 = vmatprep.subr.bf16.mxu0 0
    %2955 = vmatpush1.bf16.msra.mxu0 0
    %2956 = vmatprep.subr.bf16.mxu0 0
    %2957 = vmatpush1.bf16.msra.mxu0 0
    %2958 = vmatprep.subr.bf16.mxu0 0
    %2959 = vmatpush1.bf16.msra.mxu0 0
    %2960 = vmatprep.subr.bf16.mxu0 0
    %2961 = vmatpush1.bf16.msra.mxu0 0
    %2962 = vmatprep.subr.bf16.mxu0 0
    %2963 = vmatpush1.bf16.msra.mxu0 0
    %2964 = vmatprep.subr.bf16.mxu0 0
    %2965 = vmatpush1.bf16.msra.mxu0 0
    %2966 = vmatprep.subr.bf16.mxu0 0
    %2967 = vmatpush1.bf16.msra.mxu0 %v2950
    %2968 = vmatprep.subr.bf16.mxu0 0
    %2969 = vmatpush2.bf16.msra.mxu0 0
    %2970 = vmatprep.subr.bf16.mxu0 0
    %2971 = vmatpush2.bf16.msra.mxu0 0
    %2972 = vmatprep.subr.bf16.mxu0 0
    %2973 = vmatpush2.bf16.msra.mxu0 0
    %2974 = vmatprep.subr.bf16.mxu0 0
    %2975 = vmatpush2.bf16.msra.mxu0 0
    %2976 = vmatprep.subr.bf16.mxu0 0
    %2977 = vmatpush2.bf16.msra.mxu0 0
    %2978 = vmatprep.subr.bf16.mxu0 0
    %2979 = vmatpush2.bf16.msra.mxu0 0
    %2980 = vmatprep.subr.bf16.mxu0 0
    %2981 = vmatpush2.bf16.msra.mxu0 0
    %2982 = vmatprep.subr.bf16.mxu0 0
    %2983 = vmatpush2.bf16.msra.mxu0 0
    %2984 = vmatprep.mubr.bf16.mxu0 0
    %2985 = vmatmul.mubr.bf16.gmra.mxu0 %v2947
    %v2986 = vpop.f32.mrf.mxu0
    %v2987 = vadd.f32 0.0, %v2986
    %v2988 = vpop.f32.mrf.mxu0
    %v2989 = vpop.f32.mrf.mxu0
    %v2990 = vpop.f32.mrf.mxu0
    %2991 = vdwg.mxu0
    %2992 = vrot.lane.b32.xlu0 %v2254, 64
    %v2993 = vpop.permute.xlu0 %2992
    %v2995 = vsel %vm2749, %v2744, 0
    %v2998 = vand.u32 %v2993, %v2756
    %3000 = vmatprep.subr.bf16.mxu0 0
    %3001 = vmatpush1.bf16.msra.mxu0 0
    %3002 = vmatprep.subr.bf16.mxu0 0
    %3003 = vmatpush1.bf16.msra.mxu0 0
    %3004 = vmatprep.subr.bf16.mxu0 0
    %3005 = vmatpush1.bf16.msra.mxu0 0
    %3006 = vmatprep.subr.bf16.mxu0 0
    %3007 = vmatpush1.bf16.msra.mxu0 0
    %3008 = vmatprep.subr.bf16.mxu0 0
    %3009 = vmatpush1.bf16.msra.mxu0 0
    %3010 = vmatprep.subr.bf16.mxu0 0
    %3011 = vmatpush1.bf16.msra.mxu0 0
    %3012 = vmatprep.subr.bf16.mxu0 0
    %3013 = vmatpush1.bf16.msra.mxu0 0
    %3014 = vmatprep.subr.bf16.mxu0 0
    %3015 = vmatpush1.bf16.msra.mxu0 %v2998
    %3016 = vmatprep.subr.bf16.mxu0 0
    %3017 = vmatpush2.bf16.msra.mxu0 0
    %3018 = vmatprep.subr.bf16.mxu0 0
    %3019 = vmatpush2.bf16.msra.mxu0 0
    %3020 = vmatprep.subr.bf16.mxu0 0
    %3021 = vmatpush2.bf16.msra.mxu0 0
    %3022 = vmatprep.subr.bf16.mxu0 0
    %3023 = vmatpush2.bf16.msra.mxu0 0
    %3024 = vmatprep.subr.bf16.mxu0 0
    %3025 = vmatpush2.bf16.msra.mxu0 0
    %3026 = vmatprep.subr.bf16.mxu0 0
    %3027 = vmatpush2.bf16.msra.mxu0 0
    %3028 = vmatprep.subr.bf16.mxu0 0
    %3029 = vmatpush2.bf16.msra.mxu0 0
    %3030 = vmatprep.subr.bf16.mxu0 0
    %3031 = vmatpush2.bf16.msra.mxu0 0
    %3032 = vmatprep.mubr.bf16.mxu0 0
    %3033 = vmatmul.mubr.bf16.gmra.mxu0 %v2995
    %v3034 = vpop.f32.mrf.mxu0
    %v3035 = vadd.f32 0.0, %v3034
    %v3036 = vpop.f32.mrf.mxu0
    %v3037 = vpop.f32.mrf.mxu0
    %v3038 = vpop.f32.mrf.mxu0
    %3039 = vdwg.mxu0
    %3040 = vrot.lane.b32.xlu0 %v2255, 64
    %v3041 = vpop.permute.xlu0 %3040
    %v3043 = vsel %vm2749, %v2745, 0
    %v3046 = vand.u32 %v3041, %v2756
    %3048 = vmatprep.subr.bf16.mxu0 0
    %3049 = vmatpush1.bf16.msra.mxu0 0
    %3050 = vmatprep.subr.bf16.mxu0 0
    %3051 = vmatpush1.bf16.msra.mxu0 0
    %3052 = vmatprep.subr.bf16.mxu0 0
    %3053 = vmatpush1.bf16.msra.mxu0 0
    %3054 = vmatprep.subr.bf16.mxu0 0
    %3055 = vmatpush1.bf16.msra.mxu0 0
    %3056 = vmatprep.subr.bf16.mxu0 0
    %3057 = vmatpush1.bf16.msra.mxu0 0
    %3058 = vmatprep.subr.bf16.mxu0 0
    %3059 = vmatpush1.bf16.msra.mxu0 0
    %3060 = vmatprep.subr.bf16.mxu0 0
    %3061 = vmatpush1.bf16.msra.mxu0 0
    %3062 = vmatprep.subr.bf16.mxu0 0
    %3063 = vmatpush1.bf16.msra.mxu0 %v3046
    %3064 = vmatprep.subr.bf16.mxu0 0
    %3065 = vmatpush2.bf16.msra.mxu0 0
    %3066 = vmatprep.subr.bf16.mxu0 0
    %3067 = vmatpush2.bf16.msra.mxu0 0
    %3068 = vmatprep.subr.bf16.mxu0 0
    %3069 = vmatpush2.bf16.msra.mxu0 0
    %3070 = vmatprep.subr.bf16.mxu0 0
    %3071 = vmatpush2.bf16.msra.mxu0 0
    %3072 = vmatprep.subr.bf16.mxu0 0
    %3073 = vmatpush2.bf16.msra.mxu0 0
    %3074 = vmatprep.subr.bf16.mxu0 0
    %3075 = vmatpush2.bf16.msra.mxu0 0
    %3076 = vmatprep.subr.bf16.mxu0 0
    %3077 = vmatpush2.bf16.msra.mxu0 0
    %3078 = vmatprep.subr.bf16.mxu0 0
    %3079 = vmatpush2.bf16.msra.mxu0 0
    %3080 = vmatprep.mubr.bf16.mxu0 0
    %3081 = vmatmul.mubr.bf16.gmra.mxu0 %v3043
    %v3082 = vpop.f32.mrf.mxu0
    %v3083 = vadd.f32 0.0, %v3082
    %v3084 = vpop.f32.mrf.mxu0
    %v3085 = vpop.f32.mrf.mxu0
    %v3086 = vpop.f32.mrf.mxu0
    %3087 = vdwg.mxu0
    %3088 = vrot.lane.b32.xlu0 %v2256, 64
    %v3089 = vpop.permute.xlu0 %3088
    %v3091 = vsel %vm2749, %v2746, 0
    %v3094 = vand.u32 %v3089, %v2756
    %3096 = vmatprep.subr.bf16.mxu0 0
    %3097 = vmatpush1.bf16.msra.mxu0 0
    %3098 = vmatprep.subr.bf16.mxu0 0
    %3099 = vmatpush1.bf16.msra.mxu0 0
    %3100 = vmatprep.subr.bf16.mxu0 0
    %3101 = vmatpush1.bf16.msra.mxu0 0
    %3102 = vmatprep.subr.bf16.mxu0 0
    %3103 = vmatpush1.bf16.msra.mxu0 0
    %3104 = vmatprep.subr.bf16.mxu0 0
    %3105 = vmatpush1.bf16.msra.mxu0 0
    %3106 = vmatprep.subr.bf16.mxu0 0
    %3107 = vmatpush1.bf16.msra.mxu0 0
    %3108 = vmatprep.subr.bf16.mxu0 0
    %3109 = vmatpush1.bf16.msra.mxu0 0
    %3110 = vmatprep.subr.bf16.mxu0 0
    %3111 = vmatpush1.bf16.msra.mxu0 %v3094
    %3112 = vmatprep.subr.bf16.mxu0 0
    %3113 = vmatpush2.bf16.msra.mxu0 0
    %3114 = vmatprep.subr.bf16.mxu0 0
    %3115 = vmatpush2.bf16.msra.mxu0 0
    %3116 = vmatprep.subr.bf16.mxu0 0
    %3117 = vmatpush2.bf16.msra.mxu0 0
    %3118 = vmatprep.subr.bf16.mxu0 0
    %3119 = vmatpush2.bf16.msra.mxu0 0
    %3120 = vmatprep.subr.bf16.mxu0 0
    %3121 = vmatpush2.bf16.msra.mxu0 0
    %3122 = vmatprep.subr.bf16.mxu0 0
    %3123 = vmatpush2.bf16.msra.mxu0 0
    %3124 = vmatprep.subr.bf16.mxu0 0
    %3125 = vmatpush2.bf16.msra.mxu0 0
    %3126 = vmatprep.subr.bf16.mxu0 0
    %3127 = vmatpush2.bf16.msra.mxu0 0
    %3128 = vmatprep.mubr.bf16.mxu0 0
    %3129 = vmatmul.mubr.bf16.gmra.mxu0 %v3091
    %v3130 = vpop.f32.mrf.mxu0
    %v3131 = vadd.f32 0.0, %v3130
    %v3132 = vpop.f32.mrf.mxu0
    %v3133 = vpop.f32.mrf.mxu0
    %v3134 = vpop.f32.mrf.mxu0
    %3135 = vdwg.mxu0
    %3138 = vrot.lane.b32.xlu0 %v2891, 8
    %v3139 = vpop.permute.xlu0 %3138
    %3140 = vrot.lane.b32.xlu0 %v2939, 8
    %v3141 = vpop.permute.xlu0 %3140
    %3146 = vrot.lane.b32.xlu0 %v2987, 16
    %v3147 = vpop.permute.xlu0 %3146
    %3148 = vrot.lane.b32.xlu0 %v3035, 16
    %v3149 = vpop.permute.xlu0 %3148
    %3154 = vrot.lane.b32.xlu0 %v3083, 24
    %v3155 = vpop.permute.xlu0 %3154
    %3156 = vrot.lane.b32.xlu0 %v3131, 24
    %v3157 = vpop.permute.xlu0 %3156
    %v3160 = vsel %vm2260, %v2795, %v3139
    %v3161 = vsel %vm2260, %v2843, %v3141
    %vm3162 = vcmask 130048
    %v3163 = vsel %vm3162, %v3160, %v3147
    %v3164 = vsel %vm3162, %v3161, %v3149
    %vm3165 = vcmask 195584
    %v3166 = vsel %vm3165, %v3163, %v3155
    %v3167 = vsel %vm3165, %v3164, %v3157
    %v3168 = vpack.c.bf16 %v3166, %v3166
    %v3169 = vpack.c.bf16 %v3167, %v3167
    %v3170 = vld [vmem:[%s9] sm:$0xf]
    %v3171 = vld [vmem:[%s9 + $0x4] sm:$0xf]
    %v3172 = vld [vmem:[%s9 + $0x8] sm:$0xf]
    %v3173 = vld [vmem:[%s9 + $0xc] sm:$0xf]
    %v3174 = vld [vmem:[%s10] sm:$0x1]
    %v3176 = vlaneseq
    %v3177 = vshrl.u32 %v3176, 7
    %v3178 = vsub.s32 0, %v3177
    %v3179 = vrot.slane %v3174, %v3178
    %v3183 = vunpack.c.l.s4 1966171168
    %v3184 = vunpack.c.0.s8 %v3183
    %v3185 = vlaneseq
    %v3186 = vshrl.u32 %v3185, 7
    %v3187 = vsub.s32 %v3184, %v3186
    %v3188 = vrot.slane %v3168, %v3187
    %v3189 = vcombine.high %v3188, %v3188
    %v3191 = vunpack.c.l.s4 1966171168
    %v3192 = vunpack.c.0.s8 %v3191
    %v3193 = vlaneseq
    %v3194 = vshrl.u32 %v3193, 7
    %v3195 = vsub.s32 %v3192, %v3194
    %v3196 = vrot.slane %v3188, %v3195
    %v3198 = vunpack.c.l.s4 1966171168
    %v3199 = vunpack.c.0.s8 %v3198
    %v3200 = vlaneseq
    %v3201 = vshrl.u32 %v3200, 7
    %v3202 = vsub.s32 %v3199, %v3201
    %v3203 = vrot.slane %v3189, %v3202
    %v3204 = vcombine.high %v3196, %v3196
    %v3206 = vunpack.c.l.s4 1966171168
    %v3207 = vunpack.c.0.s8 %v3206
    %v3208 = vlaneseq
    %v3209 = vshrl.u32 %v3208, 7
    %v3210 = vsub.s32 %v3207, %v3209
    %v3211 = vrot.slane %v3169, %v3210
    %v3212 = vcombine.high %v3211, %v3211
    %v3214 = vunpack.c.l.s4 1966171168
    %v3215 = vunpack.c.0.s8 %v3214
    %v3216 = vlaneseq
    %v3217 = vshrl.u32 %v3216, 7
    %v3218 = vsub.s32 %v3215, %v3217
    %v3219 = vrot.slane %v3211, %v3218
    %v3221 = vunpack.c.l.s4 1966171168
    %v3222 = vunpack.c.0.s8 %v3221
    %v3223 = vlaneseq
    %v3224 = vshrl.u32 %v3223, 7
    %v3225 = vsub.s32 %v3222, %v3224
    %v3226 = vrot.slane %v3212, %v3225
    %v3227 = vcombine.high %v3219, %v3219
    %v3228 = vunpack.i.l.s16 %v3196
    %v3229 = vunpack.i.h.s16 %v3196
    %v3230 = vunpack.i.l.s16 %v3203
    %v3231 = vunpack.i.h.s16 %v3203
    %v3232 = vunpack.i.l.s16 %v3204
    %v3233 = vunpack.i.l.s16 %v3219
    %v3234 = vunpack.i.h.s16 %v3219
    %v3235 = vunpack.i.l.s16 %v3226
    %v3236 = vunpack.i.h.s16 %v3226
    %v3237 = vunpack.i.l.s16 %v3227
    %v3238 = vcombine.high %v3179, %v3179
    %v3240 = vunpack.c.l.s4 1966171168
    %v3241 = vunpack.c.0.s8 %v3240
    %v3242 = vlaneseq
    %v3243 = vshrl.u32 %v3242, 7
    %v3244 = vsub.s32 %v3241, %v3243
    %v3245 = vrot.slane %v3179, %v3244
    %v3247 = vunpack.c.l.s4 1966171168
    %v3248 = vunpack.c.0.s8 %v3247
    %v3249 = vlaneseq
    %v3250 = vshrl.u32 %v3249, 7
    %v3251 = vsub.s32 %v3248, %v3250
    %v3252 = vrot.slane %v3238, %v3251
    %v3253 = vcombine.high %v3245, %v3245
    %v3255 = vunpack.c.l.s4 1966171168
    %v3256 = vunpack.c.0.s8 %v3255
    %v3257 = vlaneseq
    %v3258 = vshrl.u32 %v3257, 7
    %v3259 = vsub.s32 %v3256, %v3258
    %v3260 = vrot.slane %v3245, %v3259
    %v3262 = vunpack.c.l.s4 1966171168
    %v3263 = vunpack.c.0.s8 %v3262
    %v3264 = vlaneseq
    %v3265 = vshrl.u32 %v3264, 7
    %v3266 = vsub.s32 %v3263, %v3265
    %v3267 = vrot.slane %v3252, %v3266
    %v3269 = vunpack.c.l.s4 1966171168
    %v3270 = vunpack.c.0.s8 %v3269
    %v3271 = vlaneseq
    %v3272 = vshrl.u32 %v3271, 7
    %v3273 = vsub.s32 %v3270, %v3272
    %v3274 = vrot.slane %v3253, %v3273
    %v3275 = vcombine.high %v3260, %v3260
    %v3276 = vcombine.high %v3274, %v3274
    %v3277 = vpack.i.b16 %v3229, %v3228
    %v3278 = vpack.i.b16 %v3231, %v3230
    %v3279 = vpack.i.b16 %v3233, %v3232
    %v3280 = vpack.i.b16 %v3235, %v3234
    %v3281 = vpack.i.b16 %v3237, %v3236
    %v3282 = vcombine.low %v3277, %v3278
    %v3283 = vcombine.low %v3279, %v3280
    %v3285 = vunpack.c.l.s4 1966171168
    %v3286 = vunpack.c.0.s8 %v3285
    %v3287 = vlaneseq
    %v3288 = vshrl.u32 %v3287, 7
    %v3289 = vsub.s32 %v3286, %v3288
    %v3290 = vrot.slane %v3282, %v3289
    %v3292 = vunpack.c.l.s4 1966171168
    %v3293 = vunpack.c.0.s8 %v3292
    %v3294 = vlaneseq
    %v3295 = vshrl.u32 %v3294, 7
    %v3296 = vsub.s32 %v3293, %v3295
    %v3297 = vrot.slane %v3283, %v3296
    %v3299 = vunpack.c.l.s4 1966171168
    %v3300 = vunpack.c.0.s8 %v3299
    %v3301 = vlaneseq
    %v3302 = vshrl.u32 %v3301, 7
    %v3303 = vsub.s32 %v3300, %v3302
    %v3304 = vrot.slane %v3281, %v3303
    %v3305 = vcombine.low %v3290, %v3297
    %v3307 = vunpack.c.l.s4 1966171168
    %v3308 = vunpack.c.0.s8 %v3307
    %v3309 = vlaneseq
    %v3310 = vshrl.u32 %v3309, 7
    %v3311 = vsub.s32 %v3308, %v3310
    %v3312 = vrot.slane %v3305, %v3311
    %v3314 = vunpack.c.l.s4 1966171168
    %v3315 = vunpack.c.0.s8 %v3314
    %v3316 = vlaneseq
    %v3317 = vshrl.u32 %v3316, 7
    %v3318 = vsub.s32 %v3315, %v3317
    %v3319 = vrot.slane %v3304, %v3318
    %v3320 = vcombine.low %v3312, %v3319
    %v3325 = vunpack.c.l.b16 %v3170
    %v3326 = vunpack.c.l.b16 %v3171
    %v3327 = vunpack.c.l.b16 %v3172
    %v3328 = vunpack.c.l.b16 %v3173
    %v3329 = vpack.c.b16 %v3326, %v3325
    %v3330 = vpack.c.b16 %v3328, %v3327
    %v3333 = vcombine.low %v3260, %v3274
    %v3334 = vcombine.low %v3275, %v3276
    %v3335 = vcombine.low %v3267, %v3260
    %v3336 = vcombine.low %v3274, %v3275
    %v3338 = vunpack.c.l.s4 1966171168
    %v3339 = vunpack.c.0.s8 %v3338
    %v3340 = vlaneseq
    %v3341 = vshrl.u32 %v3340, 7
    %v3342 = vsub.s32 %v3339, %v3341
    %v3343 = vrot.slane %v3333, %v3342
    %v3345 = vunpack.c.l.s4 1966171168
    %v3346 = vunpack.c.0.s8 %v3345
    %v3347 = vlaneseq
    %v3348 = vshrl.u32 %v3347, 7
    %v3349 = vsub.s32 %v3346, %v3348
    %v3350 = vrot.slane %v3334, %v3349
    %v3352 = vunpack.c.l.s4 1966171168
    %v3353 = vunpack.c.0.s8 %v3352
    %v3354 = vlaneseq
    %v3355 = vshrl.u32 %v3354, 7
    %v3356 = vsub.s32 %v3353, %v3355
    %v3357 = vrot.slane %v3335, %v3356
    %v3359 = vunpack.c.l.s4 1966171168
    %v3360 = vunpack.c.0.s8 %v3359
    %v3361 = vlaneseq
    %v3362 = vshrl.u32 %v3361, 7
    %v3363 = vsub.s32 %v3360, %v3362
    %v3364 = vrot.slane %v3336, %v3363
    %v3365 = vcombine.low %v3343, %v3350
    %v3366 = vcombine.low %v3357, %v3364
    %v3368 = vunpack.c.l.s4 1966171168
    %v3369 = vunpack.c.0.s8 %v3368
    %v3370 = vlaneseq
    %v3371 = vshrl.u32 %v3370, 7
    %v3372 = vsub.s32 %v3369, %v3371
    %v3373 = vrot.slane %v3365, %v3372
    %v3375 = vunpack.c.l.s4 1966171168
    %v3376 = vunpack.c.0.s8 %v3375
    %v3377 = vlaneseq
    %v3378 = vshrl.u32 %v3377, 7
    %v3379 = vsub.s32 %v3376, %v3378
    %v3380 = vrot.slane %v3366, %v3379
    %v3381 = vcombine.low %v3373, %v3380
    %v3382 = vcombine.low %v3276, %v3267
    %v3384 = vunpack.c.l.s4 1966171168
    %v3385 = vunpack.c.0.s8 %v3384
    %v3386 = vlaneseq
    %v3387 = vshrl.u32 %v3386, 7
    %v3388 = vsub.s32 %v3385, %v3387
    %v3389 = vrot.slane %v3382, %v3388
    %v3391 = vunpack.c.l.s4 1966171168
    %v3392 = vunpack.c.0.s8 %v3391
    %v3393 = vlaneseq
    %v3394 = vshrl.u32 %v3393, 7
    %v3395 = vsub.s32 %v3392, %v3394
    %v3396 = vrot.slane %v3389, %v3395
    %v3400 = vsel %vm1751, %v3320, 0
    %3402 = vmatprep.subr.bf16.mxu0 0
    %3403 = vmatpush1.bf16.msra.mxu0 0
    %3404 = vmatprep.subr.bf16.mxu0 0
    %3405 = vmatpush1.bf16.msra.mxu0 0
    %3406 = vmatprep.subr.bf16.mxu0 0
    %3407 = vmatpush1.bf16.msra.mxu0 0
    %3408 = vmatprep.subr.bf16.mxu0 0
    %3409 = vmatpush1.bf16.msra.mxu0 0
    %3410 = vmatprep.subr.bf16.mxu0 0
    %3411 = vmatpush1.bf16.msra.mxu0 0
    %3412 = vmatprep.subr.bf16.mxu0 0
    %3413 = vmatpush1.bf16.msra.mxu0 0
    %3414 = vmatprep.subr.bf16.mxu0 0
    %3415 = vmatpush1.bf16.msra.mxu0 %v3330
    %3416 = vmatprep.subr.bf16.mxu0 0
    %3417 = vmatpush1.bf16.msra.mxu0 %v3329
    %3418 = vmatprep.subr.bf16.mxu0 0
    %3419 = vmatpush2.bf16.msra.mxu0 0
    %3420 = vmatprep.subr.bf16.mxu0 0
    %3421 = vmatpush2.bf16.msra.mxu0 0
    %3422 = vmatprep.subr.bf16.mxu0 0
    %3423 = vmatpush2.bf16.msra.mxu0 0
    %3424 = vmatprep.subr.bf16.mxu0 0
    %3425 = vmatpush2.bf16.msra.mxu0 0
    %3426 = vmatprep.subr.bf16.mxu0 0
    %3427 = vmatpush2.bf16.msra.mxu0 0
    %3428 = vmatprep.subr.bf16.mxu0 0
    %3429 = vmatpush2.bf16.msra.mxu0 0
    %3430 = vmatprep.subr.bf16.mxu0 0
    %3431 = vmatpush2.bf16.msra.mxu0 0
    %3432 = vmatprep.subr.bf16.mxu0 0
    %3433 = vmatpush2.bf16.msra.mxu0 0
    %3434 = vmatprep.mubr.bf16.mxu0 0
    %3435 = vmatmul.mubr.bf16.gmra.mxu0 %v3400
    %v3436 = vpop.f32.mrf.mxu0
    %v3437 = vadd.f32 %v3381, %v3436
    %v3438 = vpop.f32.mrf.mxu0
    %v3439 = vpop.f32.mrf.mxu0
    %v3440 = vadd.f32 %v3396, %v3439
    %v3441 = vpop.f32.mrf.mxu0
    %3442 = vdwg.mxu0
    %v3445 = vcombine.high %v3437, %v3437
    %v3447 = vunpack.c.l.s4 1966171168
    %v3448 = vunpack.c.0.s8 %v3447
    %v3449 = vlaneseq
    %v3450 = vshrl.u32 %v3449, 7
    %v3451 = vsub.s32 %v3448, %v3450
    %v3452 = vrot.slane %v3437, %v3451
    %v3454 = vunpack.c.l.s4 1966171168
    %v3455 = vunpack.c.0.s8 %v3454
    %v3456 = vlaneseq
    %v3457 = vshrl.u32 %v3456, 7
    %v3458 = vsub.s32 %v3455, %v3457
    %v3459 = vrot.slane %v3445, %v3458
    %v3460 = vcombine.high %v3452, %v3452
    %v3461 = vcombine.high %v3459, %v3459
    %v3463 = vunpack.c.l.s4 1966171168
    %v3464 = vunpack.c.0.s8 %v3463
    %v3465 = vlaneseq
    %v3466 = vshrl.u32 %v3465, 7
    %v3467 = vsub.s32 %v3464, %v3466
    %v3468 = vrot.slane %v3452, %v3467
    %v3470 = vunpack.c.l.s4 1966171168
    %v3471 = vunpack.c.0.s8 %v3470
    %v3472 = vlaneseq
    %v3473 = vshrl.u32 %v3472, 7
    %v3474 = vsub.s32 %v3471, %v3473
    %v3475 = vrot.slane %v3459, %v3474
    %v3477 = vunpack.c.l.s4 1966171168
    %v3478 = vunpack.c.0.s8 %v3477
    %v3479 = vlaneseq
    %v3480 = vshrl.u32 %v3479, 7
    %v3481 = vsub.s32 %v3478, %v3480
    %v3482 = vrot.slane %v3460, %v3481
    %v3484 = vunpack.c.l.s4 1966171168
    %v3485 = vunpack.c.0.s8 %v3484
    %v3486 = vlaneseq
    %v3487 = vshrl.u32 %v3486, 7
    %v3488 = vsub.s32 %v3485, %v3487
    %v3489 = vrot.slane %v3461, %v3488
    %v3490 = vcombine.high %v3468, %v3468
    %v3491 = vcombine.high %v3475, %v3475
    %v3492 = vcombine.high %v3482, %v3482
    %v3493 = vcombine.high %v3489, %v3489
    %v3495 = vunpack.c.l.s4 1966171168
    %v3496 = vunpack.c.0.s8 %v3495
    %v3497 = vlaneseq
    %v3498 = vshrl.u32 %v3497, 7
    %v3499 = vsub.s32 %v3496, %v3498
    %v3500 = vrot.slane %v3440, %v3499
    %v3501 = vcombine.high %v3500, %v3500
    %v3503 = vunpack.c.l.s4 1966171168
    %v3504 = vunpack.c.0.s8 %v3503
    %v3505 = vlaneseq
    %v3506 = vshrl.u32 %v3505, 7
    %v3507 = vsub.s32 %v3504, %v3506
    %v3508 = vrot.slane %v3500, %v3507
    %v3510 = vunpack.c.l.s4 1966171168
    %v3511 = vunpack.c.0.s8 %v3510
    %v3512 = vlaneseq
    %v3513 = vshrl.u32 %v3512, 7
    %v3514 = vsub.s32 %v3511, %v3513
    %v3515 = vrot.slane %v3501, %v3514
    %v3526 = vadd.f32 %v966, %v3468
    %v3527 = vadd.f32 %v967, %v3482
    %v3528 = vadd.f32 %v968, %v3490
    %v3529 = vadd.f32 %v969, %v3492
    %v3530 = vadd.f32 %v970, %v3475
    %v3531 = vadd.f32 %v971, %v3489
    %v3532 = vadd.f32 %v972, %v3491
    %v3533 = vadd.f32 %v973, %v3493
    %v3534 = vadd.f32 %v974, %v3508
    %v3535 = vadd.f32 %v975, %v3515
    %v3536 = vld [vmem:[%s11] sm:$0x1]
    %v3537 = vld [vmem:[%s12] sm:$0x1]
    %v3548 = vcombine.low %v3526, %v3527
    %v3549 = vcombine.low %v3528, %v3529
    %v3551 = vunpack.c.l.s4 1966171168
    %v3552 = vunpack.c.0.s8 %v3551
    %v3553 = vlaneseq
    %v3554 = vshrl.u32 %v3553, 7
    %v3555 = vsub.s32 %v3552, %v3554
    %v3556 = vrot.slane %v3548, %v3555
    %v3558 = vunpack.c.l.s4 1966171168
    %v3559 = vunpack.c.0.s8 %v3558
    %v3560 = vlaneseq
    %v3561 = vshrl.u32 %v3560, 7
    %v3562 = vsub.s32 %v3559, %v3561
    %v3563 = vrot.slane %v3549, %v3562
    %v3565 = vunpack.c.l.s4 1966171168
    %v3566 = vunpack.c.0.s8 %v3565
    %v3567 = vlaneseq
    %v3568 = vshrl.u32 %v3567, 7
    %v3569 = vsub.s32 %v3566, %v3568
    %v3570 = vrot.slane %v3530, %v3569
    %v3571 = vcombine.low %v3556, %v3563
    %v3573 = vunpack.c.l.s4 1966171168
    %v3574 = vunpack.c.0.s8 %v3573
    %v3575 = vlaneseq
    %v3576 = vshrl.u32 %v3575, 7
    %v3577 = vsub.s32 %v3574, %v3576
    %v3578 = vrot.slane %v3571, %v3577
    %v3580 = vunpack.c.l.s4 1966171168
    %v3581 = vunpack.c.0.s8 %v3580
    %v3582 = vlaneseq
    %v3583 = vshrl.u32 %v3582, 7
    %v3584 = vsub.s32 %v3581, %v3583
    %v3585 = vrot.slane %v3570, %v3584
    %v3586 = vcombine.low %v3578, %v3585
    %v3587 = vcombine.low %v3531, %v3532
    %v3588 = vcombine.low %v3533, %v3534
    %v3590 = vunpack.c.l.s4 1966171168
    %v3591 = vunpack.c.0.s8 %v3590
    %v3592 = vlaneseq
    %v3593 = vshrl.u32 %v3592, 7
    %v3594 = vsub.s32 %v3591, %v3593
    %v3595 = vrot.slane %v3587, %v3594
    %v3597 = vunpack.c.l.s4 1966171168
    %v3598 = vunpack.c.0.s8 %v3597
    %v3599 = vlaneseq
    %v3600 = vshrl.u32 %v3599, 7
    %v3601 = vsub.s32 %v3598, %v3600
    %v3602 = vrot.slane %v3588, %v3601
    %v3604 = vunpack.c.l.s4 1966171168
    %v3605 = vunpack.c.0.s8 %v3604
    %v3606 = vlaneseq
    %v3607 = vshrl.u32 %v3606, 7
    %v3608 = vsub.s32 %v3605, %v3607
    %v3609 = vrot.slane %v3535, %v3608
    %v3610 = vcombine.low %v3595, %v3602
    %v3612 = vunpack.c.l.s4 1966171168
    %v3613 = vunpack.c.0.s8 %v3612
    %v3614 = vlaneseq
    %v3615 = vshrl.u32 %v3614, 7
    %v3616 = vsub.s32 %v3613, %v3615
    %v3617 = vrot.slane %v3610, %v3616
    %v3619 = vunpack.c.l.s4 1966171168
    %v3620 = vunpack.c.0.s8 %v3619
    %v3621 = vlaneseq
    %v3622 = vshrl.u32 %v3621, 7
    %v3623 = vsub.s32 %v3620, %v3622
    %v3624 = vrot.slane %v3609, %v3623
    %v3625 = vcombine.low %v3617, %v3624
    %v3628 = vsel %vm612, %v3586, 0.0
    %3629 = vadd.xlane.f32.xlu0 %v3628
    %v3630 = vpop.xlane.xlu0 %3629
    %v3631 = vsel %vm612, %v3625, 0.0
    %3632 = vadd.xlane.f32.xlu0 %v3631
    %v3633 = vpop.xlane.xlu0 %3632
    %v3634 = vmul.f32 %v3630, %v619
    %v3635 = vmul.f32 %v3633, %v619
    %v3638 = vlaneseq
    %v3639 = vshrl.u32 %v3638, 7
    %v3640 = vsub.s32 0, %v3639
    %v3641 = vrot.slane %v3634, %v3640
    %v3642 = vlaneseq
    %v3643 = vshrl.u32 %v3642, 7
    %v3644 = vsub.s32 1, %v3643
    %v3645 = vrot.slane %v3634, %v3644
    %v3646 = vlaneseq
    %v3647 = vshrl.u32 %v3646, 7
    %v3648 = vsub.s32 2, %v3647
    %v3649 = vrot.slane %v3634, %v3648
    %v3650 = vlaneseq
    %v3651 = vshrl.u32 %v3650, 7
    %v3652 = vsub.s32 3, %v3651
    %v3653 = vrot.slane %v3634, %v3652
    %v3654 = vlaneseq
    %v3655 = vshrl.u32 %v3654, 7
    %v3656 = vsub.s32 4, %v3655
    %v3657 = vrot.slane %v3634, %v3656
    %v3658 = vlaneseq
    %v3659 = vshrl.u32 %v3658, 7
    %v3660 = vsub.s32 0, %v3659
    %v3661 = vrot.slane %v3635, %v3660
    %v3662 = vlaneseq
    %v3663 = vshrl.u32 %v3662, 7
    %v3664 = vsub.s32 1, %v3663
    %v3665 = vrot.slane %v3635, %v3664
    %v3666 = vlaneseq
    %v3667 = vshrl.u32 %v3666, 7
    %v3668 = vsub.s32 2, %v3667
    %v3669 = vrot.slane %v3635, %v3668
    %v3670 = vlaneseq
    %v3671 = vshrl.u32 %v3670, 7
    %v3672 = vsub.s32 3, %v3671
    %v3673 = vrot.slane %v3635, %v3672
    %v3674 = vlaneseq
    %v3675 = vshrl.u32 %v3674, 7
    %v3676 = vsub.s32 4, %v3675
    %v3677 = vrot.slane %v3635, %v3676
    %v3688 = vsub.f32 %v3526, %v3641
    %v3689 = vsub.f32 %v3527, %v3645
    %v3690 = vsub.f32 %v3528, %v3649
    %v3691 = vsub.f32 %v3529, %v3653
    %v3692 = vsub.f32 %v3530, %v3657
    %v3693 = vsub.f32 %v3531, %v3661
    %v3694 = vsub.f32 %v3532, %v3665
    %v3695 = vsub.f32 %v3533, %v3669
    %v3696 = vsub.f32 %v3534, %v3673
    %v3697 = vsub.f32 %v3535, %v3677
    %v3698 = vmul.f32 %v3688, %v3688
    %v3699 = vmul.f32 %v3689, %v3689
    %v3700 = vmul.f32 %v3690, %v3690
    %v3701 = vmul.f32 %v3691, %v3691
    %v3702 = vmul.f32 %v3692, %v3692
    %v3703 = vmul.f32 %v3693, %v3693
    %v3704 = vmul.f32 %v3694, %v3694
    %v3705 = vmul.f32 %v3695, %v3695
    %v3706 = vmul.f32 %v3696, %v3696
    %v3707 = vmul.f32 %v3697, %v3697
    %v3718 = vcombine.low %v3698, %v3699
    %v3719 = vcombine.low %v3700, %v3701
    %v3721 = vunpack.c.l.s4 1966171168
    %v3722 = vunpack.c.0.s8 %v3721
    %v3723 = vlaneseq
    %v3724 = vshrl.u32 %v3723, 7
    %v3725 = vsub.s32 %v3722, %v3724
    %v3726 = vrot.slane %v3718, %v3725
    %v3728 = vunpack.c.l.s4 1966171168
    %v3729 = vunpack.c.0.s8 %v3728
    %v3730 = vlaneseq
    %v3731 = vshrl.u32 %v3730, 7
    %v3732 = vsub.s32 %v3729, %v3731
    %v3733 = vrot.slane %v3719, %v3732
    %v3735 = vunpack.c.l.s4 1966171168
    %v3736 = vunpack.c.0.s8 %v3735
    %v3737 = vlaneseq
    %v3738 = vshrl.u32 %v3737, 7
    %v3739 = vsub.s32 %v3736, %v3738
    %v3740 = vrot.slane %v3702, %v3739
    %v3741 = vcombine.low %v3726, %v3733
    %v3743 = vunpack.c.l.s4 1966171168
    %v3744 = vunpack.c.0.s8 %v3743
    %v3745 = vlaneseq
    %v3746 = vshrl.u32 %v3745, 7
    %v3747 = vsub.s32 %v3744, %v3746
    %v3748 = vrot.slane %v3741, %v3747
    %v3750 = vunpack.c.l.s4 1966171168
    %v3751 = vunpack.c.0.s8 %v3750
    %v3752 = vlaneseq
    %v3753 = vshrl.u32 %v3752, 7
    %v3754 = vsub.s32 %v3751, %v3753
    %v3755 = vrot.slane %v3740, %v3754
    %v3756 = vcombine.low %v3748, %v3755
    %v3757 = vcombine.low %v3703, %v3704
    %v3758 = vcombine.low %v3705, %v3706
    %v3760 = vunpack.c.l.s4 1966171168
    %v3761 = vunpack.c.0.s8 %v3760
    %v3762 = vlaneseq
    %v3763 = vshrl.u32 %v3762, 7
    %v3764 = vsub.s32 %v3761, %v3763
    %v3765 = vrot.slane %v3757, %v3764
    %v3767 = vunpack.c.l.s4 1966171168
    %v3768 = vunpack.c.0.s8 %v3767
    %v3769 = vlaneseq
    %v3770 = vshrl.u32 %v3769, 7
    %v3771 = vsub.s32 %v3768, %v3770
    %v3772 = vrot.slane %v3758, %v3771
    %v3774 = vunpack.c.l.s4 1966171168
    %v3775 = vunpack.c.0.s8 %v3774
    %v3776 = vlaneseq
    %v3777 = vshrl.u32 %v3776, 7
    %v3778 = vsub.s32 %v3775, %v3777
    %v3779 = vrot.slane %v3707, %v3778
    %v3780 = vcombine.low %v3765, %v3772
    %v3782 = vunpack.c.l.s4 1966171168
    %v3783 = vunpack.c.0.s8 %v3782
    %v3784 = vlaneseq
    %v3785 = vshrl.u32 %v3784, 7
    %v3786 = vsub.s32 %v3783, %v3785
    %v3787 = vrot.slane %v3780, %v3786
    %v3789 = vunpack.c.l.s4 1966171168
    %v3790 = vunpack.c.0.s8 %v3789
    %v3791 = vlaneseq
    %v3792 = vshrl.u32 %v3791, 7
    %v3793 = vsub.s32 %v3790, %v3792
    %v3794 = vrot.slane %v3779, %v3793
    %v3795 = vcombine.low %v3787, %v3794
    %v3798 = vsel %vm612, %v3756, 0.0
    %3799 = vadd.xlane.f32.xlu0 %v3798
    %v3800 = vpop.xlane.xlu0 %3799
    %v3801 = vsel %vm612, %v3795, 0.0
    %3802 = vadd.xlane.f32.xlu0 %v3801
    %v3803 = vpop.xlane.xlu0 %3802
    %v3804 = vmul.f32 %v3800, %v619
    %v3805 = vmul.f32 %v3803, %v619
    %v3806 = vadd.f32 %v3804, 1e-05
    %v3807 = vadd.f32 %v3805, 1e-05
    %v3808 = vrsqrt.pop %v3806
    %v3809 = vrsqrt.pop %v3807
    %v3812 = vlaneseq
    %v3813 = vshrl.u32 %v3812, 7
    %v3814 = vsub.s32 0, %v3813
    %v3815 = vrot.slane %v3808, %v3814
    %v3816 = vlaneseq
    %v3817 = vshrl.u32 %v3816, 7
    %v3818 = vsub.s32 1, %v3817
    %v3819 = vrot.slane %v3808, %v3818
    %v3820 = vlaneseq
    %v3821 = vshrl.u32 %v3820, 7
    %v3822 = vsub.s32 2, %v3821
    %v3823 = vrot.slane %v3808, %v3822
    %v3824 = vlaneseq
    %v3825 = vshrl.u32 %v3824, 7
    %v3826 = vsub.s32 3, %v3825
    %v3827 = vrot.slane %v3808, %v3826
    %v3828 = vlaneseq
    %v3829 = vshrl.u32 %v3828, 7
    %v3830 = vsub.s32 4, %v3829
    %v3831 = vrot.slane %v3808, %v3830
    %v3832 = vlaneseq
    %v3833 = vshrl.u32 %v3832, 7
    %v3834 = vsub.s32 0, %v3833
    %v3835 = vrot.slane %v3809, %v3834
    %v3836 = vlaneseq
    %v3837 = vshrl.u32 %v3836, 7
    %v3838 = vsub.s32 1, %v3837
    %v3839 = vrot.slane %v3809, %v3838
    %v3840 = vlaneseq
    %v3841 = vshrl.u32 %v3840, 7
    %v3842 = vsub.s32 2, %v3841
    %v3843 = vrot.slane %v3809, %v3842
    %v3844 = vlaneseq
    %v3845 = vshrl.u32 %v3844, 7
    %v3846 = vsub.s32 3, %v3845
    %v3847 = vrot.slane %v3809, %v3846
    %v3848 = vlaneseq
    %v3849 = vshrl.u32 %v3848, 7
    %v3850 = vsub.s32 4, %v3849
    %v3851 = vrot.slane %v3809, %v3850
    %v3862 = vmul.f32 %v3688, %v3815
    %v3863 = vmul.f32 %v3689, %v3819
    %v3864 = vmul.f32 %v3690, %v3823
    %v3865 = vmul.f32 %v3691, %v3827
    %v3866 = vmul.f32 %v3692, %v3831
    %v3867 = vmul.f32 %v3693, %v3835
    %v3868 = vmul.f32 %v3694, %v3839
    %v3869 = vmul.f32 %v3695, %v3843
    %v3870 = vmul.f32 %v3696, %v3847
    %v3871 = vmul.f32 %v3697, %v3851
    %v3873 = vlaneseq
    %v3874 = vshrl.u32 %v3873, 7
    %v3875 = vsub.s32 0, %v3874
    %v3876 = vrot.slane %v3536, %v3875
    %v3877 = vcombine.high %v3876, %v3876
    %v3879 = vunpack.c.l.s4 1966171168
    %v3880 = vunpack.c.0.s8 %v3879
    %v3881 = vlaneseq
    %v3882 = vshrl.u32 %v3881, 7
    %v3883 = vsub.s32 %v3880, %v3882
    %v3884 = vrot.slane %v3876, %v3883
    %v3886 = vunpack.c.l.s4 1966171168
    %v3887 = vunpack.c.0.s8 %v3886
    %v3888 = vlaneseq
    %v3889 = vshrl.u32 %v3888, 7
    %v3890 = vsub.s32 %v3887, %v3889
    %v3891 = vrot.slane %v3877, %v3890
    %v3892 = vcombine.high %v3884, %v3884
    %v3894 = vunpack.c.l.s4 1966171168
    %v3895 = vunpack.c.0.s8 %v3894
    %v3896 = vlaneseq
    %v3897 = vshrl.u32 %v3896, 7
    %v3898 = vsub.s32 %v3895, %v3897
    %v3899 = vrot.slane %v3884, %v3898
    %v3901 = vunpack.c.l.s4 1966171168
    %v3902 = vunpack.c.0.s8 %v3901
    %v3903 = vlaneseq
    %v3904 = vshrl.u32 %v3903, 7
    %v3905 = vsub.s32 %v3902, %v3904
    %v3906 = vrot.slane %v3891, %v3905
    %v3908 = vunpack.c.l.s4 1966171168
    %v3909 = vunpack.c.0.s8 %v3908
    %v3910 = vlaneseq
    %v3911 = vshrl.u32 %v3910, 7
    %v3912 = vsub.s32 %v3909, %v3911
    %v3913 = vrot.slane %v3892, %v3912
    %v3914 = vcombine.high %v3899, %v3899
    %v3915 = vcombine.high %v3913, %v3913
    %v3921 = vmul.f32 %v3862, %v3899
    %v3922 = vmul.f32 %v3863, %v3913
    %v3923 = vmul.f32 %v3864, %v3914
    %v3924 = vmul.f32 %v3865, %v3915
    %v3925 = vmul.f32 %v3866, %v3906
    %v3926 = vmul.f32 %v3867, %v3899
    %v3927 = vmul.f32 %v3868, %v3913
    %v3928 = vmul.f32 %v3869, %v3914
    %v3929 = vmul.f32 %v3870, %v3915
    %v3930 = vmul.f32 %v3871, %v3906
    %v3932 = vlaneseq
    %v3933 = vshrl.u32 %v3932, 7
    %v3934 = vsub.s32 0, %v3933
    %v3935 = vrot.slane %v3537, %v3934
    %v3936 = vcombine.high %v3935, %v3935
    %v3938 = vunpack.c.l.s4 1966171168
    %v3939 = vunpack.c.0.s8 %v3938
    %v3940 = vlaneseq
    %v3941 = vshrl.u32 %v3940, 7
    %v3942 = vsub.s32 %v3939, %v3941
    %v3943 = vrot.slane %v3935, %v3942
    %v3945 = vunpack.c.l.s4 1966171168
    %v3946 = vunpack.c.0.s8 %v3945
    %v3947 = vlaneseq
    %v3948 = vshrl.u32 %v3947, 7
    %v3949 = vsub.s32 %v3946, %v3948
    %v3950 = vrot.slane %v3936, %v3949
    %v3951 = vcombine.high %v3943, %v3943
    %v3953 = vunpack.c.l.s4 1966171168
    %v3954 = vunpack.c.0.s8 %v3953
    %v3955 = vlaneseq
    %v3956 = vshrl.u32 %v3955, 7
    %v3957 = vsub.s32 %v3954, %v3956
    %v3958 = vrot.slane %v3943, %v3957
    %v3960 = vunpack.c.l.s4 1966171168
    %v3961 = vunpack.c.0.s8 %v3960
    %v3962 = vlaneseq
    %v3963 = vshrl.u32 %v3962, 7
    %v3964 = vsub.s32 %v3961, %v3963
    %v3965 = vrot.slane %v3950, %v3964
    %v3967 = vunpack.c.l.s4 1966171168
    %v3968 = vunpack.c.0.s8 %v3967
    %v3969 = vlaneseq
    %v3970 = vshrl.u32 %v3969, 7
    %v3971 = vsub.s32 %v3968, %v3970
    %v3972 = vrot.slane %v3951, %v3971
    %v3973 = vcombine.high %v3958, %v3958
    %v3974 = vcombine.high %v3972, %v3972
    %v3980 = vadd.f32 %v3921, %v3958
    %v3981 = vadd.f32 %v3922, %v3972
    %v3982 = vadd.f32 %v3923, %v3973
    %v3983 = vadd.f32 %v3924, %v3974
    %v3984 = vadd.f32 %v3925, %v3965
    %v3985 = vadd.f32 %v3926, %v3958
    %v3986 = vadd.f32 %v3927, %v3972
    %v3987 = vadd.f32 %v3928, %v3973
    %v3988 = vadd.f32 %v3929, %v3974
    %v3989 = vadd.f32 %v3930, %v3965
    %v4000 = vcombine.low %v3980, %v3981
    %v4001 = vcombine.low %v3982, %v3983
    %v4003 = vunpack.c.l.s4 1966171168
    %v4004 = vunpack.c.0.s8 %v4003
    %v4005 = vlaneseq
    %v4006 = vshrl.u32 %v4005, 7
    %v4007 = vsub.s32 %v4004, %v4006
    %v4008 = vrot.slane %v4000, %v4007
    %v4010 = vunpack.c.l.s4 1966171168
    %v4011 = vunpack.c.0.s8 %v4010
    %v4012 = vlaneseq
    %v4013 = vshrl.u32 %v4012, 7
    %v4014 = vsub.s32 %v4011, %v4013
    %v4015 = vrot.slane %v4001, %v4014
    %v4017 = vunpack.c.l.s4 1966171168
    %v4018 = vunpack.c.0.s8 %v4017
    %v4019 = vlaneseq
    %v4020 = vshrl.u32 %v4019, 7
    %v4021 = vsub.s32 %v4018, %v4020
    %v4022 = vrot.slane %v3984, %v4021
    %v4023 = vcombine.low %v4008, %v4015
    %v4025 = vunpack.c.l.s4 1966171168
    %v4026 = vunpack.c.0.s8 %v4025
    %v4027 = vlaneseq
    %v4028 = vshrl.u32 %v4027, 7
    %v4029 = vsub.s32 %v4026, %v4028
    %v4030 = vrot.slane %v4023, %v4029
    %v4032 = vunpack.c.l.s4 1966171168
    %v4033 = vunpack.c.0.s8 %v4032
    %v4034 = vlaneseq
    %v4035 = vshrl.u32 %v4034, 7
    %v4036 = vsub.s32 %v4033, %v4035
    %v4037 = vrot.slane %v4022, %v4036
    %v4038 = vcombine.low %v4030, %v4037
    %v4039 = vcombine.low %v3985, %v3986
    %v4040 = vcombine.low %v3987, %v3988
    %v4042 = vunpack.c.l.s4 1966171168
    %v4043 = vunpack.c.0.s8 %v4042
    %v4044 = vlaneseq
    %v4045 = vshrl.u32 %v4044, 7
    %v4046 = vsub.s32 %v4043, %v4045
    %v4047 = vrot.slane %v4039, %v4046
    %v4049 = vunpack.c.l.s4 1966171168
    %v4050 = vunpack.c.0.s8 %v4049
    %v4051 = vlaneseq
    %v4052 = vshrl.u32 %v4051, 7
    %v4053 = vsub.s32 %v4050, %v4052
    %v4054 = vrot.slane %v4040, %v4053
    %v4056 = vunpack.c.l.s4 1966171168
    %v4057 = vunpack.c.0.s8 %v4056
    %v4058 = vlaneseq
    %v4059 = vshrl.u32 %v4058, 7
    %v4060 = vsub.s32 %v4057, %v4059
    %v4061 = vrot.slane %v3989, %v4060
    %v4062 = vcombine.low %v4047, %v4054
    %v4064 = vunpack.c.l.s4 1966171168
    %v4065 = vunpack.c.0.s8 %v4064
    %v4066 = vlaneseq
    %v4067 = vshrl.u32 %v4066, 7
    %v4068 = vsub.s32 %v4065, %v4067
    %v4069 = vrot.slane %v4062, %v4068
    %v4071 = vunpack.c.l.s4 1966171168
    %v4072 = vunpack.c.0.s8 %v4071
    %v4073 = vlaneseq
    %v4074 = vshrl.u32 %v4073, 7
    %v4075 = vsub.s32 %v4072, %v4074
    %v4076 = vrot.slane %v4061, %v4075
    %v4077 = vcombine.low %v4069, %v4076
    %v4080 = vpack.c.bf16 %v4038, %v4038
    %v4081 = vpack.c.bf16 %v4077, %v4077
    %v4082 = vld [vmem:[%s13] sm:$0xf]
    %v4083 = vld [vmem:[%s13 + $0x4] sm:$0xf]
    %v4084 = vld [vmem:[%s13 + $0x8] sm:$0xf]
    %v4085 = vld [vmem:[%s13 + $0xc] sm:$0xf]
    %v4086 = vld [vmem:[%s14] sm:$0x1]
    %v4088 = vlaneseq
    %v4089 = vshrl.u32 %v4088, 7
    %v4090 = vsub.s32 0, %v4089
    %v4091 = vrot.slane %v4086, %v4090
    %v4095 = vunpack.c.l.s4 1966171168
    %v4096 = vunpack.c.0.s8 %v4095
    %v4097 = vlaneseq
    %v4098 = vshrl.u32 %v4097, 7
    %v4099 = vsub.s32 %v4096, %v4098
    %v4100 = vrot.slane %v4080, %v4099
    %v4101 = vcombine.high %v4100, %v4100
    %v4103 = vunpack.c.l.s4 1966171168
    %v4104 = vunpack.c.0.s8 %v4103
    %v4105 = vlaneseq
    %v4106 = vshrl.u32 %v4105, 7
    %v4107 = vsub.s32 %v4104, %v4106
    %v4108 = vrot.slane %v4100, %v4107
    %v4110 = vunpack.c.l.s4 1966171168
    %v4111 = vunpack.c.0.s8 %v4110
    %v4112 = vlaneseq
    %v4113 = vshrl.u32 %v4112, 7
    %v4114 = vsub.s32 %v4111, %v4113
    %v4115 = vrot.slane %v4101, %v4114
    %v4116 = vcombine.high %v4108, %v4108
    %v4118 = vunpack.c.l.s4 1966171168
    %v4119 = vunpack.c.0.s8 %v4118
    %v4120 = vlaneseq
    %v4121 = vshrl.u32 %v4120, 7
    %v4122 = vsub.s32 %v4119, %v4121
    %v4123 = vrot.slane %v4081, %v4122
    %v4124 = vcombine.high %v4123, %v4123
    %v4126 = vunpack.c.l.s4 1966171168
    %v4127 = vunpack.c.0.s8 %v4126
    %v4128 = vlaneseq
    %v4129 = vshrl.u32 %v4128, 7
    %v4130 = vsub.s32 %v4127, %v4129
    %v4131 = vrot.slane %v4123, %v4130
    %v4133 = vunpack.c.l.s4 1966171168
    %v4134 = vunpack.c.0.s8 %v4133
    %v4135 = vlaneseq
    %v4136 = vshrl.u32 %v4135, 7
    %v4137 = vsub.s32 %v4134, %v4136
    %v4138 = vrot.slane %v4124, %v4137
    %v4139 = vcombine.high %v4131, %v4131
    %v4140 = vunpack.i.l.s16 %v4108
    %v4141 = vunpack.i.h.s16 %v4108
    %v4142 = vunpack.i.l.s16 %v4115
    %v4143 = vunpack.i.h.s16 %v4115
    %v4144 = vunpack.i.l.s16 %v4116
    %v4145 = vunpack.i.l.s16 %v4131
    %v4146 = vunpack.i.h.s16 %v4131
    %v4147 = vunpack.i.l.s16 %v4138
    %v4148 = vunpack.i.h.s16 %v4138
    %v4149 = vunpack.i.l.s16 %v4139
    %v4150 = vcombine.high %v4091, %v4091
    %v4152 = vunpack.c.l.s4 1966171168
    %v4153 = vunpack.c.0.s8 %v4152
    %v4154 = vlaneseq
    %v4155 = vshrl.u32 %v4154, 7
    %v4156 = vsub.s32 %v4153, %v4155
    %v4157 = vrot.slane %v4091, %v4156
    %v4159 = vunpack.c.l.s4 1966171168
    %v4160 = vunpack.c.0.s8 %v4159
    %v4161 = vlaneseq
    %v4162 = vshrl.u32 %v4161, 7
    %v4163 = vsub.s32 %v4160, %v4162
    %v4164 = vrot.slane %v4150, %v4163
    %v4165 = vcombine.high %v4157, %v4157
    %v4167 = vunpack.c.l.s4 1966171168
    %v4168 = vunpack.c.0.s8 %v4167
    %v4169 = vlaneseq
    %v4170 = vshrl.u32 %v4169, 7
    %v4171 = vsub.s32 %v4168, %v4170
    %v4172 = vrot.slane %v4157, %v4171
    %v4174 = vunpack.c.l.s4 1966171168
    %v4175 = vunpack.c.0.s8 %v4174
    %v4176 = vlaneseq
    %v4177 = vshrl.u32 %v4176, 7
    %v4178 = vsub.s32 %v4175, %v4177
    %v4179 = vrot.slane %v4164, %v4178
    %v4181 = vunpack.c.l.s4 1966171168
    %v4182 = vunpack.c.0.s8 %v4181
    %v4183 = vlaneseq
    %v4184 = vshrl.u32 %v4183, 7
    %v4185 = vsub.s32 %v4182, %v4184
    %v4186 = vrot.slane %v4165, %v4185
    %v4187 = vcombine.high %v4172, %v4172
    %v4188 = vcombine.high %v4186, %v4186
    %v4189 = vpack.i.b16 %v4141, %v4140
    %v4190 = vpack.i.b16 %v4143, %v4142
    %v4191 = vpack.i.b16 %v4145, %v4144
    %v4192 = vpack.i.b16 %v4147, %v4146
    %v4193 = vpack.i.b16 %v4149, %v4148
    %v4194 = vcombine.low %v4189, %v4190
    %v4195 = vcombine.low %v4191, %v4192
    %v4197 = vunpack.c.l.s4 1966171168
    %v4198 = vunpack.c.0.s8 %v4197
    %v4199 = vlaneseq
    %v4200 = vshrl.u32 %v4199, 7
    %v4201 = vsub.s32 %v4198, %v4200
    %v4202 = vrot.slane %v4194, %v4201
    %v4204 = vunpack.c.l.s4 1966171168
    %v4205 = vunpack.c.0.s8 %v4204
    %v4206 = vlaneseq
    %v4207 = vshrl.u32 %v4206, 7
    %v4208 = vsub.s32 %v4205, %v4207
    %v4209 = vrot.slane %v4195, %v4208
    %v4211 = vunpack.c.l.s4 1966171168
    %v4212 = vunpack.c.0.s8 %v4211
    %v4213 = vlaneseq
    %v4214 = vshrl.u32 %v4213, 7
    %v4215 = vsub.s32 %v4212, %v4214
    %v4216 = vrot.slane %v4193, %v4215
    %v4217 = vcombine.low %v4202, %v4209
    %v4219 = vunpack.c.l.s4 1966171168
    %v4220 = vunpack.c.0.s8 %v4219
    %v4221 = vlaneseq
    %v4222 = vshrl.u32 %v4221, 7
    %v4223 = vsub.s32 %v4220, %v4222
    %v4224 = vrot.slane %v4217, %v4223
    %v4226 = vunpack.c.l.s4 1966171168
    %v4227 = vunpack.c.0.s8 %v4226
    %v4228 = vlaneseq
    %v4229 = vshrl.u32 %v4228, 7
    %v4230 = vsub.s32 %v4227, %v4229
    %v4231 = vrot.slane %v4216, %v4230
    %v4232 = vcombine.low %v4224, %v4231
    %v4237 = vunpack.c.l.b16 %v4082
    %v4238 = vunpack.c.l.b16 %v4083
    %v4239 = vunpack.c.l.b16 %v4084
    %v4240 = vunpack.c.l.b16 %v4085
    %v4241 = vpack.c.b16 %v4238, %v4237
    %v4242 = vpack.c.b16 %v4240, %v4239
    %v4245 = vcombine.low %v4172, %v4186
    %v4246 = vcombine.low %v4187, %v4188
    %v4247 = vcombine.low %v4179, %v4172
    %v4248 = vcombine.low %v4186, %v4187
    %v4250 = vunpack.c.l.s4 1966171168
    %v4251 = vunpack.c.0.s8 %v4250
    %v4252 = vlaneseq
    %v4253 = vshrl.u32 %v4252, 7
    %v4254 = vsub.s32 %v4251, %v4253
    %v4255 = vrot.slane %v4245, %v4254
    %v4257 = vunpack.c.l.s4 1966171168
    %v4258 = vunpack.c.0.s8 %v4257
    %v4259 = vlaneseq
    %v4260 = vshrl.u32 %v4259, 7
    %v4261 = vsub.s32 %v4258, %v4260
    %v4262 = vrot.slane %v4246, %v4261
    %v4264 = vunpack.c.l.s4 1966171168
    %v4265 = vunpack.c.0.s8 %v4264
    %v4266 = vlaneseq
    %v4267 = vshrl.u32 %v4266, 7
    %v4268 = vsub.s32 %v4265, %v4267
    %v4269 = vrot.slane %v4247, %v4268
    %v4271 = vunpack.c.l.s4 1966171168
    %v4272 = vunpack.c.0.s8 %v4271
    %v4273 = vlaneseq
    %v4274 = vshrl.u32 %v4273, 7
    %v4275 = vsub.s32 %v4272, %v4274
    %v4276 = vrot.slane %v4248, %v4275
    %v4277 = vcombine.low %v4255, %v4262
    %v4278 = vcombine.low %v4269, %v4276
    %v4280 = vunpack.c.l.s4 1966171168
    %v4281 = vunpack.c.0.s8 %v4280
    %v4282 = vlaneseq
    %v4283 = vshrl.u32 %v4282, 7
    %v4284 = vsub.s32 %v4281, %v4283
    %v4285 = vrot.slane %v4277, %v4284
    %v4287 = vunpack.c.l.s4 1966171168
    %v4288 = vunpack.c.0.s8 %v4287
    %v4289 = vlaneseq
    %v4290 = vshrl.u32 %v4289, 7
    %v4291 = vsub.s32 %v4288, %v4290
    %v4292 = vrot.slane %v4278, %v4291
    %v4293 = vcombine.low %v4285, %v4292
    %v4294 = vcombine.low %v4188, %v4179
    %v4296 = vunpack.c.l.s4 1966171168
    %v4297 = vunpack.c.0.s8 %v4296
    %v4298 = vlaneseq
    %v4299 = vshrl.u32 %v4298, 7
    %v4300 = vsub.s32 %v4297, %v4299
    %v4301 = vrot.slane %v4294, %v4300
    %v4303 = vunpack.c.l.s4 1966171168
    %v4304 = vunpack.c.0.s8 %v4303
    %v4305 = vlaneseq
    %v4306 = vshrl.u32 %v4305, 7
    %v4307 = vsub.s32 %v4304, %v4306
    %v4308 = vrot.slane %v4301, %v4307
    %v4312 = vsel %vm1751, %v4232, 0
    %4314 = vmatprep.subr.bf16.mxu0 0
    %4315 = vmatpush1.bf16.msra.mxu0 0
    %4316 = vmatprep.subr.bf16.mxu0 0
    %4317 = vmatpush1.bf16.msra.mxu0 0
    %4318 = vmatprep.subr.bf16.mxu0 0
    %4319 = vmatpush1.bf16.msra.mxu0 0
    %4320 = vmatprep.subr.bf16.mxu0 0
    %4321 = vmatpush1.bf16.msra.mxu0 0
    %4322 = vmatprep.subr.bf16.mxu0 0
    %4323 = vmatpush1.bf16.msra.mxu0 0
    %4324 = vmatprep.subr.bf16.mxu0 0
    %4325 = vmatpush1.bf16.msra.mxu0 0
    %4326 = vmatprep.subr.bf16.mxu0 0
    %4327 = vmatpush1.bf16.msra.mxu0 %v4242
    %4328 = vmatprep.subr.bf16.mxu0 0
    %4329 = vmatpush1.bf16.msra.mxu0 %v4241
    %4330 = vmatprep.subr.bf16.mxu0 0
    %4331 = vmatpush2.bf16.msra.mxu0 0
    %4332 = vmatprep.subr.bf16.mxu0 0
    %4333 = vmatpush2.bf16.msra.mxu0 0
    %4334 = vmatprep.subr.bf16.mxu0 0
    %4335 = vmatpush2.bf16.msra.mxu0 0
    %4336 = vmatprep.subr.bf16.mxu0 0
    %4337 = vmatpush2.bf16.msra.mxu0 0
    %4338 = vmatprep.subr.bf16.mxu0 0
    %4339 = vmatpush2.bf16.msra.mxu0 0
    %4340 = vmatprep.subr.bf16.mxu0 0
    %4341 = vmatpush2.bf16.msra.mxu0 0
    %4342 = vmatprep.subr.bf16.mxu0 0
    %4343 = vmatpush2.bf16.msra.mxu0 0
    %4344 = vmatprep.subr.bf16.mxu0 0
    %4345 = vmatpush2.bf16.msra.mxu0 0
    %4346 = vmatprep.mubr.bf16.mxu0 0
    %4347 = vmatmul.mubr.bf16.gmra.mxu0 %v4312
    %v4348 = vpop.f32.mrf.mxu0
    %v4349 = vadd.f32 %v4293, %v4348
    %v4350 = vpop.f32.mrf.mxu0
    %v4351 = vpop.f32.mrf.mxu0
    %v4352 = vadd.f32 %v4308, %v4351
    %v4353 = vpop.f32.mrf.mxu0
    %4354 = vdwg.mxu0
    %v4357 = vcombine.high %v4349, %v4349
    %v4359 = vunpack.c.l.s4 1966171168
    %v4360 = vunpack.c.0.s8 %v4359
    %v4361 = vlaneseq
    %v4362 = vshrl.u32 %v4361, 7
    %v4363 = vsub.s32 %v4360, %v4362
    %v4364 = vrot.slane %v4349, %v4363
    %v4366 = vunpack.c.l.s4 1966171168
    %v4367 = vunpack.c.0.s8 %v4366
    %v4368 = vlaneseq
    %v4369 = vshrl.u32 %v4368, 7
    %v4370 = vsub.s32 %v4367, %v4369
    %v4371 = vrot.slane %v4357, %v4370
    %v4372 = vcombine.high %v4364, %v4364
    %v4373 = vcombine.high %v4371, %v4371
    %v4375 = vunpack.c.l.s4 1966171168
    %v4376 = vunpack.c.0.s8 %v4375
    %v4377 = vlaneseq
    %v4378 = vshrl.u32 %v4377, 7
    %v4379 = vsub.s32 %v4376, %v4378
    %v4380 = vrot.slane %v4364, %v4379
    %v4382 = vunpack.c.l.s4 1966171168
    %v4383 = vunpack.c.0.s8 %v4382
    %v4384 = vlaneseq
    %v4385 = vshrl.u32 %v4384, 7
    %v4386 = vsub.s32 %v4383, %v4385
    %v4387 = vrot.slane %v4371, %v4386
    %v4389 = vunpack.c.l.s4 1966171168
    %v4390 = vunpack.c.0.s8 %v4389
    %v4391 = vlaneseq
    %v4392 = vshrl.u32 %v4391, 7
    %v4393 = vsub.s32 %v4390, %v4392
    %v4394 = vrot.slane %v4372, %v4393
    %v4396 = vunpack.c.l.s4 1966171168
    %v4397 = vunpack.c.0.s8 %v4396
    %v4398 = vlaneseq
    %v4399 = vshrl.u32 %v4398, 7
    %v4400 = vsub.s32 %v4397, %v4399
    %v4401 = vrot.slane %v4373, %v4400
    %v4402 = vcombine.high %v4380, %v4380
    %v4403 = vcombine.high %v4387, %v4387
    %v4404 = vcombine.high %v4394, %v4394
    %v4405 = vcombine.high %v4401, %v4401
    %v4407 = vunpack.c.l.s4 1966171168
    %v4408 = vunpack.c.0.s8 %v4407
    %v4409 = vlaneseq
    %v4410 = vshrl.u32 %v4409, 7
    %v4411 = vsub.s32 %v4408, %v4410
    %v4412 = vrot.slane %v4352, %v4411
    %v4413 = vcombine.high %v4412, %v4412
    %v4415 = vunpack.c.l.s4 1966171168
    %v4416 = vunpack.c.0.s8 %v4415
    %v4417 = vlaneseq
    %v4418 = vshrl.u32 %v4417, 7
    %v4419 = vsub.s32 %v4416, %v4418
    %v4420 = vrot.slane %v4412, %v4419
    %v4422 = vunpack.c.l.s4 1966171168
    %v4423 = vunpack.c.0.s8 %v4422
    %v4424 = vlaneseq
    %v4425 = vshrl.u32 %v4424, 7
    %v4426 = vsub.s32 %v4423, %v4425
    %v4427 = vrot.slane %v4413, %v4426
    %v4438 = vmul.f32 %v4380, 1.702
    %v4439 = vmul.f32 %v4394, 1.702
    %v4440 = vmul.f32 %v4402, 1.702
    %v4441 = vmul.f32 %v4404, 1.702
    %v4442 = vmul.f32 %v4387, 1.702
    %v4443 = vmul.f32 %v4401, 1.702
    %v4444 = vmul.f32 %v4403, 1.702
    %v4445 = vmul.f32 %v4405, 1.702
    %v4446 = vmul.f32 %v4420, 1.702
    %v4447 = vmul.f32 %v4427, 1.702
    %v4448 = vxor.u32 %v4438, 2147483648
    %v4449 = vxor.u32 %v4439, 2147483648
    %v4450 = vxor.u32 %v4440, 2147483648
    %v4451 = vxor.u32 %v4441, 2147483648
    %v4452 = vxor.u32 %v4442, 2147483648
    %v4453 = vxor.u32 %v4443, 2147483648
    %v4454 = vxor.u32 %v4444, 2147483648
    %v4455 = vxor.u32 %v4445, 2147483648
    %v4456 = vxor.u32 %v4446, 2147483648
    %v4457 = vxor.u32 %v4447, 2147483648
    %v4458 = vmul.f32 %v4448, 1.442695
    %v4459 = vpow.pop %v4458
    %v4460 = vmul.f32 %v4449, 1.442695
    %v4461 = vpow.pop %v4460
    %v4462 = vmul.f32 %v4450, 1.442695
    %v4463 = vpow.pop %v4462
    %v4464 = vmul.f32 %v4451, 1.442695
    %v4465 = vpow.pop %v4464
    %v4466 = vmul.f32 %v4452, 1.442695
    %v4467 = vpow.pop %v4466
    %v4468 = vmul.f32 %v4453, 1.442695
    %v4469 = vpow.pop %v4468
    %v4470 = vmul.f32 %v4454, 1.442695
    %v4471 = vpow.pop %v4470
    %v4472 = vmul.f32 %v4455, 1.442695
    %v4473 = vpow.pop %v4472
    %v4474 = vmul.f32 %v4456, 1.442695
    %v4475 = vpow.pop %v4474
    %v4476 = vmul.f32 %v4457, 1.442695
    %v4477 = vpow.pop %v4476
    %v4478 = vadd.f32 %v4459, 1.0
    %v4479 = vadd.f32 %v4461, 1.0
    %v4480 = vadd.f32 %v4463, 1.0
    %v4481 = vadd.f32 %v4465, 1.0
    %v4482 = vadd.f32 %v4467, 1.0
    %v4483 = vadd.f32 %v4469, 1.0
    %v4484 = vadd.f32 %v4471, 1.0
    %v4485 = vadd.f32 %v4473, 1.0
    %v4486 = vadd.f32 %v4475, 1.0
    %v4487 = vadd.f32 %v4477, 1.0
    %v4488 = vrcp.pop %v4478
    %v4489 = vmul.f32 1.0, %v4488
    %v4490 = vrcp.pop %v4479
    %v4491 = vmul.f32 1.0, %v4490
    %v4492 = vrcp.pop %v4480
    %v4493 = vmul.f32 1.0, %v4492
    %v4494 = vrcp.pop %v4481
    %v4495 = vmul.f32 1.0, %v4494
    %v4496 = vrcp.pop %v4482
    %v4497 = vmul.f32 1.0, %v4496
    %v4498 = vrcp.pop %v4483
    %v4499 = vmul.f32 1.0, %v4498
    %v4500 = vrcp.pop %v4484
    %v4501 = vmul.f32 1.0, %v4500
    %v4502 = vrcp.pop %v4485
    %v4503 = vmul.f32 1.0, %v4502
    %v4504 = vrcp.pop %v4486
    %v4505 = vmul.f32 1.0, %v4504
    %v4506 = vrcp.pop %v4487
    %v4507 = vmul.f32 1.0, %v4506
    %v4508 = vmul.f32 %v4380, %v4489
    %v4509 = vmul.f32 %v4394, %v4491
    %v4510 = vmul.f32 %v4402, %v4493
    %v4511 = vmul.f32 %v4404, %v4495
    %v4512 = vmul.f32 %v4387, %v4497
    %v4513 = vmul.f32 %v4401, %v4499
    %v4514 = vmul.f32 %v4403, %v4501
    %v4515 = vmul.f32 %v4405, %v4503
    %v4516 = vmul.f32 %v4420, %v4505
    %v4517 = vmul.f32 %v4427, %v4507
    %v4528 = vcombine.low %v4508, %v4509
    %v4529 = vcombine.low %v4510, %v4511
    %v4531 = vunpack.c.l.s4 1966171168
    %v4532 = vunpack.c.0.s8 %v4531
    %v4533 = vlaneseq
    %v4534 = vshrl.u32 %v4533, 7
    %v4535 = vsub.s32 %v4532, %v4534
    %v4536 = vrot.slane %v4528, %v4535
    %v4538 = vunpack.c.l.s4 1966171168
    %v4539 = vunpack.c.0.s8 %v4538
    %v4540 = vlaneseq
    %v4541 = vshrl.u32 %v4540, 7
    %v4542 = vsub.s32 %v4539, %v4541
    %v4543 = vrot.slane %v4529, %v4542
    %v4545 = vunpack.c.l.s4 1966171168
    %v4546 = vunpack.c.0.s8 %v4545
    %v4547 = vlaneseq
    %v4548 = vshrl.u32 %v4547, 7
    %v4549 = vsub.s32 %v4546, %v4548
    %v4550 = vrot.slane %v4512, %v4549
    %v4551 = vcombine.low %v4536, %v4543
    %v4553 = vunpack.c.l.s4 1966171168
    %v4554 = vunpack.c.0.s8 %v4553
    %v4555 = vlaneseq
    %v4556 = vshrl.u32 %v4555, 7
    %v4557 = vsub.s32 %v4554, %v4556
    %v4558 = vrot.slane %v4551, %v4557
    %v4560 = vunpack.c.l.s4 1966171168
    %v4561 = vunpack.c.0.s8 %v4560
    %v4562 = vlaneseq
    %v4563 = vshrl.u32 %v4562, 7
    %v4564 = vsub.s32 %v4561, %v4563
    %v4565 = vrot.slane %v4550, %v4564
    %v4566 = vcombine.low %v4558, %v4565
    %v4567 = vcombine.low %v4513, %v4514
    %v4568 = vcombine.low %v4515, %v4516
    %v4570 = vunpack.c.l.s4 1966171168
    %v4571 = vunpack.c.0.s8 %v4570
    %v4572 = vlaneseq
    %v4573 = vshrl.u32 %v4572, 7
    %v4574 = vsub.s32 %v4571, %v4573
    %v4575 = vrot.slane %v4567, %v4574
    %v4577 = vunpack.c.l.s4 1966171168
    %v4578 = vunpack.c.0.s8 %v4577
    %v4579 = vlaneseq
    %v4580 = vshrl.u32 %v4579, 7
    %v4581 = vsub.s32 %v4578, %v4580
    %v4582 = vrot.slane %v4568, %v4581
    %v4584 = vunpack.c.l.s4 1966171168
    %v4585 = vunpack.c.0.s8 %v4584
    %v4586 = vlaneseq
    %v4587 = vshrl.u32 %v4586, 7
    %v4588 = vsub.s32 %v4585, %v4587
    %v4589 = vrot.slane %v4517, %v4588
    %v4590 = vcombine.low %v4575, %v4582
    %v4592 = vunpack.c.l.s4 1966171168
    %v4593 = vunpack.c.0.s8 %v4592
    %v4594 = vlaneseq
    %v4595 = vshrl.u32 %v4594, 7
    %v4596 = vsub.s32 %v4593, %v4595
    %v4597 = vrot.slane %v4590, %v4596
    %v4599 = vunpack.c.l.s4 1966171168
    %v4600 = vunpack.c.0.s8 %v4599
    %v4601 = vlaneseq
    %v4602 = vshrl.u32 %v4601, 7
    %v4603 = vsub.s32 %v4600, %v4602
    %v4604 = vrot.slane %v4589, %v4603
    %v4605 = vcombine.low %v4597, %v4604
    %v4608 = vpack.c.bf16 %v4566, %v4566
    %v4609 = vpack.c.bf16 %v4605, %v4605
    %v4610 = vld [vmem:[%s15] sm:$0xf]
    %v4611 = vld [vmem:[%s15 + $0x4] sm:$0xf]
    %v4612 = vld [vmem:[%s15 + $0x8] sm:$0xf]
    %v4613 = vld [vmem:[%s15 + $0xc] sm:$0xf]
    %v4614 = vld [vmem:[%s15 + $0x10] sm:$0xf]
    %v4615 = vld [vmem:[%s15 + $0x14] sm:$0xf]
    %v4616 = vld [vmem:[%s15 + $0x18] sm:$0xf]
    %v4617 = vld [vmem:[%s15 + $0x1c] sm:$0xf]
    %v4618 = vld [vmem:[%s16] sm:$0x1]
    %v4620 = vlaneseq
    %v4621 = vshrl.u32 %v4620, 7
    %v4622 = vsub.s32 0, %v4621
    %v4623 = vrot.slane %v4618, %v4622
    %v4627 = vunpack.c.l.s4 1966171168
    %v4628 = vunpack.c.0.s8 %v4627
    %v4629 = vlaneseq
    %v4630 = vshrl.u32 %v4629, 7
    %v4631 = vsub.s32 %v4628, %v4630
    %v4632 = vrot.slane %v4608, %v4631
    %v4633 = vcombine.high %v4632, %v4632
    %v4635 = vunpack.c.l.s4 1966171168
    %v4636 = vunpack.c.0.s8 %v4635
    %v4637 = vlaneseq
    %v4638 = vshrl.u32 %v4637, 7
    %v4639 = vsub.s32 %v4636, %v4638
    %v4640 = vrot.slane %v4632, %v4639
    %v4642 = vunpack.c.l.s4 1966171168
    %v4643 = vunpack.c.0.s8 %v4642
    %v4644 = vlaneseq
    %v4645 = vshrl.u32 %v4644, 7
    %v4646 = vsub.s32 %v4643, %v4645
    %v4647 = vrot.slane %v4633, %v4646
    %v4648 = vcombine.high %v4640, %v4640
    %v4650 = vunpack.c.l.s4 1966171168
    %v4651 = vunpack.c.0.s8 %v4650
    %v4652 = vlaneseq
    %v4653 = vshrl.u32 %v4652, 7
    %v4654 = vsub.s32 %v4651, %v4653
    %v4655 = vrot.slane %v4609, %v4654
    %v4656 = vcombine.high %v4655, %v4655
    %v4658 = vunpack.c.l.s4 1966171168
    %v4659 = vunpack.c.0.s8 %v4658
    %v4660 = vlaneseq
    %v4661 = vshrl.u32 %v4660, 7
    %v4662 = vsub.s32 %v4659, %v4661
    %v4663 = vrot.slane %v4655, %v4662
    %v4665 = vunpack.c.l.s4 1966171168
    %v4666 = vunpack.c.0.s8 %v4665
    %v4667 = vlaneseq
    %v4668 = vshrl.u32 %v4667, 7
    %v4669 = vsub.s32 %v4666, %v4668
    %v4670 = vrot.slane %v4656, %v4669
    %v4671 = vcombine.high %v4663, %v4663
    %v4672 = vunpack.i.l.s16 %v4640
    %v4673 = vunpack.i.h.s16 %v4640
    %v4674 = vunpack.i.l.s16 %v4647
    %v4675 = vunpack.i.h.s16 %v4647
    %v4676 = vunpack.i.l.s16 %v4648
    %v4677 = vunpack.i.l.s16 %v4663
    %v4678 = vunpack.i.h.s16 %v4663
    %v4679 = vunpack.i.l.s16 %v4670
    %v4680 = vunpack.i.h.s16 %v4670
    %v4681 = vunpack.i.l.s16 %v4671
    %v4682 = vcombine.high %v4623, %v4623
    %v4684 = vunpack.c.l.s4 1966171168
    %v4685 = vunpack.c.0.s8 %v4684
    %v4686 = vlaneseq
    %v4687 = vshrl.u32 %v4686, 7
    %v4688 = vsub.s32 %v4685, %v4687
    %v4689 = vrot.slane %v4623, %v4688
    %v4691 = vunpack.c.l.s4 1966171168
    %v4692 = vunpack.c.0.s8 %v4691
    %v4693 = vlaneseq
    %v4694 = vshrl.u32 %v4693, 7
    %v4695 = vsub.s32 %v4692, %v4694
    %v4696 = vrot.slane %v4682, %v4695
    %v4697 = vcombine.high %v4689, %v4689
    %v4699 = vunpack.c.l.s4 1966171168
    %v4700 = vunpack.c.0.s8 %v4699
    %v4701 = vlaneseq
    %v4702 = vshrl.u32 %v4701, 7
    %v4703 = vsub.s32 %v4700, %v4702
    %v4704 = vrot.slane %v4689, %v4703
    %v4706 = vunpack.c.l.s4 1966171168
    %v4707 = vunpack.c.0.s8 %v4706
    %v4708 = vlaneseq
    %v4709 = vshrl.u32 %v4708, 7
    %v4710 = vsub.s32 %v4707, %v4709
    %v4711 = vrot.slane %v4696, %v4710
    %v4713 = vunpack.c.l.s4 1966171168
    %v4714 = vunpack.c.0.s8 %v4713
    %v4715 = vlaneseq
    %v4716 = vshrl.u32 %v4715, 7
    %v4717 = vsub.s32 %v4714, %v4716
    %v4718 = vrot.slane %v4697, %v4717
    %v4719 = vcombine.high %v4704, %v4704
    %v4720 = vcombine.high %v4718, %v4718
    %v4721 = vpack.i.b16 %v4673, %v4672
    %v4722 = vpack.i.b16 %v4675, %v4674
    %v4723 = vpack.i.b16 %v4677, %v4676
    %v4724 = vpack.i.b16 %v4679, %v4678
    %v4725 = vpack.i.b16 %v4681, %v4680
    %v4726 = vcombine.low %v4721, %v4722
    %v4727 = vcombine.low %v4723, %v4724
    %v4729 = vunpack.c.l.s4 1966171168
    %v4730 = vunpack.c.0.s8 %v4729
    %v4731 = vlaneseq
    %v4732 = vshrl.u32 %v4731, 7
    %v4733 = vsub.s32 %v4730, %v4732
    %v4734 = vrot.slane %v4726, %v4733
    %v4736 = vunpack.c.l.s4 1966171168
    %v4737 = vunpack.c.0.s8 %v4736
    %v4738 = vlaneseq
    %v4739 = vshrl.u32 %v4738, 7
    %v4740 = vsub.s32 %v4737, %v4739
    %v4741 = vrot.slane %v4727, %v4740
    %v4743 = vunpack.c.l.s4 1966171168
    %v4744 = vunpack.c.0.s8 %v4743
    %v4745 = vlaneseq
    %v4746 = vshrl.u32 %v4745, 7
    %v4747 = vsub.s32 %v4744, %v4746
    %v4748 = vrot.slane %v4725, %v4747
    %v4749 = vcombine.low %v4734, %v4741
    %v4751 = vunpack.c.l.s4 1966171168
    %v4752 = vunpack.c.0.s8 %v4751
    %v4753 = vlaneseq
    %v4754 = vshrl.u32 %v4753, 7
    %v4755 = vsub.s32 %v4752, %v4754
    %v4756 = vrot.slane %v4749, %v4755
    %v4758 = vunpack.c.l.s4 1966171168
    %v4759 = vunpack.c.0.s8 %v4758
    %v4760 = vlaneseq
    %v4761 = vshrl.u32 %v4760, 7
    %v4762 = vsub.s32 %v4759, %v4761
    %v4763 = vrot.slane %v4748, %v4762
    %v4764 = vcombine.low %v4756, %v4763
    %v4773 = vunpack.c.l.b16 %v4610
    %v4774 = vunpack.c.l.b16 %v4611
    %v4775 = vunpack.c.l.b16 %v4612
    %v4776 = vunpack.c.l.b16 %v4613
    %v4777 = vunpack.c.l.b16 %v4614
    %v4778 = vunpack.c.l.b16 %v4615
    %v4779 = vunpack.c.l.b16 %v4616
    %v4780 = vunpack.c.l.b16 %v4617
    %v4781 = vpack.c.b16 %v4774, %v4773
    %v4782 = vpack.c.b16 %v4776, %v4775
    %v4783 = vpack.c.b16 %v4778, %v4777
    %v4784 = vpack.c.b16 %v4780, %v4779
    %v4789 = vcombine.low %v4704, %v4718
    %v4790 = vcombine.low %v4719, %v4720
    %v4791 = vcombine.low %v4711, %v4704
    %v4792 = vcombine.low %v4718, %v4719
    %v4794 = vunpack.c.l.s4 1966171168
    %v4795 = vunpack.c.0.s8 %v4794
    %v4796 = vlaneseq
    %v4797 = vshrl.u32 %v4796, 7
    %v4798 = vsub.s32 %v4795, %v4797
    %v4799 = vrot.slane %v4789, %v4798
    %v4801 = vunpack.c.l.s4 1966171168
    %v4802 = vunpack.c.0.s8 %v4801
    %v4803 = vlaneseq
    %v4804 = vshrl.u32 %v4803, 7
    %v4805 = vsub.s32 %v4802, %v4804
    %v4806 = vrot.slane %v4790, %v4805
    %v4808 = vunpack.c.l.s4 1966171168
    %v4809 = vunpack.c.0.s8 %v4808
    %v4810 = vlaneseq
    %v4811 = vshrl.u32 %v4810, 7
    %v4812 = vsub.s32 %v4809, %v4811
    %v4813 = vrot.slane %v4791, %v4812
    %v4815 = vunpack.c.l.s4 1966171168
    %v4816 = vunpack.c.0.s8 %v4815
    %v4817 = vlaneseq
    %v4818 = vshrl.u32 %v4817, 7
    %v4819 = vsub.s32 %v4816, %v4818
    %v4820 = vrot.slane %v4792, %v4819
    %v4821 = vcombine.low %v4799, %v4806
    %v4822 = vcombine.low %v4813, %v4820
    %v4824 = vunpack.c.l.s4 1966171168
    %v4825 = vunpack.c.0.s8 %v4824
    %v4826 = vlaneseq
    %v4827 = vshrl.u32 %v4826, 7
    %v4828 = vsub.s32 %v4825, %v4827
    %v4829 = vrot.slane %v4821, %v4828
    %v4831 = vunpack.c.l.s4 1966171168
    %v4832 = vunpack.c.0.s8 %v4831
    %v4833 = vlaneseq
    %v4834 = vshrl.u32 %v4833, 7
    %v4835 = vsub.s32 %v4832, %v4834
    %v4836 = vrot.slane %v4822, %v4835
    %v4837 = vcombine.low %v4829, %v4836
    %v4838 = vcombine.low %v4720, %v4711
    %v4840 = vunpack.c.l.s4 1966171168
    %v4841 = vunpack.c.0.s8 %v4840
    %v4842 = vlaneseq
    %v4843 = vshrl.u32 %v4842, 7
    %v4844 = vsub.s32 %v4841, %v4843
    %v4845 = vrot.slane %v4838, %v4844
    %v4847 = vunpack.c.l.s4 1966171168
    %v4848 = vunpack.c.0.s8 %v4847
    %v4849 = vlaneseq
    %v4850 = vshrl.u32 %v4849, 7
    %v4851 = vsub.s32 %v4848, %v4850
    %v4852 = vrot.slane %v4845, %v4851
    %v4856 = vsel %vm402, %v4764, 0
    %4858 = vmatprep.subr.bf16.mxu0 0
    %4859 = vmatpush1.bf16.msra.mxu0 0
    %4860 = vmatprep.subr.bf16.mxu0 0
    %4861 = vmatpush1.bf16.msra.mxu0 0
    %4862 = vmatprep.subr.bf16.mxu0 0
    %4863 = vmatpush1.bf16.msra.mxu0 0
    %4864 = vmatprep.subr.bf16.mxu0 0
    %4865 = vmatpush1.bf16.msra.mxu0 0
    %4866 = vmatprep.subr.bf16.mxu0 0
    %4867 = vmatpush1.bf16.msra.mxu0 %v4784
    %4868 = vmatprep.subr.bf16.mxu0 0
    %4869 = vmatpush1.bf16.msra.mxu0 %v4783
    %4870 = vmatprep.subr.bf16.mxu0 0
    %4871 = vmatpush1.bf16.msra.mxu0 %v4782
    %4872 = vmatprep.subr.bf16.mxu0 0
    %4873 = vmatpush1.bf16.msra.mxu0 %v4781
    %4874 = vmatprep.subr.bf16.mxu0 0
    %4875 = vmatpush2.bf16.msra.mxu0 0
    %4876 = vmatprep.subr.bf16.mxu0 0
    %4877 = vmatpush2.bf16.msra.mxu0 0
    %4878 = vmatprep.subr.bf16.mxu0 0
    %4879 = vmatpush2.bf16.msra.mxu0 0
    %4880 = vmatprep.subr.bf16.mxu0 0
    %4881 = vmatpush2.bf16.msra.mxu0 0
    %4882 = vmatprep.subr.bf16.mxu0 0
    %4883 = vmatpush2.bf16.msra.mxu0 0
    %4884 = vmatprep.subr.bf16.mxu0 0
    %4885 = vmatpush2.bf16.msra.mxu0 0
    %4886 = vmatprep.subr.bf16.mxu0 0
    %4887 = vmatpush2.bf16.msra.mxu0 0
    %4888 = vmatprep.subr.bf16.mxu0 0
    %4889 = vmatpush2.bf16.msra.mxu0 0
    %4890 = vmatprep.mubr.bf16.mxu0 0
    %4891 = vmatmul.mubr.bf16.gmra.mxu0 %v4856
    %v4892 = vpop.f32.mrf.mxu0
    %v4893 = vadd.f32 %v4837, %v4892
    %v4894 = vpop.f32.mrf.mxu0
    %v4895 = vpop.f32.mrf.mxu0
    %v4896 = vadd.f32 %v4852, %v4895
    %v4897 = vpop.f32.mrf.mxu0
    %4898 = vdwg.mxu0
    %v4901 = vcombine.high %v4893, %v4893
    %v4903 = vunpack.c.l.s4 1966171168
    %v4904 = vunpack.c.0.s8 %v4903
    %v4905 = vlaneseq
    %v4906 = vshrl.u32 %v4905, 7
    %v4907 = vsub.s32 %v4904, %v4906
    %v4908 = vrot.slane %v4893, %v4907
    %v4910 = vunpack.c.l.s4 1966171168
    %v4911 = vunpack.c.0.s8 %v4910
    %v4912 = vlaneseq
    %v4913 = vshrl.u32 %v4912, 7
    %v4914 = vsub.s32 %v4911, %v4913
    %v4915 = vrot.slane %v4901, %v4914
    %v4916 = vcombine.high %v4908, %v4908
    %v4917 = vcombine.high %v4915, %v4915
    %v4919 = vunpack.c.l.s4 1966171168
    %v4920 = vunpack.c.0.s8 %v4919
    %v4921 = vlaneseq
    %v4922 = vshrl.u32 %v4921, 7
    %v4923 = vsub.s32 %v4920, %v4922
    %v4924 = vrot.slane %v4908, %v4923
    %v4926 = vunpack.c.l.s4 1966171168
    %v4927 = vunpack.c.0.s8 %v4926
    %v4928 = vlaneseq
    %v4929 = vshrl.u32 %v4928, 7
    %v4930 = vsub.s32 %v4927, %v4929
    %v4931 = vrot.slane %v4915, %v4930
    %v4933 = vunpack.c.l.s4 1966171168
    %v4934 = vunpack.c.0.s8 %v4933
    %v4935 = vlaneseq
    %v4936 = vshrl.u32 %v4935, 7
    %v4937 = vsub.s32 %v4934, %v4936
    %v4938 = vrot.slane %v4916, %v4937
    %v4940 = vunpack.c.l.s4 1966171168
    %v4941 = vunpack.c.0.s8 %v4940
    %v4942 = vlaneseq
    %v4943 = vshrl.u32 %v4942, 7
    %v4944 = vsub.s32 %v4941, %v4943
    %v4945 = vrot.slane %v4917, %v4944
    %v4946 = vcombine.high %v4924, %v4924
    %v4947 = vcombine.high %v4931, %v4931
    %v4948 = vcombine.high %v4938, %v4938
    %v4949 = vcombine.high %v4945, %v4945
    %v4951 = vunpack.c.l.s4 1966171168
    %v4952 = vunpack.c.0.s8 %v4951
    %v4953 = vlaneseq
    %v4954 = vshrl.u32 %v4953, 7
    %v4955 = vsub.s32 %v4952, %v4954
    %v4956 = vrot.slane %v4896, %v4955
    %v4957 = vcombine.high %v4956, %v4956
    %v4959 = vunpack.c.l.s4 1966171168
    %v4960 = vunpack.c.0.s8 %v4959
    %v4961 = vlaneseq
    %v4962 = vshrl.u32 %v4961, 7
    %v4963 = vsub.s32 %v4960, %v4962
    %v4964 = vrot.slane %v4956, %v4963
    %v4966 = vunpack.c.l.s4 1966171168
    %v4967 = vunpack.c.0.s8 %v4966
    %v4968 = vlaneseq
    %v4969 = vshrl.u32 %v4968, 7
    %v4970 = vsub.s32 %v4967, %v4969
    %v4971 = vrot.slane %v4957, %v4970
    %v4982 = vadd.f32 %v3526, %v4924
    %v4983 = vadd.f32 %v3527, %v4938
    %v4984 = vadd.f32 %v3528, %v4946
    %v4985 = vadd.f32 %v3529, %v4948
    %v4986 = vadd.f32 %v3530, %v4931
    %v4987 = vadd.f32 %v3531, %v4945
    %v4988 = vadd.f32 %v3532, %v4947
    %v4989 = vadd.f32 %v3533, %v4949
    %v4990 = vadd.f32 %v3534, %v4964
    %v4991 = vadd.f32 %v3535, %v4971
    %s4992 = scalar_lea.vmem %s5, 1
    %v4993 = vld [vmem:[%s4992] sm:$0x1]
    %s4994 = scalar_lea.vmem %s6, 1
    %v4995 = vld [vmem:[%s4994] sm:$0x1]
    %v5006 = vcombine.low %v4982, %v4983
    %v5007 = vcombine.low %v4984, %v4985
    %v5009 = vunpack.c.l.s4 1966171168
    %v5010 = vunpack.c.0.s8 %v5009
    %v5011 = vlaneseq
    %v5012 = vshrl.u32 %v5011, 7
    %v5013 = vsub.s32 %v5010, %v5012
    %v5014 = vrot.slane %v5006, %v5013
    %v5016 = vunpack.c.l.s4 1966171168
    %v5017 = vunpack.c.0.s8 %v5016
    %v5018 = vlaneseq
    %v5019 = vshrl.u32 %v5018, 7
    %v5020 = vsub.s32 %v5017, %v5019
    %v5021 = vrot.slane %v5007, %v5020
    %v5023 = vunpack.c.l.s4 1966171168
    %v5024 = vunpack.c.0.s8 %v5023
    %v5025 = vlaneseq
    %v5026 = vshrl.u32 %v5025, 7
    %v5027 = vsub.s32 %v5024, %v5026
    %v5028 = vrot.slane %v4986, %v5027
    %v5029 = vcombine.low %v5014, %v5021
    %v5031 = vunpack.c.l.s4 1966171168
    %v5032 = vunpack.c.0.s8 %v5031
    %v5033 = vlaneseq
    %v5034 = vshrl.u32 %v5033, 7
    %v5035 = vsub.s32 %v5032, %v5034
    %v5036 = vrot.slane %v5029, %v5035
    %v5038 = vunpack.c.l.s4 1966171168
    %v5039 = vunpack.c.0.s8 %v5038
    %v5040 = vlaneseq
    %v5041 = vshrl.u32 %v5040, 7
    %v5042 = vsub.s32 %v5039, %v5041
    %v5043 = vrot.slane %v5028, %v5042
    %v5044 = vcombine.low %v5036, %v5043
    %v5045 = vcombine.low %v4987, %v4988
    %v5046 = vcombine.low %v4989, %v4990
    %v5048 = vunpack.c.l.s4 1966171168
    %v5049 = vunpack.c.0.s8 %v5048
    %v5050 = vlaneseq
    %v5051 = vshrl.u32 %v5050, 7
    %v5052 = vsub.s32 %v5049, %v5051
    %v5053 = vrot.slane %v5045, %v5052
    %v5055 = vunpack.c.l.s4 1966171168
    %v5056 = vunpack.c.0.s8 %v5055
    %v5057 = vlaneseq
    %v5058 = vshrl.u32 %v5057, 7
    %v5059 = vsub.s32 %v5056, %v5058
    %v5060 = vrot.slane %v5046, %v5059
    %v5062 = vunpack.c.l.s4 1966171168
    %v5063 = vunpack.c.0.s8 %v5062
    %v5064 = vlaneseq
    %v5065 = vshrl.u32 %v5064, 7
    %v5066 = vsub.s32 %v5063, %v5065
    %v5067 = vrot.slane %v4991, %v5066
    %v5068 = vcombine.low %v5053, %v5060
    %v5070 = vunpack.c.l.s4 1966171168
    %v5071 = vunpack.c.0.s8 %v5070
    %v5072 = vlaneseq
    %v5073 = vshrl.u32 %v5072, 7
    %v5074 = vsub.s32 %v5071, %v5073
    %v5075 = vrot.slane %v5068, %v5074
    %v5077 = vunpack.c.l.s4 1966171168
    %v5078 = vunpack.c.0.s8 %v5077
    %v5079 = vlaneseq
    %v5080 = vshrl.u32 %v5079, 7
    %v5081 = vsub.s32 %v5078, %v5080
    %v5082 = vrot.slane %v5067, %v5081
    %v5083 = vcombine.low %v5075, %v5082
    %v5086 = vsel %vm612, %v5044, 0.0
    %5087 = vadd.xlane.f32.xlu0 %v5086
    %v5088 = vpop.xlane.xlu0 %5087
    %v5089 = vsel %vm612, %v5083, 0.0
    %5090 = vadd.xlane.f32.xlu0 %v5089
    %v5091 = vpop.xlane.xlu0 %5090
    %v5092 = vmul.f32 %v5088, %v619
    %v5093 = vmul.f32 %v5091, %v619
    %v5096 = vlaneseq
    %v5097 = vshrl.u32 %v5096, 7
    %v5098 = vsub.s32 0, %v5097
    %v5099 = vrot.slane %v5092, %v5098
    %v5100 = vlaneseq
    %v5101 = vshrl.u32 %v5100, 7
    %v5102 = vsub.s32 1, %v5101
    %v5103 = vrot.slane %v5092, %v5102
    %v5104 = vlaneseq
    %v5105 = vshrl.u32 %v5104, 7
    %v5106 = vsub.s32 2, %v5105
    %v5107 = vrot.slane %v5092, %v5106
    %v5108 = vlaneseq
    %v5109 = vshrl.u32 %v5108, 7
    %v5110 = vsub.s32 3, %v5109
    %v5111 = vrot.slane %v5092, %v5110
    %v5112 = vlaneseq
    %v5113 = vshrl.u32 %v5112, 7
    %v5114 = vsub.s32 4, %v5113
    %v5115 = vrot.slane %v5092, %v5114
    %v5116 = vlaneseq
    %v5117 = vshrl.u32 %v5116, 7
    %v5118 = vsub.s32 0, %v5117
    %v5119 = vrot.slane %v5093, %v5118
    %v5120 = vlaneseq
    %v5121 = vshrl.u32 %v5120, 7
    %v5122 = vsub.s32 1, %v5121
    %v5123 = vrot.slane %v5093, %v5122
    %v5124 = vlaneseq
    %v5125 = vshrl.u32 %v5124, 7
    %v5126 = vsub.s32 2, %v5125
    %v5127 = vrot.slane %v5093, %v5126
    %v5128 = vlaneseq
    %v5129 = vshrl.u32 %v5128, 7
    %v5130 = vsub.s32 3, %v5129
    %v5131 = vrot.slane %v5093, %v5130
    %v5132 = vlaneseq
    %v5133 = vshrl.u32 %v5132, 7
    %v5134 = vsub.s32 4, %v5133
    %v5135 = vrot.slane %v5093, %v5134
    %v5146 = vsub.f32 %v4982, %v5099
    %v5147 = vsub.f32 %v4983, %v5103
    %v5148 = vsub.f32 %v4984, %v5107
    %v5149 = vsub.f32 %v4985, %v5111
    %v5150 = vsub.f32 %v4986, %v5115
    %v5151 = vsub.f32 %v4987, %v5119
    %v5152 = vsub.f32 %v4988, %v5123
    %v5153 = vsub.f32 %v4989, %v5127
    %v5154 = vsub.f32 %v4990, %v5131
    %v5155 = vsub.f32 %v4991, %v5135
    %v5156 = vmul.f32 %v5146, %v5146
    %v5157 = vmul.f32 %v5147, %v5147
    %v5158 = vmul.f32 %v5148, %v5148
    %v5159 = vmul.f32 %v5149, %v5149
    %v5160 = vmul.f32 %v5150, %v5150
    %v5161 = vmul.f32 %v5151, %v5151
    %v5162 = vmul.f32 %v5152, %v5152
    %v5163 = vmul.f32 %v5153, %v5153
    %v5164 = vmul.f32 %v5154, %v5154
    %v5165 = vmul.f32 %v5155, %v5155
    %v5176 = vcombine.low %v5156, %v5157
    %v5177 = vcombine.low %v5158, %v5159
    %v5179 = vunpack.c.l.s4 1966171168
    %v5180 = vunpack.c.0.s8 %v5179
    %v5181 = vlaneseq
    %v5182 = vshrl.u32 %v5181, 7
    %v5183 = vsub.s32 %v5180, %v5182
    %v5184 = vrot.slane %v5176, %v5183
    %v5186 = vunpack.c.l.s4 1966171168
    %v5187 = vunpack.c.0.s8 %v5186
    %v5188 = vlaneseq
    %v5189 = vshrl.u32 %v5188, 7
    %v5190 = vsub.s32 %v5187, %v5189
    %v5191 = vrot.slane %v5177, %v5190
    %v5193 = vunpack.c.l.s4 1966171168
    %v5194 = vunpack.c.0.s8 %v5193
    %v5195 = vlaneseq
    %v5196 = vshrl.u32 %v5195, 7
    %v5197 = vsub.s32 %v5194, %v5196
    %v5198 = vrot.slane %v5160, %v5197
    %v5199 = vcombine.low %v5184, %v5191
    %v5201 = vunpack.c.l.s4 1966171168
    %v5202 = vunpack.c.0.s8 %v5201
    %v5203 = vlaneseq
    %v5204 = vshrl.u32 %v5203, 7
    %v5205 = vsub.s32 %v5202, %v5204
    %v5206 = vrot.slane %v5199, %v5205
    %v5208 = vunpack.c.l.s4 1966171168
    %v5209 = vunpack.c.0.s8 %v5208
    %v5210 = vlaneseq
    %v5211 = vshrl.u32 %v5210, 7
    %v5212 = vsub.s32 %v5209, %v5211
    %v5213 = vrot.slane %v5198, %v5212
    %v5214 = vcombine.low %v5206, %v5213
    %v5215 = vcombine.low %v5161, %v5162
    %v5216 = vcombine.low %v5163, %v5164
    %v5218 = vunpack.c.l.s4 1966171168
    %v5219 = vunpack.c.0.s8 %v5218
    %v5220 = vlaneseq
    %v5221 = vshrl.u32 %v5220, 7
    %v5222 = vsub.s32 %v5219, %v5221
    %v5223 = vrot.slane %v5215, %v5222
    %v5225 = vunpack.c.l.s4 1966171168
    %v5226 = vunpack.c.0.s8 %v5225
    %v5227 = vlaneseq
    %v5228 = vshrl.u32 %v5227, 7
    %v5229 = vsub.s32 %v5226, %v5228
    %v5230 = vrot.slane %v5216, %v5229
    %v5232 = vunpack.c.l.s4 1966171168
    %v5233 = vunpack.c.0.s8 %v5232
    %v5234 = vlaneseq
    %v5235 = vshrl.u32 %v5234, 7
    %v5236 = vsub.s32 %v5233, %v5235
    %v5237 = vrot.slane %v5165, %v5236
    %v5238 = vcombine.low %v5223, %v5230
    %v5240 = vunpack.c.l.s4 1966171168
    %v5241 = vunpack.c.0.s8 %v5240
    %v5242 = vlaneseq
    %v5243 = vshrl.u32 %v5242, 7
    %v5244 = vsub.s32 %v5241, %v5243
    %v5245 = vrot.slane %v5238, %v5244
    %v5247 = vunpack.c.l.s4 1966171168
    %v5248 = vunpack.c.0.s8 %v5247
    %v5249 = vlaneseq
    %v5250 = vshrl.u32 %v5249, 7
    %v5251 = vsub.s32 %v5248, %v5250
    %v5252 = vrot.slane %v5237, %v5251
    %v5253 = vcombine.low %v5245, %v5252
    %v5256 = vsel %vm612, %v5214, 0.0
    %5257 = vadd.xlane.f32.xlu0 %v5256
    %v5258 = vpop.xlane.xlu0 %5257
    %v5259 = vsel %vm612, %v5253, 0.0
    %5260 = vadd.xlane.f32.xlu0 %v5259
    %v5261 = vpop.xlane.xlu0 %5260
    %v5262 = vmul.f32 %v5258, %v619
    %v5263 = vmul.f32 %v5261, %v619
    %v5264 = vadd.f32 %v5262, 1e-05
    %v5265 = vadd.f32 %v5263, 1e-05
    %v5266 = vrsqrt.pop %v5264
    %v5267 = vrsqrt.pop %v5265
    %v5270 = vlaneseq
    %v5271 = vshrl.u32 %v5270, 7
    %v5272 = vsub.s32 0, %v5271
    %v5273 = vrot.slane %v5266, %v5272
    %v5274 = vlaneseq
    %v5275 = vshrl.u32 %v5274, 7
    %v5276 = vsub.s32 1, %v5275
    %v5277 = vrot.slane %v5266, %v5276
    %v5278 = vlaneseq
    %v5279 = vshrl.u32 %v5278, 7
    %v5280 = vsub.s32 2, %v5279
    %v5281 = vrot.slane %v5266, %v5280
    %v5282 = vlaneseq
    %v5283 = vshrl.u32 %v5282, 7
    %v5284 = vsub.s32 3, %v5283
    %v5285 = vrot.slane %v5266, %v5284
    %v5286 = vlaneseq
    %v5287 = vshrl.u32 %v5286, 7
    %v5288 = vsub.s32 4, %v5287
    %v5289 = vrot.slane %v5266, %v5288
    %v5290 = vlaneseq
    %v5291 = vshrl.u32 %v5290, 7
    %v5292 = vsub.s32 0, %v5291
    %v5293 = vrot.slane %v5267, %v5292
    %v5294 = vlaneseq
    %v5295 = vshrl.u32 %v5294, 7
    %v5296 = vsub.s32 1, %v5295
    %v5297 = vrot.slane %v5267, %v5296
    %v5298 = vlaneseq
    %v5299 = vshrl.u32 %v5298, 7
    %v5300 = vsub.s32 2, %v5299
    %v5301 = vrot.slane %v5267, %v5300
    %v5302 = vlaneseq
    %v5303 = vshrl.u32 %v5302, 7
    %v5304 = vsub.s32 3, %v5303
    %v5305 = vrot.slane %v5267, %v5304
    %v5306 = vlaneseq
    %v5307 = vshrl.u32 %v5306, 7
    %v5308 = vsub.s32 4, %v5307
    %v5309 = vrot.slane %v5267, %v5308
    %v5320 = vmul.f32 %v5146, %v5273
    %v5321 = vmul.f32 %v5147, %v5277
    %v5322 = vmul.f32 %v5148, %v5281
    %v5323 = vmul.f32 %v5149, %v5285
    %v5324 = vmul.f32 %v5150, %v5289
    %v5325 = vmul.f32 %v5151, %v5293
    %v5326 = vmul.f32 %v5152, %v5297
    %v5327 = vmul.f32 %v5153, %v5301
    %v5328 = vmul.f32 %v5154, %v5305
    %v5329 = vmul.f32 %v5155, %v5309
    %v5331 = vlaneseq
    %v5332 = vshrl.u32 %v5331, 7
    %v5333 = vsub.s32 0, %v5332
    %v5334 = vrot.slane %v4993, %v5333
    %v5335 = vcombine.high %v5334, %v5334
    %v5337 = vunpack.c.l.s4 1966171168
    %v5338 = vunpack.c.0.s8 %v5337
    %v5339 = vlaneseq
    %v5340 = vshrl.u32 %v5339, 7
    %v5341 = vsub.s32 %v5338, %v5340
    %v5342 = vrot.slane %v5334, %v5341
    %v5344 = vunpack.c.l.s4 1966171168
    %v5345 = vunpack.c.0.s8 %v5344
    %v5346 = vlaneseq
    %v5347 = vshrl.u32 %v5346, 7
    %v5348 = vsub.s32 %v5345, %v5347
    %v5349 = vrot.slane %v5335, %v5348
    %v5350 = vcombine.high %v5342, %v5342
    %v5352 = vunpack.c.l.s4 1966171168
    %v5353 = vunpack.c.0.s8 %v5352
    %v5354 = vlaneseq
    %v5355 = vshrl.u32 %v5354, 7
    %v5356 = vsub.s32 %v5353, %v5355
    %v5357 = vrot.slane %v5342, %v5356
    %v5359 = vunpack.c.l.s4 1966171168
    %v5360 = vunpack.c.0.s8 %v5359
    %v5361 = vlaneseq
    %v5362 = vshrl.u32 %v5361, 7
    %v5363 = vsub.s32 %v5360, %v5362
    %v5364 = vrot.slane %v5349, %v5363
    %v5366 = vunpack.c.l.s4 1966171168
    %v5367 = vunpack.c.0.s8 %v5366
    %v5368 = vlaneseq
    %v5369 = vshrl.u32 %v5368, 7
    %v5370 = vsub.s32 %v5367, %v5369
    %v5371 = vrot.slane %v5350, %v5370
    %v5372 = vcombine.high %v5357, %v5357
    %v5373 = vcombine.high %v5371, %v5371
    %v5379 = vmul.f32 %v5320, %v5357
    %v5380 = vmul.f32 %v5321, %v5371
    %v5381 = vmul.f32 %v5322, %v5372
    %v5382 = vmul.f32 %v5323, %v5373
    %v5383 = vmul.f32 %v5324, %v5364
    %v5384 = vmul.f32 %v5325, %v5357
    %v5385 = vmul.f32 %v5326, %v5371
    %v5386 = vmul.f32 %v5327, %v5372
    %v5387 = vmul.f32 %v5328, %v5373
    %v5388 = vmul.f32 %v5329, %v5364
    %v5390 = vlaneseq
    %v5391 = vshrl.u32 %v5390, 7
    %v5392 = vsub.s32 0, %v5391
    %v5393 = vrot.slane %v4995, %v5392
    %v5394 = vcombine.high %v5393, %v5393
    %v5396 = vunpack.c.l.s4 1966171168
    %v5397 = vunpack.c.0.s8 %v5396
    %v5398 = vlaneseq
    %v5399 = vshrl.u32 %v5398, 7
    %v5400 = vsub.s32 %v5397, %v5399
    %v5401 = vrot.slane %v5393, %v5400
    %v5403 = vunpack.c.l.s4 1966171168
    %v5404 = vunpack.c.0.s8 %v5403
    %v5405 = vlaneseq
    %v5406 = vshrl.u32 %v5405, 7
    %v5407 = vsub.s32 %v5404, %v5406
    %v5408 = vrot.slane %v5394, %v5407
    %v5409 = vcombine.high %v5401, %v5401
    %v5411 = vunpack.c.l.s4 1966171168
    %v5412 = vunpack.c.0.s8 %v5411
    %v5413 = vlaneseq
    %v5414 = vshrl.u32 %v5413, 7
    %v5415 = vsub.s32 %v5412, %v5414
    %v5416 = vrot.slane %v5401, %v5415
    %v5418 = vunpack.c.l.s4 1966171168
    %v5419 = vunpack.c.0.s8 %v5418
    %v5420 = vlaneseq
    %v5421 = vshrl.u32 %v5420, 7
    %v5422 = vsub.s32 %v5419, %v5421
    %v5423 = vrot.slane %v5408, %v5422
    %v5425 = vunpack.c.l.s4 1966171168
    %v5426 = vunpack.c.0.s8 %v5425
    %v5427 = vlaneseq
    %v5428 = vshrl.u32 %v5427, 7
    %v5429 = vsub.s32 %v5426, %v5428
    %v5430 = vrot.slane %v5409, %v5429
    %v5431 = vcombine.high %v5416, %v5416
    %v5432 = vcombine.high %v5430, %v5430
    %v5438 = vadd.f32 %v5379, %v5416
    %v5439 = vadd.f32 %v5380, %v5430
    %v5440 = vadd.f32 %v5381, %v5431
    %v5441 = vadd.f32 %v5382, %v5432
    %v5442 = vadd.f32 %v5383, %v5423
    %v5443 = vadd.f32 %v5384, %v5416
    %v5444 = vadd.f32 %v5385, %v5430
    %v5445 = vadd.f32 %v5386, %v5431
    %v5446 = vadd.f32 %v5387, %v5432
    %v5447 = vadd.f32 %v5388, %v5423
    %v5458 = vcombine.low %v5438, %v5439
    %v5459 = vcombine.low %v5440, %v5441
    %v5461 = vunpack.c.l.s4 1966171168
    %v5462 = vunpack.c.0.s8 %v5461
    %v5463 = vlaneseq
    %v5464 = vshrl.u32 %v5463, 7
    %v5465 = vsub.s32 %v5462, %v5464
    %v5466 = vrot.slane %v5458, %v5465
    %v5468 = vunpack.c.l.s4 1966171168
    %v5469 = vunpack.c.0.s8 %v5468
    %v5470 = vlaneseq
    %v5471 = vshrl.u32 %v5470, 7
    %v5472 = vsub.s32 %v5469, %v5471
    %v5473 = vrot.slane %v5459, %v5472
    %v5475 = vunpack.c.l.s4 1966171168
    %v5476 = vunpack.c.0.s8 %v5475
    %v5477 = vlaneseq
    %v5478 = vshrl.u32 %v5477, 7
    %v5479 = vsub.s32 %v5476, %v5478
    %v5480 = vrot.slane %v5442, %v5479
    %v5481 = vcombine.low %v5466, %v5473
    %v5483 = vunpack.c.l.s4 1966171168
    %v5484 = vunpack.c.0.s8 %v5483
    %v5485 = vlaneseq
    %v5486 = vshrl.u32 %v5485, 7
    %v5487 = vsub.s32 %v5484, %v5486
    %v5488 = vrot.slane %v5481, %v5487
    %v5490 = vunpack.c.l.s4 1966171168
    %v5491 = vunpack.c.0.s8 %v5490
    %v5492 = vlaneseq
    %v5493 = vshrl.u32 %v5492, 7
    %v5494 = vsub.s32 %v5491, %v5493
    %v5495 = vrot.slane %v5480, %v5494
    %v5496 = vcombine.low %v5488, %v5495
    %v5497 = vcombine.low %v5443, %v5444
    %v5498 = vcombine.low %v5445, %v5446
    %v5500 = vunpack.c.l.s4 1966171168
    %v5501 = vunpack.c.0.s8 %v5500
    %v5502 = vlaneseq
    %v5503 = vshrl.u32 %v5502, 7
    %v5504 = vsub.s32 %v5501, %v5503
    %v5505 = vrot.slane %v5497, %v5504
    %v5507 = vunpack.c.l.s4 1966171168
    %v5508 = vunpack.c.0.s8 %v5507
    %v5509 = vlaneseq
    %v5510 = vshrl.u32 %v5509, 7
    %v5511 = vsub.s32 %v5508, %v5510
    %v5512 = vrot.slane %v5498, %v5511
    %v5514 = vunpack.c.l.s4 1966171168
    %v5515 = vunpack.c.0.s8 %v5514
    %v5516 = vlaneseq
    %v5517 = vshrl.u32 %v5516, 7
    %v5518 = vsub.s32 %v5515, %v5517
    %v5519 = vrot.slane %v5447, %v5518
    %v5520 = vcombine.low %v5505, %v5512
    %v5522 = vunpack.c.l.s4 1966171168
    %v5523 = vunpack.c.0.s8 %v5522
    %v5524 = vlaneseq
    %v5525 = vshrl.u32 %v5524, 7
    %v5526 = vsub.s32 %v5523, %v5525
    %v5527 = vrot.slane %v5520, %v5526
    %v5529 = vunpack.c.l.s4 1966171168
    %v5530 = vunpack.c.0.s8 %v5529
    %v5531 = vlaneseq
    %v5532 = vshrl.u32 %v5531, 7
    %v5533 = vsub.s32 %v5530, %v5532
    %v5534 = vrot.slane %v5519, %v5533
    %v5535 = vcombine.low %v5527, %v5534
    %v5538 = vpack.c.bf16 %v5496, %v5496
    %v5539 = vpack.c.bf16 %v5535, %v5535
    %s5540 = scalar_lea.vmem %s7, 16
    %v5541 = vld [vmem:[%s5540] sm:$0xf]
    %v5542 = vld [vmem:[%s5540 + $0x4] sm:$0xf]
    %v5543 = vld [vmem:[%s5540 + $0x8] sm:$0xf]
    %v5544 = vld [vmem:[%s5540 + $0xc] sm:$0xf]
    %s5545 = scalar_lea.vmem %s8, 1
    %v5546 = vld [vmem:[%s5545] sm:$0x1]
    %v5548 = vlaneseq
    %v5549 = vshrl.u32 %v5548, 7
    %v5550 = vsub.s32 0, %v5549
    %v5551 = vrot.slane %v5546, %v5550
    %v5555 = vunpack.c.l.s4 1966171168
    %v5556 = vunpack.c.0.s8 %v5555
    %v5557 = vlaneseq
    %v5558 = vshrl.u32 %v5557, 7
    %v5559 = vsub.s32 %v5556, %v5558
    %v5560 = vrot.slane %v5538, %v5559
    %v5561 = vcombine.high %v5560, %v5560
    %v5563 = vunpack.c.l.s4 1966171168
    %v5564 = vunpack.c.0.s8 %v5563
    %v5565 = vlaneseq
    %v5566 = vshrl.u32 %v5565, 7
    %v5567 = vsub.s32 %v5564, %v5566
    %v5568 = vrot.slane %v5560, %v5567
    %v5570 = vunpack.c.l.s4 1966171168
    %v5571 = vunpack.c.0.s8 %v5570
    %v5572 = vlaneseq
    %v5573 = vshrl.u32 %v5572, 7
    %v5574 = vsub.s32 %v5571, %v5573
    %v5575 = vrot.slane %v5561, %v5574
    %v5576 = vcombine.high %v5568, %v5568
    %v5578 = vunpack.c.l.s4 1966171168
    %v5579 = vunpack.c.0.s8 %v5578
    %v5580 = vlaneseq
    %v5581 = vshrl.u32 %v5580, 7
    %v5582 = vsub.s32 %v5579, %v5581
    %v5583 = vrot.slane %v5539, %v5582
    %v5584 = vcombine.high %v5583, %v5583
    %v5586 = vunpack.c.l.s4 1966171168
    %v5587 = vunpack.c.0.s8 %v5586
    %v5588 = vlaneseq
    %v5589 = vshrl.u32 %v5588, 7
    %v5590 = vsub.s32 %v5587, %v5589
    %v5591 = vrot.slane %v5583, %v5590
    %v5593 = vunpack.c.l.s4 1966171168
    %v5594 = vunpack.c.0.s8 %v5593
    %v5595 = vlaneseq
    %v5596 = vshrl.u32 %v5595, 7
    %v5597 = vsub.s32 %v5594, %v5596
    %v5598 = vrot.slane %v5584, %v5597
    %v5599 = vcombine.high %v5591, %v5591
    %v5600 = vunpack.i.l.s16 %v5568
    %v5601 = vunpack.i.h.s16 %v5568
    %v5602 = vunpack.i.l.s16 %v5575
    %v5603 = vunpack.i.h.s16 %v5575
    %v5604 = vunpack.i.l.s16 %v5576
    %v5605 = vunpack.i.l.s16 %v5591
    %v5606 = vunpack.i.h.s16 %v5591
    %v5607 = vunpack.i.l.s16 %v5598
    %v5608 = vunpack.i.h.s16 %v5598
    %v5609 = vunpack.i.l.s16 %v5599
    %v5610 = vcombine.high %v5551, %v5551
    %v5612 = vunpack.c.l.s4 1966171168
    %v5613 = vunpack.c.0.s8 %v5612
    %v5614 = vlaneseq
    %v5615 = vshrl.u32 %v5614, 7
    %v5616 = vsub.s32 %v5613, %v5615
    %v5617 = vrot.slane %v5551, %v5616
    %v5619 = vunpack.c.l.s4 1966171168
    %v5620 = vunpack.c.0.s8 %v5619
    %v5621 = vlaneseq
    %v5622 = vshrl.u32 %v5621, 7
    %v5623 = vsub.s32 %v5620, %v5622
    %v5624 = vrot.slane %v5610, %v5623
    %v5625 = vcombine.high %v5617, %v5617
    %v5627 = vunpack.c.l.s4 1966171168
    %v5628 = vunpack.c.0.s8 %v5627
    %v5629 = vlaneseq
    %v5630 = vshrl.u32 %v5629, 7
    %v5631 = vsub.s32 %v5628, %v5630
    %v5632 = vrot.slane %v5617, %v5631
    %v5634 = vunpack.c.l.s4 1966171168
    %v5635 = vunpack.c.0.s8 %v5634
    %v5636 = vlaneseq
    %v5637 = vshrl.u32 %v5636, 7
    %v5638 = vsub.s32 %v5635, %v5637
    %v5639 = vrot.slane %v5624, %v5638
    %v5641 = vunpack.c.l.s4 1966171168
    %v5642 = vunpack.c.0.s8 %v5641
    %v5643 = vlaneseq
    %v5644 = vshrl.u32 %v5643, 7
    %v5645 = vsub.s32 %v5642, %v5644
    %v5646 = vrot.slane %v5625, %v5645
    %v5647 = vcombine.high %v5632, %v5632
    %v5648 = vcombine.high %v5646, %v5646
    %v5649 = vpack.i.b16 %v5601, %v5600
    %v5650 = vpack.i.b16 %v5603, %v5602
    %v5651 = vpack.i.b16 %v5605, %v5604
    %v5652 = vpack.i.b16 %v5607, %v5606
    %v5653 = vpack.i.b16 %v5609, %v5608
    %v5654 = vcombine.low %v5649, %v5650
    %v5655 = vcombine.low %v5651, %v5652
    %v5657 = vunpack.c.l.s4 1966171168
    %v5658 = vunpack.c.0.s8 %v5657
    %v5659 = vlaneseq
    %v5660 = vshrl.u32 %v5659, 7
    %v5661 = vsub.s32 %v5658, %v5660
    %v5662 = vrot.slane %v5654, %v5661
    %v5664 = vunpack.c.l.s4 1966171168
    %v5665 = vunpack.c.0.s8 %v5664
    %v5666 = vlaneseq
    %v5667 = vshrl.u32 %v5666, 7
    %v5668 = vsub.s32 %v5665, %v5667
    %v5669 = vrot.slane %v5655, %v5668
    %v5671 = vunpack.c.l.s4 1966171168
    %v5672 = vunpack.c.0.s8 %v5671
    %v5673 = vlaneseq
    %v5674 = vshrl.u32 %v5673, 7
    %v5675 = vsub.s32 %v5672, %v5674
    %v5676 = vrot.slane %v5653, %v5675
    %v5677 = vcombine.low %v5662, %v5669
    %v5679 = vunpack.c.l.s4 1966171168
    %v5680 = vunpack.c.0.s8 %v5679
    %v5681 = vlaneseq
    %v5682 = vshrl.u32 %v5681, 7
    %v5683 = vsub.s32 %v5680, %v5682
    %v5684 = vrot.slane %v5677, %v5683
    %v5686 = vunpack.c.l.s4 1966171168
    %v5687 = vunpack.c.0.s8 %v5686
    %v5688 = vlaneseq
    %v5689 = vshrl.u32 %v5688, 7
    %v5690 = vsub.s32 %v5687, %v5689
    %v5691 = vrot.slane %v5676, %v5690
    %v5692 = vcombine.low %v5684, %v5691
    %v5697 = vunpack.c.l.b16 %v5541
    %v5698 = vunpack.c.l.b16 %v5542
    %v5699 = vunpack.c.l.b16 %v5543
    %v5700 = vunpack.c.l.b16 %v5544
    %v5701 = vpack.c.b16 %v5698, %v5697
    %v5702 = vpack.c.b16 %v5700, %v5699
    %v5705 = vcombine.low %v5632, %v5646
    %v5706 = vcombine.low %v5647, %v5648
    %v5707 = vcombine.low %v5639, %v5632
    %v5708 = vcombine.low %v5646, %v5647
    %v5710 = vunpack.c.l.s4 1966171168
    %v5711 = vunpack.c.0.s8 %v5710
    %v5712 = vlaneseq
    %v5713 = vshrl.u32 %v5712, 7
    %v5714 = vsub.s32 %v5711, %v5713
    %v5715 = vrot.slane %v5705, %v5714
    %v5717 = vunpack.c.l.s4 1966171168
    %v5718 = vunpack.c.0.s8 %v5717
    %v5719 = vlaneseq
    %v5720 = vshrl.u32 %v5719, 7
    %v5721 = vsub.s32 %v5718, %v5720
    %v5722 = vrot.slane %v5706, %v5721
    %v5724 = vunpack.c.l.s4 1966171168
    %v5725 = vunpack.c.0.s8 %v5724
    %v5726 = vlaneseq
    %v5727 = vshrl.u32 %v5726, 7
    %v5728 = vsub.s32 %v5725, %v5727
    %v5729 = vrot.slane %v5707, %v5728
    %v5731 = vunpack.c.l.s4 1966171168
    %v5732 = vunpack.c.0.s8 %v5731
    %v5733 = vlaneseq
    %v5734 = vshrl.u32 %v5733, 7
    %v5735 = vsub.s32 %v5732, %v5734
    %v5736 = vrot.slane %v5708, %v5735
    %v5737 = vcombine.low %v5715, %v5722
    %v5738 = vcombine.low %v5729, %v5736
    %v5740 = vunpack.c.l.s4 1966171168
    %v5741 = vunpack.c.0.s8 %v5740
    %v5742 = vlaneseq
    %v5743 = vshrl.u32 %v5742, 7
    %v5744 = vsub.s32 %v5741, %v5743
    %v5745 = vrot.slane %v5737, %v5744
    %v5747 = vunpack.c.l.s4 1966171168
    %v5748 = vunpack.c.0.s8 %v5747
    %v5749 = vlaneseq
    %v5750 = vshrl.u32 %v5749, 7
    %v5751 = vsub.s32 %v5748, %v5750
    %v5752 = vrot.slane %v5738, %v5751
    %v5753 = vcombine.low %v5745, %v5752
    %v5754 = vcombine.low %v5648, %v5639
    %v5756 = vunpack.c.l.s4 1966171168
    %v5757 = vunpack.c.0.s8 %v5756
    %v5758 = vlaneseq
    %v5759 = vshrl.u32 %v5758, 7
    %v5760 = vsub.s32 %v5757, %v5759
    %v5761 = vrot.slane %v5754, %v5760
    %v5763 = vunpack.c.l.s4 1966171168
    %v5764 = vunpack.c.0.s8 %v5763
    %v5765 = vlaneseq
    %v5766 = vshrl.u32 %v5765, 7
    %v5767 = vsub.s32 %v5764, %v5766
    %v5768 = vrot.slane %v5761, %v5767
    %v5772 = vsel %vm1751, %v5692, 0
    %5774 = vmatprep.subr.bf16.mxu0 0
    %5775 = vmatpush1.bf16.msra.mxu0 0
    %5776 = vmatprep.subr.bf16.mxu0 0
    %5777 = vmatpush1.bf16.msra.mxu0 0
    %5778 = vmatprep.subr.bf16.mxu0 0
    %5779 = vmatpush1.bf16.msra.mxu0 0
    %5780 = vmatprep.subr.bf16.mxu0 0
    %5781 = vmatpush1.bf16.msra.mxu0 0
    %5782 = vmatprep.subr.bf16.mxu0 0
    %5783 = vmatpush1.bf16.msra.mxu0 0
    %5784 = vmatprep.subr.bf16.mxu0 0
    %5785 = vmatpush1.bf16.msra.mxu0 0
    %5786 = vmatprep.subr.bf16.mxu0 0
    %5787 = vmatpush1.bf16.msra.mxu0 %v5702
    %5788 = vmatprep.subr.bf16.mxu0 0
    %5789 = vmatpush1.bf16.msra.mxu0 %v5701
    %5790 = vmatprep.subr.bf16.mxu0 0
    %5791 = vmatpush2.bf16.msra.mxu0 0
    %5792 = vmatprep.subr.bf16.mxu0 0
    %5793 = vmatpush2.bf16.msra.mxu0 0
    %5794 = vmatprep.subr.bf16.mxu0 0
    %5795 = vmatpush2.bf16.msra.mxu0 0
    %5796 = vmatprep.subr.bf16.mxu0 0
    %5797 = vmatpush2.bf16.msra.mxu0 0
    %5798 = vmatprep.subr.bf16.mxu0 0
    %5799 = vmatpush2.bf16.msra.mxu0 0
    %5800 = vmatprep.subr.bf16.mxu0 0
    %5801 = vmatpush2.bf16.msra.mxu0 0
    %5802 = vmatprep.subr.bf16.mxu0 0
    %5803 = vmatpush2.bf16.msra.mxu0 0
    %5804 = vmatprep.subr.bf16.mxu0 0
    %5805 = vmatpush2.bf16.msra.mxu0 0
    %5806 = vmatprep.mubr.bf16.mxu0 0
    %5807 = vmatmul.mubr.bf16.gmra.mxu0 %v5772
    %v5808 = vpop.f32.mrf.mxu0
    %v5809 = vadd.f32 %v5753, %v5808
    %v5810 = vpop.f32.mrf.mxu0
    %v5811 = vpop.f32.mrf.mxu0
    %v5812 = vadd.f32 %v5768, %v5811
    %v5813 = vpop.f32.mrf.mxu0
    %5814 = vdwg.mxu0
    %v5817 = vcombine.high %v5809, %v5809
    %v5819 = vunpack.c.l.s4 1966171168
    %v5820 = vunpack.c.0.s8 %v5819
    %v5821 = vlaneseq
    %v5822 = vshrl.u32 %v5821, 7
    %v5823 = vsub.s32 %v5820, %v5822
    %v5824 = vrot.slane %v5809, %v5823
    %v5826 = vunpack.c.l.s4 1966171168
    %v5827 = vunpack.c.0.s8 %v5826
    %v5828 = vlaneseq
    %v5829 = vshrl.u32 %v5828, 7
    %v5830 = vsub.s32 %v5827, %v5829
    %v5831 = vrot.slane %v5817, %v5830
    %v5832 = vcombine.high %v5824, %v5824
    %v5833 = vcombine.high %v5831, %v5831
    %v5835 = vunpack.c.l.s4 1966171168
    %v5836 = vunpack.c.0.s8 %v5835
    %v5837 = vlaneseq
    %v5838 = vshrl.u32 %v5837, 7
    %v5839 = vsub.s32 %v5836, %v5838
    %v5840 = vrot.slane %v5824, %v5839
    %v5842 = vunpack.c.l.s4 1966171168
    %v5843 = vunpack.c.0.s8 %v5842
    %v5844 = vlaneseq
    %v5845 = vshrl.u32 %v5844, 7
    %v5846 = vsub.s32 %v5843, %v5845
    %v5847 = vrot.slane %v5831, %v5846
    %v5849 = vunpack.c.l.s4 1966171168
    %v5850 = vunpack.c.0.s8 %v5849
    %v5851 = vlaneseq
    %v5852 = vshrl.u32 %v5851, 7
    %v5853 = vsub.s32 %v5850, %v5852
    %v5854 = vrot.slane %v5832, %v5853
    %v5856 = vunpack.c.l.s4 1966171168
    %v5857 = vunpack.c.0.s8 %v5856
    %v5858 = vlaneseq
    %v5859 = vshrl.u32 %v5858, 7
    %v5860 = vsub.s32 %v5857, %v5859
    %v5861 = vrot.slane %v5833, %v5860
    %v5862 = vcombine.high %v5840, %v5840
    %v5863 = vcombine.high %v5847, %v5847
    %v5864 = vcombine.high %v5854, %v5854
    %v5865 = vcombine.high %v5861, %v5861
    %v5867 = vunpack.c.l.s4 1966171168
    %v5868 = vunpack.c.0.s8 %v5867
    %v5869 = vlaneseq
    %v5870 = vshrl.u32 %v5869, 7
    %v5871 = vsub.s32 %v5868, %v5870
    %v5872 = vrot.slane %v5812, %v5871
    %v5873 = vcombine.high %v5872, %v5872
    %v5875 = vunpack.c.l.s4 1966171168
    %v5876 = vunpack.c.0.s8 %v5875
    %v5877 = vlaneseq
    %v5878 = vshrl.u32 %v5877, 7
    %v5879 = vsub.s32 %v5876, %v5878
    %v5880 = vrot.slane %v5872, %v5879
    %v5882 = vunpack.c.l.s4 1966171168
    %v5883 = vunpack.c.0.s8 %v5882
    %v5884 = vlaneseq
    %v5885 = vshrl.u32 %v5884, 7
    %v5886 = vsub.s32 %v5883, %v5885
    %v5887 = vrot.slane %v5873, %v5886
    %5888 = vrot.lane.b32.xlu0 %v5840, 120
    %v5889 = vpop.permute.xlu0 %5888
    %5890 = vrot.lane.b32.xlu0 %v5854, 120
    %v5891 = vpop.permute.xlu0 %5890
    %5892 = vrot.lane.b32.xlu0 %v5862, 120
    %v5893 = vpop.permute.xlu0 %5892
    %5894 = vrot.lane.b32.xlu0 %v5864, 120
    %v5895 = vpop.permute.xlu0 %5894
    %5896 = vrot.lane.b32.xlu0 %v5847, 120
    %v5897 = vpop.permute.xlu0 %5896
    %5898 = vrot.lane.b32.xlu0 %v5861, 120
    %v5899 = vpop.permute.xlu0 %5898
    %5900 = vrot.lane.b32.xlu0 %v5863, 120
    %v5901 = vpop.permute.xlu0 %5900
    %5902 = vrot.lane.b32.xlu0 %v5865, 120
    %v5903 = vpop.permute.xlu0 %5902
    %5904 = vrot.lane.b32.xlu0 %v5880, 120
    %v5905 = vpop.permute.xlu0 %5904
    %5906 = vrot.lane.b32.xlu0 %v5887, 120
    %v5907 = vpop.permute.xlu0 %5906
    %5908 = vrot.lane.b32.xlu0 %v5840, 112
    %v5909 = vpop.permute.xlu0 %5908
    %5910 = vrot.lane.b32.xlu0 %v5854, 112
    %v5911 = vpop.permute.xlu0 %5910
    %5912 = vrot.lane.b32.xlu0 %v5862, 112
    %v5913 = vpop.permute.xlu0 %5912
    %5914 = vrot.lane.b32.xlu0 %v5864, 112
    %v5915 = vpop.permute.xlu0 %5914
    %5916 = vrot.lane.b32.xlu0 %v5847, 112
    %v5917 = vpop.permute.xlu0 %5916
    %5918 = vrot.lane.b32.xlu0 %v5861, 112
    %v5919 = vpop.permute.xlu0 %5918
    %5920 = vrot.lane.b32.xlu0 %v5863, 112
    %v5921 = vpop.permute.xlu0 %5920
    %5922 = vrot.lane.b32.xlu0 %v5865, 112
    %v5923 = vpop.permute.xlu0 %5922
    %5924 = vrot.lane.b32.xlu0 %v5880, 112
    %v5925 = vpop.permute.xlu0 %5924
    %5926 = vrot.lane.b32.xlu0 %v5887, 112
    %v5927 = vpop.permute.xlu0 %5926
    %5928 = vrot.lane.b32.xlu0 %v5840, 104
    %v5929 = vpop.permute.xlu0 %5928
    %5930 = vrot.lane.b32.xlu0 %v5854, 104
    %v5931 = vpop.permute.xlu0 %5930
    %5932 = vrot.lane.b32.xlu0 %v5862, 104
    %v5933 = vpop.permute.xlu0 %5932
    %5934 = vrot.lane.b32.xlu0 %v5864, 104
    %v5935 = vpop.permute.xlu0 %5934
    %5936 = vrot.lane.b32.xlu0 %v5847, 104
    %v5937 = vpop.permute.xlu0 %5936
    %5938 = vrot.lane.b32.xlu0 %v5861, 104
    %v5939 = vpop.permute.xlu0 %5938
    %5940 = vrot.lane.b32.xlu0 %v5863, 104
    %v5941 = vpop.permute.xlu0 %5940
    %5942 = vrot.lane.b32.xlu0 %v5865, 104
    %v5943 = vpop.permute.xlu0 %5942
    %5944 = vrot.lane.b32.xlu0 %v5880, 104
    %v5945 = vpop.permute.xlu0 %5944
    %5946 = vrot.lane.b32.xlu0 %v5887, 104
    %v5947 = vpop.permute.xlu0 %5946
    %v5948 = vcombine.low %v5840, %v5854
    %v5949 = vcombine.low %v5862, %v5864
    %v5951 = vunpack.c.l.s4 1966171168
    %v5952 = vunpack.c.0.s8 %v5951
    %v5953 = vlaneseq
    %v5954 = vshrl.u32 %v5953, 7
    %v5955 = vsub.s32 %v5952, %v5954
    %v5956 = vrot.slane %v5948, %v5955
    %v5958 = vunpack.c.l.s4 1966171168
    %v5959 = vunpack.c.0.s8 %v5958
    %v5960 = vlaneseq
    %v5961 = vshrl.u32 %v5960, 7
    %v5962 = vsub.s32 %v5959, %v5961
    %v5963 = vrot.slane %v5949, %v5962
    %v5965 = vunpack.c.l.s4 1966171168
    %v5966 = vunpack.c.0.s8 %v5965
    %v5967 = vlaneseq
    %v5968 = vshrl.u32 %v5967, 7
    %v5969 = vsub.s32 %v5966, %v5968
    %v5970 = vrot.slane %v5847, %v5969
    %v5971 = vcombine.low %v5956, %v5963
    %v5973 = vunpack.c.l.s4 1966171168
    %v5974 = vunpack.c.0.s8 %v5973
    %v5975 = vlaneseq
    %v5976 = vshrl.u32 %v5975, 7
    %v5977 = vsub.s32 %v5974, %v5976
    %v5978 = vrot.slane %v5971, %v5977
    %v5980 = vunpack.c.l.s4 1966171168
    %v5981 = vunpack.c.0.s8 %v5980
    %v5982 = vlaneseq
    %v5983 = vshrl.u32 %v5982, 7
    %v5984 = vsub.s32 %v5981, %v5983
    %v5985 = vrot.slane %v5970, %v5984
    %v5986 = vcombine.low %v5978, %v5985
    %v5987 = vcombine.low %v5861, %v5863
    %v5988 = vcombine.low %v5865, %v5880
    %v5990 = vunpack.c.l.s4 1966171168
    %v5991 = vunpack.c.0.s8 %v5990
    %v5992 = vlaneseq
    %v5993 = vshrl.u32 %v5992, 7
    %v5994 = vsub.s32 %v5991, %v5993
    %v5995 = vrot.slane %v5987, %v5994
    %v5997 = vunpack.c.l.s4 1966171168
    %v5998 = vunpack.c.0.s8 %v5997
    %v5999 = vlaneseq
    %v6000 = vshrl.u32 %v5999, 7
    %v6001 = vsub.s32 %v5998, %v6000
    %v6002 = vrot.slane %v5988, %v6001
    %v6004 = vunpack.c.l.s4 1966171168
    %v6005 = vunpack.c.0.s8 %v6004
    %v6006 = vlaneseq
    %v6007 = vshrl.u32 %v6006, 7
    %v6008 = vsub.s32 %v6005, %v6007
    %v6009 = vrot.slane %v5887, %v6008
    %v6010 = vcombine.low %v5995, %v6002
    %v6012 = vunpack.c.l.s4 1966171168
    %v6013 = vunpack.c.0.s8 %v6012
    %v6014 = vlaneseq
    %v6015 = vshrl.u32 %v6014, 7
    %v6016 = vsub.s32 %v6013, %v6015
    %v6017 = vrot.slane %v6010, %v6016
    %v6019 = vunpack.c.l.s4 1966171168
    %v6020 = vunpack.c.0.s8 %v6019
    %v6021 = vlaneseq
    %v6022 = vshrl.u32 %v6021, 7
    %v6023 = vsub.s32 %v6020, %v6022
    %v6024 = vrot.slane %v6009, %v6023
    %v6025 = vcombine.low %v6017, %v6024
    %v6026 = vcombine.low %v5889, %v5891
    %v6027 = vcombine.low %v5893, %v5895
    %v6029 = vunpack.c.l.s4 1966171168
    %v6030 = vunpack.c.0.s8 %v6029
    %v6031 = vlaneseq
    %v6032 = vshrl.u32 %v6031, 7
    %v6033 = vsub.s32 %v6030, %v6032
    %v6034 = vrot.slane %v6026, %v6033
    %v6036 = vunpack.c.l.s4 1966171168
    %v6037 = vunpack.c.0.s8 %v6036
    %v6038 = vlaneseq
    %v6039 = vshrl.u32 %v6038, 7
    %v6040 = vsub.s32 %v6037, %v6039
    %v6041 = vrot.slane %v6027, %v6040
    %v6043 = vunpack.c.l.s4 1966171168
    %v6044 = vunpack.c.0.s8 %v6043
    %v6045 = vlaneseq
    %v6046 = vshrl.u32 %v6045, 7
    %v6047 = vsub.s32 %v6044, %v6046
    %v6048 = vrot.slane %v5897, %v6047
    %v6049 = vcombine.low %v6034, %v6041
    %v6051 = vunpack.c.l.s4 1966171168
    %v6052 = vunpack.c.0.s8 %v6051
    %v6053 = vlaneseq
    %v6054 = vshrl.u32 %v6053, 7
    %v6055 = vsub.s32 %v6052, %v6054
    %v6056 = vrot.slane %v6049, %v6055
    %v6058 = vunpack.c.l.s4 1966171168
    %v6059 = vunpack.c.0.s8 %v6058
    %v6060 = vlaneseq
    %v6061 = vshrl.u32 %v6060, 7
    %v6062 = vsub.s32 %v6059, %v6061
    %v6063 = vrot.slane %v6048, %v6062
    %v6064 = vcombine.low %v6056, %v6063
    %v6065 = vcombine.low %v5899, %v5901
    %v6066 = vcombine.low %v5903, %v5905
    %v6068 = vunpack.c.l.s4 1966171168
    %v6069 = vunpack.c.0.s8 %v6068
    %v6070 = vlaneseq
    %v6071 = vshrl.u32 %v6070, 7
    %v6072 = vsub.s32 %v6069, %v6071
    %v6073 = vrot.slane %v6065, %v6072
    %v6075 = vunpack.c.l.s4 1966171168
    %v6076 = vunpack.c.0.s8 %v6075
    %v6077 = vlaneseq
    %v6078 = vshrl.u32 %v6077, 7
    %v6079 = vsub.s32 %v6076, %v6078
    %v6080 = vrot.slane %v6066, %v6079
    %v6082 = vunpack.c.l.s4 1966171168
    %v6083 = vunpack.c.0.s8 %v6082
    %v6084 = vlaneseq
    %v6085 = vshrl.u32 %v6084, 7
    %v6086 = vsub.s32 %v6083, %v6085
    %v6087 = vrot.slane %v5907, %v6086
    %v6088 = vcombine.low %v6073, %v6080
    %v6090 = vunpack.c.l.s4 1966171168
    %v6091 = vunpack.c.0.s8 %v6090
    %v6092 = vlaneseq
    %v6093 = vshrl.u32 %v6092, 7
    %v6094 = vsub.s32 %v6091, %v6093
    %v6095 = vrot.slane %v6088, %v6094
    %v6097 = vunpack.c.l.s4 1966171168
    %v6098 = vunpack.c.0.s8 %v6097
    %v6099 = vlaneseq
    %v6100 = vshrl.u32 %v6099, 7
    %v6101 = vsub.s32 %v6098, %v6100
    %v6102 = vrot.slane %v6087, %v6101
    %v6103 = vcombine.low %v6095, %v6102
    %v6104 = vcombine.low %v5909, %v5911
    %v6105 = vcombine.low %v5913, %v5915
    %v6107 = vunpack.c.l.s4 1966171168
    %v6108 = vunpack.c.0.s8 %v6107
    %v6109 = vlaneseq
    %v6110 = vshrl.u32 %v6109, 7
    %v6111 = vsub.s32 %v6108, %v6110
    %v6112 = vrot.slane %v6104, %v6111
    %v6114 = vunpack.c.l.s4 1966171168
    %v6115 = vunpack.c.0.s8 %v6114
    %v6116 = vlaneseq
    %v6117 = vshrl.u32 %v6116, 7
    %v6118 = vsub.s32 %v6115, %v6117
    %v6119 = vrot.slane %v6105, %v6118
    %v6121 = vunpack.c.l.s4 1966171168
    %v6122 = vunpack.c.0.s8 %v6121
    %v6123 = vlaneseq
    %v6124 = vshrl.u32 %v6123, 7
    %v6125 = vsub.s32 %v6122, %v6124
    %v6126 = vrot.slane %v5917, %v6125
    %v6127 = vcombine.low %v6112, %v6119
    %v6129 = vunpack.c.l.s4 1966171168
    %v6130 = vunpack.c.0.s8 %v6129
    %v6131 = vlaneseq
    %v6132 = vshrl.u32 %v6131, 7
    %v6133 = vsub.s32 %v6130, %v6132
    %v6134 = vrot.slane %v6127, %v6133
    %v6136 = vunpack.c.l.s4 1966171168
    %v6137 = vunpack.c.0.s8 %v6136
    %v6138 = vlaneseq
    %v6139 = vshrl.u32 %v6138, 7
    %v6140 = vsub.s32 %v6137, %v6139
    %v6141 = vrot.slane %v6126, %v6140
    %v6142 = vcombine.low %v6134, %v6141
    %v6143 = vcombine.low %v5919, %v5921
    %v6144 = vcombine.low %v5923, %v5925
    %v6146 = vunpack.c.l.s4 1966171168
    %v6147 = vunpack.c.0.s8 %v6146
    %v6148 = vlaneseq
    %v6149 = vshrl.u32 %v6148, 7
    %v6150 = vsub.s32 %v6147, %v6149
    %v6151 = vrot.slane %v6143, %v6150
    %v6153 = vunpack.c.l.s4 1966171168
    %v6154 = vunpack.c.0.s8 %v6153
    %v6155 = vlaneseq
    %v6156 = vshrl.u32 %v6155, 7
    %v6157 = vsub.s32 %v6154, %v6156
    %v6158 = vrot.slane %v6144, %v6157
    %v6160 = vunpack.c.l.s4 1966171168
    %v6161 = vunpack.c.0.s8 %v6160
    %v6162 = vlaneseq
    %v6163 = vshrl.u32 %v6162, 7
    %v6164 = vsub.s32 %v6161, %v6163
    %v6165 = vrot.slane %v5927, %v6164
    %v6166 = vcombine.low %v6151, %v6158
    %v6168 = vunpack.c.l.s4 1966171168
    %v6169 = vunpack.c.0.s8 %v6168
    %v6170 = vlaneseq
    %v6171 = vshrl.u32 %v6170, 7
    %v6172 = vsub.s32 %v6169, %v6171
    %v6173 = vrot.slane %v6166, %v6172
    %v6175 = vunpack.c.l.s4 1966171168
    %v6176 = vunpack.c.0.s8 %v6175
    %v6177 = vlaneseq
    %v6178 = vshrl.u32 %v6177, 7
    %v6179 = vsub.s32 %v6176, %v6178
    %v6180 = vrot.slane %v6165, %v6179
    %v6181 = vcombine.low %v6173, %v6180
    %v6182 = vcombine.low %v5929, %v5931
    %v6183 = vcombine.low %v5933, %v5935
    %v6185 = vunpack.c.l.s4 1966171168
    %v6186 = vunpack.c.0.s8 %v6185
    %v6187 = vlaneseq
    %v6188 = vshrl.u32 %v6187, 7
    %v6189 = vsub.s32 %v6186, %v6188
    %v6190 = vrot.slane %v6182, %v6189
    %v6192 = vunpack.c.l.s4 1966171168
    %v6193 = vunpack.c.0.s8 %v6192
    %v6194 = vlaneseq
    %v6195 = vshrl.u32 %v6194, 7
    %v6196 = vsub.s32 %v6193, %v6195
    %v6197 = vrot.slane %v6183, %v6196
    %v6199 = vunpack.c.l.s4 1966171168
    %v6200 = vunpack.c.0.s8 %v6199
    %v6201 = vlaneseq
    %v6202 = vshrl.u32 %v6201, 7
    %v6203 = vsub.s32 %v6200, %v6202
    %v6204 = vrot.slane %v5937, %v6203
    %v6205 = vcombine.low %v6190, %v6197
    %v6207 = vunpack.c.l.s4 1966171168
    %v6208 = vunpack.c.0.s8 %v6207
    %v6209 = vlaneseq
    %v6210 = vshrl.u32 %v6209, 7
    %v6211 = vsub.s32 %v6208, %v6210
    %v6212 = vrot.slane %v6205, %v6211
    %v6214 = vunpack.c.l.s4 1966171168
    %v6215 = vunpack.c.0.s8 %v6214
    %v6216 = vlaneseq
    %v6217 = vshrl.u32 %v6216, 7
    %v6218 = vsub.s32 %v6215, %v6217
    %v6219 = vrot.slane %v6204, %v6218
    %v6220 = vcombine.low %v6212, %v6219
    %v6221 = vcombine.low %v5939, %v5941
    %v6222 = vcombine.low %v5943, %v5945
    %v6224 = vunpack.c.l.s4 1966171168
    %v6225 = vunpack.c.0.s8 %v6224
    %v6226 = vlaneseq
    %v6227 = vshrl.u32 %v6226, 7
    %v6228 = vsub.s32 %v6225, %v6227
    %v6229 = vrot.slane %v6221, %v6228
    %v6231 = vunpack.c.l.s4 1966171168
    %v6232 = vunpack.c.0.s8 %v6231
    %v6233 = vlaneseq
    %v6234 = vshrl.u32 %v6233, 7
    %v6235 = vsub.s32 %v6232, %v6234
    %v6236 = vrot.slane %v6222, %v6235
    %v6238 = vunpack.c.l.s4 1966171168
    %v6239 = vunpack.c.0.s8 %v6238
    %v6240 = vlaneseq
    %v6241 = vshrl.u32 %v6240, 7
    %v6242 = vsub.s32 %v6239, %v6241
    %v6243 = vrot.slane %v5947, %v6242
    %v6244 = vcombine.low %v6229, %v6236
    %v6246 = vunpack.c.l.s4 1966171168
    %v6247 = vunpack.c.0.s8 %v6246
    %v6248 = vlaneseq
    %v6249 = vshrl.u32 %v6248, 7
    %v6250 = vsub.s32 %v6247, %v6249
    %v6251 = vrot.slane %v6244, %v6250
    %v6253 = vunpack.c.l.s4 1966171168
    %v6254 = vunpack.c.0.s8 %v6253
    %v6255 = vlaneseq
    %v6256 = vshrl.u32 %v6255, 7
    %v6257 = vsub.s32 %v6254, %v6256
    %v6258 = vrot.slane %v6243, %v6257
    %v6259 = vcombine.low %v6251, %v6258
    %v6268 = vpack.c.bf16 %v5986, %v5986
    %v6269 = vpack.c.bf16 %v6025, %v6025
    %v6270 = vpack.c.bf16 %v6064, %v6064
    %v6271 = vpack.c.bf16 %v6103, %v6103
    %v6272 = vpack.c.bf16 %v6142, %v6142
    %v6273 = vpack.c.bf16 %v6181, %v6181
    %v6274 = vpack.c.bf16 %v6220, %v6220
    %v6275 = vpack.c.bf16 %v6259, %v6259
    %6277 = vrot.lane.b32.xlu0 %v6268, 96
    %v6278 = vpop.permute.xlu0 %6277
    %v6280 = vsel %vm2260, %v6268, 0
    %v6283 = vsel %vm2260, %v6278, 0
    %6285 = vmatprep.subr.bf16.mxu0 0
    %6286 = vmatpush1.bf16.xpose.msra.mxu0 0
    %6287 = vmatprep.subr.bf16.mxu0 0
    %6288 = vmatpush1.bf16.xpose.msra.mxu0 0
    %6289 = vmatprep.subr.bf16.mxu0 0
    %6290 = vmatpush1.bf16.xpose.msra.mxu0 0
    %6291 = vmatprep.subr.bf16.mxu0 0
    %6292 = vmatpush1.bf16.xpose.msra.mxu0 0
    %6293 = vmatprep.subr.bf16.mxu0 0
    %6294 = vmatpush1.bf16.xpose.msra.mxu0 0
    %6295 = vmatprep.subr.bf16.mxu0 0
    %6296 = vmatpush1.bf16.xpose.msra.mxu0 0
    %6297 = vmatprep.subr.bf16.mxu0 0
    %6298 = vmatpush1.bf16.xpose.msra.mxu0 0
    %6299 = vmatprep.subr.bf16.mxu0 0
    %6300 = vmatpush1.bf16.xpose.msra.mxu0 %v6283
    %6301 = vmatprep.subr.bf16.mxu0 0
    %6302 = vmatpush2.bf16.xpose.msra.mxu0 0
    %6303 = vmatprep.subr.bf16.mxu0 0
    %6304 = vmatpush2.bf16.xpose.msra.mxu0 0
    %6305 = vmatprep.subr.bf16.mxu0 0
    %6306 = vmatpush2.bf16.xpose.msra.mxu0 0
    %6307 = vmatprep.subr.bf16.mxu0 0
    %6308 = vmatpush2.bf16.xpose.msra.mxu0 0
    %6309 = vmatprep.subr.bf16.mxu0 0
    %6310 = vmatpush2.bf16.xpose.msra.mxu0 0
    %6311 = vmatprep.subr.bf16.mxu0 0
    %6312 = vmatpush2.bf16.xpose.msra.mxu0 0
    %6313 = vmatprep.subr.bf16.mxu0 0
    %6314 = vmatpush2.bf16.xpose.msra.mxu0 0
    %6315 = vmatprep.subr.bf16.mxu0 0
    %6316 = vmatpush2.bf16.xpose.msra.mxu0 0
    %6317 = vmatprep.mubr.bf16.mxu0 0
    %6318 = vmatmul.mubr.bf16.gmra.mxu0 %v6280
    %v6319 = vpop.f32.mrf.mxu0
    %v6320 = vadd.f32 0.0, %v6319
    %v6321 = vpop.f32.mrf.mxu0
    %v6322 = vpop.f32.mrf.mxu0
    %v6323 = vpop.f32.mrf.mxu0
    %6324 = vdwg.mxu0
    %6326 = vrot.lane.b32.xlu0 %v6269, 96
    %v6327 = vpop.permute.xlu0 %6326
    %v6329 = vsel %vm2260, %v6269, 0
    %v6332 = vsel %vm2260, %v6327, 0
    %6334 = vmatprep.subr.bf16.mxu0 0
    %6335 = vmatpush1.bf16.xpose.msra.mxu0 0
    %6336 = vmatprep.subr.bf16.mxu0 0
    %6337 = vmatpush1.bf16.xpose.msra.mxu0 0
    %6338 = vmatprep.subr.bf16.mxu0 0
    %6339 = vmatpush1.bf16.xpose.msra.mxu0 0
    %6340 = vmatprep.subr.bf16.mxu0 0
    %6341 = vmatpush1.bf16.xpose.msra.mxu0 0
    %6342 = vmatprep.subr.bf16.mxu0 0
    %6343 = vmatpush1.bf16.xpose.msra.mxu0 0
    %6344 = vmatprep.subr.bf16.mxu0 0
    %6345 = vmatpush1.bf16.xpose.msra.mxu0 0
    %6346 = vmatprep.subr.bf16.mxu0 0
    %6347 = vmatpush1.bf16.xpose.msra.mxu0 0
    %6348 = vmatprep.subr.bf16.mxu0 0
    %6349 = vmatpush1.bf16.xpose.msra.mxu0 %v6332
    %6350 = vmatprep.subr.bf16.mxu0 0
    %6351 = vmatpush2.bf16.xpose.msra.mxu0 0
    %6352 = vmatprep.subr.bf16.mxu0 0
    %6353 = vmatpush2.bf16.xpose.msra.mxu0 0
    %6354 = vmatprep.subr.bf16.mxu0 0
    %6355 = vmatpush2.bf16.xpose.msra.mxu0 0
    %6356 = vmatprep.subr.bf16.mxu0 0
    %6357 = vmatpush2.bf16.xpose.msra.mxu0 0
    %6358 = vmatprep.subr.bf16.mxu0 0
    %6359 = vmatpush2.bf16.xpose.msra.mxu0 0
    %6360 = vmatprep.subr.bf16.mxu0 0
    %6361 = vmatpush2.bf16.xpose.msra.mxu0 0
    %6362 = vmatprep.subr.bf16.mxu0 0
    %6363 = vmatpush2.bf16.xpose.msra.mxu0 0
    %6364 = vmatprep.subr.bf16.mxu0 0
    %6365 = vmatpush2.bf16.xpose.msra.mxu0 0
    %6366 = vmatprep.mubr.bf16.mxu0 0
    %6367 = vmatmul.mubr.bf16.gmra.mxu0 %v6329
    %v6368 = vpop.f32.mrf.mxu0
    %v6369 = vadd.f32 0.0, %v6368
    %v6370 = vpop.f32.mrf.mxu0
    %v6371 = vpop.f32.mrf.mxu0
    %v6372 = vpop.f32.mrf.mxu0
    %6373 = vdwg.mxu0
    %6375 = vrot.lane.b32.xlu0 %v6270, 96
    %v6376 = vpop.permute.xlu0 %6375
    %v6378 = vsel %vm2260, %v6270, 0
    %v6381 = vsel %vm2260, %v6376, 0
    %6383 = vmatprep.subr.bf16.mxu0 0
    %6384 = vmatpush1.bf16.xpose.msra.mxu0 0
    %6385 = vmatprep.subr.bf16.mxu0 0
    %6386 = vmatpush1.bf16.xpose.msra.mxu0 0
    %6387 = vmatprep.subr.bf16.mxu0 0
    %6388 = vmatpush1.bf16.xpose.msra.mxu0 0
    %6389 = vmatprep.subr.bf16.mxu0 0
    %6390 = vmatpush1.bf16.xpose.msra.mxu0 0
    %6391 = vmatprep.subr.bf16.mxu0 0
    %6392 = vmatpush1.bf16.xpose.msra.mxu0 0
    %6393 = vmatprep.subr.bf16.mxu0 0
    %6394 = vmatpush1.bf16.xpose.msra.mxu0 0
    %6395 = vmatprep.subr.bf16.mxu0 0
    %6396 = vmatpush1.bf16.xpose.msra.mxu0 0
    %6397 = vmatprep.subr.bf16.mxu0 0
    %6398 = vmatpush1.bf16.xpose.msra.mxu0 %v6381
    %6399 = vmatprep.subr.bf16.mxu0 0
    %6400 = vmatpush2.bf16.xpose.msra.mxu0 0
    %6401 = vmatprep.subr.bf16.mxu0 0
    %6402 = vmatpush2.bf16.xpose.msra.mxu0 0
    %6403 = vmatprep.subr.bf16.mxu0 0
    %6404 = vmatpush2.bf16.xpose.msra.mxu0 0
    %6405 = vmatprep.subr.bf16.mxu0 0
    %6406 = vmatpush2.bf16.xpose.msra.mxu0 0
    %6407 = vmatprep.subr.bf16.mxu0 0
    %6408 = vmatpush2.bf16.xpose.msra.mxu0 0
    %6409 = vmatprep.subr.bf16.mxu0 0
    %6410 = vmatpush2.bf16.xpose.msra.mxu0 0
    %6411 = vmatprep.subr.bf16.mxu0 0
    %6412 = vmatpush2.bf16.xpose.msra.mxu0 0
    %6413 = vmatprep.subr.bf16.mxu0 0
    %6414 = vmatpush2.bf16.xpose.msra.mxu0 0
    %6415 = vmatprep.mubr.bf16.mxu0 0
    %6416 = vmatmul.mubr.bf16.gmra.mxu0 %v6378
    %v6417 = vpop.f32.mrf.mxu0
    %v6418 = vadd.f32 0.0, %v6417
    %v6419 = vpop.f32.mrf.mxu0
    %v6420 = vpop.f32.mrf.mxu0
    %v6421 = vpop.f32.mrf.mxu0
    %6422 = vdwg.mxu0
    %6424 = vrot.lane.b32.xlu0 %v6271, 96
    %v6425 = vpop.permute.xlu0 %6424
    %v6427 = vsel %vm2260, %v6271, 0
    %v6430 = vsel %vm2260, %v6425, 0
    %6432 = vmatprep.subr.bf16.mxu0 0
    %6433 = vmatpush1.bf16.xpose.msra.mxu0 0
    %6434 = vmatprep.subr.bf16.mxu0 0
    %6435 = vmatpush1.bf16.xpose.msra.mxu0 0
    %6436 = vmatprep.subr.bf16.mxu0 0
    %6437 = vmatpush1.bf16.xpose.msra.mxu0 0
    %6438 = vmatprep.subr.bf16.mxu0 0
    %6439 = vmatpush1.bf16.xpose.msra.mxu0 0
    %6440 = vmatprep.subr.bf16.mxu0 0
    %6441 = vmatpush1.bf16.xpose.msra.mxu0 0
    %6442 = vmatprep.subr.bf16.mxu0 0
    %6443 = vmatpush1.bf16.xpose.msra.mxu0 0
    %6444 = vmatprep.subr.bf16.mxu0 0
    %6445 = vmatpush1.bf16.xpose.msra.mxu0 0
    %6446 = vmatprep.subr.bf16.mxu0 0
    %6447 = vmatpush1.bf16.xpose.msra.mxu0 %v6430
    %6448 = vmatprep.subr.bf16.mxu0 0
    %6449 = vmatpush2.bf16.xpose.msra.mxu0 0
    %6450 = vmatprep.subr.bf16.mxu0 0
    %6451 = vmatpush2.bf16.xpose.msra.mxu0 0
    %6452 = vmatprep.subr.bf16.mxu0 0
    %6453 = vmatpush2.bf16.xpose.msra.mxu0 0
    %6454 = vmatprep.subr.bf16.mxu0 0
    %6455 = vmatpush2.bf16.xpose.msra.mxu0 0
    %6456 = vmatprep.subr.bf16.mxu0 0
    %6457 = vmatpush2.bf16.xpose.msra.mxu0 0
    %6458 = vmatprep.subr.bf16.mxu0 0
    %6459 = vmatpush2.bf16.xpose.msra.mxu0 0
    %6460 = vmatprep.subr.bf16.mxu0 0
    %6461 = vmatpush2.bf16.xpose.msra.mxu0 0
    %6462 = vmatprep.subr.bf16.mxu0 0
    %6463 = vmatpush2.bf16.xpose.msra.mxu0 0
    %6464 = vmatprep.mubr.bf16.mxu0 0
    %6465 = vmatmul.mubr.bf16.gmra.mxu0 %v6427
    %v6466 = vpop.f32.mrf.mxu0
    %v6467 = vadd.f32 0.0, %v6466
    %v6468 = vpop.f32.mrf.mxu0
    %v6469 = vpop.f32.mrf.mxu0
    %v6470 = vpop.f32.mrf.mxu0
    %6471 = vdwg.mxu0
    %6473 = vrot.lane.b32.xlu0 %v6272, 96
    %v6474 = vpop.permute.xlu0 %6473
    %v6476 = vsel %vm2260, %v6272, 0
    %v6479 = vsel %vm2260, %v6474, 0
    %6481 = vmatprep.subr.bf16.mxu0 0
    %6482 = vmatpush1.bf16.xpose.msra.mxu0 0
    %6483 = vmatprep.subr.bf16.mxu0 0
    %6484 = vmatpush1.bf16.xpose.msra.mxu0 0
    %6485 = vmatprep.subr.bf16.mxu0 0
    %6486 = vmatpush1.bf16.xpose.msra.mxu0 0
    %6487 = vmatprep.subr.bf16.mxu0 0
    %6488 = vmatpush1.bf16.xpose.msra.mxu0 0
    %6489 = vmatprep.subr.bf16.mxu0 0
    %6490 = vmatpush1.bf16.xpose.msra.mxu0 0
    %6491 = vmatprep.subr.bf16.mxu0 0
    %6492 = vmatpush1.bf16.xpose.msra.mxu0 0
    %6493 = vmatprep.subr.bf16.mxu0 0
    %6494 = vmatpush1.bf16.xpose.msra.mxu0 0
    %6495 = vmatprep.subr.bf16.mxu0 0
    %6496 = vmatpush1.bf16.xpose.msra.mxu0 %v6479
    %6497 = vmatprep.subr.bf16.mxu0 0
    %6498 = vmatpush2.bf16.xpose.msra.mxu0 0
    %6499 = vmatprep.subr.bf16.mxu0 0
    %6500 = vmatpush2.bf16.xpose.msra.mxu0 0
    %6501 = vmatprep.subr.bf16.mxu0 0
    %6502 = vmatpush2.bf16.xpose.msra.mxu0 0
    %6503 = vmatprep.subr.bf16.mxu0 0
    %6504 = vmatpush2.bf16.xpose.msra.mxu0 0
    %6505 = vmatprep.subr.bf16.mxu0 0
    %6506 = vmatpush2.bf16.xpose.msra.mxu0 0
    %6507 = vmatprep.subr.bf16.mxu0 0
    %6508 = vmatpush2.bf16.xpose.msra.mxu0 0
    %6509 = vmatprep.subr.bf16.mxu0 0
    %6510 = vmatpush2.bf16.xpose.msra.mxu0 0
    %6511 = vmatprep.subr.bf16.mxu0 0
    %6512 = vmatpush2.bf16.xpose.msra.mxu0 0
    %6513 = vmatprep.mubr.bf16.mxu0 0
    %6514 = vmatmul.mubr.bf16.gmra.mxu0 %v6476
    %v6515 = vpop.f32.mrf.mxu0
    %v6516 = vadd.f32 0.0, %v6515
    %v6517 = vpop.f32.mrf.mxu0
    %v6518 = vpop.f32.mrf.mxu0
    %v6519 = vpop.f32.mrf.mxu0
    %6520 = vdwg.mxu0
    %6522 = vrot.lane.b32.xlu0 %v6273, 96
    %v6523 = vpop.permute.xlu0 %6522
    %v6525 = vsel %vm2260, %v6273, 0
    %v6528 = vsel %vm2260, %v6523, 0
    %6530 = vmatprep.subr.bf16.mxu0 0
    %6531 = vmatpush1.bf16.xpose.msra.mxu0 0
    %6532 = vmatprep.subr.bf16.mxu0 0
    %6533 = vmatpush1.bf16.xpose.msra.mxu0 0
    %6534 = vmatprep.subr.bf16.mxu0 0
    %6535 = vmatpush1.bf16.xpose.msra.mxu0 0
    %6536 = vmatprep.subr.bf16.mxu0 0
    %6537 = vmatpush1.bf16.xpose.msra.mxu0 0
    %6538 = vmatprep.subr.bf16.mxu0 0
    %6539 = vmatpush1.bf16.xpose.msra.mxu0 0
    %6540 = vmatprep.subr.bf16.mxu0 0
    %6541 = vmatpush1.bf16.xpose.msra.mxu0 0
    %6542 = vmatprep.subr.bf16.mxu0 0
    %6543 = vmatpush1.bf16.xpose.msra.mxu0 0
    %6544 = vmatprep.subr.bf16.mxu0 0
    %6545 = vmatpush1.bf16.xpose.msra.mxu0 %v6528
    %6546 = vmatprep.subr.bf16.mxu0 0
    %6547 = vmatpush2.bf16.xpose.msra.mxu0 0
    %6548 = vmatprep.subr.bf16.mxu0 0
    %6549 = vmatpush2.bf16.xpose.msra.mxu0 0
    %6550 = vmatprep.subr.bf16.mxu0 0
    %6551 = vmatpush2.bf16.xpose.msra.mxu0 0
    %6552 = vmatprep.subr.bf16.mxu0 0
    %6553 = vmatpush2.bf16.xpose.msra.mxu0 0
    %6554 = vmatprep.subr.bf16.mxu0 0
    %6555 = vmatpush2.bf16.xpose.msra.mxu0 0
    %6556 = vmatprep.subr.bf16.mxu0 0
    %6557 = vmatpush2.bf16.xpose.msra.mxu0 0
    %6558 = vmatprep.subr.bf16.mxu0 0
    %6559 = vmatpush2.bf16.xpose.msra.mxu0 0
    %6560 = vmatprep.subr.bf16.mxu0 0
    %6561 = vmatpush2.bf16.xpose.msra.mxu0 0
    %6562 = vmatprep.mubr.bf16.mxu0 0
    %6563 = vmatmul.mubr.bf16.gmra.mxu0 %v6525
    %v6564 = vpop.f32.mrf.mxu0
    %v6565 = vadd.f32 0.0, %v6564
    %v6566 = vpop.f32.mrf.mxu0
    %v6567 = vpop.f32.mrf.mxu0
    %v6568 = vpop.f32.mrf.mxu0
    %6569 = vdwg.mxu0
    %6571 = vrot.lane.b32.xlu0 %v6274, 96
    %v6572 = vpop.permute.xlu0 %6571
    %v6574 = vsel %vm2260, %v6274, 0
    %v6577 = vsel %vm2260, %v6572, 0
    %6579 = vmatprep.subr.bf16.mxu0 0
    %6580 = vmatpush1.bf16.xpose.msra.mxu0 0
    %6581 = vmatprep.subr.bf16.mxu0 0
    %6582 = vmatpush1.bf16.xpose.msra.mxu0 0
    %6583 = vmatprep.subr.bf16.mxu0 0
    %6584 = vmatpush1.bf16.xpose.msra.mxu0 0
    %6585 = vmatprep.subr.bf16.mxu0 0
    %6586 = vmatpush1.bf16.xpose.msra.mxu0 0
    %6587 = vmatprep.subr.bf16.mxu0 0
    %6588 = vmatpush1.bf16.xpose.msra.mxu0 0
    %6589 = vmatprep.subr.bf16.mxu0 0
    %6590 = vmatpush1.bf16.xpose.msra.mxu0 0
    %6591 = vmatprep.subr.bf16.mxu0 0
    %6592 = vmatpush1.bf16.xpose.msra.mxu0 0
    %6593 = vmatprep.subr.bf16.mxu0 0
    %6594 = vmatpush1.bf16.xpose.msra.mxu0 %v6577
    %6595 = vmatprep.subr.bf16.mxu0 0
    %6596 = vmatpush2.bf16.xpose.msra.mxu0 0
    %6597 = vmatprep.subr.bf16.mxu0 0
    %6598 = vmatpush2.bf16.xpose.msra.mxu0 0
    %6599 = vmatprep.subr.bf16.mxu0 0
    %6600 = vmatpush2.bf16.xpose.msra.mxu0 0
    %6601 = vmatprep.subr.bf16.mxu0 0
    %6602 = vmatpush2.bf16.xpose.msra.mxu0 0
    %6603 = vmatprep.subr.bf16.mxu0 0
    %6604 = vmatpush2.bf16.xpose.msra.mxu0 0
    %6605 = vmatprep.subr.bf16.mxu0 0
    %6606 = vmatpush2.bf16.xpose.msra.mxu0 0
    %6607 = vmatprep.subr.bf16.mxu0 0
    %6608 = vmatpush2.bf16.xpose.msra.mxu0 0
    %6609 = vmatprep.subr.bf16.mxu0 0
    %6610 = vmatpush2.bf16.xpose.msra.mxu0 0
    %6611 = vmatprep.mubr.bf16.mxu0 0
    %6612 = vmatmul.mubr.bf16.gmra.mxu0 %v6574
    %v6613 = vpop.f32.mrf.mxu0
    %v6614 = vadd.f32 0.0, %v6613
    %v6615 = vpop.f32.mrf.mxu0
    %v6616 = vpop.f32.mrf.mxu0
    %v6617 = vpop.f32.mrf.mxu0
    %6618 = vdwg.mxu0
    %6620 = vrot.lane.b32.xlu0 %v6275, 96
    %v6621 = vpop.permute.xlu0 %6620
    %v6623 = vsel %vm2260, %v6275, 0
    %v6626 = vsel %vm2260, %v6621, 0
    %6628 = vmatprep.subr.bf16.mxu0 0
    %6629 = vmatpush1.bf16.xpose.msra.mxu0 0
    %6630 = vmatprep.subr.bf16.mxu0 0
    %6631 = vmatpush1.bf16.xpose.msra.mxu0 0
    %6632 = vmatprep.subr.bf16.mxu0 0
    %6633 = vmatpush1.bf16.xpose.msra.mxu0 0
    %6634 = vmatprep.subr.bf16.mxu0 0
    %6635 = vmatpush1.bf16.xpose.msra.mxu0 0
    %6636 = vmatprep.subr.bf16.mxu0 0
    %6637 = vmatpush1.bf16.xpose.msra.mxu0 0
    %6638 = vmatprep.subr.bf16.mxu0 0
    %6639 = vmatpush1.bf16.xpose.msra.mxu0 0
    %6640 = vmatprep.subr.bf16.mxu0 0
    %6641 = vmatpush1.bf16.xpose.msra.mxu0 0
    %6642 = vmatprep.subr.bf16.mxu0 0
    %6643 = vmatpush1.bf16.xpose.msra.mxu0 %v6626
    %6644 = vmatprep.subr.bf16.mxu0 0
    %6645 = vmatpush2.bf16.xpose.msra.mxu0 0
    %6646 = vmatprep.subr.bf16.mxu0 0
    %6647 = vmatpush2.bf16.xpose.msra.mxu0 0
    %6648 = vmatprep.subr.bf16.mxu0 0
    %6649 = vmatpush2.bf16.xpose.msra.mxu0 0
    %6650 = vmatprep.subr.bf16.mxu0 0
    %6651 = vmatpush2.bf16.xpose.msra.mxu0 0
    %6652 = vmatprep.subr.bf16.mxu0 0
    %6653 = vmatpush2.bf16.xpose.msra.mxu0 0
    %6654 = vmatprep.subr.bf16.mxu0 0
    %6655 = vmatpush2.bf16.xpose.msra.mxu0 0
    %6656 = vmatprep.subr.bf16.mxu0 0
    %6657 = vmatpush2.bf16.xpose.msra.mxu0 0
    %6658 = vmatprep.subr.bf16.mxu0 0
    %6659 = vmatpush2.bf16.xpose.msra.mxu0 0
    %6660 = vmatprep.mubr.bf16.mxu0 0
    %6661 = vmatmul.mubr.bf16.gmra.mxu0 %v6623
    %v6662 = vpop.f32.mrf.mxu0
    %v6663 = vadd.f32 0.0, %v6662
    %v6664 = vpop.f32.mrf.mxu0
    %v6665 = vpop.f32.mrf.mxu0
    %v6666 = vpop.f32.mrf.mxu0
    %6667 = vdwg.mxu0
    %v6668 = vsel %vm2650, %v6320, -inf
    %6669 = vmax.xlane.f32.xlu0 %v6668
    %v6670 = vpop.xlane.xlu0 %6669
    %v6671 = vsel %vm2650, %v6369, -inf
    %6672 = vmax.xlane.f32.xlu0 %v6671
    %v6673 = vpop.xlane.xlu0 %6672
    %v6674 = vsel %vm2650, %v6418, -inf
    %6675 = vmax.xlane.f32.xlu0 %v6674
    %v6676 = vpop.xlane.xlu0 %6675
    %v6677 = vsel %vm2650, %v6467, -inf
    %6678 = vmax.xlane.f32.xlu0 %v6677
    %v6679 = vpop.xlane.xlu0 %6678
    %v6680 = vsel %vm2650, %v6516, -inf
    %6681 = vmax.xlane.f32.xlu0 %v6680
    %v6682 = vpop.xlane.xlu0 %6681
    %v6683 = vsel %vm2650, %v6565, -inf
    %6684 = vmax.xlane.f32.xlu0 %v6683
    %v6685 = vpop.xlane.xlu0 %6684
    %v6686 = vsel %vm2650, %v6614, -inf
    %6687 = vmax.xlane.f32.xlu0 %v6686
    %v6688 = vpop.xlane.xlu0 %6687
    %v6689 = vsel %vm2650, %v6663, -inf
    %6690 = vmax.xlane.f32.xlu0 %v6689
    %v6691 = vpop.xlane.xlu0 %6690
    %v6692 = vsub.f32 %v6320, %v6670
    %v6693 = vsub.f32 %v6369, %v6673
    %v6694 = vsub.f32 %v6418, %v6676
    %v6695 = vsub.f32 %v6467, %v6679
    %v6696 = vsub.f32 %v6516, %v6682
    %v6697 = vsub.f32 %v6565, %v6685
    %v6698 = vsub.f32 %v6614, %v6688
    %v6699 = vsub.f32 %v6663, %v6691
    %v6700 = vmul.f32 %v6692, 1.442695
    %v6701 = vpow.pop %v6700
    %v6702 = vmul.f32 %v6693, 1.442695
    %v6703 = vpow.pop %v6702
    %v6704 = vmul.f32 %v6694, 1.442695
    %v6705 = vpow.pop %v6704
    %v6706 = vmul.f32 %v6695, 1.442695
    %v6707 = vpow.pop %v6706
    %v6708 = vmul.f32 %v6696, 1.442695
    %v6709 = vpow.pop %v6708
    %v6710 = vmul.f32 %v6697, 1.442695
    %v6711 = vpow.pop %v6710
    %v6712 = vmul.f32 %v6698, 1.442695
    %v6713 = vpow.pop %v6712
    %v6714 = vmul.f32 %v6699, 1.442695
    %v6715 = vpow.pop %v6714
    %v6716 = vsel %vm2650, %v6701, 0.0
    %6717 = vadd.xlane.f32.xlu0 %v6716
    %v6718 = vpop.xlane.xlu0 %6717
    %v6719 = vsel %vm2650, %v6703, 0.0
    %6720 = vadd.xlane.f32.xlu0 %v6719
    %v6721 = vpop.xlane.xlu0 %6720
    %v6722 = vsel %vm2650, %v6705, 0.0
    %6723 = vadd.xlane.f32.xlu0 %v6722
    %v6724 = vpop.xlane.xlu0 %6723
    %v6725 = vsel %vm2650, %v6707, 0.0
    %6726 = vadd.xlane.f32.xlu0 %v6725
    %v6727 = vpop.xlane.xlu0 %6726
    %v6728 = vsel %vm2650, %v6709, 0.0
    %6729 = vadd.xlane.f32.xlu0 %v6728
    %v6730 = vpop.xlane.xlu0 %6729
    %v6731 = vsel %vm2650, %v6711, 0.0
    %6732 = vadd.xlane.f32.xlu0 %v6731
    %v6733 = vpop.xlane.xlu0 %6732
    %v6734 = vsel %vm2650, %v6713, 0.0
    %6735 = vadd.xlane.f32.xlu0 %v6734
    %v6736 = vpop.xlane.xlu0 %6735
    %v6737 = vsel %vm2650, %v6715, 0.0
    %6738 = vadd.xlane.f32.xlu0 %v6737
    %v6739 = vpop.xlane.xlu0 %6738
    %v6740 = vrcp.pop %v6718
    %v6741 = vrcp.pop %v6721
    %v6742 = vrcp.pop %v6724
    %v6743 = vrcp.pop %v6727
    %v6744 = vrcp.pop %v6730
    %v6745 = vrcp.pop %v6733
    %v6746 = vrcp.pop %v6736
    %v6747 = vrcp.pop %v6739
    %v6748 = vmul.f32 %v6701, %v6740
    %v6749 = vmul.f32 %v6703, %v6741
    %v6750 = vmul.f32 %v6705, %v6742
    %v6751 = vmul.f32 %v6707, %v6743
    %v6752 = vmul.f32 %v6709, %v6744
    %v6753 = vmul.f32 %v6711, %v6745
    %v6754 = vmul.f32 %v6713, %v6746
    %v6755 = vmul.f32 %v6715, %v6747
    %v6756 = vpack.c.bf16 %v6748, %v6748
    %v6757 = vpack.c.bf16 %v6749, %v6749
    %v6758 = vpack.c.bf16 %v6750, %v6750
    %v6759 = vpack.c.bf16 %v6751, %v6751
    %v6760 = vpack.c.bf16 %v6752, %v6752
    %v6761 = vpack.c.bf16 %v6753, %v6753
    %v6762 = vpack.c.bf16 %v6754, %v6754
    %v6763 = vpack.c.bf16 %v6755, %v6755
    %6764 = vrot.lane.b32.xlu0 %v6268, 64
    %v6765 = vpop.permute.xlu0 %6764
    %v6767 = vsel %vm2749, %v6756, 0
    %v6770 = vand.u32 %v6765, %v2756
    %6772 = vmatprep.subr.bf16.mxu0 0
    %6773 = vmatpush1.bf16.msra.mxu0 0
    %6774 = vmatprep.subr.bf16.mxu0 0
    %6775 = vmatpush1.bf16.msra.mxu0 0
    %6776 = vmatprep.subr.bf16.mxu0 0
    %6777 = vmatpush1.bf16.msra.mxu0 0
    %6778 = vmatprep.subr.bf16.mxu0 0
    %6779 = vmatpush1.bf16.msra.mxu0 0
    %6780 = vmatprep.subr.bf16.mxu0 0
    %6781 = vmatpush1.bf16.msra.mxu0 0
    %6782 = vmatprep.subr.bf16.mxu0 0
    %6783 = vmatpush1.bf16.msra.mxu0 0
    %6784 = vmatprep.subr.bf16.mxu0 0
    %6785 = vmatpush1.bf16.msra.mxu0 0
    %6786 = vmatprep.subr.bf16.mxu0 0
    %6787 = vmatpush1.bf16.msra.mxu0 %v6770
    %6788 = vmatprep.subr.bf16.mxu0 0
    %6789 = vmatpush2.bf16.msra.mxu0 0
    %6790 = vmatprep.subr.bf16.mxu0 0
    %6791 = vmatpush2.bf16.msra.mxu0 0
    %6792 = vmatprep.subr.bf16.mxu0 0
    %6793 = vmatpush2.bf16.msra.mxu0 0
    %6794 = vmatprep.subr.bf16.mxu0 0
    %6795 = vmatpush2.bf16.msra.mxu0 0
    %6796 = vmatprep.subr.bf16.mxu0 0
    %6797 = vmatpush2.bf16.msra.mxu0 0
    %6798 = vmatprep.subr.bf16.mxu0 0
    %6799 = vmatpush2.bf16.msra.mxu0 0
    %6800 = vmatprep.subr.bf16.mxu0 0
    %6801 = vmatpush2.bf16.msra.mxu0 0
    %6802 = vmatprep.subr.bf16.mxu0 0
    %6803 = vmatpush2.bf16.msra.mxu0 0
    %6804 = vmatprep.mubr.bf16.mxu0 0
    %6805 = vmatmul.mubr.bf16.gmra.mxu0 %v6767
    %v6806 = vpop.f32.mrf.mxu0
    %v6807 = vadd.f32 0.0, %v6806
    %v6808 = vpop.f32.mrf.mxu0
    %v6809 = vpop.f32.mrf.mxu0
    %v6810 = vpop.f32.mrf.mxu0
    %6811 = vdwg.mxu0
    %6812 = vrot.lane.b32.xlu0 %v6269, 64
    %v6813 = vpop.permute.xlu0 %6812
    %v6815 = vsel %vm2749, %v6757, 0
    %v6818 = vand.u32 %v6813, %v2756
    %6820 = vmatprep.subr.bf16.mxu0 0
    %6821 = vmatpush1.bf16.msra.mxu0 0
    %6822 = vmatprep.subr.bf16.mxu0 0
    %6823 = vmatpush1.bf16.msra.mxu0 0
    %6824 = vmatprep.subr.bf16.mxu0 0
    %6825 = vmatpush1.bf16.msra.mxu0 0
    %6826 = vmatprep.subr.bf16.mxu0 0
    %6827 = vmatpush1.bf16.msra.mxu0 0
    %6828 = vmatprep.subr.bf16.mxu0 0
    %6829 = vmatpush1.bf16.msra.mxu0 0
    %6830 = vmatprep.subr.bf16.mxu0 0
    %6831 = vmatpush1.bf16.msra.mxu0 0
    %6832 = vmatprep.subr.bf16.mxu0 0
    %6833 = vmatpush1.bf16.msra.mxu0 0
    %6834 = vmatprep.subr.bf16.mxu0 0
    %6835 = vmatpush1.bf16.msra.mxu0 %v6818
    %6836 = vmatprep.subr.bf16.mxu0 0
    %6837 = vmatpush2.bf16.msra.mxu0 0
    %6838 = vmatprep.subr.bf16.mxu0 0
    %6839 = vmatpush2.bf16.msra.mxu0 0
    %6840 = vmatprep.subr.bf16.mxu0 0
    %6841 = vmatpush2.bf16.msra.mxu0 0
    %6842 = vmatprep.subr.bf16.mxu0 0
    %6843 = vmatpush2.bf16.msra.mxu0 0
    %6844 = vmatprep.subr.bf16.mxu0 0
    %6845 = vmatpush2.bf16.msra.mxu0 0
    %6846 = vmatprep.subr.bf16.mxu0 0
    %6847 = vmatpush2.bf16.msra.mxu0 0
    %6848 = vmatprep.subr.bf16.mxu0 0
    %6849 = vmatpush2.bf16.msra.mxu0 0
    %6850 = vmatprep.subr.bf16.mxu0 0
    %6851 = vmatpush2.bf16.msra.mxu0 0
    %6852 = vmatprep.mubr.bf16.mxu0 0
    %6853 = vmatmul.mubr.bf16.gmra.mxu0 %v6815
    %v6854 = vpop.f32.mrf.mxu0
    %v6855 = vadd.f32 0.0, %v6854
    %v6856 = vpop.f32.mrf.mxu0
    %v6857 = vpop.f32.mrf.mxu0
    %v6858 = vpop.f32.mrf.mxu0
    %6859 = vdwg.mxu0
    %6860 = vrot.lane.b32.xlu0 %v6270, 64
    %v6861 = vpop.permute.xlu0 %6860
    %v6863 = vsel %vm2749, %v6758, 0
    %v6866 = vand.u32 %v6861, %v2756
    %6868 = vmatprep.subr.bf16.mxu0 0
    %6869 = vmatpush1.bf16.msra.mxu0 0
    %6870 = vmatprep.subr.bf16.mxu0 0
    %6871 = vmatpush1.bf16.msra.mxu0 0
    %6872 = vmatprep.subr.bf16.mxu0 0
    %6873 = vmatpush1.bf16.msra.mxu0 0
    %6874 = vmatprep.subr.bf16.mxu0 0
    %6875 = vmatpush1.bf16.msra.mxu0 0
    %6876 = vmatprep.subr.bf16.mxu0 0
    %6877 = vmatpush1.bf16.msra.mxu0 0
    %6878 = vmatprep.subr.bf16.mxu0 0
    %6879 = vmatpush1.bf16.msra.mxu0 0
    %6880 = vmatprep.subr.bf16.mxu0 0
    %6881 = vmatpush1.bf16.msra.mxu0 0
    %6882 = vmatprep.subr.bf16.mxu0 0
    %6883 = vmatpush1.bf16.msra.mxu0 %v6866
    %6884 = vmatprep.subr.bf16.mxu0 0
    %6885 = vmatpush2.bf16.msra.mxu0 0
    %6886 = vmatprep.subr.bf16.mxu0 0
    %6887 = vmatpush2.bf16.msra.mxu0 0
    %6888 = vmatprep.subr.bf16.mxu0 0
    %6889 = vmatpush2.bf16.msra.mxu0 0
    %6890 = vmatprep.subr.bf16.mxu0 0
    %6891 = vmatpush2.bf16.msra.mxu0 0
    %6892 = vmatprep.subr.bf16.mxu0 0
    %6893 = vmatpush2.bf16.msra.mxu0 0
    %6894 = vmatprep.subr.bf16.mxu0 0
    %6895 = vmatpush2.bf16.msra.mxu0 0
    %6896 = vmatprep.subr.bf16.mxu0 0
    %6897 = vmatpush2.bf16.msra.mxu0 0
    %6898 = vmatprep.subr.bf16.mxu0 0
    %6899 = vmatpush2.bf16.msra.mxu0 0
    %6900 = vmatprep.mubr.bf16.mxu0 0
    %6901 = vmatmul.mubr.bf16.gmra.mxu0 %v6863
    %v6902 = vpop.f32.mrf.mxu0
    %v6903 = vadd.f32 0.0, %v6902
    %v6904 = vpop.f32.mrf.mxu0
    %v6905 = vpop.f32.mrf.mxu0
    %v6906 = vpop.f32.mrf.mxu0
    %6907 = vdwg.mxu0
    %6908 = vrot.lane.b32.xlu0 %v6271, 64
    %v6909 = vpop.permute.xlu0 %6908
    %v6911 = vsel %vm2749, %v6759, 0
    %v6914 = vand.u32 %v6909, %v2756
    %6916 = vmatprep.subr.bf16.mxu0 0
    %6917 = vmatpush1.bf16.msra.mxu0 0
    %6918 = vmatprep.subr.bf16.mxu0 0
    %6919 = vmatpush1.bf16.msra.mxu0 0
    %6920 = vmatprep.subr.bf16.mxu0 0
    %6921 = vmatpush1.bf16.msra.mxu0 0
    %6922 = vmatprep.subr.bf16.mxu0 0
    %6923 = vmatpush1.bf16.msra.mxu0 0
    %6924 = vmatprep.subr.bf16.mxu0 0
    %6925 = vmatpush1.bf16.msra.mxu0 0
    %6926 = vmatprep.subr.bf16.mxu0 0
    %6927 = vmatpush1.bf16.msra.mxu0 0
    %6928 = vmatprep.subr.bf16.mxu0 0
    %6929 = vmatpush1.bf16.msra.mxu0 0
    %6930 = vmatprep.subr.bf16.mxu0 0
    %6931 = vmatpush1.bf16.msra.mxu0 %v6914
    %6932 = vmatprep.subr.bf16.mxu0 0
    %6933 = vmatpush2.bf16.msra.mxu0 0
    %6934 = vmatprep.subr.bf16.mxu0 0
    %6935 = vmatpush2.bf16.msra.mxu0 0
    %6936 = vmatprep.subr.bf16.mxu0 0
    %6937 = vmatpush2.bf16.msra.mxu0 0
    %6938 = vmatprep.subr.bf16.mxu0 0
    %6939 = vmatpush2.bf16.msra.mxu0 0
    %6940 = vmatprep.subr.bf16.mxu0 0
    %6941 = vmatpush2.bf16.msra.mxu0 0
    %6942 = vmatprep.subr.bf16.mxu0 0
    %6943 = vmatpush2.bf16.msra.mxu0 0
    %6944 = vmatprep.subr.bf16.mxu0 0
    %6945 = vmatpush2.bf16.msra.mxu0 0
    %6946 = vmatprep.subr.bf16.mxu0 0
    %6947 = vmatpush2.bf16.msra.mxu0 0
    %6948 = vmatprep.mubr.bf16.mxu0 0
    %6949 = vmatmul.mubr.bf16.gmra.mxu0 %v6911
    %v6950 = vpop.f32.mrf.mxu0
    %v6951 = vadd.f32 0.0, %v6950
    %v6952 = vpop.f32.mrf.mxu0
    %v6953 = vpop.f32.mrf.mxu0
    %v6954 = vpop.f32.mrf.mxu0
    %6955 = vdwg.mxu0
    %6956 = vrot.lane.b32.xlu0 %v6272, 64
    %v6957 = vpop.permute.xlu0 %6956
    %v6959 = vsel %vm2749, %v6760, 0
    %v6962 = vand.u32 %v6957, %v2756
    %6964 = vmatprep.subr.bf16.mxu0 0
    %6965 = vmatpush1.bf16.msra.mxu0 0
    %6966 = vmatprep.subr.bf16.mxu0 0
    %6967 = vmatpush1.bf16.msra.mxu0 0
    %6968 = vmatprep.subr.bf16.mxu0 0
    %6969 = vmatpush1.bf16.msra.mxu0 0
    %6970 = vmatprep.subr.bf16.mxu0 0
    %6971 = vmatpush1.bf16.msra.mxu0 0
    %6972 = vmatprep.subr.bf16.mxu0 0
    %6973 = vmatpush1.bf16.msra.mxu0 0
    %6974 = vmatprep.subr.bf16.mxu0 0
    %6975 = vmatpush1.bf16.msra.mxu0 0
    %6976 = vmatprep.subr.bf16.mxu0 0
    %6977 = vmatpush1.bf16.msra.mxu0 0
    %6978 = vmatprep.subr.bf16.mxu0 0
    %6979 = vmatpush1.bf16.msra.mxu0 %v6962
    %6980 = vmatprep.subr.bf16.mxu0 0
    %6981 = vmatpush2.bf16.msra.mxu0 0
    %6982 = vmatprep.subr.bf16.mxu0 0
    %6983 = vmatpush2.bf16.msra.mxu0 0
    %6984 = vmatprep.subr.bf16.mxu0 0
    %6985 = vmatpush2.bf16.msra.mxu0 0
    %6986 = vmatprep.subr.bf16.mxu0 0
    %6987 = vmatpush2.bf16.msra.mxu0 0
    %6988 = vmatprep.subr.bf16.mxu0 0
    %6989 = vmatpush2.bf16.msra.mxu0 0
    %6990 = vmatprep.subr.bf16.mxu0 0
    %6991 = vmatpush2.bf16.msra.mxu0 0
    %6992 = vmatprep.subr.bf16.mxu0 0
    %6993 = vmatpush2.bf16.msra.mxu0 0
    %6994 = vmatprep.subr.bf16.mxu0 0
    %6995 = vmatpush2.bf16.msra.mxu0 0
    %6996 = vmatprep.mubr.bf16.mxu0 0
    %6997 = vmatmul.mubr.bf16.gmra.mxu0 %v6959
    %v6998 = vpop.f32.mrf.mxu0
    %v6999 = vadd.f32 0.0, %v6998
    %v7000 = vpop.f32.mrf.mxu0
    %v7001 = vpop.f32.mrf.mxu0
    %v7002 = vpop.f32.mrf.mxu0
    %7003 = vdwg.mxu0
    %7004 = vrot.lane.b32.xlu0 %v6273, 64
    %v7005 = vpop.permute.xlu0 %7004
    %v7007 = vsel %vm2749, %v6761, 0
    %v7010 = vand.u32 %v7005, %v2756
    %7012 = vmatprep.subr.bf16.mxu0 0
    %7013 = vmatpush1.bf16.msra.mxu0 0
    %7014 = vmatprep.subr.bf16.mxu0 0
    %7015 = vmatpush1.bf16.msra.mxu0 0
    %7016 = vmatprep.subr.bf16.mxu0 0
    %7017 = vmatpush1.bf16.msra.mxu0 0
    %7018 = vmatprep.subr.bf16.mxu0 0
    %7019 = vmatpush1.bf16.msra.mxu0 0
    %7020 = vmatprep.subr.bf16.mxu0 0
    %7021 = vmatpush1.bf16.msra.mxu0 0
    %7022 = vmatprep.subr.bf16.mxu0 0
    %7023 = vmatpush1.bf16.msra.mxu0 0
    %7024 = vmatprep.subr.bf16.mxu0 0
    %7025 = vmatpush1.bf16.msra.mxu0 0
    %7026 = vmatprep.subr.bf16.mxu0 0
    %7027 = vmatpush1.bf16.msra.mxu0 %v7010
    %7028 = vmatprep.subr.bf16.mxu0 0
    %7029 = vmatpush2.bf16.msra.mxu0 0
    %7030 = vmatprep.subr.bf16.mxu0 0
    %7031 = vmatpush2.bf16.msra.mxu0 0
    %7032 = vmatprep.subr.bf16.mxu0 0
    %7033 = vmatpush2.bf16.msra.mxu0 0
    %7034 = vmatprep.subr.bf16.mxu0 0
    %7035 = vmatpush2.bf16.msra.mxu0 0
    %7036 = vmatprep.subr.bf16.mxu0 0
    %7037 = vmatpush2.bf16.msra.mxu0 0
    %7038 = vmatprep.subr.bf16.mxu0 0
    %7039 = vmatpush2.bf16.msra.mxu0 0
    %7040 = vmatprep.subr.bf16.mxu0 0
    %7041 = vmatpush2.bf16.msra.mxu0 0
    %7042 = vmatprep.subr.bf16.mxu0 0
    %7043 = vmatpush2.bf16.msra.mxu0 0
    %7044 = vmatprep.mubr.bf16.mxu0 0
    %7045 = vmatmul.mubr.bf16.gmra.mxu0 %v7007
    %v7046 = vpop.f32.mrf.mxu0
    %v7047 = vadd.f32 0.0, %v7046
    %v7048 = vpop.f32.mrf.mxu0
    %v7049 = vpop.f32.mrf.mxu0
    %v7050 = vpop.f32.mrf.mxu0
    %7051 = vdwg.mxu0
    %7052 = vrot.lane.b32.xlu0 %v6274, 64
    %v7053 = vpop.permute.xlu0 %7052
    %v7055 = vsel %vm2749, %v6762, 0
    %v7058 = vand.u32 %v7053, %v2756
    %7060 = vmatprep.subr.bf16.mxu0 0
    %7061 = vmatpush1.bf16.msra.mxu0 0
    %7062 = vmatprep.subr.bf16.mxu0 0
    %7063 = vmatpush1.bf16.msra.mxu0 0
    %7064 = vmatprep.subr.bf16.mxu0 0
    %7065 = vmatpush1.bf16.msra.mxu0 0
    %7066 = vmatprep.subr.bf16.mxu0 0
    %7067 = vmatpush1.bf16.msra.mxu0 0
    %7068 = vmatprep.subr.bf16.mxu0 0
    %7069 = vmatpush1.bf16.msra.mxu0 0
    %7070 = vmatprep.subr.bf16.mxu0 0
    %7071 = vmatpush1.bf16.msra.mxu0 0
    %7072 = vmatprep.subr.bf16.mxu0 0
    %7073 = vmatpush1.bf16.msra.mxu0 0
    %7074 = vmatprep.subr.bf16.mxu0 0
    %7075 = vmatpush1.bf16.msra.mxu0 %v7058
    %7076 = vmatprep.subr.bf16.mxu0 0
    %7077 = vmatpush2.bf16.msra.mxu0 0
    %7078 = vmatprep.subr.bf16.mxu0 0
    %7079 = vmatpush2.bf16.msra.mxu0 0
    %7080 = vmatprep.subr.bf16.mxu0 0
    %7081 = vmatpush2.bf16.msra.mxu0 0
    %7082 = vmatprep.subr.bf16.mxu0 0
    %7083 = vmatpush2.bf16.msra.mxu0 0
    %7084 = vmatprep.subr.bf16.mxu0 0
    %7085 = vmatpush2.bf16.msra.mxu0 0
    %7086 = vmatprep.subr.bf16.mxu0 0
    %7087 = vmatpush2.bf16.msra.mxu0 0
    %7088 = vmatprep.subr.bf16.mxu0 0
    %7089 = vmatpush2.bf16.msra.mxu0 0
    %7090 = vmatprep.subr.bf16.mxu0 0
    %7091 = vmatpush2.bf16.msra.mxu0 0
    %7092 = vmatprep.mubr.bf16.mxu0 0
    %7093 = vmatmul.mubr.bf16.gmra.mxu0 %v7055
    %v7094 = vpop.f32.mrf.mxu0
    %v7095 = vadd.f32 0.0, %v7094
    %v7096 = vpop.f32.mrf.mxu0
    %v7097 = vpop.f32.mrf.mxu0
    %v7098 = vpop.f32.mrf.mxu0
    %7099 = vdwg.mxu0
    %7100 = vrot.lane.b32.xlu0 %v6275, 64
    %v7101 = vpop.permute.xlu0 %7100
    %v7103 = vsel %vm2749, %v6763, 0
    %v7106 = vand.u32 %v7101, %v2756
    %7108 = vmatprep.subr.bf16.mxu0 0
    %7109 = vmatpush1.bf16.msra.mxu0 0
    %7110 = vmatprep.subr.bf16.mxu0 0
    %7111 = vmatpush1.bf16.msra.mxu0 0
    %7112 = vmatprep.subr.bf16.mxu0 0
    %7113 = vmatpush1.bf16.msra.mxu0 0
    %7114 = vmatprep.subr.bf16.mxu0 0
    %7115 = vmatpush1.bf16.msra.mxu0 0
    %7116 = vmatprep.subr.bf16.mxu0 0
    %7117 = vmatpush1.bf16.msra.mxu0 0
    %7118 = vmatprep.subr.bf16.mxu0 0
    %7119 = vmatpush1.bf16.msra.mxu0 0
    %7120 = vmatprep.subr.bf16.mxu0 0
    %7121 = vmatpush1.bf16.msra.mxu0 0
    %7122 = vmatprep.subr.bf16.mxu0 0
    %7123 = vmatpush1.bf16.msra.mxu0 %v7106
    %7124 = vmatprep.subr.bf16.mxu0 0
    %7125 = vmatpush2.bf16.msra.mxu0 0
    %7126 = vmatprep.subr.bf16.mxu0 0
    %7127 = vmatpush2.bf16.msra.mxu0 0
    %7128 = vmatprep.subr.bf16.mxu0 0
    %7129 = vmatpush2.bf16.msra.mxu0 0
    %7130 = vmatprep.subr.bf16.mxu0 0
    %7131 = vmatpush2.bf16.msra.mxu0 0
    %7132 = vmatprep.subr.bf16.mxu0 0
    %7133 = vmatpush2.bf16.msra.mxu0 0
    %7134 = vmatprep.subr.bf16.mxu0 0
    %7135 = vmatpush2.bf16.msra.mxu0 0
    %7136 = vmatprep.subr.bf16.mxu0 0
    %7137 = vmatpush2.bf16.msra.mxu0 0
    %7138 = vmatprep.subr.bf16.mxu0 0
    %7139 = vmatpush2.bf16.msra.mxu0 0
    %7140 = vmatprep.mubr.bf16.mxu0 0
    %7141 = vmatmul.mubr.bf16.gmra.mxu0 %v7103
    %v7142 = vpop.f32.mrf.mxu0
    %v7143 = vadd.f32 0.0, %v7142
    %v7144 = vpop.f32.mrf.mxu0
    %v7145 = vpop.f32.mrf.mxu0
    %v7146 = vpop.f32.mrf.mxu0
    %7147 = vdwg.mxu0
    %7150 = vrot.lane.b32.xlu0 %v6903, 8
    %v7151 = vpop.permute.xlu0 %7150
    %7152 = vrot.lane.b32.xlu0 %v6951, 8
    %v7153 = vpop.permute.xlu0 %7152
    %7158 = vrot.lane.b32.xlu0 %v6999, 16
    %v7159 = vpop.permute.xlu0 %7158
    %7160 = vrot.lane.b32.xlu0 %v7047, 16
    %v7161 = vpop.permute.xlu0 %7160
    %7166 = vrot.lane.b32.xlu0 %v7095, 24
    %v7167 = vpop.permute.xlu0 %7166
    %7168 = vrot.lane.b32.xlu0 %v7143, 24
    %v7169 = vpop.permute.xlu0 %7168
    %v7172 = vsel %vm2260, %v6807, %v7151
    %v7173 = vsel %vm2260, %v6855, %v7153
    %v7174 = vsel %vm3162, %v7172, %v7159
    %v7175 = vsel %vm3162, %v7173, %v7161
    %v7176 = vsel %vm3165, %v7174, %v7167
    %v7177 = vsel %vm3165, %v7175, %v7169
    %v7178 = vpack.c.bf16 %v7176, %v7176
    %v7179 = vpack.c.bf16 %v7177, %v7177
    %s7180 = scalar_lea.vmem %s9, 16
    %v7181 = vld [vmem:[%s7180] sm:$0xf]
    %v7182 = vld [vmem:[%s7180 + $0x4] sm:$0xf]
    %v7183 = vld [vmem:[%s7180 + $0x8] sm:$0xf]
    %v7184 = vld [vmem:[%s7180 + $0xc] sm:$0xf]
    %s7185 = scalar_lea.vmem %s10, 1
    %v7186 = vld [vmem:[%s7185] sm:$0x1]
    %v7188 = vlaneseq
    %v7189 = vshrl.u32 %v7188, 7
    %v7190 = vsub.s32 0, %v7189
    %v7191 = vrot.slane %v7186, %v7190
    %v7195 = vunpack.c.l.s4 1966171168
    %v7196 = vunpack.c.0.s8 %v7195
    %v7197 = vlaneseq
    %v7198 = vshrl.u32 %v7197, 7
    %v7199 = vsub.s32 %v7196, %v7198
    %v7200 = vrot.slane %v7178, %v7199
    %v7201 = vcombine.high %v7200, %v7200
    %v7203 = vunpack.c.l.s4 1966171168
    %v7204 = vunpack.c.0.s8 %v7203
    %v7205 = vlaneseq
    %v7206 = vshrl.u32 %v7205, 7
    %v7207 = vsub.s32 %v7204, %v7206
    %v7208 = vrot.slane %v7200, %v7207
    %v7210 = vunpack.c.l.s4 1966171168
    %v7211 = vunpack.c.0.s8 %v7210
    %v7212 = vlaneseq
    %v7213 = vshrl.u32 %v7212, 7
    %v7214 = vsub.s32 %v7211, %v7213
    %v7215 = vrot.slane %v7201, %v7214
    %v7216 = vcombine.high %v7208, %v7208
    %v7218 = vunpack.c.l.s4 1966171168
    %v7219 = vunpack.c.0.s8 %v7218
    %v7220 = vlaneseq
    %v7221 = vshrl.u32 %v7220, 7
    %v7222 = vsub.s32 %v7219, %v7221
    %v7223 = vrot.slane %v7179, %v7222
    %v7224 = vcombine.high %v7223, %v7223
    %v7226 = vunpack.c.l.s4 1966171168
    %v7227 = vunpack.c.0.s8 %v7226
    %v7228 = vlaneseq
    %v7229 = vshrl.u32 %v7228, 7
    %v7230 = vsub.s32 %v7227, %v7229
    %v7231 = vrot.slane %v7223, %v7230
    %v7233 = vunpack.c.l.s4 1966171168
    %v7234 = vunpack.c.0.s8 %v7233
    %v7235 = vlaneseq
    %v7236 = vshrl.u32 %v7235, 7
    %v7237 = vsub.s32 %v7234, %v7236
    %v7238 = vrot.slane %v7224, %v7237
    %v7239 = vcombine.high %v7231, %v7231
    %v7240 = vunpack.i.l.s16 %v7208
    %v7241 = vunpack.i.h.s16 %v7208
    %v7242 = vunpack.i.l.s16 %v7215
    %v7243 = vunpack.i.h.s16 %v7215
    %v7244 = vunpack.i.l.s16 %v7216
    %v7245 = vunpack.i.l.s16 %v7231
    %v7246 = vunpack.i.h.s16 %v7231
    %v7247 = vunpack.i.l.s16 %v7238
    %v7248 = vunpack.i.h.s16 %v7238
    %v7249 = vunpack.i.l.s16 %v7239
    %v7250 = vcombine.high %v7191, %v7191
    %v7252 = vunpack.c.l.s4 1966171168
    %v7253 = vunpack.c.0.s8 %v7252
    %v7254 = vlaneseq
    %v7255 = vshrl.u32 %v7254, 7
    %v7256 = vsub.s32 %v7253, %v7255
    %v7257 = vrot.slane %v7191, %v7256
    %v7259 = vunpack.c.l.s4 1966171168
    %v7260 = vunpack.c.0.s8 %v7259
    %v7261 = vlaneseq
    %v7262 = vshrl.u32 %v7261, 7
    %v7263 = vsub.s32 %v7260, %v7262
    %v7264 = vrot.slane %v7250, %v7263
    %v7265 = vcombine.high %v7257, %v7257
    %v7267 = vunpack.c.l.s4 1966171168
    %v7268 = vunpack.c.0.s8 %v7267
    %v7269 = vlaneseq
    %v7270 = vshrl.u32 %v7269, 7
    %v7271 = vsub.s32 %v7268, %v7270
    %v7272 = vrot.slane %v7257, %v7271
    %v7274 = vunpack.c.l.s4 1966171168
    %v7275 = vunpack.c.0.s8 %v7274
    %v7276 = vlaneseq
    %v7277 = vshrl.u32 %v7276, 7
    %v7278 = vsub.s32 %v7275, %v7277
    %v7279 = vrot.slane %v7264, %v7278
    %v7281 = vunpack.c.l.s4 1966171168
    %v7282 = vunpack.c.0.s8 %v7281
    %v7283 = vlaneseq
    %v7284 = vshrl.u32 %v7283, 7
    %v7285 = vsub.s32 %v7282, %v7284
    %v7286 = vrot.slane %v7265, %v7285
    %v7287 = vcombine.high %v7272, %v7272
    %v7288 = vcombine.high %v7286, %v7286
    %v7289 = vpack.i.b16 %v7241, %v7240
    %v7290 = vpack.i.b16 %v7243, %v7242
    %v7291 = vpack.i.b16 %v7245, %v7244
    %v7292 = vpack.i.b16 %v7247, %v7246
    %v7293 = vpack.i.b16 %v7249, %v7248
    %v7294 = vcombine.low %v7289, %v7290
    %v7295 = vcombine.low %v7291, %v7292
    %v7297 = vunpack.c.l.s4 1966171168
    %v7298 = vunpack.c.0.s8 %v7297
    %v7299 = vlaneseq
    %v7300 = vshrl.u32 %v7299, 7
    %v7301 = vsub.s32 %v7298, %v7300
    %v7302 = vrot.slane %v7294, %v7301
    %v7304 = vunpack.c.l.s4 1966171168
    %v7305 = vunpack.c.0.s8 %v7304
    %v7306 = vlaneseq
    %v7307 = vshrl.u32 %v7306, 7
    %v7308 = vsub.s32 %v7305, %v7307
    %v7309 = vrot.slane %v7295, %v7308
    %v7311 = vunpack.c.l.s4 1966171168
    %v7312 = vunpack.c.0.s8 %v7311
    %v7313 = vlaneseq
    %v7314 = vshrl.u32 %v7313, 7
    %v7315 = vsub.s32 %v7312, %v7314
    %v7316 = vrot.slane %v7293, %v7315
    %v7317 = vcombine.low %v7302, %v7309
    %v7319 = vunpack.c.l.s4 1966171168
    %v7320 = vunpack.c.0.s8 %v7319
    %v7321 = vlaneseq
    %v7322 = vshrl.u32 %v7321, 7
    %v7323 = vsub.s32 %v7320, %v7322
    %v7324 = vrot.slane %v7317, %v7323
    %v7326 = vunpack.c.l.s4 1966171168
    %v7327 = vunpack.c.0.s8 %v7326
    %v7328 = vlaneseq
    %v7329 = vshrl.u32 %v7328, 7
    %v7330 = vsub.s32 %v7327, %v7329
    %v7331 = vrot.slane %v7316, %v7330
    %v7332 = vcombine.low %v7324, %v7331
    %v7337 = vunpack.c.l.b16 %v7181
    %v7338 = vunpack.c.l.b16 %v7182
    %v7339 = vunpack.c.l.b16 %v7183
    %v7340 = vunpack.c.l.b16 %v7184
    %v7341 = vpack.c.b16 %v7338, %v7337
    %v7342 = vpack.c.b16 %v7340, %v7339
    %v7345 = vcombine.low %v7272, %v7286
    %v7346 = vcombine.low %v7287, %v7288
    %v7347 = vcombine.low %v7279, %v7272
    %v7348 = vcombine.low %v7286, %v7287
    %v7350 = vunpack.c.l.s4 1966171168
    %v7351 = vunpack.c.0.s8 %v7350
    %v7352 = vlaneseq
    %v7353 = vshrl.u32 %v7352, 7
    %v7354 = vsub.s32 %v7351, %v7353
    %v7355 = vrot.slane %v7345, %v7354
    %v7357 = vunpack.c.l.s4 1966171168
    %v7358 = vunpack.c.0.s8 %v7357
    %v7359 = vlaneseq
    %v7360 = vshrl.u32 %v7359, 7
    %v7361 = vsub.s32 %v7358, %v7360
    %v7362 = vrot.slane %v7346, %v7361
    %v7364 = vunpack.c.l.s4 1966171168
    %v7365 = vunpack.c.0.s8 %v7364
    %v7366 = vlaneseq
    %v7367 = vshrl.u32 %v7366, 7
    %v7368 = vsub.s32 %v7365, %v7367
    %v7369 = vrot.slane %v7347, %v7368
    %v7371 = vunpack.c.l.s4 1966171168
    %v7372 = vunpack.c.0.s8 %v7371
    %v7373 = vlaneseq
    %v7374 = vshrl.u32 %v7373, 7
    %v7375 = vsub.s32 %v7372, %v7374
    %v7376 = vrot.slane %v7348, %v7375
    %v7377 = vcombine.low %v7355, %v7362
    %v7378 = vcombine.low %v7369, %v7376
    %v7380 = vunpack.c.l.s4 1966171168
    %v7381 = vunpack.c.0.s8 %v7380
    %v7382 = vlaneseq
    %v7383 = vshrl.u32 %v7382, 7
    %v7384 = vsub.s32 %v7381, %v7383
    %v7385 = vrot.slane %v7377, %v7384
    %v7387 = vunpack.c.l.s4 1966171168
    %v7388 = vunpack.c.0.s8 %v7387
    %v7389 = vlaneseq
    %v7390 = vshrl.u32 %v7389, 7
    %v7391 = vsub.s32 %v7388, %v7390
    %v7392 = vrot.slane %v7378, %v7391
    %v7393 = vcombine.low %v7385, %v7392
    %v7394 = vcombine.low %v7288, %v7279
    %v7396 = vunpack.c.l.s4 1966171168
    %v7397 = vunpack.c.0.s8 %v7396
    %v7398 = vlaneseq
    %v7399 = vshrl.u32 %v7398, 7
    %v7400 = vsub.s32 %v7397, %v7399
    %v7401 = vrot.slane %v7394, %v7400
    %v7403 = vunpack.c.l.s4 1966171168
    %v7404 = vunpack.c.0.s8 %v7403
    %v7405 = vlaneseq
    %v7406 = vshrl.u32 %v7405, 7
    %v7407 = vsub.s32 %v7404, %v7406
    %v7408 = vrot.slane %v7401, %v7407
    %v7412 = vsel %vm1751, %v7332, 0
    %7414 = vmatprep.subr.bf16.mxu0 0
    %7415 = vmatpush1.bf16.msra.mxu0 0
    %7416 = vmatprep.subr.bf16.mxu0 0
    %7417 = vmatpush1.bf16.msra.mxu0 0
    %7418 = vmatprep.subr.bf16.mxu0 0
    %7419 = vmatpush1.bf16.msra.mxu0 0
    %7420 = vmatprep.subr.bf16.mxu0 0
    %7421 = vmatpush1.bf16.msra.mxu0 0
    %7422 = vmatprep.subr.bf16.mxu0 0
    %7423 = vmatpush1.bf16.msra.mxu0 0
    %7424 = vmatprep.subr.bf16.mxu0 0
    %7425 = vmatpush1.bf16.msra.mxu0 0
    %7426 = vmatprep.subr.bf16.mxu0 0
    %7427 = vmatpush1.bf16.msra.mxu0 %v7342
    %7428 = vmatprep.subr.bf16.mxu0 0
    %7429 = vmatpush1.bf16.msra.mxu0 %v7341
    %7430 = vmatprep.subr.bf16.mxu0 0
    %7431 = vmatpush2.bf16.msra.mxu0 0
    %7432 = vmatprep.subr.bf16.mxu0 0
    %7433 = vmatpush2.bf16.msra.mxu0 0
    %7434 = vmatprep.subr.bf16.mxu0 0
    %7435 = vmatpush2.bf16.msra.mxu0 0
    %7436 = vmatprep.subr.bf16.mxu0 0
    %7437 = vmatpush2.bf16.msra.mxu0 0
    %7438 = vmatprep.subr.bf16.mxu0 0
    %7439 = vmatpush2.bf16.msra.mxu0 0
    %7440 = vmatprep.subr.bf16.mxu0 0
    %7441 = vmatpush2.bf16.msra.mxu0 0
    %7442 = vmatprep.subr.bf16.mxu0 0
    %7443 = vmatpush2.bf16.msra.mxu0 0
    %7444 = vmatprep.subr.bf16.mxu0 0
    %7445 = vmatpush2.bf16.msra.mxu0 0
    %7446 = vmatprep.mubr.bf16.mxu0 0
    %7447 = vmatmul.mubr.bf16.gmra.mxu0 %v7412
    %v7448 = vpop.f32.mrf.mxu0
    %v7449 = vadd.f32 %v7393, %v7448
    %v7450 = vpop.f32.mrf.mxu0
    %v7451 = vpop.f32.mrf.mxu0
    %v7452 = vadd.f32 %v7408, %v7451
    %v7453 = vpop.f32.mrf.mxu0
    %7454 = vdwg.mxu0
    %v7457 = vcombine.high %v7449, %v7449
    %v7459 = vunpack.c.l.s4 1966171168
    %v7460 = vunpack.c.0.s8 %v7459
    %v7461 = vlaneseq
    %v7462 = vshrl.u32 %v7461, 7
    %v7463 = vsub.s32 %v7460, %v7462
    %v7464 = vrot.slane %v7449, %v7463
    %v7466 = vunpack.c.l.s4 1966171168
    %v7467 = vunpack.c.0.s8 %v7466
    %v7468 = vlaneseq
    %v7469 = vshrl.u32 %v7468, 7
    %v7470 = vsub.s32 %v7467, %v7469
    %v7471 = vrot.slane %v7457, %v7470
    %v7472 = vcombine.high %v7464, %v7464
    %v7473 = vcombine.high %v7471, %v7471
    %v7475 = vunpack.c.l.s4 1966171168
    %v7476 = vunpack.c.0.s8 %v7475
    %v7477 = vlaneseq
    %v7478 = vshrl.u32 %v7477, 7
    %v7479 = vsub.s32 %v7476, %v7478
    %v7480 = vrot.slane %v7464, %v7479
    %v7482 = vunpack.c.l.s4 1966171168
    %v7483 = vunpack.c.0.s8 %v7482
    %v7484 = vlaneseq
    %v7485 = vshrl.u32 %v7484, 7
    %v7486 = vsub.s32 %v7483, %v7485
    %v7487 = vrot.slane %v7471, %v7486
    %v7489 = vunpack.c.l.s4 1966171168
    %v7490 = vunpack.c.0.s8 %v7489
    %v7491 = vlaneseq
    %v7492 = vshrl.u32 %v7491, 7
    %v7493 = vsub.s32 %v7490, %v7492
    %v7494 = vrot.slane %v7472, %v7493
    %v7496 = vunpack.c.l.s4 1966171168
    %v7497 = vunpack.c.0.s8 %v7496
    %v7498 = vlaneseq
    %v7499 = vshrl.u32 %v7498, 7
    %v7500 = vsub.s32 %v7497, %v7499
    %v7501 = vrot.slane %v7473, %v7500
    %v7502 = vcombine.high %v7480, %v7480
    %v7503 = vcombine.high %v7487, %v7487
    %v7504 = vcombine.high %v7494, %v7494
    %v7505 = vcombine.high %v7501, %v7501
    %v7507 = vunpack.c.l.s4 1966171168
    %v7508 = vunpack.c.0.s8 %v7507
    %v7509 = vlaneseq
    %v7510 = vshrl.u32 %v7509, 7
    %v7511 = vsub.s32 %v7508, %v7510
    %v7512 = vrot.slane %v7452, %v7511
    %v7513 = vcombine.high %v7512, %v7512
    %v7515 = vunpack.c.l.s4 1966171168
    %v7516 = vunpack.c.0.s8 %v7515
    %v7517 = vlaneseq
    %v7518 = vshrl.u32 %v7517, 7
    %v7519 = vsub.s32 %v7516, %v7518
    %v7520 = vrot.slane %v7512, %v7519
    %v7522 = vunpack.c.l.s4 1966171168
    %v7523 = vunpack.c.0.s8 %v7522
    %v7524 = vlaneseq
    %v7525 = vshrl.u32 %v7524, 7
    %v7526 = vsub.s32 %v7523, %v7525
    %v7527 = vrot.slane %v7513, %v7526
    %v7538 = vadd.f32 %v4982, %v7480
    %v7539 = vadd.f32 %v4983, %v7494
    %v7540 = vadd.f32 %v4984, %v7502
    %v7541 = vadd.f32 %v4985, %v7504
    %v7542 = vadd.f32 %v4986, %v7487
    %v7543 = vadd.f32 %v4987, %v7501
    %v7544 = vadd.f32 %v4988, %v7503
    %v7545 = vadd.f32 %v4989, %v7505
    %v7546 = vadd.f32 %v4990, %v7520
    %v7547 = vadd.f32 %v4991, %v7527
    %s7548 = scalar_lea.vmem %s11, 1
    %v7549 = vld [vmem:[%s7548] sm:$0x1]
    %s7550 = scalar_lea.vmem %s12, 1
    %v7551 = vld [vmem:[%s7550] sm:$0x1]
    %v7562 = vcombine.low %v7538, %v7539
    %v7563 = vcombine.low %v7540, %v7541
    %v7565 = vunpack.c.l.s4 1966171168
    %v7566 = vunpack.c.0.s8 %v7565
    %v7567 = vlaneseq
    %v7568 = vshrl.u32 %v7567, 7
    %v7569 = vsub.s32 %v7566, %v7568
    %v7570 = vrot.slane %v7562, %v7569
    %v7572 = vunpack.c.l.s4 1966171168
    %v7573 = vunpack.c.0.s8 %v7572
    %v7574 = vlaneseq
    %v7575 = vshrl.u32 %v7574, 7
    %v7576 = vsub.s32 %v7573, %v7575
    %v7577 = vrot.slane %v7563, %v7576
    %v7579 = vunpack.c.l.s4 1966171168
    %v7580 = vunpack.c.0.s8 %v7579
    %v7581 = vlaneseq
    %v7582 = vshrl.u32 %v7581, 7
    %v7583 = vsub.s32 %v7580, %v7582
    %v7584 = vrot.slane %v7542, %v7583
    %v7585 = vcombine.low %v7570, %v7577
    %v7587 = vunpack.c.l.s4 1966171168
    %v7588 = vunpack.c.0.s8 %v7587
    %v7589 = vlaneseq
    %v7590 = vshrl.u32 %v7589, 7
    %v7591 = vsub.s32 %v7588, %v7590
    %v7592 = vrot.slane %v7585, %v7591
    %v7594 = vunpack.c.l.s4 1966171168
    %v7595 = vunpack.c.0.s8 %v7594
    %v7596 = vlaneseq
    %v7597 = vshrl.u32 %v7596, 7
    %v7598 = vsub.s32 %v7595, %v7597
    %v7599 = vrot.slane %v7584, %v7598
    %v7600 = vcombine.low %v7592, %v7599
    %v7601 = vcombine.low %v7543, %v7544
    %v7602 = vcombine.low %v7545, %v7546
    %v7604 = vunpack.c.l.s4 1966171168
    %v7605 = vunpack.c.0.s8 %v7604
    %v7606 = vlaneseq
    %v7607 = vshrl.u32 %v7606, 7
    %v7608 = vsub.s32 %v7605, %v7607
    %v7609 = vrot.slane %v7601, %v7608
    %v7611 = vunpack.c.l.s4 1966171168
    %v7612 = vunpack.c.0.s8 %v7611
    %v7613 = vlaneseq
    %v7614 = vshrl.u32 %v7613, 7
    %v7615 = vsub.s32 %v7612, %v7614
    %v7616 = vrot.slane %v7602, %v7615
    %v7618 = vunpack.c.l.s4 1966171168
    %v7619 = vunpack.c.0.s8 %v7618
    %v7620 = vlaneseq
    %v7621 = vshrl.u32 %v7620, 7
    %v7622 = vsub.s32 %v7619, %v7621
    %v7623 = vrot.slane %v7547, %v7622
    %v7624 = vcombine.low %v7609, %v7616
    %v7626 = vunpack.c.l.s4 1966171168
    %v7627 = vunpack.c.0.s8 %v7626
    %v7628 = vlaneseq
    %v7629 = vshrl.u32 %v7628, 7
    %v7630 = vsub.s32 %v7627, %v7629
    %v7631 = vrot.slane %v7624, %v7630
    %v7633 = vunpack.c.l.s4 1966171168
    %v7634 = vunpack.c.0.s8 %v7633
    %v7635 = vlaneseq
    %v7636 = vshrl.u32 %v7635, 7
    %v7637 = vsub.s32 %v7634, %v7636
    %v7638 = vrot.slane %v7623, %v7637
    %v7639 = vcombine.low %v7631, %v7638
    %v7642 = vsel %vm612, %v7600, 0.0
    %7643 = vadd.xlane.f32.xlu0 %v7642
    %v7644 = vpop.xlane.xlu0 %7643
    %v7645 = vsel %vm612, %v7639, 0.0
    %7646 = vadd.xlane.f32.xlu0 %v7645
    %v7647 = vpop.xlane.xlu0 %7646
    %v7648 = vmul.f32 %v7644, %v619
    %v7649 = vmul.f32 %v7647, %v619
    %v7652 = vlaneseq
    %v7653 = vshrl.u32 %v7652, 7
    %v7654 = vsub.s32 0, %v7653
    %v7655 = vrot.slane %v7648, %v7654
    %v7656 = vlaneseq
    %v7657 = vshrl.u32 %v7656, 7
    %v7658 = vsub.s32 1, %v7657
    %v7659 = vrot.slane %v7648, %v7658
    %v7660 = vlaneseq
    %v7661 = vshrl.u32 %v7660, 7
    %v7662 = vsub.s32 2, %v7661
    %v7663 = vrot.slane %v7648, %v7662
    %v7664 = vlaneseq
    %v7665 = vshrl.u32 %v7664, 7
    %v7666 = vsub.s32 3, %v7665
    %v7667 = vrot.slane %v7648, %v7666
    %v7668 = vlaneseq
    %v7669 = vshrl.u32 %v7668, 7
    %v7670 = vsub.s32 4, %v7669
    %v7671 = vrot.slane %v7648, %v7670
    %v7672 = vlaneseq
    %v7673 = vshrl.u32 %v7672, 7
    %v7674 = vsub.s32 0, %v7673
    %v7675 = vrot.slane %v7649, %v7674
    %v7676 = vlaneseq
    %v7677 = vshrl.u32 %v7676, 7
    %v7678 = vsub.s32 1, %v7677
    %v7679 = vrot.slane %v7649, %v7678
    %v7680 = vlaneseq
    %v7681 = vshrl.u32 %v7680, 7
    %v7682 = vsub.s32 2, %v7681
    %v7683 = vrot.slane %v7649, %v7682
    %v7684 = vlaneseq
    %v7685 = vshrl.u32 %v7684, 7
    %v7686 = vsub.s32 3, %v7685
    %v7687 = vrot.slane %v7649, %v7686
    %v7688 = vlaneseq
    %v7689 = vshrl.u32 %v7688, 7
    %v7690 = vsub.s32 4, %v7689
    %v7691 = vrot.slane %v7649, %v7690
    %v7702 = vsub.f32 %v7538, %v7655
    %v7703 = vsub.f32 %v7539, %v7659
    %v7704 = vsub.f32 %v7540, %v7663
    %v7705 = vsub.f32 %v7541, %v7667
    %v7706 = vsub.f32 %v7542, %v7671
    %v7707 = vsub.f32 %v7543, %v7675
    %v7708 = vsub.f32 %v7544, %v7679
    %v7709 = vsub.f32 %v7545, %v7683
    %v7710 = vsub.f32 %v7546, %v7687
    %v7711 = vsub.f32 %v7547, %v7691
    %v7712 = vmul.f32 %v7702, %v7702
    %v7713 = vmul.f32 %v7703, %v7703
    %v7714 = vmul.f32 %v7704, %v7704
    %v7715 = vmul.f32 %v7705, %v7705
    %v7716 = vmul.f32 %v7706, %v7706
    %v7717 = vmul.f32 %v7707, %v7707
    %v7718 = vmul.f32 %v7708, %v7708
    %v7719 = vmul.f32 %v7709, %v7709
    %v7720 = vmul.f32 %v7710, %v7710
    %v7721 = vmul.f32 %v7711, %v7711
    %v7732 = vcombine.low %v7712, %v7713
    %v7733 = vcombine.low %v7714, %v7715
    %v7735 = vunpack.c.l.s4 1966171168
    %v7736 = vunpack.c.0.s8 %v7735
    %v7737 = vlaneseq
    %v7738 = vshrl.u32 %v7737, 7
    %v7739 = vsub.s32 %v7736, %v7738
    %v7740 = vrot.slane %v7732, %v7739
    %v7742 = vunpack.c.l.s4 1966171168
    %v7743 = vunpack.c.0.s8 %v7742
    %v7744 = vlaneseq
    %v7745 = vshrl.u32 %v7744, 7
    %v7746 = vsub.s32 %v7743, %v7745
    %v7747 = vrot.slane %v7733, %v7746
    %v7749 = vunpack.c.l.s4 1966171168
    %v7750 = vunpack.c.0.s8 %v7749
    %v7751 = vlaneseq
    %v7752 = vshrl.u32 %v7751, 7
    %v7753 = vsub.s32 %v7750, %v7752
    %v7754 = vrot.slane %v7716, %v7753
    %v7755 = vcombine.low %v7740, %v7747
    %v7757 = vunpack.c.l.s4 1966171168
    %v7758 = vunpack.c.0.s8 %v7757
    %v7759 = vlaneseq
    %v7760 = vshrl.u32 %v7759, 7
    %v7761 = vsub.s32 %v7758, %v7760
    %v7762 = vrot.slane %v7755, %v7761
    %v7764 = vunpack.c.l.s4 1966171168
    %v7765 = vunpack.c.0.s8 %v7764
    %v7766 = vlaneseq
    %v7767 = vshrl.u32 %v7766, 7
    %v7768 = vsub.s32 %v7765, %v7767
    %v7769 = vrot.slane %v7754, %v7768
    %v7770 = vcombine.low %v7762, %v7769
    %v7771 = vcombine.low %v7717, %v7718
    %v7772 = vcombine.low %v7719, %v7720
    %v7774 = vunpack.c.l.s4 1966171168
    %v7775 = vunpack.c.0.s8 %v7774
    %v7776 = vlaneseq
    %v7777 = vshrl.u32 %v7776, 7
    %v7778 = vsub.s32 %v7775, %v7777
    %v7779 = vrot.slane %v7771, %v7778
    %v7781 = vunpack.c.l.s4 1966171168
    %v7782 = vunpack.c.0.s8 %v7781
    %v7783 = vlaneseq
    %v7784 = vshrl.u32 %v7783, 7
    %v7785 = vsub.s32 %v7782, %v7784
    %v7786 = vrot.slane %v7772, %v7785
    %v7788 = vunpack.c.l.s4 1966171168
    %v7789 = vunpack.c.0.s8 %v7788
    %v7790 = vlaneseq
    %v7791 = vshrl.u32 %v7790, 7
    %v7792 = vsub.s32 %v7789, %v7791
    %v7793 = vrot.slane %v7721, %v7792
    %v7794 = vcombine.low %v7779, %v7786
    %v7796 = vunpack.c.l.s4 1966171168
    %v7797 = vunpack.c.0.s8 %v7796
    %v7798 = vlaneseq
    %v7799 = vshrl.u32 %v7798, 7
    %v7800 = vsub.s32 %v7797, %v7799
    %v7801 = vrot.slane %v7794, %v7800
    %v7803 = vunpack.c.l.s4 1966171168
    %v7804 = vunpack.c.0.s8 %v7803
    %v7805 = vlaneseq
    %v7806 = vshrl.u32 %v7805, 7
    %v7807 = vsub.s32 %v7804, %v7806
    %v7808 = vrot.slane %v7793, %v7807
    %v7809 = vcombine.low %v7801, %v7808
    %v7812 = vsel %vm612, %v7770, 0.0
    %7813 = vadd.xlane.f32.xlu0 %v7812
    %v7814 = vpop.xlane.xlu0 %7813
    %v7815 = vsel %vm612, %v7809, 0.0
    %7816 = vadd.xlane.f32.xlu0 %v7815
    %v7817 = vpop.xlane.xlu0 %7816
    %v7818 = vmul.f32 %v7814, %v619
    %v7819 = vmul.f32 %v7817, %v619
    %v7820 = vadd.f32 %v7818, 1e-05
    %v7821 = vadd.f32 %v7819, 1e-05
    %v7822 = vrsqrt.pop %v7820
    %v7823 = vrsqrt.pop %v7821
    %v7826 = vlaneseq
    %v7827 = vshrl.u32 %v7826, 7
    %v7828 = vsub.s32 0, %v7827
    %v7829 = vrot.slane %v7822, %v7828
    %v7830 = vlaneseq
    %v7831 = vshrl.u32 %v7830, 7
    %v7832 = vsub.s32 1, %v7831
    %v7833 = vrot.slane %v7822, %v7832
    %v7834 = vlaneseq
    %v7835 = vshrl.u32 %v7834, 7
    %v7836 = vsub.s32 2, %v7835
    %v7837 = vrot.slane %v7822, %v7836
    %v7838 = vlaneseq
    %v7839 = vshrl.u32 %v7838, 7
    %v7840 = vsub.s32 3, %v7839
    %v7841 = vrot.slane %v7822, %v7840
    %v7842 = vlaneseq
    %v7843 = vshrl.u32 %v7842, 7
    %v7844 = vsub.s32 4, %v7843
    %v7845 = vrot.slane %v7822, %v7844
    %v7846 = vlaneseq
    %v7847 = vshrl.u32 %v7846, 7
    %v7848 = vsub.s32 0, %v7847
    %v7849 = vrot.slane %v7823, %v7848
    %v7850 = vlaneseq
    %v7851 = vshrl.u32 %v7850, 7
    %v7852 = vsub.s32 1, %v7851
    %v7853 = vrot.slane %v7823, %v7852
    %v7854 = vlaneseq
    %v7855 = vshrl.u32 %v7854, 7
    %v7856 = vsub.s32 2, %v7855
    %v7857 = vrot.slane %v7823, %v7856
    %v7858 = vlaneseq
    %v7859 = vshrl.u32 %v7858, 7
    %v7860 = vsub.s32 3, %v7859
    %v7861 = vrot.slane %v7823, %v7860
    %v7862 = vlaneseq
    %v7863 = vshrl.u32 %v7862, 7
    %v7864 = vsub.s32 4, %v7863
    %v7865 = vrot.slane %v7823, %v7864
    %v7876 = vmul.f32 %v7702, %v7829
    %v7877 = vmul.f32 %v7703, %v7833
    %v7878 = vmul.f32 %v7704, %v7837
    %v7879 = vmul.f32 %v7705, %v7841
    %v7880 = vmul.f32 %v7706, %v7845
    %v7881 = vmul.f32 %v7707, %v7849
    %v7882 = vmul.f32 %v7708, %v7853
    %v7883 = vmul.f32 %v7709, %v7857
    %v7884 = vmul.f32 %v7710, %v7861
    %v7885 = vmul.f32 %v7711, %v7865
    %v7887 = vlaneseq
    %v7888 = vshrl.u32 %v7887, 7
    %v7889 = vsub.s32 0, %v7888
    %v7890 = vrot.slane %v7549, %v7889
    %v7891 = vcombine.high %v7890, %v7890
    %v7893 = vunpack.c.l.s4 1966171168
    %v7894 = vunpack.c.0.s8 %v7893
    %v7895 = vlaneseq
    %v7896 = vshrl.u32 %v7895, 7
    %v7897 = vsub.s32 %v7894, %v7896
    %v7898 = vrot.slane %v7890, %v7897
    %v7900 = vunpack.c.l.s4 1966171168
    %v7901 = vunpack.c.0.s8 %v7900
    %v7902 = vlaneseq
    %v7903 = vshrl.u32 %v7902, 7
    %v7904 = vsub.s32 %v7901, %v7903
    %v7905 = vrot.slane %v7891, %v7904
    %v7906 = vcombine.high %v7898, %v7898
    %v7908 = vunpack.c.l.s4 1966171168
    %v7909 = vunpack.c.0.s8 %v7908
    %v7910 = vlaneseq
    %v7911 = vshrl.u32 %v7910, 7
    %v7912 = vsub.s32 %v7909, %v7911
    %v7913 = vrot.slane %v7898, %v7912
    %v7915 = vunpack.c.l.s4 1966171168
    %v7916 = vunpack.c.0.s8 %v7915
    %v7917 = vlaneseq
    %v7918 = vshrl.u32 %v7917, 7
    %v7919 = vsub.s32 %v7916, %v7918
    %v7920 = vrot.slane %v7905, %v7919
    %v7922 = vunpack.c.l.s4 1966171168
    %v7923 = vunpack.c.0.s8 %v7922
    %v7924 = vlaneseq
    %v7925 = vshrl.u32 %v7924, 7
    %v7926 = vsub.s32 %v7923, %v7925
    %v7927 = vrot.slane %v7906, %v7926
    %v7928 = vcombine.high %v7913, %v7913
    %v7929 = vcombine.high %v7927, %v7927
    %v7935 = vmul.f32 %v7876, %v7913
    %v7936 = vmul.f32 %v7877, %v7927
    %v7937 = vmul.f32 %v7878, %v7928
    %v7938 = vmul.f32 %v7879, %v7929
    %v7939 = vmul.f32 %v7880, %v7920
    %v7940 = vmul.f32 %v7881, %v7913
    %v7941 = vmul.f32 %v7882, %v7927
    %v7942 = vmul.f32 %v7883, %v7928
    %v7943 = vmul.f32 %v7884, %v7929
    %v7944 = vmul.f32 %v7885, %v7920
    %v7946 = vlaneseq
    %v7947 = vshrl.u32 %v7946, 7
    %v7948 = vsub.s32 0, %v7947
    %v7949 = vrot.slane %v7551, %v7948
    %v7950 = vcombine.high %v7949, %v7949
    %v7952 = vunpack.c.l.s4 1966171168
    %v7953 = vunpack.c.0.s8 %v7952
    %v7954 = vlaneseq
    %v7955 = vshrl.u32 %v7954, 7
    %v7956 = vsub.s32 %v7953, %v7955
    %v7957 = vrot.slane %v7949, %v7956
    %v7959 = vunpack.c.l.s4 1966171168
    %v7960 = vunpack.c.0.s8 %v7959
    %v7961 = vlaneseq
    %v7962 = vshrl.u32 %v7961, 7
    %v7963 = vsub.s32 %v7960, %v7962
    %v7964 = vrot.slane %v7950, %v7963
    %v7965 = vcombine.high %v7957, %v7957
    %v7967 = vunpack.c.l.s4 1966171168
    %v7968 = vunpack.c.0.s8 %v7967
    %v7969 = vlaneseq
    %v7970 = vshrl.u32 %v7969, 7
    %v7971 = vsub.s32 %v7968, %v7970
    %v7972 = vrot.slane %v7957, %v7971
    %v7974 = vunpack.c.l.s4 1966171168
    %v7975 = vunpack.c.0.s8 %v7974
    %v7976 = vlaneseq
    %v7977 = vshrl.u32 %v7976, 7
    %v7978 = vsub.s32 %v7975, %v7977
    %v7979 = vrot.slane %v7964, %v7978
    %v7981 = vunpack.c.l.s4 1966171168
    %v7982 = vunpack.c.0.s8 %v7981
    %v7983 = vlaneseq
    %v7984 = vshrl.u32 %v7983, 7
    %v7985 = vsub.s32 %v7982, %v7984
    %v7986 = vrot.slane %v7965, %v7985
    %v7987 = vcombine.high %v7972, %v7972
    %v7988 = vcombine.high %v7986, %v7986
    %v7994 = vadd.f32 %v7935, %v7972
    %v7995 = vadd.f32 %v7936, %v7986
    %v7996 = vadd.f32 %v7937, %v7987
    %v7997 = vadd.f32 %v7938, %v7988
    %v7998 = vadd.f32 %v7939, %v7979
    %v7999 = vadd.f32 %v7940, %v7972
    %v8000 = vadd.f32 %v7941, %v7986
    %v8001 = vadd.f32 %v7942, %v7987
    %v8002 = vadd.f32 %v7943, %v7988
    %v8003 = vadd.f32 %v7944, %v7979
    %v8014 = vcombine.low %v7994, %v7995
    %v8015 = vcombine.low %v7996, %v7997
    %v8017 = vunpack.c.l.s4 1966171168
    %v8018 = vunpack.c.0.s8 %v8017
    %v8019 = vlaneseq
    %v8020 = vshrl.u32 %v8019, 7
    %v8021 = vsub.s32 %v8018, %v8020
    %v8022 = vrot.slane %v8014, %v8021
    %v8024 = vunpack.c.l.s4 1966171168
    %v8025 = vunpack.c.0.s8 %v8024
    %v8026 = vlaneseq
    %v8027 = vshrl.u32 %v8026, 7
    %v8028 = vsub.s32 %v8025, %v8027
    %v8029 = vrot.slane %v8015, %v8028
    %v8031 = vunpack.c.l.s4 1966171168
    %v8032 = vunpack.c.0.s8 %v8031
    %v8033 = vlaneseq
    %v8034 = vshrl.u32 %v8033, 7
    %v8035 = vsub.s32 %v8032, %v8034
    %v8036 = vrot.slane %v7998, %v8035
    %v8037 = vcombine.low %v8022, %v8029
    %v8039 = vunpack.c.l.s4 1966171168
    %v8040 = vunpack.c.0.s8 %v8039
    %v8041 = vlaneseq
    %v8042 = vshrl.u32 %v8041, 7
    %v8043 = vsub.s32 %v8040, %v8042
    %v8044 = vrot.slane %v8037, %v8043
    %v8046 = vunpack.c.l.s4 1966171168
    %v8047 = vunpack.c.0.s8 %v8046
    %v8048 = vlaneseq
    %v8049 = vshrl.u32 %v8048, 7
    %v8050 = vsub.s32 %v8047, %v8049
    %v8051 = vrot.slane %v8036, %v8050
    %v8052 = vcombine.low %v8044, %v8051
    %v8053 = vcombine.low %v7999, %v8000
    %v8054 = vcombine.low %v8001, %v8002
    %v8056 = vunpack.c.l.s4 1966171168
    %v8057 = vunpack.c.0.s8 %v8056
    %v8058 = vlaneseq
    %v8059 = vshrl.u32 %v8058, 7
    %v8060 = vsub.s32 %v8057, %v8059
    %v8061 = vrot.slane %v8053, %v8060
    %v8063 = vunpack.c.l.s4 1966171168
    %v8064 = vunpack.c.0.s8 %v8063
    %v8065 = vlaneseq
    %v8066 = vshrl.u32 %v8065, 7
    %v8067 = vsub.s32 %v8064, %v8066
    %v8068 = vrot.slane %v8054, %v8067
    %v8070 = vunpack.c.l.s4 1966171168
    %v8071 = vunpack.c.0.s8 %v8070
    %v8072 = vlaneseq
    %v8073 = vshrl.u32 %v8072, 7
    %v8074 = vsub.s32 %v8071, %v8073
    %v8075 = vrot.slane %v8003, %v8074
    %v8076 = vcombine.low %v8061, %v8068
    %v8078 = vunpack.c.l.s4 1966171168
    %v8079 = vunpack.c.0.s8 %v8078
    %v8080 = vlaneseq
    %v8081 = vshrl.u32 %v8080, 7
    %v8082 = vsub.s32 %v8079, %v8081
    %v8083 = vrot.slane %v8076, %v8082
    %v8085 = vunpack.c.l.s4 1966171168
    %v8086 = vunpack.c.0.s8 %v8085
    %v8087 = vlaneseq
    %v8088 = vshrl.u32 %v8087, 7
    %v8089 = vsub.s32 %v8086, %v8088
    %v8090 = vrot.slane %v8075, %v8089
    %v8091 = vcombine.low %v8083, %v8090
    %v8094 = vpack.c.bf16 %v8052, %v8052
    %v8095 = vpack.c.bf16 %v8091, %v8091
    %s8096 = scalar_lea.vmem %s13, 16
    %v8097 = vld [vmem:[%s8096] sm:$0xf]
    %v8098 = vld [vmem:[%s8096 + $0x4] sm:$0xf]
    %v8099 = vld [vmem:[%s8096 + $0x8] sm:$0xf]
    %v8100 = vld [vmem:[%s8096 + $0xc] sm:$0xf]
    %s8101 = scalar_lea.vmem %s14, 1
    %v8102 = vld [vmem:[%s8101] sm:$0x1]
    %v8104 = vlaneseq
    %v8105 = vshrl.u32 %v8104, 7
    %v8106 = vsub.s32 0, %v8105
    %v8107 = vrot.slane %v8102, %v8106
    %v8111 = vunpack.c.l.s4 1966171168
    %v8112 = vunpack.c.0.s8 %v8111
    %v8113 = vlaneseq
    %v8114 = vshrl.u32 %v8113, 7
    %v8115 = vsub.s32 %v8112, %v8114
    %v8116 = vrot.slane %v8094, %v8115
    %v8117 = vcombine.high %v8116, %v8116
    %v8119 = vunpack.c.l.s4 1966171168
    %v8120 = vunpack.c.0.s8 %v8119
    %v8121 = vlaneseq
    %v8122 = vshrl.u32 %v8121, 7
    %v8123 = vsub.s32 %v8120, %v8122
    %v8124 = vrot.slane %v8116, %v8123
    %v8126 = vunpack.c.l.s4 1966171168
    %v8127 = vunpack.c.0.s8 %v8126
    %v8128 = vlaneseq
    %v8129 = vshrl.u32 %v8128, 7
    %v8130 = vsub.s32 %v8127, %v8129
    %v8131 = vrot.slane %v8117, %v8130
    %v8132 = vcombine.high %v8124, %v8124
    %v8134 = vunpack.c.l.s4 1966171168
    %v8135 = vunpack.c.0.s8 %v8134
    %v8136 = vlaneseq
    %v8137 = vshrl.u32 %v8136, 7
    %v8138 = vsub.s32 %v8135, %v8137
    %v8139 = vrot.slane %v8095, %v8138
    %v8140 = vcombine.high %v8139, %v8139
    %v8142 = vunpack.c.l.s4 1966171168
    %v8143 = vunpack.c.0.s8 %v8142
    %v8144 = vlaneseq
    %v8145 = vshrl.u32 %v8144, 7
    %v8146 = vsub.s32 %v8143, %v8145
    %v8147 = vrot.slane %v8139, %v8146
    %v8149 = vunpack.c.l.s4 1966171168
    %v8150 = vunpack.c.0.s8 %v8149
    %v8151 = vlaneseq
    %v8152 = vshrl.u32 %v8151, 7
    %v8153 = vsub.s32 %v8150, %v8152
    %v8154 = vrot.slane %v8140, %v8153
    %v8155 = vcombine.high %v8147, %v8147
    %v8156 = vunpack.i.l.s16 %v8124
    %v8157 = vunpack.i.h.s16 %v8124
    %v8158 = vunpack.i.l.s16 %v8131
    %v8159 = vunpack.i.h.s16 %v8131
    %v8160 = vunpack.i.l.s16 %v8132
    %v8161 = vunpack.i.l.s16 %v8147
    %v8162 = vunpack.i.h.s16 %v8147
    %v8163 = vunpack.i.l.s16 %v8154
    %v8164 = vunpack.i.h.s16 %v8154
    %v8165 = vunpack.i.l.s16 %v8155
    %v8166 = vcombine.high %v8107, %v8107
    %v8168 = vunpack.c.l.s4 1966171168
    %v8169 = vunpack.c.0.s8 %v8168
    %v8170 = vlaneseq
    %v8171 = vshrl.u32 %v8170, 7
    %v8172 = vsub.s32 %v8169, %v8171
    %v8173 = vrot.slane %v8107, %v8172
    %v8175 = vunpack.c.l.s4 1966171168
    %v8176 = vunpack.c.0.s8 %v8175
    %v8177 = vlaneseq
    %v8178 = vshrl.u32 %v8177, 7
    %v8179 = vsub.s32 %v8176, %v8178
    %v8180 = vrot.slane %v8166, %v8179
    %v8181 = vcombine.high %v8173, %v8173
    %v8183 = vunpack.c.l.s4 1966171168
    %v8184 = vunpack.c.0.s8 %v8183
    %v8185 = vlaneseq
    %v8186 = vshrl.u32 %v8185, 7
    %v8187 = vsub.s32 %v8184, %v8186
    %v8188 = vrot.slane %v8173, %v8187
    %v8190 = vunpack.c.l.s4 1966171168
    %v8191 = vunpack.c.0.s8 %v8190
    %v8192 = vlaneseq
    %v8193 = vshrl.u32 %v8192, 7
    %v8194 = vsub.s32 %v8191, %v8193
    %v8195 = vrot.slane %v8180, %v8194
    %v8197 = vunpack.c.l.s4 1966171168
    %v8198 = vunpack.c.0.s8 %v8197
    %v8199 = vlaneseq
    %v8200 = vshrl.u32 %v8199, 7
    %v8201 = vsub.s32 %v8198, %v8200
    %v8202 = vrot.slane %v8181, %v8201
    %v8203 = vcombine.high %v8188, %v8188
    %v8204 = vcombine.high %v8202, %v8202
    %v8205 = vpack.i.b16 %v8157, %v8156
    %v8206 = vpack.i.b16 %v8159, %v8158
    %v8207 = vpack.i.b16 %v8161, %v8160
    %v8208 = vpack.i.b16 %v8163, %v8162
    %v8209 = vpack.i.b16 %v8165, %v8164
    %v8210 = vcombine.low %v8205, %v8206
    %v8211 = vcombine.low %v8207, %v8208
    %v8213 = vunpack.c.l.s4 1966171168
    %v8214 = vunpack.c.0.s8 %v8213
    %v8215 = vlaneseq
    %v8216 = vshrl.u32 %v8215, 7
    %v8217 = vsub.s32 %v8214, %v8216
    %v8218 = vrot.slane %v8210, %v8217
    %v8220 = vunpack.c.l.s4 1966171168
    %v8221 = vunpack.c.0.s8 %v8220
    %v8222 = vlaneseq
    %v8223 = vshrl.u32 %v8222, 7
    %v8224 = vsub.s32 %v8221, %v8223
    %v8225 = vrot.slane %v8211, %v8224
    %v8227 = vunpack.c.l.s4 1966171168
    %v8228 = vunpack.c.0.s8 %v8227
    %v8229 = vlaneseq
    %v8230 = vshrl.u32 %v8229, 7
    %v8231 = vsub.s32 %v8228, %v8230
    %v8232 = vrot.slane %v8209, %v8231
    %v8233 = vcombine.low %v8218, %v8225
    %v8235 = vunpack.c.l.s4 1966171168
    %v8236 = vunpack.c.0.s8 %v8235
    %v8237 = vlaneseq
    %v8238 = vshrl.u32 %v8237, 7
    %v8239 = vsub.s32 %v8236, %v8238
    %v8240 = vrot.slane %v8233, %v8239
    %v8242 = vunpack.c.l.s4 1966171168
    %v8243 = vunpack.c.0.s8 %v8242
    %v8244 = vlaneseq
    %v8245 = vshrl.u32 %v8244, 7
    %v8246 = vsub.s32 %v8243, %v8245
    %v8247 = vrot.slane %v8232, %v8246
    %v8248 = vcombine.low %v8240, %v8247
    %v8253 = vunpack.c.l.b16 %v8097
    %v8254 = vunpack.c.l.b16 %v8098
    %v8255 = vunpack.c.l.b16 %v8099
    %v8256 = vunpack.c.l.b16 %v8100
    %v8257 = vpack.c.b16 %v8254, %v8253
    %v8258 = vpack.c.b16 %v8256, %v8255
    %v8261 = vcombine.low %v8188, %v8202
    %v8262 = vcombine.low %v8203, %v8204
    %v8263 = vcombine.low %v8195, %v8188
    %v8264 = vcombine.low %v8202, %v8203
    %v8266 = vunpack.c.l.s4 1966171168
    %v8267 = vunpack.c.0.s8 %v8266
    %v8268 = vlaneseq
    %v8269 = vshrl.u32 %v8268, 7
    %v8270 = vsub.s32 %v8267, %v8269
    %v8271 = vrot.slane %v8261, %v8270
    %v8273 = vunpack.c.l.s4 1966171168
    %v8274 = vunpack.c.0.s8 %v8273
    %v8275 = vlaneseq
    %v8276 = vshrl.u32 %v8275, 7
    %v8277 = vsub.s32 %v8274, %v8276
    %v8278 = vrot.slane %v8262, %v8277
    %v8280 = vunpack.c.l.s4 1966171168
    %v8281 = vunpack.c.0.s8 %v8280
    %v8282 = vlaneseq
    %v8283 = vshrl.u32 %v8282, 7
    %v8284 = vsub.s32 %v8281, %v8283
    %v8285 = vrot.slane %v8263, %v8284
    %v8287 = vunpack.c.l.s4 1966171168
    %v8288 = vunpack.c.0.s8 %v8287
    %v8289 = vlaneseq
    %v8290 = vshrl.u32 %v8289, 7
    %v8291 = vsub.s32 %v8288, %v8290
    %v8292 = vrot.slane %v8264, %v8291
    %v8293 = vcombine.low %v8271, %v8278
    %v8294 = vcombine.low %v8285, %v8292
    %v8296 = vunpack.c.l.s4 1966171168
    %v8297 = vunpack.c.0.s8 %v8296
    %v8298 = vlaneseq
    %v8299 = vshrl.u32 %v8298, 7
    %v8300 = vsub.s32 %v8297, %v8299
    %v8301 = vrot.slane %v8293, %v8300
    %v8303 = vunpack.c.l.s4 1966171168
    %v8304 = vunpack.c.0.s8 %v8303
    %v8305 = vlaneseq
    %v8306 = vshrl.u32 %v8305, 7
    %v8307 = vsub.s32 %v8304, %v8306
    %v8308 = vrot.slane %v8294, %v8307
    %v8309 = vcombine.low %v8301, %v8308
    %v8310 = vcombine.low %v8204, %v8195
    %v8312 = vunpack.c.l.s4 1966171168
    %v8313 = vunpack.c.0.s8 %v8312
    %v8314 = vlaneseq
    %v8315 = vshrl.u32 %v8314, 7
    %v8316 = vsub.s32 %v8313, %v8315
    %v8317 = vrot.slane %v8310, %v8316
    %v8319 = vunpack.c.l.s4 1966171168
    %v8320 = vunpack.c.0.s8 %v8319
    %v8321 = vlaneseq
    %v8322 = vshrl.u32 %v8321, 7
    %v8323 = vsub.s32 %v8320, %v8322
    %v8324 = vrot.slane %v8317, %v8323
    %v8328 = vsel %vm1751, %v8248, 0
    %8330 = vmatprep.subr.bf16.mxu0 0
    %8331 = vmatpush1.bf16.msra.mxu0 0
    %8332 = vmatprep.subr.bf16.mxu0 0
    %8333 = vmatpush1.bf16.msra.mxu0 0
    %8334 = vmatprep.subr.bf16.mxu0 0
    %8335 = vmatpush1.bf16.msra.mxu0 0
    %8336 = vmatprep.subr.bf16.mxu0 0
    %8337 = vmatpush1.bf16.msra.mxu0 0
    %8338 = vmatprep.subr.bf16.mxu0 0
    %8339 = vmatpush1.bf16.msra.mxu0 0
    %8340 = vmatprep.subr.bf16.mxu0 0
    %8341 = vmatpush1.bf16.msra.mxu0 0
    %8342 = vmatprep.subr.bf16.mxu0 0
    %8343 = vmatpush1.bf16.msra.mxu0 %v8258
    %8344 = vmatprep.subr.bf16.mxu0 0
    %8345 = vmatpush1.bf16.msra.mxu0 %v8257
    %8346 = vmatprep.subr.bf16.mxu0 0
    %8347 = vmatpush2.bf16.msra.mxu0 0
    %8348 = vmatprep.subr.bf16.mxu0 0
    %8349 = vmatpush2.bf16.msra.mxu0 0
    %8350 = vmatprep.subr.bf16.mxu0 0
    %8351 = vmatpush2.bf16.msra.mxu0 0
    %8352 = vmatprep.subr.bf16.mxu0 0
    %8353 = vmatpush2.bf16.msra.mxu0 0
    %8354 = vmatprep.subr.bf16.mxu0 0
    %8355 = vmatpush2.bf16.msra.mxu0 0
    %8356 = vmatprep.subr.bf16.mxu0 0
    %8357 = vmatpush2.bf16.msra.mxu0 0
    %8358 = vmatprep.subr.bf16.mxu0 0
    %8359 = vmatpush2.bf16.msra.mxu0 0
    %8360 = vmatprep.subr.bf16.mxu0 0
    %8361 = vmatpush2.bf16.msra.mxu0 0
    %8362 = vmatprep.mubr.bf16.mxu0 0
    %8363 = vmatmul.mubr.bf16.gmra.mxu0 %v8328
    %v8364 = vpop.f32.mrf.mxu0
    %v8365 = vadd.f32 %v8309, %v8364
    %v8366 = vpop.f32.mrf.mxu0
    %v8367 = vpop.f32.mrf.mxu0
    %v8368 = vadd.f32 %v8324, %v8367
    %v8369 = vpop.f32.mrf.mxu0
    %8370 = vdwg.mxu0
    %v8373 = vcombine.high %v8365, %v8365
    %v8375 = vunpack.c.l.s4 1966171168
    %v8376 = vunpack.c.0.s8 %v8375
    %v8377 = vlaneseq
    %v8378 = vshrl.u32 %v8377, 7
    %v8379 = vsub.s32 %v8376, %v8378
    %v8380 = vrot.slane %v8365, %v8379
    %v8382 = vunpack.c.l.s4 1966171168
    %v8383 = vunpack.c.0.s8 %v8382
    %v8384 = vlaneseq
    %v8385 = vshrl.u32 %v8384, 7
    %v8386 = vsub.s32 %v8383, %v8385
    %v8387 = vrot.slane %v8373, %v8386
    %v8388 = vcombine.high %v8380, %v8380
    %v8389 = vcombine.high %v8387, %v8387
    %v8391 = vunpack.c.l.s4 1966171168
    %v8392 = vunpack.c.0.s8 %v8391
    %v8393 = vlaneseq
    %v8394 = vshrl.u32 %v8393, 7
    %v8395 = vsub.s32 %v8392, %v8394
    %v8396 = vrot.slane %v8380, %v8395
    %v8398 = vunpack.c.l.s4 1966171168
    %v8399 = vunpack.c.0.s8 %v8398
    %v8400 = vlaneseq
    %v8401 = vshrl.u32 %v8400, 7
    %v8402 = vsub.s32 %v8399, %v8401
    %v8403 = vrot.slane %v8387, %v8402
    %v8405 = vunpack.c.l.s4 1966171168
    %v8406 = vunpack.c.0.s8 %v8405
    %v8407 = vlaneseq
    %v8408 = vshrl.u32 %v8407, 7
    %v8409 = vsub.s32 %v8406, %v8408
    %v8410 = vrot.slane %v8388, %v8409
    %v8412 = vunpack.c.l.s4 1966171168
    %v8413 = vunpack.c.0.s8 %v8412
    %v8414 = vlaneseq
    %v8415 = vshrl.u32 %v8414, 7
    %v8416 = vsub.s32 %v8413, %v8415
    %v8417 = vrot.slane %v8389, %v8416
    %v8418 = vcombine.high %v8396, %v8396
    %v8419 = vcombine.high %v8403, %v8403
    %v8420 = vcombine.high %v8410, %v8410
    %v8421 = vcombine.high %v8417, %v8417
    %v8423 = vunpack.c.l.s4 1966171168
    %v8424 = vunpack.c.0.s8 %v8423
    %v8425 = vlaneseq
    %v8426 = vshrl.u32 %v8425, 7
    %v8427 = vsub.s32 %v8424, %v8426
    %v8428 = vrot.slane %v8368, %v8427
    %v8429 = vcombine.high %v8428, %v8428
    %v8431 = vunpack.c.l.s4 1966171168
    %v8432 = vunpack.c.0.s8 %v8431
    %v8433 = vlaneseq
    %v8434 = vshrl.u32 %v8433, 7
    %v8435 = vsub.s32 %v8432, %v8434
    %v8436 = vrot.slane %v8428, %v8435
    %v8438 = vunpack.c.l.s4 1966171168
    %v8439 = vunpack.c.0.s8 %v8438
    %v8440 = vlaneseq
    %v8441 = vshrl.u32 %v8440, 7
    %v8442 = vsub.s32 %v8439, %v8441
    %v8443 = vrot.slane %v8429, %v8442
    %v8454 = vmul.f32 %v8396, 1.702
    %v8455 = vmul.f32 %v8410, 1.702
    %v8456 = vmul.f32 %v8418, 1.702
    %v8457 = vmul.f32 %v8420, 1.702
    %v8458 = vmul.f32 %v8403, 1.702
    %v8459 = vmul.f32 %v8417, 1.702
    %v8460 = vmul.f32 %v8419, 1.702
    %v8461 = vmul.f32 %v8421, 1.702
    %v8462 = vmul.f32 %v8436, 1.702
    %v8463 = vmul.f32 %v8443, 1.702
    %v8464 = vxor.u32 %v8454, 2147483648
    %v8465 = vxor.u32 %v8455, 2147483648
    %v8466 = vxor.u32 %v8456, 2147483648
    %v8467 = vxor.u32 %v8457, 2147483648
    %v8468 = vxor.u32 %v8458, 2147483648
    %v8469 = vxor.u32 %v8459, 2147483648
    %v8470 = vxor.u32 %v8460, 2147483648
    %v8471 = vxor.u32 %v8461, 2147483648
    %v8472 = vxor.u32 %v8462, 2147483648
    %v8473 = vxor.u32 %v8463, 2147483648
    %v8474 = vmul.f32 %v8464, 1.442695
    %v8475 = vpow.pop %v8474
    %v8476 = vmul.f32 %v8465, 1.442695
    %v8477 = vpow.pop %v8476
    %v8478 = vmul.f32 %v8466, 1.442695
    %v8479 = vpow.pop %v8478
    %v8480 = vmul.f32 %v8467, 1.442695
    %v8481 = vpow.pop %v8480
    %v8482 = vmul.f32 %v8468, 1.442695
    %v8483 = vpow.pop %v8482
    %v8484 = vmul.f32 %v8469, 1.442695
    %v8485 = vpow.pop %v8484
    %v8486 = vmul.f32 %v8470, 1.442695
    %v8487 = vpow.pop %v8486
    %v8488 = vmul.f32 %v8471, 1.442695
    %v8489 = vpow.pop %v8488
    %v8490 = vmul.f32 %v8472, 1.442695
    %v8491 = vpow.pop %v8490
    %v8492 = vmul.f32 %v8473, 1.442695
    %v8493 = vpow.pop %v8492
    %v8494 = vadd.f32 %v8475, 1.0
    %v8495 = vadd.f32 %v8477, 1.0
    %v8496 = vadd.f32 %v8479, 1.0
    %v8497 = vadd.f32 %v8481, 1.0
    %v8498 = vadd.f32 %v8483, 1.0
    %v8499 = vadd.f32 %v8485, 1.0
    %v8500 = vadd.f32 %v8487, 1.0
    %v8501 = vadd.f32 %v8489, 1.0
    %v8502 = vadd.f32 %v8491, 1.0
    %v8503 = vadd.f32 %v8493, 1.0
    %v8504 = vrcp.pop %v8494
    %v8505 = vmul.f32 1.0, %v8504
    %v8506 = vrcp.pop %v8495
    %v8507 = vmul.f32 1.0, %v8506
    %v8508 = vrcp.pop %v8496
    %v8509 = vmul.f32 1.0, %v8508
    %v8510 = vrcp.pop %v8497
    %v8511 = vmul.f32 1.0, %v8510
    %v8512 = vrcp.pop %v8498
    %v8513 = vmul.f32 1.0, %v8512
    %v8514 = vrcp.pop %v8499
    %v8515 = vmul.f32 1.0, %v8514
    %v8516 = vrcp.pop %v8500
    %v8517 = vmul.f32 1.0, %v8516
    %v8518 = vrcp.pop %v8501
    %v8519 = vmul.f32 1.0, %v8518
    %v8520 = vrcp.pop %v8502
    %v8521 = vmul.f32 1.0, %v8520
    %v8522 = vrcp.pop %v8503
    %v8523 = vmul.f32 1.0, %v8522
    %v8524 = vmul.f32 %v8396, %v8505
    %v8525 = vmul.f32 %v8410, %v8507
    %v8526 = vmul.f32 %v8418, %v8509
    %v8527 = vmul.f32 %v8420, %v8511
    %v8528 = vmul.f32 %v8403, %v8513
    %v8529 = vmul.f32 %v8417, %v8515
    %v8530 = vmul.f32 %v8419, %v8517
    %v8531 = vmul.f32 %v8421, %v8519
    %v8532 = vmul.f32 %v8436, %v8521
    %v8533 = vmul.f32 %v8443, %v8523
    %v8544 = vcombine.low %v8524, %v8525
    %v8545 = vcombine.low %v8526, %v8527
    %v8547 = vunpack.c.l.s4 1966171168
    %v8548 = vunpack.c.0.s8 %v8547
    %v8549 = vlaneseq
    %v8550 = vshrl.u32 %v8549, 7
    %v8551 = vsub.s32 %v8548, %v8550
    %v8552 = vrot.slane %v8544, %v8551
    %v8554 = vunpack.c.l.s4 1966171168
    %v8555 = vunpack.c.0.s8 %v8554
    %v8556 = vlaneseq
    %v8557 = vshrl.u32 %v8556, 7
    %v8558 = vsub.s32 %v8555, %v8557
    %v8559 = vrot.slane %v8545, %v8558
    %v8561 = vunpack.c.l.s4 1966171168
    %v8562 = vunpack.c.0.s8 %v8561
    %v8563 = vlaneseq
    %v8564 = vshrl.u32 %v8563, 7
    %v8565 = vsub.s32 %v8562, %v8564
    %v8566 = vrot.slane %v8528, %v8565
    %v8567 = vcombine.low %v8552, %v8559
    %v8569 = vunpack.c.l.s4 1966171168
    %v8570 = vunpack.c.0.s8 %v8569
    %v8571 = vlaneseq
    %v8572 = vshrl.u32 %v8571, 7
    %v8573 = vsub.s32 %v8570, %v8572
    %v8574 = vrot.slane %v8567, %v8573
    %v8576 = vunpack.c.l.s4 1966171168
    %v8577 = vunpack.c.0.s8 %v8576
    %v8578 = vlaneseq
    %v8579 = vshrl.u32 %v8578, 7
    %v8580 = vsub.s32 %v8577, %v8579
    %v8581 = vrot.slane %v8566, %v8580
    %v8582 = vcombine.low %v8574, %v8581
    %v8583 = vcombine.low %v8529, %v8530
    %v8584 = vcombine.low %v8531, %v8532
    %v8586 = vunpack.c.l.s4 1966171168
    %v8587 = vunpack.c.0.s8 %v8586
    %v8588 = vlaneseq
    %v8589 = vshrl.u32 %v8588, 7
    %v8590 = vsub.s32 %v8587, %v8589
    %v8591 = vrot.slane %v8583, %v8590
    %v8593 = vunpack.c.l.s4 1966171168
    %v8594 = vunpack.c.0.s8 %v8593
    %v8595 = vlaneseq
    %v8596 = vshrl.u32 %v8595, 7
    %v8597 = vsub.s32 %v8594, %v8596
    %v8598 = vrot.slane %v8584, %v8597
    %v8600 = vunpack.c.l.s4 1966171168
    %v8601 = vunpack.c.0.s8 %v8600
    %v8602 = vlaneseq
    %v8603 = vshrl.u32 %v8602, 7
    %v8604 = vsub.s32 %v8601, %v8603
    %v8605 = vrot.slane %v8533, %v8604
    %v8606 = vcombine.low %v8591, %v8598
    %v8608 = vunpack.c.l.s4 1966171168
    %v8609 = vunpack.c.0.s8 %v8608
    %v8610 = vlaneseq
    %v8611 = vshrl.u32 %v8610, 7
    %v8612 = vsub.s32 %v8609, %v8611
    %v8613 = vrot.slane %v8606, %v8612
    %v8615 = vunpack.c.l.s4 1966171168
    %v8616 = vunpack.c.0.s8 %v8615
    %v8617 = vlaneseq
    %v8618 = vshrl.u32 %v8617, 7
    %v8619 = vsub.s32 %v8616, %v8618
    %v8620 = vrot.slane %v8605, %v8619
    %v8621 = vcombine.low %v8613, %v8620
    %v8624 = vpack.c.bf16 %v8582, %v8582
    %v8625 = vpack.c.bf16 %v8621, %v8621
    %s8626 = scalar_lea.vmem %s15, 32
    %v8627 = vld [vmem:[%s8626] sm:$0xf]
    %v8628 = vld [vmem:[%s8626 + $0x4] sm:$0xf]
    %v8629 = vld [vmem:[%s8626 + $0x8] sm:$0xf]
    %v8630 = vld [vmem:[%s8626 + $0xc] sm:$0xf]
    %v8631 = vld [vmem:[%s8626 + $0x10] sm:$0xf]
    %v8632 = vld [vmem:[%s8626 + $0x14] sm:$0xf]
    %v8633 = vld [vmem:[%s8626 + $0x18] sm:$0xf]
    %v8634 = vld [vmem:[%s8626 + $0x1c] sm:$0xf]
    %s8635 = scalar_lea.vmem %s16, 1
    %v8636 = vld [vmem:[%s8635] sm:$0x1]
    %v8638 = vlaneseq
    %v8639 = vshrl.u32 %v8638, 7
    %v8640 = vsub.s32 0, %v8639
    %v8641 = vrot.slane %v8636, %v8640
    %v8645 = vunpack.c.l.s4 1966171168
    %v8646 = vunpack.c.0.s8 %v8645
    %v8647 = vlaneseq
    %v8648 = vshrl.u32 %v8647, 7
    %v8649 = vsub.s32 %v8646, %v8648
    %v8650 = vrot.slane %v8624, %v8649
    %v8651 = vcombine.high %v8650, %v8650
    %v8653 = vunpack.c.l.s4 1966171168
    %v8654 = vunpack.c.0.s8 %v8653
    %v8655 = vlaneseq
    %v8656 = vshrl.u32 %v8655, 7
    %v8657 = vsub.s32 %v8654, %v8656
    %v8658 = vrot.slane %v8650, %v8657
    %v8660 = vunpack.c.l.s4 1966171168
    %v8661 = vunpack.c.0.s8 %v8660
    %v8662 = vlaneseq
    %v8663 = vshrl.u32 %v8662, 7
    %v8664 = vsub.s32 %v8661, %v8663
    %v8665 = vrot.slane %v8651, %v8664
    %v8666 = vcombine.high %v8658, %v8658
    %v8668 = vunpack.c.l.s4 1966171168
    %v8669 = vunpack.c.0.s8 %v8668
    %v8670 = vlaneseq
    %v8671 = vshrl.u32 %v8670, 7
    %v8672 = vsub.s32 %v8669, %v8671
    %v8673 = vrot.slane %v8625, %v8672
    %v8674 = vcombine.high %v8673, %v8673
    %v8676 = vunpack.c.l.s4 1966171168
    %v8677 = vunpack.c.0.s8 %v8676
    %v8678 = vlaneseq
    %v8679 = vshrl.u32 %v8678, 7
    %v8680 = vsub.s32 %v8677, %v8679
    %v8681 = vrot.slane %v8673, %v8680
    %v8683 = vunpack.c.l.s4 1966171168
    %v8684 = vunpack.c.0.s8 %v8683
    %v8685 = vlaneseq
    %v8686 = vshrl.u32 %v8685, 7
    %v8687 = vsub.s32 %v8684, %v8686
    %v8688 = vrot.slane %v8674, %v8687
    %v8689 = vcombine.high %v8681, %v8681
    %v8690 = vunpack.i.l.s16 %v8658
    %v8691 = vunpack.i.h.s16 %v8658
    %v8692 = vunpack.i.l.s16 %v8665
    %v8693 = vunpack.i.h.s16 %v8665
    %v8694 = vunpack.i.l.s16 %v8666
    %v8695 = vunpack.i.l.s16 %v8681
    %v8696 = vunpack.i.h.s16 %v8681
    %v8697 = vunpack.i.l.s16 %v8688
    %v8698 = vunpack.i.h.s16 %v8688
    %v8699 = vunpack.i.l.s16 %v8689
    %v8700 = vcombine.high %v8641, %v8641
    %v8702 = vunpack.c.l.s4 1966171168
    %v8703 = vunpack.c.0.s8 %v8702
    %v8704 = vlaneseq
    %v8705 = vshrl.u32 %v8704, 7
    %v8706 = vsub.s32 %v8703, %v8705
    %v8707 = vrot.slane %v8641, %v8706
    %v8709 = vunpack.c.l.s4 1966171168
    %v8710 = vunpack.c.0.s8 %v8709
    %v8711 = vlaneseq
    %v8712 = vshrl.u32 %v8711, 7
    %v8713 = vsub.s32 %v8710, %v8712
    %v8714 = vrot.slane %v8700, %v8713
    %v8715 = vcombine.high %v8707, %v8707
    %v8717 = vunpack.c.l.s4 1966171168
    %v8718 = vunpack.c.0.s8 %v8717
    %v8719 = vlaneseq
    %v8720 = vshrl.u32 %v8719, 7
    %v8721 = vsub.s32 %v8718, %v8720
    %v8722 = vrot.slane %v8707, %v8721
    %v8724 = vunpack.c.l.s4 1966171168
    %v8725 = vunpack.c.0.s8 %v8724
    %v8726 = vlaneseq
    %v8727 = vshrl.u32 %v8726, 7
    %v8728 = vsub.s32 %v8725, %v8727
    %v8729 = vrot.slane %v8714, %v8728
    %v8731 = vunpack.c.l.s4 1966171168
    %v8732 = vunpack.c.0.s8 %v8731
    %v8733 = vlaneseq
    %v8734 = vshrl.u32 %v8733, 7
    %v8735 = vsub.s32 %v8732, %v8734
    %v8736 = vrot.slane %v8715, %v8735
    %v8737 = vcombine.high %v8722, %v8722
    %v8738 = vcombine.high %v8736, %v8736
    %v8739 = vpack.i.b16 %v8691, %v8690
    %v8740 = vpack.i.b16 %v8693, %v8692
    %v8741 = vpack.i.b16 %v8695, %v8694
    %v8742 = vpack.i.b16 %v8697, %v8696
    %v8743 = vpack.i.b16 %v8699, %v8698
    %v8744 = vcombine.low %v8739, %v8740
    %v8745 = vcombine.low %v8741, %v8742
    %v8747 = vunpack.c.l.s4 1966171168
    %v8748 = vunpack.c.0.s8 %v8747
    %v8749 = vlaneseq
    %v8750 = vshrl.u32 %v8749, 7
    %v8751 = vsub.s32 %v8748, %v8750
    %v8752 = vrot.slane %v8744, %v8751
    %v8754 = vunpack.c.l.s4 1966171168
    %v8755 = vunpack.c.0.s8 %v8754
    %v8756 = vlaneseq
    %v8757 = vshrl.u32 %v8756, 7
    %v8758 = vsub.s32 %v8755, %v8757
    %v8759 = vrot.slane %v8745, %v8758
    %v8761 = vunpack.c.l.s4 1966171168
    %v8762 = vunpack.c.0.s8 %v8761
    %v8763 = vlaneseq
    %v8764 = vshrl.u32 %v8763, 7
    %v8765 = vsub.s32 %v8762, %v8764
    %v8766 = vrot.slane %v8743, %v8765
    %v8767 = vcombine.low %v8752, %v8759
    %v8769 = vunpack.c.l.s4 1966171168
    %v8770 = vunpack.c.0.s8 %v8769
    %v8771 = vlaneseq
    %v8772 = vshrl.u32 %v8771, 7
    %v8773 = vsub.s32 %v8770, %v8772
    %v8774 = vrot.slane %v8767, %v8773
    %v8776 = vunpack.c.l.s4 1966171168
    %v8777 = vunpack.c.0.s8 %v8776
    %v8778 = vlaneseq
    %v8779 = vshrl.u32 %v8778, 7
    %v8780 = vsub.s32 %v8777, %v8779
    %v8781 = vrot.slane %v8766, %v8780
    %v8782 = vcombine.low %v8774, %v8781
    %v8791 = vunpack.c.l.b16 %v8627
    %v8792 = vunpack.c.l.b16 %v8628
    %v8793 = vunpack.c.l.b16 %v8629
    %v8794 = vunpack.c.l.b16 %v8630
    %v8795 = vunpack.c.l.b16 %v8631
    %v8796 = vunpack.c.l.b16 %v8632
    %v8797 = vunpack.c.l.b16 %v8633
    %v8798 = vunpack.c.l.b16 %v8634
    %v8799 = vpack.c.b16 %v8792, %v8791
    %v8800 = vpack.c.b16 %v8794, %v8793
    %v8801 = vpack.c.b16 %v8796, %v8795
    %v8802 = vpack.c.b16 %v8798, %v8797
    %v8807 = vcombine.low %v8722, %v8736
    %v8808 = vcombine.low %v8737, %v8738
    %v8809 = vcombine.low %v8729, %v8722
    %v8810 = vcombine.low %v8736, %v8737
    %v8812 = vunpack.c.l.s4 1966171168
    %v8813 = vunpack.c.0.s8 %v8812
    %v8814 = vlaneseq
    %v8815 = vshrl.u32 %v8814, 7
    %v8816 = vsub.s32 %v8813, %v8815
    %v8817 = vrot.slane %v8807, %v8816
    %v8819 = vunpack.c.l.s4 1966171168
    %v8820 = vunpack.c.0.s8 %v8819
    %v8821 = vlaneseq
    %v8822 = vshrl.u32 %v8821, 7
    %v8823 = vsub.s32 %v8820, %v8822
    %v8824 = vrot.slane %v8808, %v8823
    %v8826 = vunpack.c.l.s4 1966171168
    %v8827 = vunpack.c.0.s8 %v8826
    %v8828 = vlaneseq
    %v8829 = vshrl.u32 %v8828, 7
    %v8830 = vsub.s32 %v8827, %v8829
    %v8831 = vrot.slane %v8809, %v8830
    %v8833 = vunpack.c.l.s4 1966171168
    %v8834 = vunpack.c.0.s8 %v8833
    %v8835 = vlaneseq
    %v8836 = vshrl.u32 %v8835, 7
    %v8837 = vsub.s32 %v8834, %v8836
    %v8838 = vrot.slane %v8810, %v8837
    %v8839 = vcombine.low %v8817, %v8824
    %v8840 = vcombine.low %v8831, %v8838
    %v8842 = vunpack.c.l.s4 1966171168
    %v8843 = vunpack.c.0.s8 %v8842
    %v8844 = vlaneseq
    %v8845 = vshrl.u32 %v8844, 7
    %v8846 = vsub.s32 %v8843, %v8845
    %v8847 = vrot.slane %v8839, %v8846
    %v8849 = vunpack.c.l.s4 1966171168
    %v8850 = vunpack.c.0.s8 %v8849
    %v8851 = vlaneseq
    %v8852 = vshrl.u32 %v8851, 7
    %v8853 = vsub.s32 %v8850, %v8852
    %v8854 = vrot.slane %v8840, %v8853
    %v8855 = vcombine.low %v8847, %v8854
    %v8858 = vsel %vm402, %v8782, 0
    %8860 = vmatprep.subr.bf16.mxu0 0
    %8861 = vmatpush1.bf16.msra.mxu0 0
    %8862 = vmatprep.subr.bf16.mxu0 0
    %8863 = vmatpush1.bf16.msra.mxu0 0
    %8864 = vmatprep.subr.bf16.mxu0 0
    %8865 = vmatpush1.bf16.msra.mxu0 0
    %8866 = vmatprep.subr.bf16.mxu0 0
    %8867 = vmatpush1.bf16.msra.mxu0 0
    %8868 = vmatprep.subr.bf16.mxu0 0
    %8869 = vmatpush1.bf16.msra.mxu0 %v8802
    %8870 = vmatprep.subr.bf16.mxu0 0
    %8871 = vmatpush1.bf16.msra.mxu0 %v8801
    %8872 = vmatprep.subr.bf16.mxu0 0
    %8873 = vmatpush1.bf16.msra.mxu0 %v8800
    %8874 = vmatprep.subr.bf16.mxu0 0
    %8875 = vmatpush1.bf16.msra.mxu0 %v8799
    %8876 = vmatprep.subr.bf16.mxu0 0
    %8877 = vmatpush2.bf16.msra.mxu0 0
    %8878 = vmatprep.subr.bf16.mxu0 0
    %8879 = vmatpush2.bf16.msra.mxu0 0
    %8880 = vmatprep.subr.bf16.mxu0 0
    %8881 = vmatpush2.bf16.msra.mxu0 0
    %8882 = vmatprep.subr.bf16.mxu0 0
    %8883 = vmatpush2.bf16.msra.mxu0 0
    %8884 = vmatprep.subr.bf16.mxu0 0
    %8885 = vmatpush2.bf16.msra.mxu0 0
    %8886 = vmatprep.subr.bf16.mxu0 0
    %8887 = vmatpush2.bf16.msra.mxu0 0
    %8888 = vmatprep.subr.bf16.mxu0 0
    %8889 = vmatpush2.bf16.msra.mxu0 0
    %8890 = vmatprep.subr.bf16.mxu0 0
    %8891 = vmatpush2.bf16.msra.mxu0 0
    %8892 = vmatprep.mubr.bf16.mxu0 0
    %8893 = vmatmul.mubr.bf16.gmra.mxu0 %v8858
    %v8894 = vpop.f32.mrf.mxu0
    %v8895 = vadd.f32 %v8855, %v8894
    %v8896 = vpop.f32.mrf.mxu0
    %v8897 = vpop.f32.mrf.mxu0
    %v8898 = vpop.f32.mrf.mxu0
    %8899 = vdwg.mxu0
    %v8901 = vcombine.high %v8895, %v8895
    %v8903 = vunpack.c.l.s4 1966171168
    %v8904 = vunpack.c.0.s8 %v8903
    %v8905 = vlaneseq
    %v8906 = vshrl.u32 %v8905, 7
    %v8907 = vsub.s32 %v8904, %v8906
    %v8908 = vrot.slane %v8895, %v8907
    %v8910 = vunpack.c.l.s4 1966171168
    %v8911 = vunpack.c.0.s8 %v8910
    %v8912 = vlaneseq
    %v8913 = vshrl.u32 %v8912, 7
    %v8914 = vsub.s32 %v8911, %v8913
    %v8915 = vrot.slane %v8901, %v8914
    %v8916 = vcombine.high %v8915, %v8915
    %v8918 = vunpack.c.l.s4 1966171168
    %v8919 = vunpack.c.0.s8 %v8918
    %v8920 = vlaneseq
    %v8921 = vshrl.u32 %v8920, 7
    %v8922 = vsub.s32 %v8919, %v8921
    %v8923 = vrot.slane %v8908, %v8922
    %v8925 = vunpack.c.l.s4 1966171168
    %v8926 = vunpack.c.0.s8 %v8925
    %v8927 = vlaneseq
    %v8928 = vshrl.u32 %v8927, 7
    %v8929 = vsub.s32 %v8926, %v8928
    %v8930 = vrot.slane %v8916, %v8929
    %v8933 = vadd.f32 %v7538, %v8923
    %v8934 = vadd.f32 %v7543, %v8930
    %v8935 = vld [vmem:[%s17] sm:$0x1]
    %v8936 = vld [vmem:[%s18] sm:$0x1]
    %vm8937 = vcmask 253952
    %v8938 = vsel %vm8937, %v8933, 0.0
    %8939 = vadd.xlane.f32.xlu0 %v8938
    %v8940 = vpop.xlane.xlu0 %8939
    %v8941 = vsel %vm8937, %v8934, 0.0
    %8942 = vadd.xlane.f32.xlu0 %v8941
    %v8943 = vpop.xlane.xlu0 %8942
    %v8944 = vmul.f32 %v8940, %v619
    %v8945 = vmul.f32 %v8943, %v619
    %v8946 = vsub.f32 %v8933, %v8944
    %v8947 = vsub.f32 %v8934, %v8945
    %v8948 = vmul.f32 %v8946, %v8946
    %v8949 = vmul.f32 %v8947, %v8947
    %v8950 = vsel %vm8937, %v8948, 0.0
    %8951 = vadd.xlane.f32.xlu0 %v8950
    %v8952 = vpop.xlane.xlu0 %8951
    %v8953 = vsel %vm8937, %v8949, 0.0
    %8954 = vadd.xlane.f32.xlu0 %v8953
    %v8955 = vpop.xlane.xlu0 %8954
    %v8956 = vmul.f32 %v8952, %v619
    %v8957 = vmul.f32 %v8955, %v619
    %v8958 = vadd.f32 %v8956, 1e-05
    %v8959 = vadd.f32 %v8957, 1e-05
    %v8960 = vrsqrt.pop %v8958
    %v8961 = vrsqrt.pop %v8959
    %v8962 = vmul.f32 %v8946, %v8960
    %v8963 = vmul.f32 %v8947, %v8961
    %v8964 = vmul.f32 %v8962, %v8935
    %v8965 = vmul.f32 %v8963, %v8935
    %v8966 = vadd.f32 %v8964, %v8936
    %v8967 = vadd.f32 %v8965, %v8936
    %v8968 = vpack.c.bf16 %v8966, %v8966
    %v8969 = vpack.c.bf16 %v8967, %v8967
    %v8970 = vld [vmem:[%s19] sm:$0xf]
    %v8971 = vld [vmem:[%s19 + $0x4] sm:$0xf]
    %v8972 = vld [vmem:[%s19 + $0x8] sm:$0xf]
    %v8973 = vld [vmem:[%s19 + $0xc] sm:$0xf]
    %v8976 = vunpack.c.l.b16 %v8968
    %v8977 = vunpack.c.l.b16 %v8969
    %v8978 = vrot.slane %v8977, 7
    %vm8979 = vcmask 1041409
    %v8980 = vsel %vm8979, %v8978, %v8976
    %v8981 = vpack.c.b16 %v8980, %v8980
    %v8986 = vunpack.c.l.b16 %v8970
    %v8987 = vunpack.c.l.b16 %v8971
    %v8988 = vunpack.c.l.b16 %v8972
    %v8989 = vunpack.c.l.b16 %v8973
    %v8990 = vpack.c.b16 %v8987, %v8986
    %v8991 = vpack.c.b16 %v8989, %v8988
    %v8995 = vsel %vm1751, %v8981, 0
    %8997 = vmatprep.subr.bf16.mxu0 0
    %8998 = vmatpush1.bf16.msra.mxu0 0
    %8999 = vmatprep.subr.bf16.mxu0 0
    %9000 = vmatpush1.bf16.msra.mxu0 0
    %9001 = vmatprep.subr.bf16.mxu0 0
    %9002 = vmatpush1.bf16.msra.mxu0 0
    %9003 = vmatprep.subr.bf16.mxu0 0
    %9004 = vmatpush1.bf16.msra.mxu0 0
    %9005 = vmatprep.subr.bf16.mxu0 0
    %9006 = vmatpush1.bf16.msra.mxu0 0
    %9007 = vmatprep.subr.bf16.mxu0 0
    %9008 = vmatpush1.bf16.msra.mxu0 0
    %9009 = vmatprep.subr.bf16.mxu0 0
    %9010 = vmatpush1.bf16.msra.mxu0 %v8991
    %9011 = vmatprep.subr.bf16.mxu0 0
    %9012 = vmatpush1.bf16.msra.mxu0 %v8990
    %9013 = vmatprep.subr.bf16.mxu0 0
    %9014 = vmatpush2.bf16.msra.mxu0 0
    %9015 = vmatprep.subr.bf16.mxu0 0
    %9016 = vmatpush2.bf16.msra.mxu0 0
    %9017 = vmatprep.subr.bf16.mxu0 0
    %9018 = vmatpush2.bf16.msra.mxu0 0
    %9019 = vmatprep.subr.bf16.mxu0 0
    %9020 = vmatpush2.bf16.msra.mxu0 0
    %9021 = vmatprep.subr.bf16.mxu0 0
    %9022 = vmatpush2.bf16.msra.mxu0 0
    %9023 = vmatprep.subr.bf16.mxu0 0
    %9024 = vmatpush2.bf16.msra.mxu0 0
    %9025 = vmatprep.subr.bf16.mxu0 0
    %9026 = vmatpush2.bf16.msra.mxu0 0
    %9027 = vmatprep.subr.bf16.mxu0 0
    %9028 = vmatpush2.bf16.msra.mxu0 0
    %9029 = vmatprep.mubr.bf16.mxu0 0
    %9030 = vmatmul.mubr.bf16.gmra.mxu0 %v8995
    %v9031 = vpop.f32.mrf.mxu0
    %v9032 = vadd.f32 0.0, %v9031
    %v9033 = vpop.f32.mrf.mxu0
    %v9034 = vpop.f32.mrf.mxu0
    %v9035 = vpop.f32.mrf.mxu0
    %9036 = vdwg.mxu0
    %v9039 = vunpack.c.l.s4 1966171168
    %v9040 = vunpack.c.0.s8 %v9039
    %v9041 = vlaneseq
    %v9042 = vshrl.u32 %v9041, 7
    %v9043 = vsub.s32 %v9040, %v9042
    %v9044 = vrot.slane %v9032, %v9043
    %v9045 = vcombine.high %v9044, %v9044
    %v9047 = vunpack.c.l.s4 1966171168
    %v9048 = vunpack.c.0.s8 %v9047
    %v9049 = vlaneseq
    %v9050 = vshrl.u32 %v9049, 7
    %v9051 = vsub.s32 %v9048, %v9050
    %v9052 = vrot.slane %v9044, %v9051
    %v9054 = vunpack.c.l.s4 1966171168
    %v9055 = vunpack.c.0.s8 %v9054
    %v9056 = vlaneseq
    %v9057 = vshrl.u32 %v9056, 7
    %v9058 = vsub.s32 %v9055, %v9057
    %v9059 = vrot.slane %v9045, %v9058
    %v9062 = vmul.f32 %v9052, %v9052
    %v9063 = vmul.f32 %v9059, %v9059
    %vm9064 = vcmask 122880
    %v9065 = vsel %vm9064, %v9062, 0.0
    %9066 = vadd.xlane.f32.xlu0 %v9065
    %v9067 = vpop.xlane.xlu0 %9066
    %v9068 = vsel %vm9064, %v9063, 0.0
    %9069 = vadd.xlane.f32.xlu0 %v9068
    %v9070 = vpop.xlane.xlu0 %9069
    %v9071 = vmax.f32 %v9067, 1e-24
    %v9072 = vmax.f32 %v9070, 1e-24
    %v9073 = vrsqrt.pop %v9071
    %v9074 = vrsqrt.pop %v9072
    %v9075 = vmul.f32 %v9052, %v9073
    %v9076 = vmul.f32 %v9059, %v9074
    %9077 = vst.msk [vmem:[#allocation2] sm:$0x1] %vm9064, %v9075
    %9078 = vst.msk [vmem:[#allocation2 + $0x1] sm:$0x1] %vm9064, %v9076
    // Predicated region
    $region82: #{clip_image_encoder_forward.1} parent=1 // pred_check
      _
    $region83: #{clip_image_encoder_forward.1} parent=1 // pred_check_branch
      %9080 = sbr.rel (0) target = $region85
    $region84: #{clip_image_encoder_forward.1} parent=1 // pred_region
      %s9082 = ssub.s32 32, 32
      %9083 = vsyncadd [#allocation3], %s9082
      %s9084 = sshll.u32 [#allocation2], 4
      %s9085 = int_to_ptr.vmem [resolvable:$true] %s9084
      %9090 = dma.vmem_to_hbm [thread:$0]  %s9085, 32, %s20, [#allocation3], 16, 16, 1
    $region85: #{clip_image_encoder_forward.1} parent=1 // pred_fallthru
      _
    // Predicated region
    $region86: #{clip_image_encoder_forward.1} parent=1 // pred_check
      _
    $region87: #{clip_image_encoder_forward.1} parent=1 // pred_check_branch
      %9092 = sbr.rel (0) target = $region89
    $region88: #{clip_image_encoder_forward.1} parent=1 // pred_region
      %9093 = dma.done [#allocation3], 32
    $region89: #{clip_image_encoder_forward.1} parent=1 // pred_fallthru
      _
    %9094 = vsyncpa [#allocation3], 1

</llo_original>
